<compile_context>
chip_gen: v5e
topology: v5e:2x2
jax: 0.10.0
libtpu: 0.0.40
codegen_flags: <defaults>
</compile_context>

<pallas_src>
import functools

import jax
import jax.numpy as jnp
from jax.experimental import pallas as pl
from jax.experimental.pallas import tpu as pltpu

LANES = 128                       # packed output lanes (cout must divide 128)
_EPS = 1e-5                       # BatchNorm eps (PyTorch default)
_MAX_TM = 1024                    # packed-row tile cap (each packed row = 128//cout pixels)
_VMEM_LIMIT = 32 * 1024 * 1024


def _cdiv(a, b):
    return -(-a // b)


def _round_up(x, m):
    return _cdiv(x, m) * m


def _choose_tile(mr):
    """Pick the packed-row tile: >=2 grid steps whenever a 16-row (bf16-safe) split is
    possible, large tiles otherwise to amortize the ~0.35us per-grid-step overhead."""
    if mr < 32:
        return mr, 1, mr                      # full-extent block (always legal)
    t = max(2, _cdiv(mr, _MAX_TM))
    tm = _round_up(_cdiv(mr, t), 16)
    mr_pad = _round_up(mr, tm)
    return tm, mr_pad // tm, mr_pad


# ----------------------------------------------------------------------------
# Kernel 1a: conv matmul + ReLU (no norm, no residual) -- used by the down-conv.
# ----------------------------------------------------------------------------
def _conv_relu_kernel(p_ref, w_ref, o_ref, *, relu):
    acc = jnp.dot(p_ref[...], w_ref[...], preferred_element_type=jnp.float32)
    if relu:
        acc = jnp.maximum(acc, 0.0)
    o_ref[...] = acc.astype(o_ref.dtype)


def _conv_relu_call(pp, wp, tm, grid, relu):
    mr_pad, kp = pp.shape
    return pl.pallas_call(
        functools.partial(_conv_relu_kernel, relu=relu),
        out_shape=jax.ShapeDtypeStruct((mr_pad, LANES), jnp.bfloat16),
        grid=(grid,),
        in_specs=[pl.BlockSpec((tm, kp), lambda i: (i, 0)),
                  pl.BlockSpec((kp, LANES), lambda i: (0, 0))],
        out_specs=pl.BlockSpec((tm, LANES), lambda i: (i, 0)),
        compiler_params=pltpu.CompilerParams(
            dimension_semantics=("parallel",),
            vmem_limit_bytes=_VMEM_LIMIT),
    )(pp, wp)


# ----------------------------------------------------------------------------
# Kernel 1b: conv matmul, emit raw result + per-tile partial BN statistics.
#   Fully "parallel" grid: each tile writes its own (1, 8, 128) partial-sum block,
#   so both v7x TensorCores can run and nothing is serialized on a resident acc.
# ----------------------------------------------------------------------------
def _conv_stats_kernel(p_ref, w_ref, y_ref, sum_ref, sq_ref):
    acc = jnp.dot(p_ref[...], w_ref[...], preferred_element_type=jnp.float32)
    y_ref[...] = acc.astype(y_ref.dtype)
    s = jnp.sum(acc, axis=0, keepdims=True)             # (1, 128), f32
    q = jnp.sum(acc * acc, axis=0, keepdims=True)
    sum_ref[...] = jnp.broadcast_to(s[None], sum_ref.shape)
    sq_ref[...] = jnp.broadcast_to(q[None], sq_ref.shape)


def _conv_stats_call(pp, wp, tm, grid):
    mr_pad, kp = pp.shape
    return pl.pallas_call(
        _conv_stats_kernel,
        out_shape=(jax.ShapeDtypeStruct((mr_pad, LANES), jnp.bfloat16),
                   jax.ShapeDtypeStruct((grid, 8, LANES), jnp.float32),
                   jax.ShapeDtypeStruct((grid, 8, LANES), jnp.float32)),
        grid=(grid,),
        in_specs=[pl.BlockSpec((tm, kp), lambda i: (i, 0)),
                  pl.BlockSpec((kp, LANES), lambda i: (0, 0))],
        out_specs=(pl.BlockSpec((tm, LANES), lambda i: (i, 0)),
                   pl.BlockSpec((1, 8, LANES), lambda i: (i, 0, 0)),
                   pl.BlockSpec((1, 8, LANES), lambda i: (i, 0, 0))),
        compiler_params=pltpu.CompilerParams(
            dimension_semantics=("parallel",),
            vmem_limit_bytes=_VMEM_LIMIT),
    )(pp, wp)


# ----------------------------------------------------------------------------
# Kernel 2: pure VPU pass -- folded-BN affine + optional residual + ReLU.
#   No matmul, no patches input; the residual is aliased onto the output buffer.
# ----------------------------------------------------------------------------
def _affine_kernel(y_ref, a_ref, b_ref, o_ref, *, relu):
    v = y_ref[...].astype(jnp.float32) * a_ref[...] + b_ref[...]
    if relu:
        v = jnp.maximum(v, 0.0)
    o_ref[...] = v.astype(o_ref.dtype)


def _affine_res_kernel(y_ref, a_ref, b_ref, r_ref, o_ref, *, relu):
    v = y_ref[...].astype(jnp.float32) * a_ref[...] + b_ref[...]
    v = v + r_ref[...].astype(jnp.float32)
    if relu:
        v = jnp.maximum(v, 0.0)
    o_ref[...] = v.astype(o_ref.dtype)


def _affine_call(y, scale, shift, res, relu, tm, grid):
    mr_pad, _ = y.shape
    row = pl.BlockSpec((tm, LANES), lambda i: (i, 0))
    vec = pl.BlockSpec((1, LANES), lambda i: (0, 0))
    if res is None:
        kernel = functools.partial(_affine_kernel, relu=relu)
        inputs, in_specs, aliases = [y, scale, shift], [row, vec, vec], {}
    else:
        kernel = functools.partial(_affine_res_kernel, relu=relu)
        inputs, in_specs, aliases = [y, scale, shift, res], [row, vec, vec, row], {3: 0}
    return pl.pallas_call(
        kernel,
        out_shape=jax.ShapeDtypeStruct((mr_pad, LANES), jnp.bfloat16),
        grid=(grid,),
        in_specs=in_specs,
        out_specs=row,
        input_output_aliases=aliases,
        compiler_params=pltpu.CompilerParams(
            dimension_semantics=("parallel",),
            vmem_limit_bytes=_VMEM_LIMIT),
    )(*inputs)


# ----------------------------------------------------------------------------
# Glue: 3x3 patch gather (padding=1), with stride and fused 2x nearest upsample.
# TODO(synk): fuse this gather into the conv kernel (shifted matmuls over a halo'd
#             x tile) so the 9x patch expansion never hits HBM.
# ----------------------------------------------------------------------------
def _im2col_3x3(x, stride=1, upsample=1):
    N, H, W, C = x.shape
    xp = jnp.pad(x, ((0, 0), (1, 1), (1, 1), (0, 0)))
    if upsample == 1:
        Ho = (H - 1) // stride + 1
        Wo = (W - 1) // stride + 1
        idx_h = lambda kh: jnp.arange(Ho) * stride + kh
        idx_w = lambda kw: jnp.arange(Wo) * stride + kw
    else:
        assert stride == 1 and upsample == 2
        Ho, Wo = 2 * H, 2 * W
        # output (h,w), tap (kh,kw) of the upsampled+padded image maps to padded-x row
        # (h+kh+1)//2 -- the 4x upsampled intermediate is never materialized.
        idx_h = lambda kh: (jnp.arange(Ho) + kh + 1) // 2
        idx_w = lambda kw: (jnp.arange(Wo) + kw + 1) // 2
    cols = []
    for kh in range(3):
        rows = jnp.take(xp, idx_h(kh), axis=1)
        for kw in range(3):
            cols.append(jnp.take(rows, idx_w(kw), axis=2))
    patches = jnp.concatenate(cols, axis=-1)            # (N,Ho,Wo,9C), tap order (kh,kw,cin)
    return patches.reshape(N * Ho * Wo, 9 * C), Ho, Wo


# ----------------------------------------------------------------------------
# conv3x3 (no bias) [+ BN (training-mode batch stats)] [+ residual] [+ ReLU]
# ----------------------------------------------------------------------------
def _conv3x3(x, w_packed, cout, *, stride=1, upsample=1, bn=None, residual=None, relu=True):
    """w_packed: (R*9*cin, 128) bf16 block-diagonal weight, R = 128 // cout.
    Packing makes every output block exactly-sized and lane-dense."""
    assert LANES % cout == 0
    N = x.shape[0]
    patches, Ho, Wo = _im2col_3x3(x, stride, upsample)
    patches = patches.astype(jnp.bfloat16)
    M, K = patches.shape
    R = LANES // cout
    Kp = R * K
    assert w_packed.shape == (Kp, LANES), (w_packed.shape, (Kp, LANES))

    Mg = _round_up(M, R)                          # no-op at the demo shapes
    if Mg != M:
        patches = jnp.pad(patches, ((0, Mg - M), (0, 0)))
    Mr = Mg // R
    pp = patches.reshape(Mr, Kp)                  # row g holds output pixels g*R .. g*R+R-1

    tm, grid, Mr_pad = _choose_tile(Mr)
    if Mr_pad != Mr:
        pp = jnp.pad(pp, ((0, Mr_pad - Mr), (0, 0)))

    if bn is None and residual is None:
        y = _conv_relu_call(pp, w_packed, tm, grid, relu)
    else:
        y, psum, psq = _conv_stats_call(pp, w_packed, tm, grid)
        if bn is not None:
            gamma, beta = bn                      # (cout,) f32 each
            s = psum[:, 0, :].sum(axis=0).reshape(R, cout).sum(axis=0)
            q = psq[:, 0, :].sum(axis=0).reshape(R, cout).sum(axis=0)
            # NOTE: E[x^2]-E[x]^2 in f32 (zero-padded rows contribute nothing; divide by
            # the true M).  For very large feature maps switch to per-tile (count, mean,
            # M2) combination to avoid cancellation.
            mean = s / M
            var = jnp.maximum(q / M - mean * mean, 0.0)   # biased var (PyTorch train mode)
            scale_c = gamma * jax.lax.rsqrt(var + _EPS)
            shift_c = beta - mean * scale_c
        else:
            scale_c = jnp.ones((cout,), jnp.float32)
            shift_c = jnp.zeros((cout,), jnp.float32)
        scale = jnp.tile(scale_c, R).reshape(1, LANES)
        shift = jnp.tile(shift_c, R).reshape(1, LANES)

        res = None
        if residual is not None:
            res = residual.astype(jnp.bfloat16).reshape(M, cout)
            if Mr_pad * R != M:
                res = jnp.pad(res, ((0, Mr_pad * R - M), (0, 0)))
            res = res.reshape(Mr_pad, LANES)      # same packed layout as y
        y = _affine_call(y, scale, shift, res, relu, tm, grid)

    out = y.reshape(Mr_pad * R, cout)
    if Mr_pad * R != M:
        out = out[:M]
    return out.reshape(N, Ho, Wo, cout)


# ----------------------------------------------------------------------------
# ResidualBlock: conv3x3 -> BN -> ReLU -> conv3x3 -> BN -> (+x) -> ReLU
# ----------------------------------------------------------------------------
def _residual_block(x, p):
    c = x.shape[-1]
    h = _conv3x3(x, p["w1"], c, bn=(p["g1"], p["b1"]), relu=True)
    return _conv3x3(h, p["w2"], c, bn=(p["g2"], p["b2"]), residual=x, relu=True)


# ----------------------------------------------------------------------------
# ResUnetSkipConnectionBlock (innermost): forward
# ----------------------------------------------------------------------------
def res_unet_innermost_forward(x, params):
    inner_nc = params["inner_nc"]
    outer_nc = params["outer_nc"]
    xb = x.astype(jnp.bfloat16)

    # down path: downconv (stride 2, no bias, no norm) -> ReLU -> 2x ResidualBlock(inner_nc)
    d = _conv3x3(xb, params["downconv"], inner_nc, stride=2, bn=None, relu=True)
    for rb in params["res_down"]:
        d = _residual_block(d, rb)

    # up path: nearest 2x upsample (fused into the conv's gather) -> upconv -> BN -> ReLU
    #          -> 2x ResidualBlock(outer_nc)
    u = _conv3x3(d, params["upconv"], outer_nc, upsample=2,
                 bn=params["upnorm"], relu=True)
    for rb in params["res_up"]:
        u = _residual_block(u, rb)

    # skip connection: torch.cat([x, model(x)], dim=1)  (channels-last here)
    return jnp.concatenate([x, u.astype(x.dtype)], axis=-1)


# ----------------------------------------------------------------------------
# Deterministic parameter initialization (shapes follow the PyTorch __init__)
# ----------------------------------------------------------------------------
def init_params(key, outer_nc, inner_nc, input_nc):
    keys = iter(jax.random.split(key, 64))

    def conv_w(cout, cin):
        # torch (cout,cin,3,3) -> (kh,kw,cin,cout) -> (9*cin, cout), then block-diagonal
        # packing so R = 128//cout consecutive output pixels fill the 128-lane dim.
        R = LANES // cout
        w = jax.random.normal(next(keys), (cout, cin, 3, 3), jnp.float32) * 0.1
        w = jnp.transpose(w, (2, 3, 1, 0)).reshape(9 * cin, cout)
        wp = jnp.kron(jnp.eye(R, dtype=jnp.float32), w)         # (R*9*cin, 128)
        return wp.astype(jnp.bfloat16)

    def bn(c):
        g = 1.0 + 0.05 * jax.random.normal(next(keys), (c,), jnp.float32)
        b = 0.05 * jax.random.normal(next(keys), (c,), jnp.float32)
        return g, b

    def resblock(c):
        w1 = conv_w(c, c); g1, b1 = bn(c)
        w2 = conv_w(c, c); g2, b2 = bn(c)
        return dict(w1=w1, g1=g1, b1=b1, w2=w2, g2=g2, b2=b2)

    return dict(
        downconv=conv_w(inner_nc, input_nc),   # Conv2d(input_nc, inner_nc, 3, 2, 1, bias=False)
        res_down=[resblock(inner_nc), resblock(inner_nc)],
        upconv=conv_w(outer_nc, inner_nc),     # Conv2d(inner_nc, outer_nc, 3, 1, 1, bias=False)
        upnorm=bn(outer_nc),
        res_up=[resblock(outer_nc), resblock(outer_nc)],
        inner_nc=inner_nc,
        outer_nc=outer_nc,
    )


if __name__ == "__main__":
    key = jax.random.PRNGKey(0)
    kx, kp = jax.random.split(key)

    N, H, W = 2, 32, 32
    outer_nc, inner_nc = 8, 16
    input_nc = outer_nc            # input_nc=None in the reference -> input_nc = outer_nc

    x = jax.random.normal(kx, (N, H, W, input_nc), jnp.float32)   # NHWC layout
    params = init_params(kp, outer_nc, inner_nc, input_nc)

    fwd = jax.jit(lambda xx: res_unet_innermost_forward(xx, params))
    out = fwd(x)
    jax.block_until_ready(out)

    assert out.shape == (N, H, W, input_nc + outer_nc), out.shape
    assert bool(jnp.all(jnp.isfinite(out)))
    print("KERNEL_OK")
</pallas_src>

<mosaic_0001>
module attributes {stable_mosaic.version = 11 : i64} {
  func.func @_conv_relu_kernel(%arg0: i32, %arg1: memref<32x576xbf16, #tpu.memory_space<vmem>>, %arg2: memref<576x128xbf16, #tpu.memory_space<vmem>>, %arg3: memref<32x128xbf16, #tpu.memory_space<vmem>>) attributes {dimension_semantics = [#tpu.dimension_semantics<parallel>], iteration_bounds = array<i64: 2>, scalar_prefetch = 0 : i64, scratch_operands = 0 : i64, tpu.core_type = #tpu.core_type<tc>, window_params = [{transform_indices = @transform_0, window_bounds = array<i64: 32, 576>}, {pipeline_mode = #tpu.pipeline_mode<synchronous>, transform_indices = @transform_1, window_bounds = array<i64: 576, 128>}, {transform_indices = @transform_2, window_bounds = array<i64: 32, 128>}]} {
    %c0 = arith.constant 0 : index
    %c0_0 = arith.constant 0 : index
    %0 = vector.load %arg1[%c0, %c0_0] : memref<32x576xbf16, #tpu.memory_space<vmem>>, vector<32x576xbf16>
    %c0_1 = arith.constant 0 : index
    %c0_2 = arith.constant 0 : index
    %1 = vector.load %arg2[%c0_1, %c0_2] : memref<576x128xbf16, #tpu.memory_space<vmem>>, vector<576x128xbf16>
    %cst = arith.constant dense<0.000000e+00> : vector<32x128xf32>
    %2 = tpu.matmul %0, %1, %cst {dimension_numbers = #tpu.dot_dimension_numbers<[1], [0], [0], [1], [0, 0, 1, 1], [], []>} : vector<32x576xbf16>, vector<576x128xbf16>, vector<32x128xf32> -> vector<32x128xf32>
    %cst_3 = arith.constant 0.000000e+00 : f32
    %3 = vector.broadcast %cst_3 : f32 to vector<32x128xf32>
    %4 = arith.maximumf %2, %3 : vector<32x128xf32>
    %5 = arith.truncf %4 : vector<32x128xf32> to vector<32x128xbf16>
    %c0_4 = arith.constant 0 : index
    %c0_5 = arith.constant 0 : index
    %6 = vector.load %arg3[%c0_4, %c0_5] : memref<32x128xbf16, #tpu.memory_space<vmem>>, vector<32x128xbf16>
    tpu.vector_store %arg3[%c0_4, %c0_5], %5 {strides = array<i32>} : memref<32x128xbf16, #tpu.memory_space<vmem>>, vector<32x128xbf16>,
    return
  }
  func.func @transform_0(%arg0: i32) -> (i32, i32) {
    %c0_i32 = arith.constant 0 : i32
    %c0_i32_0 = arith.constant 0 : i32
    return %arg0, %c0_i32 : i32, i32
  }
  func.func @transform_1(%arg0: i32) -> (i32, i32) {
    %c0_i32 = arith.constant 0 : i32
    %c0_i32_0 = arith.constant 0 : i32
    %c0_i32_1 = arith.constant 0 : i32
    return %c0_i32, %c0_i32_0 : i32, i32
  }
  func.func @transform_2(%arg0: i32) -> (i32, i32) {
    %c0_i32 = arith.constant 0 : i32
    %c0_i32_0 = arith.constant 0 : i32
    return %arg0, %c0_i32 : i32, i32
  }
}

module attributes {stable_mosaic.version = 11 : i64} {
  func.func @_conv_stats_kernel(%arg0: i32, %arg1: memref<32x1152xbf16, #tpu.memory_space<vmem>>, %arg2: memref<1152x128xbf16, #tpu.memory_space<vmem>>, %arg3: memref<32x128xbf16, #tpu.memory_space<vmem>>, %arg4: memref<1x8x128xf32, #tpu.memory_space<vmem>>, %arg5: memref<1x8x128xf32, #tpu.memory_space<vmem>>) attributes {dimension_semantics = [#tpu.dimension_semantics<parallel>], iteration_bounds = array<i64: 2>, scalar_prefetch = 0 : i64, scratch_operands = 0 : i64, tpu.core_type = #tpu.core_type<tc>, window_params = [{transform_indices = @transform_0, window_bounds = array<i64: 32, 1152>}, {pipeline_mode = #tpu.pipeline_mode<synchronous>, transform_indices = @transform_1, window_bounds = array<i64: 1152, 128>}, {transform_indices = @transform_2, window_bounds = array<i64: 32, 128>}, {transform_indices = @transform_3, window_bounds = array<i64: 1, 8, 128>}, {transform_indices = @transform_4, window_bounds = array<i64: 1, 8, 128>}]} {
    %c0 = arith.constant 0 : index
    %c0_0 = arith.constant 0 : index
    %0 = vector.load %arg1[%c0, %c0_0] : memref<32x1152xbf16, #tpu.memory_space<vmem>>, vector<32x1152xbf16>
    %c0_1 = arith.constant 0 : index
    %c0_2 = arith.constant 0 : index
    %1 = vector.load %arg2[%c0_1, %c0_2] : memref<1152x128xbf16, #tpu.memory_space<vmem>>, vector<1152x128xbf16>
    %cst = arith.constant dense<0.000000e+00> : vector<32x128xf32>
    %2 = tpu.matmul %0, %1, %cst {dimension_numbers = #tpu.dot_dimension_numbers<[1], [0], [0], [1], [0, 0, 1, 1], [], []>} : vector<32x1152xbf16>, vector<1152x128xbf16>, vector<32x128xf32> -> vector<32x128xf32>
    %3 = arith.truncf %2 : vector<32x128xf32> to vector<32x128xbf16>
    %c0_3 = arith.constant 0 : index
    %c0_4 = arith.constant 0 : index
    %4 = vector.load %arg3[%c0_3, %c0_4] : memref<32x128xbf16, #tpu.memory_space<vmem>>, vector<32x128xbf16>
    tpu.vector_store %arg3[%c0_3, %c0_4], %3 {strides = array<i32>} : memref<32x128xbf16, #tpu.memory_space<vmem>>, vector<32x128xbf16>,
    %cst_5 = arith.constant dense<0.000000e+00> : vector<128xf32>
    %5 = vector.multi_reduction <add>, %2, %cst_5 [0] : vector<32x128xf32> to vector<128xf32>
    %6 = vector.shape_cast %5 : vector<128xf32> to vector<1x128xf32>
    %7 = arith.mulf %2, %2 : vector<32x128xf32>
    %cst_6 = arith.constant dense<0.000000e+00> : vector<128xf32>
    %8 = vector.multi_reduction <add>, %7, %cst_6 [0] : vector<32x128xf32> to vector<128xf32>
    %9 = vector.shape_cast %8 : vector<128xf32> to vector<1x128xf32>
    %10 = vector.shape_cast %6 : vector<1x128xf32> to vector<1x1x128xf32>
    %11 = vector.shape_cast %10 : vector<1x1x128xf32> to vector<1x1x128xf32>
    %12 = vector.broadcast %11 : vector<1x1x128xf32> to vector<1x8x128xf32>
    %c0_7 = arith.constant 0 : index
    %c0_8 = arith.constant 0 : index
    %c0_9 = arith.constant 0 : index
    %13 = vector.load %arg4[%c0_7, %c0_8, %c0_9] : memref<1x8x128xf32, #tpu.memory_space<vmem>>, vector<1x8x128xf32>
    tpu.vector_store %arg4[%c0_7, %c0_8, %c0_9], %12 {strides = array<i32>} : memref<1x8x128xf32, #tpu.memory_space<vmem>>, vector<1x8x128xf32>,
    %14 = vector.shape_cast %9 : vector<1x128xf32> to vector<1x1x128xf32>
    %15 = vector.shape_cast %14 : vector<1x1x128xf32> to vector<1x1x128xf32>
    %16 = vector.broadcast %15 : vector<1x1x128xf32> to vector<1x8x128xf32>
    %c0_10 = arith.constant 0 : index
    %c0_11 = arith.constant 0 : index
    %c0_12 = arith.constant 0 : index
    %17 = vector.load %arg5[%c0_10, %c0_11, %c0_12] : memref<1x8x128xf32, #tpu.memory_space<vmem>>, vector<1x8x128xf32>
    tpu.vector_store %arg5[%c0_10, %c0_11, %c0_12], %16 {strides = array<i32>} : memref<1x8x128xf32, #tpu.memory_space<vmem>>, vector<1x8x128xf32>,
    return
  }
  func.func @transform_0(%arg0: i32) -> (i32, i32) {
    %c0_i32 = arith.constant 0 : i32
    %c0_i32_0 = arith.constant 0 : i32
    return %arg0, %c0_i32 : i32, i32
  }
  func.func @transform_1(%arg0: i32) -> (i32, i32) {
    %c0_i32 = arith.constant 0 : i32
    %c0_i32_0 = arith.constant 0 : i32
    %c0_i32_1 = arith.constant 0 : i32
    return %c0_i32, %c0_i32_0 : i32, i32
  }
  func.func @transform_2(%arg0: i32) -> (i32, i32) {
    %c0_i32 = arith.constant 0 : i32
    %c0_i32_0 = arith.constant 0 : i32
    return %arg0, %c0_i32 : i32, i32
  }
  func.func @transform_3(%arg0: i32) -> (i32, i32, i32) {
    %c0_i32 = arith.constant 0 : i32
    %c0_i32_0 = arith.constant 0 : i32
    %c0_i32_1 = arith.constant 0 : i32
    return %arg0, %c0_i32, %c0_i32_0 : i32, i32, i32
  }
  func.func @transform_4(%arg0: i32) -> (i32, i32, i32) {
    %c0_i32 = arith.constant 0 : i32
    %c0_i32_0 = arith.constant 0 : i32
    %c0_i32_1 = arith.constant 0 : i32
    return %arg0, %c0_i32, %c0_i32_0 : i32, i32, i32
  }
}

module attributes {stable_mosaic.version = 11 : i64} {
  func.func @_affine_kernel(%arg0: i32, %arg1: memref<32x128xbf16, #tpu.memory_space<vmem>>, %arg2: memref<1x128xf32, #tpu.memory_space<vmem>>, %arg3: memref<1x128xf32, #tpu.memory_space<vmem>>, %arg4: memref<32x128xbf16, #tpu.memory_space<vmem>>) attributes {dimension_semantics = [#tpu.dimension_semantics<parallel>], iteration_bounds = array<i64: 2>, scalar_prefetch = 0 : i64, scratch_operands = 0 : i64, tpu.core_type = #tpu.core_type<tc>, window_params = [{transform_indices = @transform_0, window_bounds = array<i64: 32, 128>}, {pipeline_mode = #tpu.pipeline_mode<synchronous>, transform_indices = @transform_1, window_bounds = array<i64: 1, 128>}, {pipeline_mode = #tpu.pipeline_mode<synchronous>, transform_indices = @transform_2, window_bounds = array<i64: 1, 128>}, {transform_indices = @transform_3, window_bounds = array<i64: 32, 128>}]} {
    %c0 = arith.constant 0 : index
    %c0_0 = arith.constant 0 : index
    %0 = vector.load %arg1[%c0, %c0_0] : memref<32x128xbf16, #tpu.memory_space<vmem>>, vector<32x128xbf16>
    %1 = arith.extf %0 : vector<32x128xbf16> to vector<32x128xf32>
    %c0_1 = arith.constant 0 : index
    %c0_2 = arith.constant 0 : index
    %2 = vector.load %arg2[%c0_1, %c0_2] : memref<1x128xf32, #tpu.memory_space<vmem>>, vector<1x128xf32>
    %3 = vector.broadcast %2 : vector<1x128xf32> to vector<32x128xf32>
    %4 = arith.mulf %1, %3 : vector<32x128xf32>
    %c0_3 = arith.constant 0 : index
    %c0_4 = arith.constant 0 : index
    %5 = vector.load %arg3[%c0_3, %c0_4] : memref<1x128xf32, #tpu.memory_space<vmem>>, vector<1x128xf32>
    %6 = vector.broadcast %5 : vector<1x128xf32> to vector<32x128xf32>
    %7 = arith.addf %4, %6 : vector<32x128xf32>
    %cst = arith.constant 0.000000e+00 : f32
    %8 = vector.broadcast %cst : f32 to vector<32x128xf32>
    %9 = arith.maximumf %7, %8 : vector<32x128xf32>
    %10 = arith.truncf %9 : vector<32x128xf32> to vector<32x128xbf16>
    %c0_5 = arith.constant 0 : index
    %c0_6 = arith.constant 0 : index
    %11 = vector.load %arg4[%c0_5, %c0_6] : memref<32x128xbf16, #tpu.memory_space<vmem>>, vector<32x128xbf16>
    tpu.vector_store %arg4[%c0_5, %c0_6], %10 {strides = array<i32>} : memref<32x128xbf16, #tpu.memory_space<vmem>>, vector<32x128xbf16>,
    return
  }
  func.func @transform_0(%arg0: i32) -> (i32, i32) {
    %c0_i32 = arith.constant 0 : i32
    %c0_i32_0 = arith.constant 0 : i32
    return %arg0, %c0_i32 : i32, i32
  }
  func.func @transform_1(%arg0: i32) -> (i32, i32) {
    %c0_i32 = arith.constant 0 : i32
    %c0_i32_0 = arith.constant 0 : i32
    %c0_i32_1 = arith.constant 0 : i32
    return %c0_i32, %c0_i32_0 : i32, i32
  }
  func.func @transform_2(%arg0: i32) -> (i32, i32) {
    %c0_i32 = arith.constant 0 : i32
    %c0_i32_0 = arith.constant 0 : i32
    %c0_i32_1 = arith.constant 0 : i32
    return %c0_i32, %c0_i32_0 : i32, i32
  }
  func.func @transform_3(%arg0: i32) -> (i32, i32) {
    %c0_i32 = arith.constant 0 : i32
    %c0_i32_0 = arith.constant 0 : i32
    return %arg0, %c0_i32 : i32, i32
  }
}

module attributes {stable_mosaic.version = 11 : i64} {
  func.func @_affine_res_kernel(%arg0: i32, %arg1: memref<32x128xbf16, #tpu.memory_space<vmem>>, %arg2: memref<1x128xf32, #tpu.memory_space<vmem>>, %arg3: memref<1x128xf32, #tpu.memory_space<vmem>>, %arg4: memref<32x128xbf16, #tpu.memory_space<vmem>>, %arg5: memref<32x128xbf16, #tpu.memory_space<vmem>>) attributes {dimension_semantics = [#tpu.dimension_semantics<parallel>], iteration_bounds = array<i64: 2>, scalar_prefetch = 0 : i64, scratch_operands = 0 : i64, tpu.core_type = #tpu.core_type<tc>, window_params = [{transform_indices = @transform_0, window_bounds = array<i64: 32, 128>}, {pipeline_mode = #tpu.pipeline_mode<synchronous>, transform_indices = @transform_1, window_bounds = array<i64: 1, 128>}, {pipeline_mode = #tpu.pipeline_mode<synchronous>, transform_indices = @transform_2, window_bounds = array<i64: 1, 128>}, {transform_indices = @transform_3, window_bounds = array<i64: 32, 128>}, {transform_indices = @transform_4, window_bounds = array<i64: 32, 128>}]} {
    %c0 = arith.constant 0 : index
    %c0_0 = arith.constant 0 : index
    %0 = vector.load %arg1[%c0, %c0_0] : memref<32x128xbf16, #tpu.memory_space<vmem>>, vector<32x128xbf16>
    %1 = arith.extf %0 : vector<32x128xbf16> to vector<32x128xf32>
    %c0_1 = arith.constant 0 : index
    %c0_2 = arith.constant 0 : index
    %2 = vector.load %arg2[%c0_1, %c0_2] : memref<1x128xf32, #tpu.memory_space<vmem>>, vector<1x128xf32>
    %3 = vector.broadcast %2 : vector<1x128xf32> to vector<32x128xf32>
    %4 = arith.mulf %1, %3 : vector<32x128xf32>
    %c0_3 = arith.constant 0 : index
    %c0_4 = arith.constant 0 : index
    %5 = vector.load %arg3[%c0_3, %c0_4] : memref<1x128xf32, #tpu.memory_space<vmem>>, vector<1x128xf32>
    %6 = vector.broadcast %5 : vector<1x128xf32> to vector<32x128xf32>
    %7 = arith.addf %4, %6 : vector<32x128xf32>
    %c0_5 = arith.constant 0 : index
    %c0_6 = arith.constant 0 : index
    %8 = vector.load %arg4[%c0_5, %c0_6] : memref<32x128xbf16, #tpu.memory_space<vmem>>, vector<32x128xbf16>
    %9 = arith.extf %8 : vector<32x128xbf16> to vector<32x128xf32>
    %10 = arith.addf %7, %9 : vector<32x128xf32>
    %cst = arith.constant 0.000000e+00 : f32
    %11 = vector.broadcast %cst : f32 to vector<32x128xf32>
    %12 = arith.maximumf %10, %11 : vector<32x128xf32>
    %13 = arith.truncf %12 : vector<32x128xf32> to vector<32x128xbf16>
    %c0_7 = arith.constant 0 : index
    %c0_8 = arith.constant 0 : index
    %14 = vector.load %arg5[%c0_7, %c0_8] : memref<32x128xbf16, #tpu.memory_space<vmem>>, vector<32x128xbf16>
    tpu.vector_store %arg5[%c0_7, %c0_8], %13 {strides = array<i32>} : memref<32x128xbf16, #tpu.memory_space<vmem>>, vector<32x128xbf16>,
    return
  }
  func.func @transform_0(%arg0: i32) -> (i32, i32) {
    %c0_i32 = arith.constant 0 : i32
    %c0_i32_0 = arith.constant 0 : i32
    return %arg0, %c0_i32 : i32, i32
  }
  func.func @transform_1(%arg0: i32) -> (i32, i32) {
    %c0_i32 = arith.constant 0 : i32
    %c0_i32_0 = arith.constant 0 : i32
    %c0_i32_1 = arith.constant 0 : i32
    return %c0_i32, %c0_i32_0 : i32, i32
  }
  func.func @transform_2(%arg0: i32) -> (i32, i32) {
    %c0_i32 = arith.constant 0 : i32
    %c0_i32_0 = arith.constant 0 : i32
    %c0_i32_1 = arith.constant 0 : i32
    return %c0_i32, %c0_i32_0 : i32, i32
  }
  func.func @transform_3(%arg0: i32) -> (i32, i32) {
    %c0_i32 = arith.constant 0 : i32
    %c0_i32_0 = arith.constant 0 : i32
    return %arg0, %c0_i32 : i32, i32
  }
  func.func @transform_4(%arg0: i32) -> (i32, i32) {
    %c0_i32 = arith.constant 0 : i32
    %c0_i32_0 = arith.constant 0 : i32
    return %arg0, %c0_i32 : i32, i32
  }
}

module attributes {stable_mosaic.version = 11 : i64} {
  func.func @_conv_stats_kernel(%arg0: i32, %arg1: memref<64x2304xbf16, #tpu.memory_space<vmem>>, %arg2: memref<2304x128xbf16, #tpu.memory_space<vmem>>, %arg3: memref<64x128xbf16, #tpu.memory_space<vmem>>, %arg4: memref<1x8x128xf32, #tpu.memory_space<vmem>>, %arg5: memref<1x8x128xf32, #tpu.memory_space<vmem>>) attributes {dimension_semantics = [#tpu.dimension_semantics<parallel>], iteration_bounds = array<i64: 2>, scalar_prefetch = 0 : i64, scratch_operands = 0 : i64, tpu.core_type = #tpu.core_type<tc>, window_params = [{transform_indices = @transform_0, window_bounds = array<i64: 64, 2304>}, {pipeline_mode = #tpu.pipeline_mode<synchronous>, transform_indices = @transform_1, window_bounds = array<i64: 2304, 128>}, {transform_indices = @transform_2, window_bounds = array<i64: 64, 128>}, {transform_indices = @transform_3, window_bounds = array<i64: 1, 8, 128>}, {transform_indices = @transform_4, window_bounds = array<i64: 1, 8, 128>}]} {
    %c0 = arith.constant 0 : index
    %c0_0 = arith.constant 0 : index
    %0 = vector.load %arg1[%c0, %c0_0] : memref<64x2304xbf16, #tpu.memory_space<vmem>>, vector<64x2304xbf16>
    %c0_1 = arith.constant 0 : index
    %c0_2 = arith.constant 0 : index
    %1 = vector.load %arg2[%c0_1, %c0_2] : memref<2304x128xbf16, #tpu.memory_space<vmem>>, vector<2304x128xbf16>
    %cst = arith.constant dense<0.000000e+00> : vector<64x128xf32>
    %2 = tpu.matmul %0, %1, %cst {dimension_numbers = #tpu.dot_dimension_numbers<[1], [0], [0], [1], [0, 0, 1, 1], [], []>} : vector<64x2304xbf16>, vector<2304x128xbf16>, vector<64x128xf32> -> vector<64x128xf32>
    %3 = arith.truncf %2 : vector<64x128xf32> to vector<64x128xbf16>
    %c0_3 = arith.constant 0 : index
    %c0_4 = arith.constant 0 : index
    %4 = vector.load %arg3[%c0_3, %c0_4] : memref<64x128xbf16, #tpu.memory_space<vmem>>, vector<64x128xbf16>
    tpu.vector_store %arg3[%c0_3, %c0_4], %3 {strides = array<i32>} : memref<64x128xbf16, #tpu.memory_space<vmem>>, vector<64x128xbf16>,
    %cst_5 = arith.constant dense<0.000000e+00> : vector<128xf32>
    %5 = vector.multi_reduction <add>, %2, %cst_5 [0] : vector<64x128xf32> to vector<128xf32>
    %6 = vector.shape_cast %5 : vector<128xf32> to vector<1x128xf32>
    %7 = arith.mulf %2, %2 : vector<64x128xf32>
    %cst_6 = arith.constant dense<0.000000e+00> : vector<128xf32>
    %8 = vector.multi_reduction <add>, %7, %cst_6 [0] : vector<64x128xf32> to vector<128xf32>
    %9 = vector.shape_cast %8 : vector<128xf32> to vector<1x128xf32>
    %10 = vector.shape_cast %6 : vector<1x128xf32> to vector<1x1x128xf32>
    %11 = vector.shape_cast %10 : vector<1x1x128xf32> to vector<1x1x128xf32>
    %12 = vector.broadcast %11 : vector<1x1x128xf32> to vector<1x8x128xf32>
    %c0_7 = arith.constant 0 : index
    %c0_8 = arith.constant 0 : index
    %c0_9 = arith.constant 0 : index
    %13 = vector.load %arg4[%c0_7, %c0_8, %c0_9] : memref<1x8x128xf32, #tpu.memory_space<vmem>>, vector<1x8x128xf32>
    tpu.vector_store %arg4[%c0_7, %c0_8, %c0_9], %12 {strides = array<i32>} : memref<1x8x128xf32, #tpu.memory_space<vmem>>, vector<1x8x128xf32>,
    %14 = vector.shape_cast %9 : vector<1x128xf32> to vector<1x1x128xf32>
    %15 = vector.shape_cast %14 : vector<1x1x128xf32> to vector<1x1x128xf32>
    %16 = vector.broadcast %15 : vector<1x1x128xf32> to vector<1x8x128xf32>
    %c0_10 = arith.constant 0 : index
    %c0_11 = arith.constant 0 : index
    %c0_12 = arith.constant 0 : index
    %17 = vector.load %arg5[%c0_10, %c0_11, %c0_12] : memref<1x8x128xf32, #tpu.memory_space<vmem>>, vector<1x8x128xf32>
    tpu.vector_store %arg5[%c0_10, %c0_11, %c0_12], %16 {strides = array<i32>} : memref<1x8x128xf32, #tpu.memory_space<vmem>>, vector<1x8x128xf32>,
    return
  }
  func.func @transform_0(%arg0: i32) -> (i32, i32) {
    %c0_i32 = arith.constant 0 : i32
    %c0_i32_0 = arith.constant 0 : i32
    return %arg0, %c0_i32 : i32, i32
  }
  func.func @transform_1(%arg0: i32) -> (i32, i32) {
    %c0_i32 = arith.constant 0 : i32
    %c0_i32_0 = arith.constant 0 : i32
    %c0_i32_1 = arith.constant 0 : i32
    return %c0_i32, %c0_i32_0 : i32, i32
  }
  func.func @transform_2(%arg0: i32) -> (i32, i32) {
    %c0_i32 = arith.constant 0 : i32
    %c0_i32_0 = arith.constant 0 : i32
    return %arg0, %c0_i32 : i32, i32
  }
  func.func @transform_3(%arg0: i32) -> (i32, i32, i32) {
    %c0_i32 = arith.constant 0 : i32
    %c0_i32_0 = arith.constant 0 : i32
    %c0_i32_1 = arith.constant 0 : i32
    return %arg0, %c0_i32, %c0_i32_0 : i32, i32, i32
  }
  func.func @transform_4(%arg0: i32) -> (i32, i32, i32) {
    %c0_i32 = arith.constant 0 : i32
    %c0_i32_0 = arith.constant 0 : i32
    %c0_i32_1 = arith.constant 0 : i32
    return %arg0, %c0_i32, %c0_i32_0 : i32, i32, i32
  }
}

module attributes {stable_mosaic.version = 11 : i64} {
  func.func @_affine_kernel(%arg0: i32, %arg1: memref<64x128xbf16, #tpu.memory_space<vmem>>, %arg2: memref<1x128xf32, #tpu.memory_space<vmem>>, %arg3: memref<1x128xf32, #tpu.memory_space<vmem>>, %arg4: memref<64x128xbf16, #tpu.memory_space<vmem>>) attributes {dimension_semantics = [#tpu.dimension_semantics<parallel>], iteration_bounds = array<i64: 2>, scalar_prefetch = 0 : i64, scratch_operands = 0 : i64, tpu.core_type = #tpu.core_type<tc>, window_params = [{transform_indices = @transform_0, window_bounds = array<i64: 64, 128>}, {pipeline_mode = #tpu.pipeline_mode<synchronous>, transform_indices = @transform_1, window_bounds = array<i64: 1, 128>}, {pipeline_mode = #tpu.pipeline_mode<synchronous>, transform_indices = @transform_2, window_bounds = array<i64: 1, 128>}, {transform_indices = @transform_3, window_bounds = array<i64: 64, 128>}]} {
    %c0 = arith.constant 0 : index
    %c0_0 = arith.constant 0 : index
    %0 = vector.load %arg1[%c0, %c0_0] : memref<64x128xbf16, #tpu.memory_space<vmem>>, vector<64x128xbf16>
    %1 = arith.extf %0 : vector<64x128xbf16> to vector<64x128xf32>
    %c0_1 = arith.constant 0 : index
    %c0_2 = arith.constant 0 : index
    %2 = vector.load %arg2[%c0_1, %c0_2] : memref<1x128xf32, #tpu.memory_space<vmem>>, vector<1x128xf32>
    %3 = vector.broadcast %2 : vector<1x128xf32> to vector<64x128xf32>
    %4 = arith.mulf %1, %3 : vector<64x128xf32>
    %c0_3 = arith.constant 0 : index
    %c0_4 = arith.constant 0 : index
    %5 = vector.load %arg3[%c0_3, %c0_4] : memref<1x128xf32, #tpu.memory_space<vmem>>, vector<1x128xf32>
    %6 = vector.broadcast %5 : vector<1x128xf32> to vector<64x128xf32>
    %7 = arith.addf %4, %6 : vector<64x128xf32>
    %cst = arith.constant 0.000000e+00 : f32
    %8 = vector.broadcast %cst : f32 to vector<64x128xf32>
    %9 = arith.maximumf %7, %8 : vector<64x128xf32>
    %10 = arith.truncf %9 : vector<64x128xf32> to vector<64x128xbf16>
    %c0_5 = arith.constant 0 : index
    %c0_6 = arith.constant 0 : index
    %11 = vector.load %arg4[%c0_5, %c0_6] : memref<64x128xbf16, #tpu.memory_space<vmem>>, vector<64x128xbf16>
    tpu.vector_store %arg4[%c0_5, %c0_6], %10 {strides = array<i32>} : memref<64x128xbf16, #tpu.memory_space<vmem>>, vector<64x128xbf16>,
    return
  }
  func.func @transform_0(%arg0: i32) -> (i32, i32) {
    %c0_i32 = arith.constant 0 : i32
    %c0_i32_0 = arith.constant 0 : i32
    return %arg0, %c0_i32 : i32, i32
  }
  func.func @transform_1(%arg0: i32) -> (i32, i32) {
    %c0_i32 = arith.constant 0 : i32
    %c0_i32_0 = arith.constant 0 : i32
    %c0_i32_1 = arith.constant 0 : i32
    return %c0_i32, %c0_i32_0 : i32, i32
  }
  func.func @transform_2(%arg0: i32) -> (i32, i32) {
    %c0_i32 = arith.constant 0 : i32
    %c0_i32_0 = arith.constant 0 : i32
    %c0_i32_1 = arith.constant 0 : i32
    return %c0_i32, %c0_i32_0 : i32, i32
  }
  func.func @transform_3(%arg0: i32) -> (i32, i32) {
    %c0_i32 = arith.constant 0 : i32
    %c0_i32_0 = arith.constant 0 : i32
    return %arg0, %c0_i32 : i32, i32
  }
}

module attributes {stable_mosaic.version = 11 : i64} {
  func.func @_conv_stats_kernel(%arg0: i32, %arg1: memref<64x1152xbf16, #tpu.memory_space<vmem>>, %arg2: memref<1152x128xbf16, #tpu.memory_space<vmem>>, %arg3: memref<64x128xbf16, #tpu.memory_space<vmem>>, %arg4: memref<1x8x128xf32, #tpu.memory_space<vmem>>, %arg5: memref<1x8x128xf32, #tpu.memory_space<vmem>>) attributes {dimension_semantics = [#tpu.dimension_semantics<parallel>], iteration_bounds = array<i64: 2>, scalar_prefetch = 0 : i64, scratch_operands = 0 : i64, tpu.core_type = #tpu.core_type<tc>, window_params = [{transform_indices = @transform_0, window_bounds = array<i64: 64, 1152>}, {pipeline_mode = #tpu.pipeline_mode<synchronous>, transform_indices = @transform_1, window_bounds = array<i64: 1152, 128>}, {transform_indices = @transform_2, window_bounds = array<i64: 64, 128>}, {transform_indices = @transform_3, window_bounds = array<i64: 1, 8, 128>}, {transform_indices = @transform_4, window_bounds = array<i64: 1, 8, 128>}]} {
    %c0 = arith.constant 0 : index
    %c0_0 = arith.constant 0 : index
    %0 = vector.load %arg1[%c0, %c0_0] : memref<64x1152xbf16, #tpu.memory_space<vmem>>, vector<64x1152xbf16>
    %c0_1 = arith.constant 0 : index
    %c0_2 = arith.constant 0 : index
    %1 = vector.load %arg2[%c0_1, %c0_2] : memref<1152x128xbf16, #tpu.memory_space<vmem>>, vector<1152x128xbf16>
    %cst = arith.constant dense<0.000000e+00> : vector<64x128xf32>
    %2 = tpu.matmul %0, %1, %cst {dimension_numbers = #tpu.dot_dimension_numbers<[1], [0], [0], [1], [0, 0, 1, 1], [], []>} : vector<64x1152xbf16>, vector<1152x128xbf16>, vector<64x128xf32> -> vector<64x128xf32>
    %3 = arith.truncf %2 : vector<64x128xf32> to vector<64x128xbf16>
    %c0_3 = arith.constant 0 : index
    %c0_4 = arith.constant 0 : index
    %4 = vector.load %arg3[%c0_3, %c0_4] : memref<64x128xbf16, #tpu.memory_space<vmem>>, vector<64x128xbf16>
    tpu.vector_store %arg3[%c0_3, %c0_4], %3 {strides = array<i32>} : memref<64x128xbf16, #tpu.memory_space<vmem>>, vector<64x128xbf16>,
    %cst_5 = arith.constant dense<0.000000e+00> : vector<128xf32>
    %5 = vector.multi_reduction <add>, %2, %cst_5 [0] : vector<64x128xf32> to vector<128xf32>
    %6 = vector.shape_cast %5 : vector<128xf32> to vector<1x128xf32>
    %7 = arith.mulf %2, %2 : vector<64x128xf32>
    %cst_6 = arith.constant dense<0.000000e+00> : vector<128xf32>
    %8 = vector.multi_reduction <add>, %7, %cst_6 [0] : vector<64x128xf32> to vector<128xf32>
    %9 = vector.shape_cast %8 : vector<128xf32> to vector<1x128xf32>
    %10 = vector.shape_cast %6 : vector<1x128xf32> to vector<1x1x128xf32>
    %11 = vector.shape_cast %10 : vector<1x1x128xf32> to vector<1x1x128xf32>
    %12 = vector.broadcast %11 : vector<1x1x128xf32> to vector<1x8x128xf32>
    %c0_7 = arith.constant 0 : index
    %c0_8 = arith.constant 0 : index
    %c0_9 = arith.constant 0 : index
    %13 = vector.load %arg4[%c0_7, %c0_8, %c0_9] : memref<1x8x128xf32, #tpu.memory_space<vmem>>, vector<1x8x128xf32>
    tpu.vector_store %arg4[%c0_7, %c0_8, %c0_9], %12 {strides = array<i32>} : memref<1x8x128xf32, #tpu.memory_space<vmem>>, vector<1x8x128xf32>,
    %14 = vector.shape_cast %9 : vector<1x128xf32> to vector<1x1x128xf32>
    %15 = vector.shape_cast %14 : vector<1x1x128xf32> to vector<1x1x128xf32>
    %16 = vector.broadcast %15 : vector<1x1x128xf32> to vector<1x8x128xf32>
    %c0_10 = arith.constant 0 : index
    %c0_11 = arith.constant 0 : index
    %c0_12 = arith.constant 0 : index
    %17 = vector.load %arg5[%c0_10, %c0_11, %c0_12] : memref<1x8x128xf32, #tpu.memory_space<vmem>>, vector<1x8x128xf32>
    tpu.vector_store %arg5[%c0_10, %c0_11, %c0_12], %16 {strides = array<i32>} : memref<1x8x128xf32, #tpu.memory_space<vmem>>, vector<1x8x128xf32>,
    return
  }
  func.func @transform_0(%arg0: i32) -> (i32, i32) {
    %c0_i32 = arith.constant 0 : i32
    %c0_i32_0 = arith.constant 0 : i32
    return %arg0, %c0_i32 : i32, i32
  }
  func.func @transform_1(%arg0: i32) -> (i32, i32) {
    %c0_i32 = arith.constant 0 : i32
    %c0_i32_0 = arith.constant 0 : i32
    %c0_i32_1 = arith.constant 0 : i32
    return %c0_i32, %c0_i32_0 : i32, i32
  }
  func.func @transform_2(%arg0: i32) -> (i32, i32) {
    %c0_i32 = arith.constant 0 : i32
    %c0_i32_0 = arith.constant 0 : i32
    return %arg0, %c0_i32 : i32, i32
  }
  func.func @transform_3(%arg0: i32) -> (i32, i32, i32) {
    %c0_i32 = arith.constant 0 : i32
    %c0_i32_0 = arith.constant 0 : i32
    %c0_i32_1 = arith.constant 0 : i32
    return %arg0, %c0_i32, %c0_i32_0 : i32, i32, i32
  }
  func.func @transform_4(%arg0: i32) -> (i32, i32, i32) {
    %c0_i32 = arith.constant 0 : i32
    %c0_i32_0 = arith.constant 0 : i32
    %c0_i32_1 = arith.constant 0 : i32
    return %arg0, %c0_i32, %c0_i32_0 : i32, i32, i32
  }
}

module attributes {stable_mosaic.version = 11 : i64} {
  func.func @_affine_res_kernel(%arg0: i32, %arg1: memref<64x128xbf16, #tpu.memory_space<vmem>>, %arg2: memref<1x128xf32, #tpu.memory_space<vmem>>, %arg3: memref<1x128xf32, #tpu.memory_space<vmem>>, %arg4: memref<64x128xbf16, #tpu.memory_space<vmem>>, %arg5: memref<64x128xbf16, #tpu.memory_space<vmem>>) attributes {dimension_semantics = [#tpu.dimension_semantics<parallel>], iteration_bounds = array<i64: 2>, scalar_prefetch = 0 : i64, scratch_operands = 0 : i64, tpu.core_type = #tpu.core_type<tc>, window_params = [{transform_indices = @transform_0, window_bounds = array<i64: 64, 128>}, {pipeline_mode = #tpu.pipeline_mode<synchronous>, transform_indices = @transform_1, window_bounds = array<i64: 1, 128>}, {pipeline_mode = #tpu.pipeline_mode<synchronous>, transform_indices = @transform_2, window_bounds = array<i64: 1, 128>}, {transform_indices = @transform_3, window_bounds = array<i64: 64, 128>}, {transform_indices = @transform_4, window_bounds = array<i64: 64, 128>}]} {
    %c0 = arith.constant 0 : index
    %c0_0 = arith.constant 0 : index
    %0 = vector.load %arg1[%c0, %c0_0] : memref<64x128xbf16, #tpu.memory_space<vmem>>, vector<64x128xbf16>
    %1 = arith.extf %0 : vector<64x128xbf16> to vector<64x128xf32>
    %c0_1 = arith.constant 0 : index
    %c0_2 = arith.constant 0 : index
    %2 = vector.load %arg2[%c0_1, %c0_2] : memref<1x128xf32, #tpu.memory_space<vmem>>, vector<1x128xf32>
    %3 = vector.broadcast %2 : vector<1x128xf32> to vector<64x128xf32>
    %4 = arith.mulf %1, %3 : vector<64x128xf32>
    %c0_3 = arith.constant 0 : index
    %c0_4 = arith.constant 0 : index
    %5 = vector.load %arg3[%c0_3, %c0_4] : memref<1x128xf32, #tpu.memory_space<vmem>>, vector<1x128xf32>
    %6 = vector.broadcast %5 : vector<1x128xf32> to vector<64x128xf32>
    %7 = arith.addf %4, %6 : vector<64x128xf32>
    %c0_5 = arith.constant 0 : index
    %c0_6 = arith.constant 0 : index
    %8 = vector.load %arg4[%c0_5, %c0_6] : memref<64x128xbf16, #tpu.memory_space<vmem>>, vector<64x128xbf16>
    %9 = arith.extf %8 : vector<64x128xbf16> to vector<64x128xf32>
    %10 = arith.addf %7, %9 : vector<64x128xf32>
    %cst = arith.constant 0.000000e+00 : f32
    %11 = vector.broadcast %cst : f32 to vector<64x128xf32>
    %12 = arith.maximumf %10, %11 : vector<64x128xf32>
    %13 = arith.truncf %12 : vector<64x128xf32> to vector<64x128xbf16>
    %c0_7 = arith.constant 0 : index
    %c0_8 = arith.constant 0 : index
    %14 = vector.load %arg5[%c0_7, %c0_8] : memref<64x128xbf16, #tpu.memory_space<vmem>>, vector<64x128xbf16>
    tpu.vector_store %arg5[%c0_7, %c0_8], %13 {strides = array<i32>} : memref<64x128xbf16, #tpu.memory_space<vmem>>, vector<64x128xbf16>,
    return
  }
  func.func @transform_0(%arg0: i32) -> (i32, i32) {
    %c0_i32 = arith.constant 0 : i32
    %c0_i32_0 = arith.constant 0 : i32
    return %arg0, %c0_i32 : i32, i32
  }
  func.func @transform_1(%arg0: i32) -> (i32, i32) {
    %c0_i32 = arith.constant 0 : i32
    %c0_i32_0 = arith.constant 0 : i32
    %c0_i32_1 = arith.constant 0 : i32
    return %c0_i32, %c0_i32_0 : i32, i32
  }
  func.func @transform_2(%arg0: i32) -> (i32, i32) {
    %c0_i32 = arith.constant 0 : i32
    %c0_i32_0 = arith.constant 0 : i32
    %c0_i32_1 = arith.constant 0 : i32
    return %c0_i32, %c0_i32_0 : i32, i32
  }
  func.func @transform_3(%arg0: i32) -> (i32, i32) {
    %c0_i32 = arith.constant 0 : i32
    %c0_i32_0 = arith.constant 0 : i32
    return %arg0, %c0_i32 : i32, i32
  }
  func.func @transform_4(%arg0: i32) -> (i32, i32) {
    %c0_i32 = arith.constant 0 : i32
    %c0_i32_0 = arith.constant 0 : i32
    return %arg0, %c0_i32 : i32, i32
  }
}

</mosaic_0001>

<llo_original>
// kernel: _lambda_.19
$region0: #{_lambda_.19}
  #allocation0 [shape = 'u32[]', space=smem, size = 0x4, offset = 0x4, fixed_abs, tag = 'smem constant byte address 0x4 - core index']
  #allocation1 [shape = 'u32[72,128]{1,0:T(1,128)}', space=vmem, size = 0x9000, scoped, tag = 'internal scratch']
  %s0 = inlined_call_operand.vmem [shape: bf16[64,576], index: 0, kind: input, shape index: {}]
  %s1 = inlined_call_operand.vmem [shape: bf16[576,128], index: 1, kind: input, shape index: {}]
  %s2 = inlined_call_operand.vmem [shape: bf16[64,128], index: 2, kind: output, shape index: {}]
  %s3 = sld [smem:[#allocation0]]
  $region41: #{_lambda_.19} parent=0
    _
  %s5 = ssub.s32 1, %s3
  %s6 = scalar_select 0, %s5, %s3
  loop: start=0, step=1, limit=4
  $region2: #{_lambda_.19} parent=0 // loop_pre_header
    _
  $region3: #{_lambda_.19} parent=0 // loop_header
    %s8 = sphi 0, %s12
    %p9 = scmp.ge.s32.totalorder %s8, 4
    %s18 = sphi 0, %s20
    %s21 = sphi 0, %s18
    %s22 = sphi 0, %s21
    %s38 = sphi 0, %s22
    %s42 = sphi 0, %s42
    %s44 = sphi 0, %s42
    %s45 = sphi 0, %s44
    %s59 = sphi 0, %s45
    %s65 = sphi 0, %s67
    %s68 = sphi 0, %s65
    %s69 = sphi 0, %s68
    %s85 = sphi 0, %s69
  $region4: #{_lambda_.19} parent=0 // loop_header_branch
    %11 = sbr.rel (%p9) target = $region8
  $region5: #{_lambda_.19} parent=0 // loop_body
    %s13 = ssub.s32 %s8, 1
    %s14 = ssub.s32 %s8, 2
    %s15 = sadd.s32 %s8, 1
    %s16 = ssub.s32 %s8, %s15
    %p17 = scmp.eq.s32.totalorder %s16, 0
    %s19 = sadd.s32 %s18, 1
    %s20 = scalar_select %p17, %s18, %s19
    %p23 = pneg %p17
    %p24 = scmp.eq.s32.totalorder %s8, 1
    %p25 = por %p23, %p24
    %p26 = scmp.ne.s32.totalorder %s18, %s21
    %p27 = scmp.eq.s32.totalorder %s8, 0
    %p28 = por %p26, %p27
    %p29 = scmp.ne.s32.totalorder %s18, %s21
    %p30 = scmp.eq.s32.totalorder %s13, 1
    %p31 = por %p29, %p30
    %p32 = scmp.ne.s32.totalorder %s21, %s22
    %p33 = scmp.eq.s32.totalorder %s13, 0
    %p34 = por %p32, %p33
    %p35 = scmp.ne.s32.totalorder %s21, %s22
    %p36 = scmp.eq.s32.totalorder %s14, 1
    %p37 = por %p35, %p36
    %p39 = scmp.ne.s32.totalorder %s22, %s38
    %p40 = scmp.eq.s32.totalorder %s14, 0
    %p41 = por %p39, %p40
    %s43 = sadd.s32 %s42, 1
    %p46 = scmp.eq.s32.totalorder %s8, 1
    %p47 = scmp.ne.s32.totalorder %s42, %s44
    %p48 = scmp.eq.s32.totalorder %s8, 0
    %p49 = por %p47, %p48
    %p50 = scmp.ne.s32.totalorder %s42, %s44
    %p51 = scmp.eq.s32.totalorder %s13, 1
    %p52 = por %p50, %p51
    %p53 = scmp.ne.s32.totalorder %s44, %s45
    %p54 = scmp.eq.s32.totalorder %s13, 0
    %p55 = por %p53, %p54
    %p56 = scmp.ne.s32.totalorder %s44, %s45
    %p57 = scmp.eq.s32.totalorder %s14, 1
    %p58 = por %p56, %p57
    %p60 = scmp.ne.s32.totalorder %s45, %s59
    %p61 = scmp.eq.s32.totalorder %s14, 0
    %p62 = por %p60, %p61
    %s63 = ssub.s32 %s8, %s15
    %p64 = scmp.eq.s32.totalorder %s63, 0
    %s66 = sadd.s32 %s65, 1
    %s67 = scalar_select %p64, %s65, %s66
    %p70 = pneg %p64
    %p71 = scmp.eq.s32.totalorder %s8, 1
    %p72 = por %p70, %p71
    %p73 = scmp.ne.s32.totalorder %s65, %s68
    %p74 = scmp.eq.s32.totalorder %s8, 0
    %p75 = por %p73, %p74
    %p76 = scmp.ne.s32.totalorder %s65, %s68
    %p77 = scmp.eq.s32.totalorder %s13, 1
    %p78 = por %p76, %p77
    %p79 = scmp.ne.s32.totalorder %s68, %s69
    %p80 = scmp.eq.s32.totalorder %s13, 0
    %p81 = por %p79, %p80
    %p82 = scmp.ne.s32.totalorder %s68, %s69
    %p83 = scmp.eq.s32.totalorder %s14, 1
    %p84 = por %p82, %p83
    %p86 = scmp.ne.s32.totalorder %s69, %s85
    %p87 = scmp.eq.s32.totalorder %s14, 0
    %p88 = por %p86, %p87
    %p89 = scmp.le.s32.totalorder 1, %s8
    %p90 = scmp.lt.s32.totalorder %s8, 3
    %p91 = pnand %p89, %p90
    %p92 = pneg %p91
    // Predicated region
    $region9: #{_lambda_.19} parent=5 // pred_check
      _
    $region10: #{_lambda_.19} parent=5 // pred_check_branch
      %94 = sbr.rel (%p91) target = $region12
    $region11: #{_lambda_.19} parent=5 // pred_region
      %s95 = ssub.s32 %s8, 1
      // Predicated region
      $region13: #{_lambda_.19} parent=11 // pred_check
        %p96 = pneg %p55
      $region14: #{_lambda_.19} parent=11 // pred_check_branch
        %98 = sbr.rel (%p96) target = $region16
      $region15: #{_lambda_.19} parent=11 // pred_region
        _
      $region16: #{_lambda_.19} parent=11 // pred_fallthru
        _
    $region12: #{_lambda_.19} parent=5 // pred_fallthru
      _
    %p99 = scmp.lt.s32.totalorder %s8, 2
    // Predicated region
    $region17: #{_lambda_.19} parent=5 // pred_check
      %p100 = pneg %p99
    $region18: #{_lambda_.19} parent=5 // pred_check_branch
      %102 = sbr.rel (%p100) target = $region20
    $region19: #{_lambda_.19} parent=5 // pred_region
      // Predicated region
      $region21: #{_lambda_.19} parent=19 // pred_check
        %p103 = pneg %p28
      $region22: #{_lambda_.19} parent=19 // pred_check_branch
        %105 = sbr.rel (%p103) target = $region24
      $region23: #{_lambda_.19} parent=19 // pred_region
        %s106 = smul.u32 4, %s8
        %p107 = scmp.lt.s32.totalorder %s106, 7
        %s108 = scalar_select %p107, %s106, 7
        %s109 = smul.addr %s108, 5
        %s110 = smul.addr %s109, 4
        %s111 = scalar_lea.vmem %s0, %s110
        %s112 = smul.u32 4, %s8
      $region24: #{_lambda_.19} parent=19 // pred_fallthru
        _
    $region20: #{_lambda_.19} parent=5 // pred_fallthru
      _
    %p113 = scmp.le.s32.totalorder 1, %s8
    %p114 = scmp.lt.s32.totalorder %s8, 3
    %p115 = pnand %p113, %p114
    %p116 = pneg %p115
    // Predicated region
    $region25: #{_lambda_.19} parent=5 // pred_check
      _
    $region26: #{_lambda_.19} parent=5 // pred_check_branch
      %118 = sbr.rel (%p115) target = $region28
    $region27: #{_lambda_.19} parent=5 // pred_region
      %s119 = ssub.s32 %s8, 1
      %s120 = smul.u32 4, %s13
      %p121 = scmp.lt.s32.totalorder %s120, 7
      %s122 = scalar_select %p121, %s120, 7
      %s123 = smul.addr %s122, 5
      %s124 = smul.addr %s123, 4
      %s125 = scalar_lea.vmem %s0, %s124
      %p126 = pneg %p34
      %p127 = pneg %p31
      %p128 = pneg %p55
      %p129 = pneg %p52
      %p130 = pneg %p81
      %p131 = pneg %p78
      %s132 = smul.u32 4, %s13
      %p133 = scmp.lt.s32.totalorder %s132, 7
      %s134 = scalar_select %p133, %s132, 7
      %s135 = smul.addr %s134, 4
      %s136 = scalar_lea.vmem %s2, %s135
      %s137 = smul.u32 4, %s13
      %p138 = scmp.lt.s32.totalorder %s137, 7
      %s139 = scalar_select %p138, %s137, 7
      %s140 = smul.addr %s139, 5
      %s141 = smul.addr %s140, 4
      %s142 = scalar_lea.vmem %s0, %s141
      %s143 = smul.u32 4, %s13
      %s144 = smul.u32 4, %s13
      %p145 = scmp.lt.s32.totalorder %s144, 7
      %s146 = scalar_select %p145, %s144, 7
      %s147 = smul.addr %s146, 4
      %s148 = scalar_lea.vmem %s2, %s147
      %s149 = smul.u32 4, %s13
      %v151 = vld [vmem:[%s142] sm:$0xff]
      %v152 = vld [vmem:[%s142 + $0x8] sm:$0xff]
      %v153 = vld [vmem:[%s142 + $0x10] sm:$0xf]
      %v154 = vld [vmem:[%s142 + $0x14] sm:$0xff]
      %v155 = vld [vmem:[%s142 + $0x1c] sm:$0xff]
      %v156 = vld [vmem:[%s142 + $0x24] sm:$0xf]
      %v157 = vld [vmem:[%s142 + $0x28] sm:$0xff]
      %v158 = vld [vmem:[%s142 + $0x30] sm:$0xff]
      %v159 = vld [vmem:[%s142 + $0x38] sm:$0xf]
      %v160 = vld [vmem:[%s142 + $0x3c] sm:$0xff]
      %v161 = vld [vmem:[%s142 + $0x44] sm:$0xff]
      %v162 = vld [vmem:[%s142 + $0x4c] sm:$0xf]
      %v163 = vld [vmem:[%s1] sm:$0xf]
      %v164 = vld [vmem:[%s1 + $0x4] sm:$0xf]
      %v165 = vld [vmem:[%s1 + $0x8] sm:$0xf]
      %v166 = vld [vmem:[%s1 + $0xc] sm:$0xf]
      %v167 = vld [vmem:[%s1 + $0x10] sm:$0xf]
      %v168 = vld [vmem:[%s1 + $0x14] sm:$0xf]
      %v169 = vld [vmem:[%s1 + $0x18] sm:$0xf]
      %v170 = vld [vmem:[%s1 + $0x1c] sm:$0xf]
      %v171 = vld [vmem:[%s1 + $0x20] sm:$0xf]
      %v172 = vld [vmem:[%s1 + $0x24] sm:$0xf]
      %v173 = vld [vmem:[%s1 + $0x28] sm:$0xf]
      %v174 = vld [vmem:[%s1 + $0x2c] sm:$0xf]
      %v175 = vld [vmem:[%s1 + $0x30] sm:$0xf]
      %v176 = vld [vmem:[%s1 + $0x34] sm:$0xf]
      %v177 = vld [vmem:[%s1 + $0x38] sm:$0xf]
      %v178 = vld [vmem:[%s1 + $0x3c] sm:$0xf]
      %v179 = vld [vmem:[%s1 + $0x40] sm:$0xf]
      %v180 = vld [vmem:[%s1 + $0x44] sm:$0xf]
      %v181 = vld [vmem:[%s1 + $0x48] sm:$0xf]
      %v182 = vld [vmem:[%s1 + $0x4c] sm:$0xf]
      %v183 = vld [vmem:[%s1 + $0x50] sm:$0xf]
      %v184 = vld [vmem:[%s1 + $0x54] sm:$0xf]
      %v185 = vld [vmem:[%s1 + $0x58] sm:$0xf]
      %v186 = vld [vmem:[%s1 + $0x5c] sm:$0xf]
      %v187 = vld [vmem:[%s1 + $0x60] sm:$0xf]
      %v188 = vld [vmem:[%s1 + $0x64] sm:$0xf]
      %v189 = vld [vmem:[%s1 + $0x68] sm:$0xf]
      %v190 = vld [vmem:[%s1 + $0x6c] sm:$0xf]
      %v191 = vld [vmem:[%s1 + $0x70] sm:$0xf]
      %v192 = vld [vmem:[%s1 + $0x74] sm:$0xf]
      %v193 = vld [vmem:[%s1 + $0x78] sm:$0xf]
      %v194 = vld [vmem:[%s1 + $0x7c] sm:$0xf]
      %v195 = vld [vmem:[%s1 + $0x80] sm:$0xf]
      %v196 = vld [vmem:[%s1 + $0x84] sm:$0xf]
      %v197 = vld [vmem:[%s1 + $0x88] sm:$0xf]
      %v198 = vld [vmem:[%s1 + $0x8c] sm:$0xf]
      %v199 = vld [vmem:[%s1 + $0x90] sm:$0xf]
      %v200 = vld [vmem:[%s1 + $0x94] sm:$0xf]
      %v201 = vld [vmem:[%s1 + $0x98] sm:$0xf]
      %v202 = vld [vmem:[%s1 + $0x9c] sm:$0xf]
      %v203 = vld [vmem:[%s1 + $0xa0] sm:$0xf]
      %v204 = vld [vmem:[%s1 + $0xa4] sm:$0xf]
      %v205 = vld [vmem:[%s1 + $0xa8] sm:$0xf]
      %v206 = vld [vmem:[%s1 + $0xac] sm:$0xf]
      %v207 = vld [vmem:[%s1 + $0xb0] sm:$0xf]
      %v208 = vld [vmem:[%s1 + $0xb4] sm:$0xf]
      %v209 = vld [vmem:[%s1 + $0xb8] sm:$0xf]
      %v210 = vld [vmem:[%s1 + $0xbc] sm:$0xf]
      %v211 = vld [vmem:[%s1 + $0xc0] sm:$0xf]
      %v212 = vld [vmem:[%s1 + $0xc4] sm:$0xf]
      %v213 = vld [vmem:[%s1 + $0xc8] sm:$0xf]
      %v214 = vld [vmem:[%s1 + $0xcc] sm:$0xf]
      %v215 = vld [vmem:[%s1 + $0xd0] sm:$0xf]
      %v216 = vld [vmem:[%s1 + $0xd4] sm:$0xf]
      %v217 = vld [vmem:[%s1 + $0xd8] sm:$0xf]
      %v218 = vld [vmem:[%s1 + $0xdc] sm:$0xf]
      %v219 = vld [vmem:[%s1 + $0xe0] sm:$0xf]
      %v220 = vld [vmem:[%s1 + $0xe4] sm:$0xf]
      %v221 = vld [vmem:[%s1 + $0xe8] sm:$0xf]
      %v222 = vld [vmem:[%s1 + $0xec] sm:$0xf]
      %v223 = vld [vmem:[%s1 + $0xf0] sm:$0xf]
      %v224 = vld [vmem:[%s1 + $0xf4] sm:$0xf]
      %v225 = vld [vmem:[%s1 + $0xf8] sm:$0xf]
      %v226 = vld [vmem:[%s1 + $0xfc] sm:$0xf]
      %v227 = vld [vmem:[%s1 + $0x100] sm:$0xf]
      %v228 = vld [vmem:[%s1 + $0x104] sm:$0xf]
      %v229 = vld [vmem:[%s1 + $0x108] sm:$0xf]
      %v230 = vld [vmem:[%s1 + $0x10c] sm:$0xf]
      %v231 = vld [vmem:[%s1 + $0x110] sm:$0xf]
      %v232 = vld [vmem:[%s1 + $0x114] sm:$0xf]
      %v233 = vld [vmem:[%s1 + $0x118] sm:$0xf]
      %v234 = vld [vmem:[%s1 + $0x11c] sm:$0xf]
      %v247 = vunpack.c.l.b16 %v151
      %v248 = vunpack.c.h.b16 %v151
      %v249 = vunpack.c.l.b16 %v152
      %v250 = vunpack.c.h.b16 %v152
      %v251 = vunpack.c.l.b16 %v153
      %v252 = vunpack.c.l.b16 %v154
      %v253 = vunpack.c.h.b16 %v154
      %v254 = vunpack.c.l.b16 %v155
      %v255 = vunpack.c.h.b16 %v155
      %v256 = vunpack.c.l.b16 %v156
      %v257 = vunpack.c.l.b16 %v157
      %v258 = vunpack.c.h.b16 %v157
      %v259 = vunpack.c.l.b16 %v158
      %v260 = vunpack.c.h.b16 %v158
      %v261 = vunpack.c.l.b16 %v159
      %v262 = vunpack.c.l.b16 %v160
      %v263 = vunpack.c.h.b16 %v160
      %v264 = vunpack.c.l.b16 %v161
      %v265 = vunpack.c.h.b16 %v161
      %v266 = vunpack.c.l.b16 %v162
      %v267 = vpack.c.b16 %v252, %v247
      %v268 = vpack.c.b16 %v253, %v248
      %v269 = vpack.c.b16 %v254, %v249
      %v270 = vpack.c.b16 %v255, %v250
      %v271 = vpack.c.b16 %v256, %v251
      %v272 = vpack.c.b16 %v262, %v257
      %v273 = vpack.c.b16 %v263, %v258
      %v274 = vpack.c.b16 %v264, %v259
      %v275 = vpack.c.b16 %v265, %v260
      %v276 = vpack.c.b16 %v266, %v261
      %v357 = vunpack.c.l.b16 %v163
      %v358 = vunpack.c.l.b16 %v164
      %v359 = vunpack.c.l.b16 %v165
      %v360 = vunpack.c.l.b16 %v166
      %v361 = vunpack.c.l.b16 %v167
      %v362 = vunpack.c.l.b16 %v168
      %v363 = vunpack.c.l.b16 %v169
      %v364 = vunpack.c.l.b16 %v170
      %v365 = vunpack.c.l.b16 %v171
      %v366 = vunpack.c.l.b16 %v172
      %v367 = vunpack.c.l.b16 %v173
      %v368 = vunpack.c.l.b16 %v174
      %v369 = vunpack.c.l.b16 %v175
      %v370 = vunpack.c.l.b16 %v176
      %v371 = vunpack.c.l.b16 %v177
      %v372 = vunpack.c.l.b16 %v178
      %v373 = vunpack.c.l.b16 %v179
      %v374 = vunpack.c.l.b16 %v180
      %v375 = vunpack.c.l.b16 %v181
      %v376 = vunpack.c.l.b16 %v182
      %v377 = vunpack.c.l.b16 %v183
      %v378 = vunpack.c.l.b16 %v184
      %v379 = vunpack.c.l.b16 %v185
      %v380 = vunpack.c.l.b16 %v186
      %v381 = vunpack.c.l.b16 %v187
      %v382 = vunpack.c.l.b16 %v188
      %v383 = vunpack.c.l.b16 %v189
      %v384 = vunpack.c.l.b16 %v190
      %v385 = vunpack.c.l.b16 %v191
      %v386 = vunpack.c.l.b16 %v192
      %v387 = vunpack.c.l.b16 %v193
      %v388 = vunpack.c.l.b16 %v194
      %v389 = vunpack.c.l.b16 %v195
      %v390 = vunpack.c.l.b16 %v196
      %v391 = vunpack.c.l.b16 %v197
      %v392 = vunpack.c.l.b16 %v198
      %v393 = vunpack.c.l.b16 %v199
      %v394 = vunpack.c.l.b16 %v200
      %v395 = vunpack.c.l.b16 %v201
      %v396 = vunpack.c.l.b16 %v202
      %v397 = vunpack.c.l.b16 %v203
      %v398 = vunpack.c.l.b16 %v204
      %v399 = vunpack.c.l.b16 %v205
      %v400 = vunpack.c.l.b16 %v206
      %v401 = vunpack.c.l.b16 %v207
      %v402 = vunpack.c.l.b16 %v208
      %v403 = vunpack.c.l.b16 %v209
      %v404 = vunpack.c.l.b16 %v210
      %v405 = vunpack.c.l.b16 %v211
      %v406 = vunpack.c.l.b16 %v212
      %v407 = vunpack.c.l.b16 %v213
      %v408 = vunpack.c.l.b16 %v214
      %v409 = vunpack.c.l.b16 %v215
      %v410 = vunpack.c.l.b16 %v216
      %v411 = vunpack.c.l.b16 %v217
      %v412 = vunpack.c.l.b16 %v218
      %v413 = vunpack.c.l.b16 %v219
      %v414 = vunpack.c.l.b16 %v220
      %v415 = vunpack.c.l.b16 %v221
      %v416 = vunpack.c.l.b16 %v222
      %v417 = vunpack.c.l.b16 %v223
      %v418 = vunpack.c.l.b16 %v224
      %v419 = vunpack.c.l.b16 %v225
      %v420 = vunpack.c.l.b16 %v226
      %v421 = vunpack.c.l.b16 %v227
      %v422 = vunpack.c.l.b16 %v228
      %v423 = vunpack.c.l.b16 %v229
      %v424 = vunpack.c.l.b16 %v230
      %v425 = vunpack.c.l.b16 %v231
      %v426 = vunpack.c.l.b16 %v232
      %v427 = vunpack.c.l.b16 %v233
      %v428 = vunpack.c.l.b16 %v234
      %v429 = vpack.c.b16 %v358, %v357
      %v430 = vpack.c.b16 %v360, %v359
      %v431 = vpack.c.b16 %v362, %v361
      %v432 = vpack.c.b16 %v364, %v363
      %v433 = vpack.c.b16 %v366, %v365
      %v434 = vpack.c.b16 %v368, %v367
      %v435 = vpack.c.b16 %v370, %v369
      %v436 = vpack.c.b16 %v372, %v371
      %v437 = vpack.c.b16 %v374, %v373
      %v438 = vpack.c.b16 %v376, %v375
      %v439 = vpack.c.b16 %v378, %v377
      %v440 = vpack.c.b16 %v380, %v379
      %v441 = vpack.c.b16 %v382, %v381
      %v442 = vpack.c.b16 %v384, %v383
      %v443 = vpack.c.b16 %v386, %v385
      %v444 = vpack.c.b16 %v388, %v387
      %v445 = vpack.c.b16 %v390, %v389
      %v446 = vpack.c.b16 %v392, %v391
      %v447 = vpack.c.b16 %v394, %v393
      %v448 = vpack.c.b16 %v396, %v395
      %v449 = vpack.c.b16 %v398, %v397
      %v450 = vpack.c.b16 %v400, %v399
      %v451 = vpack.c.b16 %v402, %v401
      %v452 = vpack.c.b16 %v404, %v403
      %v453 = vpack.c.b16 %v406, %v405
      %v454 = vpack.c.b16 %v408, %v407
      %v455 = vpack.c.b16 %v410, %v409
      %v456 = vpack.c.b16 %v412, %v411
      %v457 = vpack.c.b16 %v414, %v413
      %v458 = vpack.c.b16 %v416, %v415
      %v459 = vpack.c.b16 %v418, %v417
      %v460 = vpack.c.b16 %v420, %v419
      %v461 = vpack.c.b16 %v422, %v421
      %v462 = vpack.c.b16 %v424, %v423
      %v463 = vpack.c.b16 %v426, %v425
      %v464 = vpack.c.b16 %v428, %v427
      %vm501 = vcmask 523264
      %v503 = vsel %vm501, %v271, 0
      %v506 = vsel %vm501, %v276, 0
      %508 = vmatpush.bf16.msra.mxu0 %v436
      %509 = vmatpush.bf16.msra.mxu0 %v435
      %510 = vmatpush.bf16.msra.mxu0 %v434
      %511 = vmatpush.bf16.msra.mxu0 %v433
      %512 = vmatpush.bf16.msra.mxu0 %v432
      %513 = vmatpush.bf16.msra.mxu0 %v431
      %514 = vmatpush.bf16.msra.mxu0 %v430
      %515 = vmatpush.bf16.msra.mxu0 %v429
      %516 = vmatmul.bf16.gmra.mxu0 %v267
      %v517 = vpop.f32.mrf.mxu0
      %v518 = vadd.f32 0.0, %v517
      %v519 = vpop.f32.mrf.mxu0
      %v520 = vadd.f32 0.0, %v519
      %521 = vmatmul.bf16.gmra.mxu0 %v272
      %v522 = vpop.f32.mrf.mxu0
      %v523 = vadd.f32 0.0, %v522
      %v524 = vpop.f32.mrf.mxu0
      %v525 = vadd.f32 0.0, %v524
      %526 = vdwg.mxu0
      %527 = vmatpush.bf16.msra.mxu0 %v444
      %528 = vmatpush.bf16.msra.mxu0 %v443
      %529 = vmatpush.bf16.msra.mxu0 %v442
      %530 = vmatpush.bf16.msra.mxu0 %v441
      %531 = vmatpush.bf16.msra.mxu0 %v440
      %532 = vmatpush.bf16.msra.mxu0 %v439
      %533 = vmatpush.bf16.msra.mxu0 %v438
      %534 = vmatpush.bf16.msra.mxu0 %v437
      %535 = vmatmul.bf16.gmra.mxu0 %v268
      %v536 = vpop.f32.mrf.mxu0
      %v537 = vadd.f32 %v518, %v536
      %v538 = vpop.f32.mrf.mxu0
      %v539 = vadd.f32 %v520, %v538
      %540 = vmatmul.bf16.gmra.mxu0 %v273
      %v541 = vpop.f32.mrf.mxu0
      %v542 = vadd.f32 %v523, %v541
      %v543 = vpop.f32.mrf.mxu0
      %v544 = vadd.f32 %v525, %v543
      %545 = vdwg.mxu0
      %546 = vmatpush.bf16.msra.mxu0 %v452
      %547 = vmatpush.bf16.msra.mxu0 %v451
      %548 = vmatpush.bf16.msra.mxu0 %v450
      %549 = vmatpush.bf16.msra.mxu0 %v449
      %550 = vmatpush.bf16.msra.mxu0 %v448
      %551 = vmatpush.bf16.msra.mxu0 %v447
      %552 = vmatpush.bf16.msra.mxu0 %v446
      %553 = vmatpush.bf16.msra.mxu0 %v445
      %554 = vmatmul.bf16.gmra.mxu0 %v269
      %v555 = vpop.f32.mrf.mxu0
      %v556 = vadd.f32 %v537, %v555
      %v557 = vpop.f32.mrf.mxu0
      %v558 = vadd.f32 %v539, %v557
      %559 = vmatmul.bf16.gmra.mxu0 %v274
      %v560 = vpop.f32.mrf.mxu0
      %v561 = vadd.f32 %v542, %v560
      %v562 = vpop.f32.mrf.mxu0
      %v563 = vadd.f32 %v544, %v562
      %564 = vdwg.mxu0
      %565 = vmatpush.bf16.msra.mxu0 %v460
      %566 = vmatpush.bf16.msra.mxu0 %v459
      %567 = vmatpush.bf16.msra.mxu0 %v458
      %568 = vmatpush.bf16.msra.mxu0 %v457
      %569 = vmatpush.bf16.msra.mxu0 %v456
      %570 = vmatpush.bf16.msra.mxu0 %v455
      %571 = vmatpush.bf16.msra.mxu0 %v454
      %572 = vmatpush.bf16.msra.mxu0 %v453
      %573 = vmatmul.bf16.gmra.mxu0 %v270
      %v574 = vpop.f32.mrf.mxu0
      %v575 = vadd.f32 %v556, %v574
      %v576 = vpop.f32.mrf.mxu0
      %v577 = vadd.f32 %v558, %v576
      %578 = vmatmul.bf16.gmra.mxu0 %v275
      %v579 = vpop.f32.mrf.mxu0
      %v580 = vadd.f32 %v561, %v579
      %v581 = vpop.f32.mrf.mxu0
      %v582 = vadd.f32 %v563, %v581
      %583 = vdwg.mxu0
      %584 = vmatpush.bf16.msra.mxu0 0
      %585 = vmatpush.bf16.msra.mxu0 0
      %586 = vmatpush.bf16.msra.mxu0 0
      %587 = vmatpush.bf16.msra.mxu0 0
      %588 = vmatpush.bf16.msra.mxu0 %v464
      %589 = vmatpush.bf16.msra.mxu0 %v463
      %590 = vmatpush.bf16.msra.mxu0 %v462
      %591 = vmatpush.bf16.msra.mxu0 %v461
      %592 = vmatmul.bf16.gmra.mxu0 %v503
      %v593 = vpop.f32.mrf.mxu0
      %v594 = vadd.f32 %v575, %v593
      %v595 = vpop.f32.mrf.mxu0
      %v596 = vadd.f32 %v577, %v595
      %597 = vmatmul.bf16.gmra.mxu0 %v506
      %v598 = vpop.f32.mrf.mxu0
      %v599 = vadd.f32 %v580, %v598
      %v600 = vpop.f32.mrf.mxu0
      %v601 = vadd.f32 %v582, %v600
      %602 = vdwg.mxu0
      %v603 = vmax.f32 %v594, 0.0
      %v604 = vmax.f32 %v596, 0.0
      %v605 = vmax.f32 %v599, 0.0
      %v606 = vmax.f32 %v601, 0.0
      %v607 = vpack.c.bf16 %v603, %v603
      %v608 = vpack.c.bf16 %v604, %v604
      %v609 = vpack.c.bf16 %v605, %v605
      %v610 = vpack.c.bf16 %v606, %v606
      %611 = vst [vmem:[%s148] sm:$0xf] %v607
      %612 = vst [vmem:[%s148 + $0x4] sm:$0xf] %v608
      %613 = vst [vmem:[%s148 + $0x8] sm:$0xf] %v609
      %614 = vst [vmem:[%s148 + $0xc] sm:$0xf] %v610
      %s615 = smul.u32 4, %s13
      %p616 = scmp.lt.s32.totalorder %s615, 7
      %s617 = scalar_select %p616, %s615, 7
      %s618 = smul.addr %s617, 4
      %s619 = scalar_lea.vmem %s2, %s618
      // Predicated region
      $region29: #{_lambda_.19} parent=27 // pred_check
        %p620 = pneg %p78
      $region30: #{_lambda_.19} parent=27 // pred_check_branch
        %622 = sbr.rel (%p620) target = $region32
      $region31: #{_lambda_.19} parent=27 // pred_region
        %s623 = smul.u32 4, %s13
      $region32: #{_lambda_.19} parent=27 // pred_fallthru
        _
    $region28: #{_lambda_.19} parent=5 // pred_fallthru
      _
    %p624 = scmp.le.s32.totalorder 2, %s8
    // Predicated region
    $region33: #{_lambda_.19} parent=5 // pred_check
      %p625 = pneg %p624
    $region34: #{_lambda_.19} parent=5 // pred_check_branch
      %627 = sbr.rel (%p625) target = $region36
    $region35: #{_lambda_.19} parent=5 // pred_region
      %s628 = ssub.s32 %s8, 2
      // Predicated region
      $region37: #{_lambda_.19} parent=35 // pred_check
        %p629 = pneg %p84
      $region38: #{_lambda_.19} parent=35 // pred_check_branch
        %631 = sbr.rel (%p629) target = $region40
      $region39: #{_lambda_.19} parent=35 // pred_region
        %s632 = smul.u32 4, %s14
        %p633 = scmp.lt.s32.totalorder %s632, 7
        %s634 = scalar_select %p633, %s632, 7
        %s635 = smul.addr %s634, 4
        %s636 = scalar_lea.vmem %s2, %s635
      $region40: #{_lambda_.19} parent=35 // pred_fallthru
        _
    $region36: #{_lambda_.19} parent=5 // pred_fallthru
      _
  $region6: #{_lambda_.19} parent=0 // loop_footer
    %s12 = sadd.s32 1, %s8
  $region7: #{_lambda_.19} parent=0 // loop_footer_branch
    %7 = sbr.rel target = $region3
  $region8: #{_lambda_.19} parent=0 // loop_exit
    _

// kernel: tile.93
$region0: #{tile.93}
  #allocation0 [shape = 's32[1]{0}', space=sflag, size = 0x4, scoped, tag = 'scoped memory for tile.93']
  %s0 = inlined_call_operand.vmem [shape: f32[16], index: 0, kind: input, shape index: {}]
  %s1 = inlined_call_operand.vmem [shape: f32[8,16], index: 1, kind: output, shape index: {}]
  // Predicated region
  $region2: #{tile.93} parent=0 // pred_check
    _
  $region3: #{tile.93} parent=0 // pred_check_branch
    %3 = sbr.rel (0) target = $region5
  $region4: #{tile.93} parent=0 // pred_region
    _
  $region5: #{tile.93} parent=0 // pred_fallthru
    _
  %v4 = vld [vmem:[%s0] ss:$0 sm:$0xff]
  %5 = vst [vmem:[%s1] sm:$0xff] %v4

// kernel: tile.94
$region0: #{tile.94}
  %s0 = inlined_call_operand.vmem [shape: f32[8,16], index: 0, kind: input, shape index: {}]
  %s1 = inlined_call_operand.vmem [shape: f32[1,128], index: 1, kind: output, shape index: {}]
  $region1: #{tile.94} parent=0
    #allocation0 [shape = 'u8[4096]{0}', space=vmem, size = 0x1000, scoped, tag = 'scoped mem for output reshape']
    %v2 = vld [vmem:[%s0] sm:$0x1]
    %vm3 = vcmask 130048
    %4 = vst.msk [vmem:[#allocation0] sm:$0x1] %vm3, %v2
    %s5 = scalar_lea.vmem %s0, 7
    %v6 = vld [vmem:[%s5] sm:$0x1]
    %7 = vrot.lane.b32.xlu0 %v6, 112
    %v8 = vpop.permute.xlu0 %7
    %vm9 = vcmask 1048448
    %10 = vst.msk [vmem:[#allocation0] sm:$0x1] %vm9, %v8
    %s11 = scalar_lea.vmem %s0, 6
    %v12 = vld [vmem:[%s11] sm:$0x1]
    %13 = vrot.lane.b32.xlu0 %v12, 96
    %v14 = vpop.permute.xlu0 %13
    %vm15 = vcmask 917248
    %16 = vst.msk [vmem:[#allocation0] sm:$0x1] %vm15, %v14
    %s17 = scalar_lea.vmem %s0, 5
    %v18 = vld [vmem:[%s17] sm:$0x1]
    %19 = vrot.lane.b32.xlu0 %v18, 80
    %v20 = vpop.permute.xlu0 %19
    %vm21 = vcmask 786048
    %22 = vst.msk [vmem:[#allocation0] sm:$0x1] %vm21, %v20
    %s23 = scalar_lea.vmem %s0, 4
    %v24 = vld [vmem:[%s23] sm:$0x1]
    %25 = vrot.lane.b32.xlu0 %v24, 64
    %v26 = vpop.permute.xlu0 %25
    %vm27 = vcmask 654848
    %28 = vst.msk [vmem:[#allocation0] sm:$0x1] %vm27, %v26
    %s29 = scalar_lea.vmem %s0, 3
    %v30 = vld [vmem:[%s29] sm:$0x1]
    %31 = vrot.lane.b32.xlu0 %v30, 48
    %v32 = vpop.permute.xlu0 %31
    %vm33 = vcmask 523648
    %34 = vst.msk [vmem:[#allocation0] sm:$0x1] %vm33, %v32
    %s35 = scalar_lea.vmem %s0, 2
    %v36 = vld [vmem:[%s35] sm:$0x1]
    %37 = vrot.lane.b32.xlu0 %v36, 32
    %v38 = vpop.permute.xlu0 %37
    %vm39 = vcmask 392448
    %40 = vst.msk [vmem:[#allocation0] sm:$0x1] %vm39, %v38
    %s41 = scalar_lea.vmem %s0, 1
    %v42 = vld [vmem:[%s41] sm:$0x1]
    %43 = vrot.lane.b32.xlu0 %v42, 16
    %v44 = vpop.permute.xlu0 %43
    %vm45 = vcmask 261248
    %46 = vst.msk [vmem:[#allocation0] sm:$0x1] %vm45, %v44
    %s48 = ssub.s32 2, 1
    %v49 = vld [vmem:[#allocation0] sm:%s48]
    %s51 = ssub.s32 2, 1
    %52 = vst [vmem:[%s1] sm:%s51] %v49

// kernel: _lambda_.20
$region0: #{_lambda_.20}
  #allocation0 [shape = 'u32[]', space=smem, size = 0x4, offset = 0x4, fixed_abs, tag = 'smem constant byte address 0x4 - core index']
  #allocation1 [shape = 'u32[72,128]{1,0:T(1,128)}', space=vmem, size = 0x9000, scoped, tag = 'internal scratch']
  %s0 = inlined_call_operand.vmem [shape: bf16[64,1152], index: 0, kind: input, shape index: {}]
  %s1 = inlined_call_operand.vmem [shape: bf16[1152,128], index: 1, kind: input, shape index: {}]
  %s2 = inlined_call_operand.vmem [shape: bf16[64,128], index: 2, kind: output, shape index: {0}]
  %s3 = inlined_call_operand.vmem [shape: f32[2,8,128], index: 3, kind: output, shape index: {1}]
  %s4 = inlined_call_operand.vmem [shape: f32[2,8,128], index: 4, kind: output, shape index: {2}]
  %5 = xla_tuple %s2, %s3, %s4
  %s6 = sld [smem:[#allocation0]]
  $region57: #{_lambda_.20} parent=0
    _
  %s8 = ssub.s32 1, %s6
  %s9 = scalar_select 0, %s8, %s6
  loop: start=0, step=1, limit=4
  $region2: #{_lambda_.20} parent=0 // loop_pre_header
    _
  $region3: #{_lambda_.20} parent=0 // loop_header
    %s11 = sphi 0, %s15
    %p12 = scmp.ge.s32.totalorder %s11, 4
    %s21 = sphi 0, %s23
    %s24 = sphi 0, %s21
    %s25 = sphi 0, %s24
    %s41 = sphi 0, %s25
    %s45 = sphi 0, %s45
    %s47 = sphi 0, %s45
    %s48 = sphi 0, %s47
    %s62 = sphi 0, %s48
    %s68 = sphi 0, %s70
    %s71 = sphi 0, %s68
    %s72 = sphi 0, %s71
    %s88 = sphi 0, %s72
    %s94 = sphi 0, %s96
    %s97 = sphi 0, %s94
    %s98 = sphi 0, %s97
    %s114 = sphi 0, %s98
    %s120 = sphi 0, %s122
    %s123 = sphi 0, %s120
    %s124 = sphi 0, %s123
    %s140 = sphi 0, %s124
  $region4: #{_lambda_.20} parent=0 // loop_header_branch
    %14 = sbr.rel (%p12) target = $region8
  $region5: #{_lambda_.20} parent=0 // loop_body
    %s16 = ssub.s32 %s11, 1
    %s17 = ssub.s32 %s11, 2
    %s18 = sadd.s32 %s11, 1
    %s19 = ssub.s32 %s11, %s18
    %p20 = scmp.eq.s32.totalorder %s19, 0
    %s22 = sadd.s32 %s21, 1
    %s23 = scalar_select %p20, %s21, %s22
    %p26 = pneg %p20
    %p27 = scmp.eq.s32.totalorder %s11, 1
    %p28 = por %p26, %p27
    %p29 = scmp.ne.s32.totalorder %s21, %s24
    %p30 = scmp.eq.s32.totalorder %s11, 0
    %p31 = por %p29, %p30
    %p32 = scmp.ne.s32.totalorder %s21, %s24
    %p33 = scmp.eq.s32.totalorder %s16, 1
    %p34 = por %p32, %p33
    %p35 = scmp.ne.s32.totalorder %s24, %s25
    %p36 = scmp.eq.s32.totalorder %s16, 0
    %p37 = por %p35, %p36
    %p38 = scmp.ne.s32.totalorder %s24, %s25
    %p39 = scmp.eq.s32.totalorder %s17, 1
    %p40 = por %p38, %p39
    %p42 = scmp.ne.s32.totalorder %s25, %s41
    %p43 = scmp.eq.s32.totalorder %s17, 0
    %p44 = por %p42, %p43
    %s46 = sadd.s32 %s45, 1
    %p49 = scmp.eq.s32.totalorder %s11, 1
    %p50 = scmp.ne.s32.totalorder %s45, %s47
    %p51 = scmp.eq.s32.totalorder %s11, 0
    %p52 = por %p50, %p51
    %p53 = scmp.ne.s32.totalorder %s45, %s47
    %p54 = scmp.eq.s32.totalorder %s16, 1
    %p55 = por %p53, %p54
    %p56 = scmp.ne.s32.totalorder %s47, %s48
    %p57 = scmp.eq.s32.totalorder %s16, 0
    %p58 = por %p56, %p57
    %p59 = scmp.ne.s32.totalorder %s47, %s48
    %p60 = scmp.eq.s32.totalorder %s17, 1
    %p61 = por %p59, %p60
    %p63 = scmp.ne.s32.totalorder %s48, %s62
    %p64 = scmp.eq.s32.totalorder %s17, 0
    %p65 = por %p63, %p64
    %s66 = ssub.s32 %s11, %s18
    %p67 = scmp.eq.s32.totalorder %s66, 0
    %s69 = sadd.s32 %s68, 1
    %s70 = scalar_select %p67, %s68, %s69
    %p73 = pneg %p67
    %p74 = scmp.eq.s32.totalorder %s11, 1
    %p75 = por %p73, %p74
    %p76 = scmp.ne.s32.totalorder %s68, %s71
    %p77 = scmp.eq.s32.totalorder %s11, 0
    %p78 = por %p76, %p77
    %p79 = scmp.ne.s32.totalorder %s68, %s71
    %p80 = scmp.eq.s32.totalorder %s16, 1
    %p81 = por %p79, %p80
    %p82 = scmp.ne.s32.totalorder %s71, %s72
    %p83 = scmp.eq.s32.totalorder %s16, 0
    %p84 = por %p82, %p83
    %p85 = scmp.ne.s32.totalorder %s71, %s72
    %p86 = scmp.eq.s32.totalorder %s17, 1
    %p87 = por %p85, %p86
    %p89 = scmp.ne.s32.totalorder %s72, %s88
    %p90 = scmp.eq.s32.totalorder %s17, 0
    %p91 = por %p89, %p90
    %s92 = ssub.s32 %s11, %s18
    %p93 = scmp.eq.s32.totalorder %s92, 0
    %s95 = sadd.s32 %s94, 1
    %s96 = scalar_select %p93, %s94, %s95
    %p99 = pneg %p93
    %p100 = scmp.eq.s32.totalorder %s11, 1
    %p101 = por %p99, %p100
    %p102 = scmp.ne.s32.totalorder %s94, %s97
    %p103 = scmp.eq.s32.totalorder %s11, 0
    %p104 = por %p102, %p103
    %p105 = scmp.ne.s32.totalorder %s94, %s97
    %p106 = scmp.eq.s32.totalorder %s16, 1
    %p107 = por %p105, %p106
    %p108 = scmp.ne.s32.totalorder %s97, %s98
    %p109 = scmp.eq.s32.totalorder %s16, 0
    %p110 = por %p108, %p109
    %p111 = scmp.ne.s32.totalorder %s97, %s98
    %p112 = scmp.eq.s32.totalorder %s17, 1
    %p113 = por %p111, %p112
    %p115 = scmp.ne.s32.totalorder %s98, %s114
    %p116 = scmp.eq.s32.totalorder %s17, 0
    %p117 = por %p115, %p116
    %s118 = ssub.s32 %s11, %s18
    %p119 = scmp.eq.s32.totalorder %s118, 0
    %s121 = sadd.s32 %s120, 1
    %s122 = scalar_select %p119, %s120, %s121
    %p125 = pneg %p119
    %p126 = scmp.eq.s32.totalorder %s11, 1
    %p127 = por %p125, %p126
    %p128 = scmp.ne.s32.totalorder %s120, %s123
    %p129 = scmp.eq.s32.totalorder %s11, 0
    %p130 = por %p128, %p129
    %p131 = scmp.ne.s32.totalorder %s120, %s123
    %p132 = scmp.eq.s32.totalorder %s16, 1
    %p133 = por %p131, %p132
    %p134 = scmp.ne.s32.totalorder %s123, %s124
    %p135 = scmp.eq.s32.totalorder %s16, 0
    %p136 = por %p134, %p135
    %p137 = scmp.ne.s32.totalorder %s123, %s124
    %p138 = scmp.eq.s32.totalorder %s17, 1
    %p139 = por %p137, %p138
    %p141 = scmp.ne.s32.totalorder %s124, %s140
    %p142 = scmp.eq.s32.totalorder %s17, 0
    %p143 = por %p141, %p142
    %p144 = scmp.le.s32.totalorder 1, %s11
    %p145 = scmp.lt.s32.totalorder %s11, 3
    %p146 = pnand %p144, %p145
    %p147 = pneg %p146
    // Predicated region
    $region9: #{_lambda_.20} parent=5 // pred_check
      _
    $region10: #{_lambda_.20} parent=5 // pred_check_branch
      %149 = sbr.rel (%p146) target = $region12
    $region11: #{_lambda_.20} parent=5 // pred_region
      %s150 = ssub.s32 %s11, 1
      // Predicated region
      $region13: #{_lambda_.20} parent=11 // pred_check
        %p151 = pneg %p58
      $region14: #{_lambda_.20} parent=11 // pred_check_branch
        %153 = sbr.rel (%p151) target = $region16
      $region15: #{_lambda_.20} parent=11 // pred_region
        _
      $region16: #{_lambda_.20} parent=11 // pred_fallthru
        _
    $region12: #{_lambda_.20} parent=5 // pred_fallthru
      _
    %p154 = scmp.lt.s32.totalorder %s11, 2
    // Predicated region
    $region17: #{_lambda_.20} parent=5 // pred_check
      %p155 = pneg %p154
    $region18: #{_lambda_.20} parent=5 // pred_check_branch
      %157 = sbr.rel (%p155) target = $region20
    $region19: #{_lambda_.20} parent=5 // pred_region
      // Predicated region
      $region21: #{_lambda_.20} parent=19 // pred_check
        %p158 = pneg %p31
      $region22: #{_lambda_.20} parent=19 // pred_check_branch
        %160 = sbr.rel (%p158) target = $region24
      $region23: #{_lambda_.20} parent=19 // pred_region
        %s161 = smul.u32 4, %s11
        %p162 = scmp.lt.s32.totalorder %s161, 7
        %s163 = scalar_select %p162, %s161, 7
        %s164 = smul.addr %s163, 9
        %s165 = smul.addr %s164, 4
        %s166 = scalar_lea.vmem %s0, %s165
        %s167 = smul.u32 4, %s11
      $region24: #{_lambda_.20} parent=19 // pred_fallthru
        _
    $region20: #{_lambda_.20} parent=5 // pred_fallthru
      _
    %p168 = scmp.le.s32.totalorder 1, %s11
    %p169 = scmp.lt.s32.totalorder %s11, 3
    %p170 = pnand %p168, %p169
    %p171 = pneg %p170
    // Predicated region
    $region25: #{_lambda_.20} parent=5 // pred_check
      _
    $region26: #{_lambda_.20} parent=5 // pred_check_branch
      %173 = sbr.rel (%p170) target = $region28
    $region27: #{_lambda_.20} parent=5 // pred_region
      %s174 = ssub.s32 %s11, 1
      %s175 = smul.u32 4, %s16
      %p176 = scmp.lt.s32.totalorder %s175, 7
      %s177 = scalar_select %p176, %s175, 7
      %s178 = smul.addr %s177, 9
      %s179 = smul.addr %s178, 4
      %s180 = scalar_lea.vmem %s0, %s179
      %p181 = pneg %p37
      %p182 = pneg %p34
      %p183 = pneg %p58
      %p184 = pneg %p55
      %p185 = pneg %p84
      %p186 = pneg %p81
      %s187 = smul.u32 4, %s16
      %p188 = scmp.lt.s32.totalorder %s187, 7
      %s189 = scalar_select %p188, %s187, 7
      %s190 = smul.addr %s189, 4
      %s191 = scalar_lea.vmem %s2, %s190
      %p192 = pneg %p110
      %p193 = pneg %p107
      %p194 = scmp.lt.s32.totalorder %s16, 1
      %s195 = scalar_select %p194, %s16, 1
      %s196 = smul.addr %s195, 8
      %s197 = scalar_lea.vmem %s3, %s196
      %p198 = pneg %p136
      %p199 = pneg %p133
      %p200 = scmp.lt.s32.totalorder %s16, 1
      %s201 = scalar_select %p200, %s16, 1
      %s202 = smul.addr %s201, 8
      %s203 = scalar_lea.vmem %s4, %s202
      %s204 = smul.u32 4, %s16
      %p205 = scmp.lt.s32.totalorder %s204, 7
      %s206 = scalar_select %p205, %s204, 7
      %s207 = smul.addr %s206, 9
      %s208 = smul.addr %s207, 4
      %s209 = scalar_lea.vmem %s0, %s208
      %s210 = smul.u32 4, %s16
      %s211 = smul.u32 4, %s16
      %p212 = scmp.lt.s32.totalorder %s211, 7
      %s213 = scalar_select %p212, %s211, 7
      %s214 = smul.addr %s213, 4
      %s215 = scalar_lea.vmem %s2, %s214
      %s216 = smul.u32 4, %s16
      %p217 = scmp.lt.s32.totalorder %s16, 1
      %s218 = scalar_select %p217, %s16, 1
      %s219 = smul.addr %s218, 8
      %s220 = scalar_lea.vmem %s3, %s219
      %p221 = scmp.lt.s32.totalorder %s16, 1
      %s222 = scalar_select %p221, %s16, 1
      %s223 = smul.addr %s222, 8
      %s224 = scalar_lea.vmem %s4, %s223
      %v225 = vld [vmem:[%s209] sm:$0xff]
      %v226 = vld [vmem:[%s209 + $0x8] sm:$0xff]
      %v227 = vld [vmem:[%s209 + $0x10] sm:$0xff]
      %v228 = vld [vmem:[%s209 + $0x18] sm:$0xff]
      %v229 = vld [vmem:[%s209 + $0x20] sm:$0xf]
      %v230 = vld [vmem:[%s209 + $0x24] sm:$0xff]
      %v231 = vld [vmem:[%s209 + $0x2c] sm:$0xff]
      %v232 = vld [vmem:[%s209 + $0x34] sm:$0xff]
      %v233 = vld [vmem:[%s209 + $0x3c] sm:$0xff]
      %v234 = vld [vmem:[%s209 + $0x44] sm:$0xf]
      %v235 = vld [vmem:[%s209 + $0x48] sm:$0xff]
      %v236 = vld [vmem:[%s209 + $0x50] sm:$0xff]
      %v237 = vld [vmem:[%s209 + $0x58] sm:$0xff]
      %v238 = vld [vmem:[%s209 + $0x60] sm:$0xff]
      %v239 = vld [vmem:[%s209 + $0x68] sm:$0xf]
      %v240 = vld [vmem:[%s209 + $0x6c] sm:$0xff]
      %v241 = vld [vmem:[%s209 + $0x74] sm:$0xff]
      %v242 = vld [vmem:[%s209 + $0x7c] sm:$0xff]
      %v243 = vld [vmem:[%s209 + $0x84] sm:$0xff]
      %v244 = vld [vmem:[%s209 + $0x8c] sm:$0xf]
      %v245 = vld [vmem:[%s1] sm:$0xf]
      %v246 = vld [vmem:[%s1 + $0x4] sm:$0xf]
      %v247 = vld [vmem:[%s1 + $0x8] sm:$0xf]
      %v248 = vld [vmem:[%s1 + $0xc] sm:$0xf]
      %v249 = vld [vmem:[%s1 + $0x10] sm:$0xf]
      %v250 = vld [vmem:[%s1 + $0x14] sm:$0xf]
      %v251 = vld [vmem:[%s1 + $0x18] sm:$0xf]
      %v252 = vld [vmem:[%s1 + $0x1c] sm:$0xf]
      %v253 = vld [vmem:[%s1 + $0x20] sm:$0xf]
      %v254 = vld [vmem:[%s1 + $0x24] sm:$0xf]
      %v255 = vld [vmem:[%s1 + $0x28] sm:$0xf]
      %v256 = vld [vmem:[%s1 + $0x2c] sm:$0xf]
      %v257 = vld [vmem:[%s1 + $0x30] sm:$0xf]
      %v258 = vld [vmem:[%s1 + $0x34] sm:$0xf]
      %v259 = vld [vmem:[%s1 + $0x38] sm:$0xf]
      %v260 = vld [vmem:[%s1 + $0x3c] sm:$0xf]
      %v261 = vld [vmem:[%s1 + $0x40] sm:$0xf]
      %v262 = vld [vmem:[%s1 + $0x44] sm:$0xf]
      %v263 = vld [vmem:[%s1 + $0x48] sm:$0xf]
      %v264 = vld [vmem:[%s1 + $0x4c] sm:$0xf]
      %v265 = vld [vmem:[%s1 + $0x50] sm:$0xf]
      %v266 = vld [vmem:[%s1 + $0x54] sm:$0xf]
      %v267 = vld [vmem:[%s1 + $0x58] sm:$0xf]
      %v268 = vld [vmem:[%s1 + $0x5c] sm:$0xf]
      %v269 = vld [vmem:[%s1 + $0x60] sm:$0xf]
      %v270 = vld [vmem:[%s1 + $0x64] sm:$0xf]
      %v271 = vld [vmem:[%s1 + $0x68] sm:$0xf]
      %v272 = vld [vmem:[%s1 + $0x6c] sm:$0xf]
      %v273 = vld [vmem:[%s1 + $0x70] sm:$0xf]
      %v274 = vld [vmem:[%s1 + $0x74] sm:$0xf]
      %v275 = vld [vmem:[%s1 + $0x78] sm:$0xf]
      %v276 = vld [vmem:[%s1 + $0x7c] sm:$0xf]
      %v277 = vld [vmem:[%s1 + $0x80] sm:$0xf]
      %v278 = vld [vmem:[%s1 + $0x84] sm:$0xf]
      %v279 = vld [vmem:[%s1 + $0x88] sm:$0xf]
      %v280 = vld [vmem:[%s1 + $0x8c] sm:$0xf]
      %v281 = vld [vmem:[%s1 + $0x90] sm:$0xf]
      %v282 = vld [vmem:[%s1 + $0x94] sm:$0xf]
      %v283 = vld [vmem:[%s1 + $0x98] sm:$0xf]
      %v284 = vld [vmem:[%s1 + $0x9c] sm:$0xf]
      %v285 = vld [vmem:[%s1 + $0xa0] sm:$0xf]
      %v286 = vld [vmem:[%s1 + $0xa4] sm:$0xf]
      %v287 = vld [vmem:[%s1 + $0xa8] sm:$0xf]
      %v288 = vld [vmem:[%s1 + $0xac] sm:$0xf]
      %v289 = vld [vmem:[%s1 + $0xb0] sm:$0xf]
      %v290 = vld [vmem:[%s1 + $0xb4] sm:$0xf]
      %v291 = vld [vmem:[%s1 + $0xb8] sm:$0xf]
      %v292 = vld [vmem:[%s1 + $0xbc] sm:$0xf]
      %v293 = vld [vmem:[%s1 + $0xc0] sm:$0xf]
      %v294 = vld [vmem:[%s1 + $0xc4] sm:$0xf]
      %v295 = vld [vmem:[%s1 + $0xc8] sm:$0xf]
      %v296 = vld [vmem:[%s1 + $0xcc] sm:$0xf]
      %v297 = vld [vmem:[%s1 + $0xd0] sm:$0xf]
      %v298 = vld [vmem:[%s1 + $0xd4] sm:$0xf]
      %v299 = vld [vmem:[%s1 + $0xd8] sm:$0xf]
      %v300 = vld [vmem:[%s1 + $0xdc] sm:$0xf]
      %v301 = vld [vmem:[%s1 + $0xe0] sm:$0xf]
      %v302 = vld [vmem:[%s1 + $0xe4] sm:$0xf]
      %v303 = vld [vmem:[%s1 + $0xe8] sm:$0xf]
      %v304 = vld [vmem:[%s1 + $0xec] sm:$0xf]
      %v305 = vld [vmem:[%s1 + $0xf0] sm:$0xf]
      %v306 = vld [vmem:[%s1 + $0xf4] sm:$0xf]
      %v307 = vld [vmem:[%s1 + $0xf8] sm:$0xf]
      %v308 = vld [vmem:[%s1 + $0xfc] sm:$0xf]
      %v309 = vld [vmem:[%s1 + $0x100] sm:$0xf]
      %v310 = vld [vmem:[%s1 + $0x104] sm:$0xf]
      %v311 = vld [vmem:[%s1 + $0x108] sm:$0xf]
      %v312 = vld [vmem:[%s1 + $0x10c] sm:$0xf]
      %v313 = vld [vmem:[%s1 + $0x110] sm:$0xf]
      %v314 = vld [vmem:[%s1 + $0x114] sm:$0xf]
      %v315 = vld [vmem:[%s1 + $0x118] sm:$0xf]
      %v316 = vld [vmem:[%s1 + $0x11c] sm:$0xf]
      %v317 = vld [vmem:[%s1 + $0x120] sm:$0xf]
      %v318 = vld [vmem:[%s1 + $0x124] sm:$0xf]
      %v319 = vld [vmem:[%s1 + $0x128] sm:$0xf]
      %v320 = vld [vmem:[%s1 + $0x12c] sm:$0xf]
      %v321 = vld [vmem:[%s1 + $0x130] sm:$0xf]
      %v322 = vld [vmem:[%s1 + $0x134] sm:$0xf]
      %v323 = vld [vmem:[%s1 + $0x138] sm:$0xf]
      %v324 = vld [vmem:[%s1 + $0x13c] sm:$0xf]
      %v325 = vld [vmem:[%s1 + $0x140] sm:$0xf]
      %v326 = vld [vmem:[%s1 + $0x144] sm:$0xf]
      %v327 = vld [vmem:[%s1 + $0x148] sm:$0xf]
      %v328 = vld [vmem:[%s1 + $0x14c] sm:$0xf]
      %v329 = vld [vmem:[%s1 + $0x150] sm:$0xf]
      %v330 = vld [vmem:[%s1 + $0x154] sm:$0xf]
      %v331 = vld [vmem:[%s1 + $0x158] sm:$0xf]
      %v332 = vld [vmem:[%s1 + $0x15c] sm:$0xf]
      %v333 = vld [vmem:[%s1 + $0x160] sm:$0xf]
      %v334 = vld [vmem:[%s1 + $0x164] sm:$0xf]
      %v335 = vld [vmem:[%s1 + $0x168] sm:$0xf]
      %v336 = vld [vmem:[%s1 + $0x16c] sm:$0xf]
      %v337 = vld [vmem:[%s1 + $0x170] sm:$0xf]
      %v338 = vld [vmem:[%s1 + $0x174] sm:$0xf]
      %v339 = vld [vmem:[%s1 + $0x178] sm:$0xf]
      %v340 = vld [vmem:[%s1 + $0x17c] sm:$0xf]
      %v341 = vld [vmem:[%s1 + $0x180] sm:$0xf]
      %v342 = vld [vmem:[%s1 + $0x184] sm:$0xf]
      %v343 = vld [vmem:[%s1 + $0x188] sm:$0xf]
      %v344 = vld [vmem:[%s1 + $0x18c] sm:$0xf]
      %v345 = vld [vmem:[%s1 + $0x190] sm:$0xf]
      %v346 = vld [vmem:[%s1 + $0x194] sm:$0xf]
      %v347 = vld [vmem:[%s1 + $0x198] sm:$0xf]
      %v348 = vld [vmem:[%s1 + $0x19c] sm:$0xf]
      %v349 = vld [vmem:[%s1 + $0x1a0] sm:$0xf]
      %v350 = vld [vmem:[%s1 + $0x1a4] sm:$0xf]
      %v351 = vld [vmem:[%s1 + $0x1a8] sm:$0xf]
      %v352 = vld [vmem:[%s1 + $0x1ac] sm:$0xf]
      %v353 = vld [vmem:[%s1 + $0x1b0] sm:$0xf]
      %v354 = vld [vmem:[%s1 + $0x1b4] sm:$0xf]
      %v355 = vld [vmem:[%s1 + $0x1b8] sm:$0xf]
      %v356 = vld [vmem:[%s1 + $0x1bc] sm:$0xf]
      %v357 = vld [vmem:[%s1 + $0x1c0] sm:$0xf]
      %v358 = vld [vmem:[%s1 + $0x1c4] sm:$0xf]
      %v359 = vld [vmem:[%s1 + $0x1c8] sm:$0xf]
      %v360 = vld [vmem:[%s1 + $0x1cc] sm:$0xf]
      %v361 = vld [vmem:[%s1 + $0x1d0] sm:$0xf]
      %v362 = vld [vmem:[%s1 + $0x1d4] sm:$0xf]
      %v363 = vld [vmem:[%s1 + $0x1d8] sm:$0xf]
      %v364 = vld [vmem:[%s1 + $0x1dc] sm:$0xf]
      %v365 = vld [vmem:[%s1 + $0x1e0] sm:$0xf]
      %v366 = vld [vmem:[%s1 + $0x1e4] sm:$0xf]
      %v367 = vld [vmem:[%s1 + $0x1e8] sm:$0xf]
      %v368 = vld [vmem:[%s1 + $0x1ec] sm:$0xf]
      %v369 = vld [vmem:[%s1 + $0x1f0] sm:$0xf]
      %v370 = vld [vmem:[%s1 + $0x1f4] sm:$0xf]
      %v371 = vld [vmem:[%s1 + $0x1f8] sm:$0xf]
      %v372 = vld [vmem:[%s1 + $0x1fc] sm:$0xf]
      %v373 = vld [vmem:[%s1 + $0x200] sm:$0xf]
      %v374 = vld [vmem:[%s1 + $0x204] sm:$0xf]
      %v375 = vld [vmem:[%s1 + $0x208] sm:$0xf]
      %v376 = vld [vmem:[%s1 + $0x20c] sm:$0xf]
      %v377 = vld [vmem:[%s1 + $0x210] sm:$0xf]
      %v378 = vld [vmem:[%s1 + $0x214] sm:$0xf]
      %v379 = vld [vmem:[%s1 + $0x218] sm:$0xf]
      %v380 = vld [vmem:[%s1 + $0x21c] sm:$0xf]
      %v381 = vld [vmem:[%s1 + $0x220] sm:$0xf]
      %v382 = vld [vmem:[%s1 + $0x224] sm:$0xf]
      %v383 = vld [vmem:[%s1 + $0x228] sm:$0xf]
      %v384 = vld [vmem:[%s1 + $0x22c] sm:$0xf]
      %v385 = vld [vmem:[%s1 + $0x230] sm:$0xf]
      %v386 = vld [vmem:[%s1 + $0x234] sm:$0xf]
      %v387 = vld [vmem:[%s1 + $0x238] sm:$0xf]
      %v388 = vld [vmem:[%s1 + $0x23c] sm:$0xf]
      %v409 = vunpack.c.l.b16 %v225
      %v410 = vunpack.c.h.b16 %v225
      %v411 = vunpack.c.l.b16 %v226
      %v412 = vunpack.c.h.b16 %v226
      %v413 = vunpack.c.l.b16 %v227
      %v414 = vunpack.c.h.b16 %v227
      %v415 = vunpack.c.l.b16 %v228
      %v416 = vunpack.c.h.b16 %v228
      %v417 = vunpack.c.l.b16 %v229
      %v418 = vunpack.c.l.b16 %v230
      %v419 = vunpack.c.h.b16 %v230
      %v420 = vunpack.c.l.b16 %v231
      %v421 = vunpack.c.h.b16 %v231
      %v422 = vunpack.c.l.b16 %v232
      %v423 = vunpack.c.h.b16 %v232
      %v424 = vunpack.c.l.b16 %v233
      %v425 = vunpack.c.h.b16 %v233
      %v426 = vunpack.c.l.b16 %v234
      %v427 = vunpack.c.l.b16 %v235
      %v428 = vunpack.c.h.b16 %v235
      %v429 = vunpack.c.l.b16 %v236
      %v430 = vunpack.c.h.b16 %v236
      %v431 = vunpack.c.l.b16 %v237
      %v432 = vunpack.c.h.b16 %v237
      %v433 = vunpack.c.l.b16 %v238
      %v434 = vunpack.c.h.b16 %v238
      %v435 = vunpack.c.l.b16 %v239
      %v436 = vunpack.c.l.b16 %v240
      %v437 = vunpack.c.h.b16 %v240
      %v438 = vunpack.c.l.b16 %v241
      %v439 = vunpack.c.h.b16 %v241
      %v440 = vunpack.c.l.b16 %v242
      %v441 = vunpack.c.h.b16 %v242
      %v442 = vunpack.c.l.b16 %v243
      %v443 = vunpack.c.h.b16 %v243
      %v444 = vunpack.c.l.b16 %v244
      %v445 = vpack.c.b16 %v418, %v409
      %v446 = vpack.c.b16 %v419, %v410
      %v447 = vpack.c.b16 %v420, %v411
      %v448 = vpack.c.b16 %v421, %v412
      %v449 = vpack.c.b16 %v422, %v413
      %v450 = vpack.c.b16 %v423, %v414
      %v451 = vpack.c.b16 %v424, %v415
      %v452 = vpack.c.b16 %v425, %v416
      %v453 = vpack.c.b16 %v426, %v417
      %v454 = vpack.c.b16 %v436, %v427
      %v455 = vpack.c.b16 %v437, %v428
      %v456 = vpack.c.b16 %v438, %v429
      %v457 = vpack.c.b16 %v439, %v430
      %v458 = vpack.c.b16 %v440, %v431
      %v459 = vpack.c.b16 %v441, %v432
      %v460 = vpack.c.b16 %v442, %v433
      %v461 = vpack.c.b16 %v443, %v434
      %v462 = vpack.c.b16 %v444, %v435
      %v625 = vunpack.c.l.b16 %v245
      %v626 = vunpack.c.l.b16 %v246
      %v627 = vunpack.c.l.b16 %v247
      %v628 = vunpack.c.l.b16 %v248
      %v629 = vunpack.c.l.b16 %v249
      %v630 = vunpack.c.l.b16 %v250
      %v631 = vunpack.c.l.b16 %v251
      %v632 = vunpack.c.l.b16 %v252
      %v633 = vunpack.c.l.b16 %v253
      %v634 = vunpack.c.l.b16 %v254
      %v635 = vunpack.c.l.b16 %v255
      %v636 = vunpack.c.l.b16 %v256
      %v637 = vunpack.c.l.b16 %v257
      %v638 = vunpack.c.l.b16 %v258
      %v639 = vunpack.c.l.b16 %v259
      %v640 = vunpack.c.l.b16 %v260
      %v641 = vunpack.c.l.b16 %v261
      %v642 = vunpack.c.l.b16 %v262
      %v643 = vunpack.c.l.b16 %v263
      %v644 = vunpack.c.l.b16 %v264
      %v645 = vunpack.c.l.b16 %v265
      %v646 = vunpack.c.l.b16 %v266
      %v647 = vunpack.c.l.b16 %v267
      %v648 = vunpack.c.l.b16 %v268
      %v649 = vunpack.c.l.b16 %v269
      %v650 = vunpack.c.l.b16 %v270
      %v651 = vunpack.c.l.b16 %v271
      %v652 = vunpack.c.l.b16 %v272
      %v653 = vunpack.c.l.b16 %v273
      %v654 = vunpack.c.l.b16 %v274
      %v655 = vunpack.c.l.b16 %v275
      %v656 = vunpack.c.l.b16 %v276
      %v657 = vunpack.c.l.b16 %v277
      %v658 = vunpack.c.l.b16 %v278
      %v659 = vunpack.c.l.b16 %v279
      %v660 = vunpack.c.l.b16 %v280
      %v661 = vunpack.c.l.b16 %v281
      %v662 = vunpack.c.l.b16 %v282
      %v663 = vunpack.c.l.b16 %v283
      %v664 = vunpack.c.l.b16 %v284
      %v665 = vunpack.c.l.b16 %v285
      %v666 = vunpack.c.l.b16 %v286
      %v667 = vunpack.c.l.b16 %v287
      %v668 = vunpack.c.l.b16 %v288
      %v669 = vunpack.c.l.b16 %v289
      %v670 = vunpack.c.l.b16 %v290
      %v671 = vunpack.c.l.b16 %v291
      %v672 = vunpack.c.l.b16 %v292
      %v673 = vunpack.c.l.b16 %v293
      %v674 = vunpack.c.l.b16 %v294
      %v675 = vunpack.c.l.b16 %v295
      %v676 = vunpack.c.l.b16 %v296
      %v677 = vunpack.c.l.b16 %v297
      %v678 = vunpack.c.l.b16 %v298
      %v679 = vunpack.c.l.b16 %v299
      %v680 = vunpack.c.l.b16 %v300
      %v681 = vunpack.c.l.b16 %v301
      %v682 = vunpack.c.l.b16 %v302
      %v683 = vunpack.c.l.b16 %v303
      %v684 = vunpack.c.l.b16 %v304
      %v685 = vunpack.c.l.b16 %v305
      %v686 = vunpack.c.l.b16 %v306
      %v687 = vunpack.c.l.b16 %v307
      %v688 = vunpack.c.l.b16 %v308
      %v689 = vunpack.c.l.b16 %v309
      %v690 = vunpack.c.l.b16 %v310
      %v691 = vunpack.c.l.b16 %v311
      %v692 = vunpack.c.l.b16 %v312
      %v693 = vunpack.c.l.b16 %v313
      %v694 = vunpack.c.l.b16 %v314
      %v695 = vunpack.c.l.b16 %v315
      %v696 = vunpack.c.l.b16 %v316
      %v697 = vunpack.c.l.b16 %v317
      %v698 = vunpack.c.l.b16 %v318
      %v699 = vunpack.c.l.b16 %v319
      %v700 = vunpack.c.l.b16 %v320
      %v701 = vunpack.c.l.b16 %v321
      %v702 = vunpack.c.l.b16 %v322
      %v703 = vunpack.c.l.b16 %v323
      %v704 = vunpack.c.l.b16 %v324
      %v705 = vunpack.c.l.b16 %v325
      %v706 = vunpack.c.l.b16 %v326
      %v707 = vunpack.c.l.b16 %v327
      %v708 = vunpack.c.l.b16 %v328
      %v709 = vunpack.c.l.b16 %v329
      %v710 = vunpack.c.l.b16 %v330
      %v711 = vunpack.c.l.b16 %v331
      %v712 = vunpack.c.l.b16 %v332
      %v713 = vunpack.c.l.b16 %v333
      %v714 = vunpack.c.l.b16 %v334
      %v715 = vunpack.c.l.b16 %v335
      %v716 = vunpack.c.l.b16 %v336
      %v717 = vunpack.c.l.b16 %v337
      %v718 = vunpack.c.l.b16 %v338
      %v719 = vunpack.c.l.b16 %v339
      %v720 = vunpack.c.l.b16 %v340
      %v721 = vunpack.c.l.b16 %v341
      %v722 = vunpack.c.l.b16 %v342
      %v723 = vunpack.c.l.b16 %v343
      %v724 = vunpack.c.l.b16 %v344
      %v725 = vunpack.c.l.b16 %v345
      %v726 = vunpack.c.l.b16 %v346
      %v727 = vunpack.c.l.b16 %v347
      %v728 = vunpack.c.l.b16 %v348
      %v729 = vunpack.c.l.b16 %v349
      %v730 = vunpack.c.l.b16 %v350
      %v731 = vunpack.c.l.b16 %v351
      %v732 = vunpack.c.l.b16 %v352
      %v733 = vunpack.c.l.b16 %v353
      %v734 = vunpack.c.l.b16 %v354
      %v735 = vunpack.c.l.b16 %v355
      %v736 = vunpack.c.l.b16 %v356
      %v737 = vunpack.c.l.b16 %v357
      %v738 = vunpack.c.l.b16 %v358
      %v739 = vunpack.c.l.b16 %v359
      %v740 = vunpack.c.l.b16 %v360
      %v741 = vunpack.c.l.b16 %v361
      %v742 = vunpack.c.l.b16 %v362
      %v743 = vunpack.c.l.b16 %v363
      %v744 = vunpack.c.l.b16 %v364
      %v745 = vunpack.c.l.b16 %v365
      %v746 = vunpack.c.l.b16 %v366
      %v747 = vunpack.c.l.b16 %v367
      %v748 = vunpack.c.l.b16 %v368
      %v749 = vunpack.c.l.b16 %v369
      %v750 = vunpack.c.l.b16 %v370
      %v751 = vunpack.c.l.b16 %v371
      %v752 = vunpack.c.l.b16 %v372
      %v753 = vunpack.c.l.b16 %v373
      %v754 = vunpack.c.l.b16 %v374
      %v755 = vunpack.c.l.b16 %v375
      %v756 = vunpack.c.l.b16 %v376
      %v757 = vunpack.c.l.b16 %v377
      %v758 = vunpack.c.l.b16 %v378
      %v759 = vunpack.c.l.b16 %v379
      %v760 = vunpack.c.l.b16 %v380
      %v761 = vunpack.c.l.b16 %v381
      %v762 = vunpack.c.l.b16 %v382
      %v763 = vunpack.c.l.b16 %v383
      %v764 = vunpack.c.l.b16 %v384
      %v765 = vunpack.c.l.b16 %v385
      %v766 = vunpack.c.l.b16 %v386
      %v767 = vunpack.c.l.b16 %v387
      %v768 = vunpack.c.l.b16 %v388
      %v769 = vpack.c.b16 %v626, %v625
      %v770 = vpack.c.b16 %v628, %v627
      %v771 = vpack.c.b16 %v630, %v629
      %v772 = vpack.c.b16 %v632, %v631
      %v773 = vpack.c.b16 %v634, %v633
      %v774 = vpack.c.b16 %v636, %v635
      %v775 = vpack.c.b16 %v638, %v637
      %v776 = vpack.c.b16 %v640, %v639
      %v777 = vpack.c.b16 %v642, %v641
      %v778 = vpack.c.b16 %v644, %v643
      %v779 = vpack.c.b16 %v646, %v645
      %v780 = vpack.c.b16 %v648, %v647
      %v781 = vpack.c.b16 %v650, %v649
      %v782 = vpack.c.b16 %v652, %v651
      %v783 = vpack.c.b16 %v654, %v653
      %v784 = vpack.c.b16 %v656, %v655
      %v785 = vpack.c.b16 %v658, %v657
      %v786 = vpack.c.b16 %v660, %v659
      %v787 = vpack.c.b16 %v662, %v661
      %v788 = vpack.c.b16 %v664, %v663
      %v789 = vpack.c.b16 %v666, %v665
      %v790 = vpack.c.b16 %v668, %v667
      %v791 = vpack.c.b16 %v670, %v669
      %v792 = vpack.c.b16 %v672, %v671
      %v793 = vpack.c.b16 %v674, %v673
      %v794 = vpack.c.b16 %v676, %v675
      %v795 = vpack.c.b16 %v678, %v677
      %v796 = vpack.c.b16 %v680, %v679
      %v797 = vpack.c.b16 %v682, %v681
      %v798 = vpack.c.b16 %v684, %v683
      %v799 = vpack.c.b16 %v686, %v685
      %v800 = vpack.c.b16 %v688, %v687
      %v801 = vpack.c.b16 %v690, %v689
      %v802 = vpack.c.b16 %v692, %v691
      %v803 = vpack.c.b16 %v694, %v693
      %v804 = vpack.c.b16 %v696, %v695
      %v805 = vpack.c.b16 %v698, %v697
      %v806 = vpack.c.b16 %v700, %v699
      %v807 = vpack.c.b16 %v702, %v701
      %v808 = vpack.c.b16 %v704, %v703
      %v809 = vpack.c.b16 %v706, %v705
      %v810 = vpack.c.b16 %v708, %v707
      %v811 = vpack.c.b16 %v710, %v709
      %v812 = vpack.c.b16 %v712, %v711
      %v813 = vpack.c.b16 %v714, %v713
      %v814 = vpack.c.b16 %v716, %v715
      %v815 = vpack.c.b16 %v718, %v717
      %v816 = vpack.c.b16 %v720, %v719
      %v817 = vpack.c.b16 %v722, %v721
      %v818 = vpack.c.b16 %v724, %v723
      %v819 = vpack.c.b16 %v726, %v725
      %v820 = vpack.c.b16 %v728, %v727
      %v821 = vpack.c.b16 %v730, %v729
      %v822 = vpack.c.b16 %v732, %v731
      %v823 = vpack.c.b16 %v734, %v733
      %v824 = vpack.c.b16 %v736, %v735
      %v825 = vpack.c.b16 %v738, %v737
      %v826 = vpack.c.b16 %v740, %v739
      %v827 = vpack.c.b16 %v742, %v741
      %v828 = vpack.c.b16 %v744, %v743
      %v829 = vpack.c.b16 %v746, %v745
      %v830 = vpack.c.b16 %v748, %v747
      %v831 = vpack.c.b16 %v750, %v749
      %v832 = vpack.c.b16 %v752, %v751
      %v833 = vpack.c.b16 %v754, %v753
      %v834 = vpack.c.b16 %v756, %v755
      %v835 = vpack.c.b16 %v758, %v757
      %v836 = vpack.c.b16 %v760, %v759
      %v837 = vpack.c.b16 %v762, %v761
      %v838 = vpack.c.b16 %v764, %v763
      %v839 = vpack.c.b16 %v766, %v765
      %v840 = vpack.c.b16 %v768, %v767
      %913 = vmatpush.bf16.msra.mxu0 %v776
      %914 = vmatpush.bf16.msra.mxu0 %v775
      %915 = vmatpush.bf16.msra.mxu0 %v774
      %916 = vmatpush.bf16.msra.mxu0 %v773
      %917 = vmatpush.bf16.msra.mxu0 %v772
      %918 = vmatpush.bf16.msra.mxu0 %v771
      %919 = vmatpush.bf16.msra.mxu0 %v770
      %920 = vmatpush.bf16.msra.mxu0 %v769
      %921 = vmatmul.bf16.gmra.mxu0 %v445
      %v922 = vpop.f32.mrf.mxu0
      %v923 = vadd.f32 0.0, %v922
      %v924 = vpop.f32.mrf.mxu0
      %v925 = vadd.f32 0.0, %v924
      %926 = vmatmul.bf16.gmra.mxu0 %v454
      %v927 = vpop.f32.mrf.mxu0
      %v928 = vadd.f32 0.0, %v927
      %v929 = vpop.f32.mrf.mxu0
      %v930 = vadd.f32 0.0, %v929
      %931 = vdwg.mxu0
      %932 = vmatpush.bf16.msra.mxu0 %v784
      %933 = vmatpush.bf16.msra.mxu0 %v783
      %934 = vmatpush.bf16.msra.mxu0 %v782
      %935 = vmatpush.bf16.msra.mxu0 %v781
      %936 = vmatpush.bf16.msra.mxu0 %v780
      %937 = vmatpush.bf16.msra.mxu0 %v779
      %938 = vmatpush.bf16.msra.mxu0 %v778
      %939 = vmatpush.bf16.msra.mxu0 %v777
      %940 = vmatmul.bf16.gmra.mxu0 %v446
      %v941 = vpop.f32.mrf.mxu0
      %v942 = vadd.f32 %v923, %v941
      %v943 = vpop.f32.mrf.mxu0
      %v944 = vadd.f32 %v925, %v943
      %945 = vmatmul.bf16.gmra.mxu0 %v455
      %v946 = vpop.f32.mrf.mxu0
      %v947 = vadd.f32 %v928, %v946
      %v948 = vpop.f32.mrf.mxu0
      %v949 = vadd.f32 %v930, %v948
      %950 = vdwg.mxu0
      %951 = vmatpush.bf16.msra.mxu0 %v792
      %952 = vmatpush.bf16.msra.mxu0 %v791
      %953 = vmatpush.bf16.msra.mxu0 %v790
      %954 = vmatpush.bf16.msra.mxu0 %v789
      %955 = vmatpush.bf16.msra.mxu0 %v788
      %956 = vmatpush.bf16.msra.mxu0 %v787
      %957 = vmatpush.bf16.msra.mxu0 %v786
      %958 = vmatpush.bf16.msra.mxu0 %v785
      %959 = vmatmul.bf16.gmra.mxu0 %v447
      %v960 = vpop.f32.mrf.mxu0
      %v961 = vadd.f32 %v942, %v960
      %v962 = vpop.f32.mrf.mxu0
      %v963 = vadd.f32 %v944, %v962
      %964 = vmatmul.bf16.gmra.mxu0 %v456
      %v965 = vpop.f32.mrf.mxu0
      %v966 = vadd.f32 %v947, %v965
      %v967 = vpop.f32.mrf.mxu0
      %v968 = vadd.f32 %v949, %v967
      %969 = vdwg.mxu0
      %970 = vmatpush.bf16.msra.mxu0 %v800
      %971 = vmatpush.bf16.msra.mxu0 %v799
      %972 = vmatpush.bf16.msra.mxu0 %v798
      %973 = vmatpush.bf16.msra.mxu0 %v797
      %974 = vmatpush.bf16.msra.mxu0 %v796
      %975 = vmatpush.bf16.msra.mxu0 %v795
      %976 = vmatpush.bf16.msra.mxu0 %v794
      %977 = vmatpush.bf16.msra.mxu0 %v793
      %978 = vmatmul.bf16.gmra.mxu0 %v448
      %v979 = vpop.f32.mrf.mxu0
      %v980 = vadd.f32 %v961, %v979
      %v981 = vpop.f32.mrf.mxu0
      %v982 = vadd.f32 %v963, %v981
      %983 = vmatmul.bf16.gmra.mxu0 %v457
      %v984 = vpop.f32.mrf.mxu0
      %v985 = vadd.f32 %v966, %v984
      %v986 = vpop.f32.mrf.mxu0
      %v987 = vadd.f32 %v968, %v986
      %988 = vdwg.mxu0
      %989 = vmatpush.bf16.msra.mxu0 %v808
      %990 = vmatpush.bf16.msra.mxu0 %v807
      %991 = vmatpush.bf16.msra.mxu0 %v806
      %992 = vmatpush.bf16.msra.mxu0 %v805
      %993 = vmatpush.bf16.msra.mxu0 %v804
      %994 = vmatpush.bf16.msra.mxu0 %v803
      %995 = vmatpush.bf16.msra.mxu0 %v802
      %996 = vmatpush.bf16.msra.mxu0 %v801
      %997 = vmatmul.bf16.gmra.mxu0 %v449
      %v998 = vpop.f32.mrf.mxu0
      %v999 = vadd.f32 %v980, %v998
      %v1000 = vpop.f32.mrf.mxu0
      %v1001 = vadd.f32 %v982, %v1000
      %1002 = vmatmul.bf16.gmra.mxu0 %v458
      %v1003 = vpop.f32.mrf.mxu0
      %v1004 = vadd.f32 %v985, %v1003
      %v1005 = vpop.f32.mrf.mxu0
      %v1006 = vadd.f32 %v987, %v1005
      %1007 = vdwg.mxu0
      %1008 = vmatpush.bf16.msra.mxu0 %v816
      %1009 = vmatpush.bf16.msra.mxu0 %v815
      %1010 = vmatpush.bf16.msra.mxu0 %v814
      %1011 = vmatpush.bf16.msra.mxu0 %v813
      %1012 = vmatpush.bf16.msra.mxu0 %v812
      %1013 = vmatpush.bf16.msra.mxu0 %v811
      %1014 = vmatpush.bf16.msra.mxu0 %v810
      %1015 = vmatpush.bf16.msra.mxu0 %v809
      %1016 = vmatmul.bf16.gmra.mxu0 %v450
      %v1017 = vpop.f32.mrf.mxu0
      %v1018 = vadd.f32 %v999, %v1017
      %v1019 = vpop.f32.mrf.mxu0
      %v1020 = vadd.f32 %v1001, %v1019
      %1021 = vmatmul.bf16.gmra.mxu0 %v459
      %v1022 = vpop.f32.mrf.mxu0
      %v1023 = vadd.f32 %v1004, %v1022
      %v1024 = vpop.f32.mrf.mxu0
      %v1025 = vadd.f32 %v1006, %v1024
      %1026 = vdwg.mxu0
      %1027 = vmatpush.bf16.msra.mxu0 %v824
      %1028 = vmatpush.bf16.msra.mxu0 %v823
      %1029 = vmatpush.bf16.msra.mxu0 %v822
      %1030 = vmatpush.bf16.msra.mxu0 %v821
      %1031 = vmatpush.bf16.msra.mxu0 %v820
      %1032 = vmatpush.bf16.msra.mxu0 %v819
      %1033 = vmatpush.bf16.msra.mxu0 %v818
      %1034 = vmatpush.bf16.msra.mxu0 %v817
      %1035 = vmatmul.bf16.gmra.mxu0 %v451
      %v1036 = vpop.f32.mrf.mxu0
      %v1037 = vadd.f32 %v1018, %v1036
      %v1038 = vpop.f32.mrf.mxu0
      %v1039 = vadd.f32 %v1020, %v1038
      %1040 = vmatmul.bf16.gmra.mxu0 %v460
      %v1041 = vpop.f32.mrf.mxu0
      %v1042 = vadd.f32 %v1023, %v1041
      %v1043 = vpop.f32.mrf.mxu0
      %v1044 = vadd.f32 %v1025, %v1043
      %1045 = vdwg.mxu0
      %1046 = vmatpush.bf16.msra.mxu0 %v832
      %1047 = vmatpush.bf16.msra.mxu0 %v831
      %1048 = vmatpush.bf16.msra.mxu0 %v830
      %1049 = vmatpush.bf16.msra.mxu0 %v829
      %1050 = vmatpush.bf16.msra.mxu0 %v828
      %1051 = vmatpush.bf16.msra.mxu0 %v827
      %1052 = vmatpush.bf16.msra.mxu0 %v826
      %1053 = vmatpush.bf16.msra.mxu0 %v825
      %1054 = vmatmul.bf16.gmra.mxu0 %v452
      %v1055 = vpop.f32.mrf.mxu0
      %v1056 = vadd.f32 %v1037, %v1055
      %v1057 = vpop.f32.mrf.mxu0
      %v1058 = vadd.f32 %v1039, %v1057
      %1059 = vmatmul.bf16.gmra.mxu0 %v461
      %v1060 = vpop.f32.mrf.mxu0
      %v1061 = vadd.f32 %v1042, %v1060
      %v1062 = vpop.f32.mrf.mxu0
      %v1063 = vadd.f32 %v1044, %v1062
      %1064 = vdwg.mxu0
      %1065 = vmatpush.bf16.msra.mxu0 %v840
      %1066 = vmatpush.bf16.msra.mxu0 %v839
      %1067 = vmatpush.bf16.msra.mxu0 %v838
      %1068 = vmatpush.bf16.msra.mxu0 %v837
      %1069 = vmatpush.bf16.msra.mxu0 %v836
      %1070 = vmatpush.bf16.msra.mxu0 %v835
      %1071 = vmatpush.bf16.msra.mxu0 %v834
      %1072 = vmatpush.bf16.msra.mxu0 %v833
      %1073 = vmatmul.bf16.gmra.mxu0 %v453
      %v1074 = vpop.f32.mrf.mxu0
      %v1075 = vadd.f32 %v1056, %v1074
      %v1076 = vpop.f32.mrf.mxu0
      %v1077 = vadd.f32 %v1058, %v1076
      %1078 = vmatmul.bf16.gmra.mxu0 %v462
      %v1079 = vpop.f32.mrf.mxu0
      %v1080 = vadd.f32 %v1061, %v1079
      %v1081 = vpop.f32.mrf.mxu0
      %v1082 = vadd.f32 %v1063, %v1081
      %1083 = vdwg.mxu0
      %v1084 = vpack.c.bf16 %v1075, %v1075
      %v1085 = vpack.c.bf16 %v1077, %v1077
      %v1086 = vpack.c.bf16 %v1080, %v1080
      %v1087 = vpack.c.bf16 %v1082, %v1082
      %1088 = vst [vmem:[%s215] sm:$0xf] %v1084
      %1089 = vst [vmem:[%s215 + $0x4] sm:$0xf] %v1085
      %1090 = vst [vmem:[%s215 + $0x8] sm:$0xf] %v1086
      %1091 = vst [vmem:[%s215 + $0xc] sm:$0xf] %v1087
      %v1092 = vadd.f32 %v1075, %v1077
      %v1093 = vadd.f32 %v1092, %v1080
      %v1094 = vadd.f32 %v1093, %v1082
      %v1095 = vrot.slane %v1094, 4
      %v1096 = vadd.f32 %v1094, %v1095
      %v1097 = vrot.slane %v1096, 2
      %v1098 = vadd.f32 %v1096, %v1097
      %v1099 = vrot.slane %v1098, 1
      %v1100 = vadd.f32 %v1098, %v1099
      %v1101 = vmul.f32 %v1075, %v1075
      %v1102 = vmul.f32 %v1077, %v1077
      %v1103 = vmul.f32 %v1080, %v1080
      %v1104 = vmul.f32 %v1082, %v1082
      %v1105 = vadd.f32 %v1101, %v1102
      %v1106 = vadd.f32 %v1105, %v1103
      %v1107 = vadd.f32 %v1106, %v1104
      %v1108 = vrot.slane %v1107, 4
      %v1109 = vadd.f32 %v1107, %v1108
      %v1110 = vrot.slane %v1109, 2
      %v1111 = vadd.f32 %v1109, %v1110
      %v1112 = vrot.slane %v1111, 1
      %v1113 = vadd.f32 %v1111, %v1112
      %1114 = vst [vmem:[%s220] sm:$0xff] %v1100
      %1115 = vst [vmem:[%s224] sm:$0xff] %v1113
      %s1116 = smul.u32 4, %s16
      %p1117 = scmp.lt.s32.totalorder %s1116, 7
      %s1118 = scalar_select %p1117, %s1116, 7
      %s1119 = smul.addr %s1118, 4
      %s1120 = scalar_lea.vmem %s2, %s1119
      %p1121 = scmp.lt.s32.totalorder %s16, 1
      %s1122 = scalar_select %p1121, %s16, 1
      %s1123 = smul.addr %s1122, 8
      %s1124 = scalar_lea.vmem %s3, %s1123
      %p1125 = scmp.lt.s32.totalorder %s16, 1
      %s1126 = scalar_select %p1125, %s16, 1
      %s1127 = smul.addr %s1126, 8
      %s1128 = scalar_lea.vmem %s4, %s1127
      // Predicated region
      $region29: #{_lambda_.20} parent=27 // pred_check
        %p1129 = pneg %p81
      $region30: #{_lambda_.20} parent=27 // pred_check_branch
        %1131 = sbr.rel (%p1129) target = $region32
      $region31: #{_lambda_.20} parent=27 // pred_region
        %s1132 = smul.u32 4, %s16
      $region32: #{_lambda_.20} parent=27 // pred_fallthru
        _
      // Predicated region
      $region33: #{_lambda_.20} parent=27 // pred_check
        %p1133 = pneg %p107
      $region34: #{_lambda_.20} parent=27 // pred_check_branch
        %1135 = sbr.rel (%p1133) target = $region36
      $region35: #{_lambda_.20} parent=27 // pred_region
        _
      $region36: #{_lambda_.20} parent=27 // pred_fallthru
        _
      // Predicated region
      $region37: #{_lambda_.20} parent=27 // pred_check
        %p1136 = pneg %p133
      $region38: #{_lambda_.20} parent=27 // pred_check_branch
        %1138 = sbr.rel (%p1136) target = $region40
      $region39: #{_lambda_.20} parent=27 // pred_region
        _
      $region40: #{_lambda_.20} parent=27 // pred_fallthru
        _
    $region28: #{_lambda_.20} parent=5 // pred_fallthru
      _
    %p1139 = scmp.le.s32.totalorder 2, %s11
    // Predicated region
    $region41: #{_lambda_.20} parent=5 // pred_check
      %p1140 = pneg %p1139
    $region42: #{_lambda_.20} parent=5 // pred_check_branch
      %1142 = sbr.rel (%p1140) target = $region44
    $region43: #{_lambda_.20} parent=5 // pred_region
      %s1143 = ssub.s32 %s11, 2
      // Predicated region
      $region45: #{_lambda_.20} parent=43 // pred_check
        %p1144 = pneg %p87
      $region46: #{_lambda_.20} parent=43 // pred_check_branch
        %1146 = sbr.rel (%p1144) target = $region48
      $region47: #{_lambda_.20} parent=43 // pred_region
        %s1147 = smul.u32 4, %s17
        %p1148 = scmp.lt.s32.totalorder %s1147, 7
        %s1149 = scalar_select %p1148, %s1147, 7
        %s1150 = smul.addr %s1149, 4
        %s1151 = scalar_lea.vmem %s2, %s1150
      $region48: #{_lambda_.20} parent=43 // pred_fallthru
        _
      // Predicated region
      $region49: #{_lambda_.20} parent=43 // pred_check
        %p1152 = pneg %p113
      $region50: #{_lambda_.20} parent=43 // pred_check_branch
        %1154 = sbr.rel (%p1152) target = $region52
      $region51: #{_lambda_.20} parent=43 // pred_region
        %p1155 = scmp.lt.s32.totalorder %s17, 1
        %s1156 = scalar_select %p1155, %s17, 1
        %s1157 = smul.addr %s1156, 8
        %s1158 = scalar_lea.vmem %s3, %s1157
      $region52: #{_lambda_.20} parent=43 // pred_fallthru
        _
      // Predicated region
      $region53: #{_lambda_.20} parent=43 // pred_check
        %p1159 = pneg %p139
      $region54: #{_lambda_.20} parent=43 // pred_check_branch
        %1161 = sbr.rel (%p1159) target = $region56
      $region55: #{_lambda_.20} parent=43 // pred_region
        %p1162 = scmp.lt.s32.totalorder %s17, 1
        %s1163 = scalar_select %p1162, %s17, 1
        %s1164 = smul.addr %s1163, 8
        %s1165 = scalar_lea.vmem %s4, %s1164
      $region56: #{_lambda_.20} parent=43 // pred_fallthru
        _
    $region44: #{_lambda_.20} parent=5 // pred_fallthru
      _
  $region6: #{_lambda_.20} parent=0 // loop_footer
    %s15 = sadd.s32 1, %s11
  $region7: #{_lambda_.20} parent=0 // loop_footer_branch
    %10 = sbr.rel target = $region3
  $region8: #{_lambda_.20} parent=0 // loop_exit
    _

// kernel: _lambda_.21
$region0: #{_lambda_.21}
  #allocation0 [shape = 'u32[]', space=smem, size = 0x4, offset = 0x4, fixed_abs, tag = 'smem constant byte address 0x4 - core index']
  #allocation1 [shape = 'u32[72,128]{1,0:T(1,128)}', space=vmem, size = 0x9000, scoped, tag = 'internal scratch']
  %s0 = inlined_call_operand.vmem [shape: bf16[64,128], index: 0, kind: input, shape index: {}]
  %s1 = inlined_call_operand.vmem [shape: f32[1,128], index: 1, kind: input, shape index: {}]
  %s2 = inlined_call_operand.vmem [shape: f32[1,128], index: 2, kind: input, shape index: {}]
  %s3 = inlined_call_operand.vmem [shape: bf16[64,128], index: 3, kind: output, shape index: {}]
  %s4 = sld [smem:[#allocation0]]
  $region45: #{_lambda_.21} parent=0
    _
  %s6 = ssub.s32 1, %s4
  %s7 = scalar_select 0, %s6, %s4
  loop: start=0, step=1, limit=4
  $region2: #{_lambda_.21} parent=0 // loop_pre_header
    _
  $region3: #{_lambda_.21} parent=0 // loop_header
    %s9 = sphi 0, %s13
    %p10 = scmp.ge.s32.totalorder %s9, 4
    %s19 = sphi 0, %s21
    %s22 = sphi 0, %s19
    %s23 = sphi 0, %s22
    %s39 = sphi 0, %s23
    %s43 = sphi 0, %s43
    %s45 = sphi 0, %s43
    %s46 = sphi 0, %s45
    %s60 = sphi 0, %s46
    %s64 = sphi 0, %s64
    %s66 = sphi 0, %s64
    %s67 = sphi 0, %s66
    %s81 = sphi 0, %s67
    %s87 = sphi 0, %s89
    %s90 = sphi 0, %s87
    %s91 = sphi 0, %s90
    %s107 = sphi 0, %s91
  $region4: #{_lambda_.21} parent=0 // loop_header_branch
    %12 = sbr.rel (%p10) target = $region8
  $region5: #{_lambda_.21} parent=0 // loop_body
    %s14 = ssub.s32 %s9, 1
    %s15 = ssub.s32 %s9, 2
    %s16 = sadd.s32 %s9, 1
    %s17 = ssub.s32 %s9, %s16
    %p18 = scmp.eq.s32.totalorder %s17, 0
    %s20 = sadd.s32 %s19, 1
    %s21 = scalar_select %p18, %s19, %s20
    %p24 = pneg %p18
    %p25 = scmp.eq.s32.totalorder %s9, 1
    %p26 = por %p24, %p25
    %p27 = scmp.ne.s32.totalorder %s19, %s22
    %p28 = scmp.eq.s32.totalorder %s9, 0
    %p29 = por %p27, %p28
    %p30 = scmp.ne.s32.totalorder %s19, %s22
    %p31 = scmp.eq.s32.totalorder %s14, 1
    %p32 = por %p30, %p31
    %p33 = scmp.ne.s32.totalorder %s22, %s23
    %p34 = scmp.eq.s32.totalorder %s14, 0
    %p35 = por %p33, %p34
    %p36 = scmp.ne.s32.totalorder %s22, %s23
    %p37 = scmp.eq.s32.totalorder %s15, 1
    %p38 = por %p36, %p37
    %p40 = scmp.ne.s32.totalorder %s23, %s39
    %p41 = scmp.eq.s32.totalorder %s15, 0
    %p42 = por %p40, %p41
    %s44 = sadd.s32 %s43, 1
    %p47 = scmp.eq.s32.totalorder %s9, 1
    %p48 = scmp.ne.s32.totalorder %s43, %s45
    %p49 = scmp.eq.s32.totalorder %s9, 0
    %p50 = por %p48, %p49
    %p51 = scmp.ne.s32.totalorder %s43, %s45
    %p52 = scmp.eq.s32.totalorder %s14, 1
    %p53 = por %p51, %p52
    %p54 = scmp.ne.s32.totalorder %s45, %s46
    %p55 = scmp.eq.s32.totalorder %s14, 0
    %p56 = por %p54, %p55
    %p57 = scmp.ne.s32.totalorder %s45, %s46
    %p58 = scmp.eq.s32.totalorder %s15, 1
    %p59 = por %p57, %p58
    %p61 = scmp.ne.s32.totalorder %s46, %s60
    %p62 = scmp.eq.s32.totalorder %s15, 0
    %p63 = por %p61, %p62
    %s65 = sadd.s32 %s64, 1
    %p68 = scmp.eq.s32.totalorder %s9, 1
    %p69 = scmp.ne.s32.totalorder %s64, %s66
    %p70 = scmp.eq.s32.totalorder %s9, 0
    %p71 = por %p69, %p70
    %p72 = scmp.ne.s32.totalorder %s64, %s66
    %p73 = scmp.eq.s32.totalorder %s14, 1
    %p74 = por %p72, %p73
    %p75 = scmp.ne.s32.totalorder %s66, %s67
    %p76 = scmp.eq.s32.totalorder %s14, 0
    %p77 = por %p75, %p76
    %p78 = scmp.ne.s32.totalorder %s66, %s67
    %p79 = scmp.eq.s32.totalorder %s15, 1
    %p80 = por %p78, %p79
    %p82 = scmp.ne.s32.totalorder %s67, %s81
    %p83 = scmp.eq.s32.totalorder %s15, 0
    %p84 = por %p82, %p83
    %s85 = ssub.s32 %s9, %s16
    %p86 = scmp.eq.s32.totalorder %s85, 0
    %s88 = sadd.s32 %s87, 1
    %s89 = scalar_select %p86, %s87, %s88
    %p92 = pneg %p86
    %p93 = scmp.eq.s32.totalorder %s9, 1
    %p94 = por %p92, %p93
    %p95 = scmp.ne.s32.totalorder %s87, %s90
    %p96 = scmp.eq.s32.totalorder %s9, 0
    %p97 = por %p95, %p96
    %p98 = scmp.ne.s32.totalorder %s87, %s90
    %p99 = scmp.eq.s32.totalorder %s14, 1
    %p100 = por %p98, %p99
    %p101 = scmp.ne.s32.totalorder %s90, %s91
    %p102 = scmp.eq.s32.totalorder %s14, 0
    %p103 = por %p101, %p102
    %p104 = scmp.ne.s32.totalorder %s90, %s91
    %p105 = scmp.eq.s32.totalorder %s15, 1
    %p106 = por %p104, %p105
    %p108 = scmp.ne.s32.totalorder %s91, %s107
    %p109 = scmp.eq.s32.totalorder %s15, 0
    %p110 = por %p108, %p109
    %p111 = scmp.le.s32.totalorder 1, %s9
    %p112 = scmp.lt.s32.totalorder %s9, 3
    %p113 = pnand %p111, %p112
    %p114 = pneg %p113
    // Predicated region
    $region9: #{_lambda_.21} parent=5 // pred_check
      _
    $region10: #{_lambda_.21} parent=5 // pred_check_branch
      %116 = sbr.rel (%p113) target = $region12
    $region11: #{_lambda_.21} parent=5 // pred_region
      %s117 = ssub.s32 %s9, 1
      // Predicated region
      $region13: #{_lambda_.21} parent=11 // pred_check
        %p118 = pneg %p56
      $region14: #{_lambda_.21} parent=11 // pred_check_branch
        %120 = sbr.rel (%p118) target = $region16
      $region15: #{_lambda_.21} parent=11 // pred_region
        _
      $region16: #{_lambda_.21} parent=11 // pred_fallthru
        _
      // Predicated region
      $region17: #{_lambda_.21} parent=11 // pred_check
        %p121 = pneg %p77
      $region18: #{_lambda_.21} parent=11 // pred_check_branch
        %123 = sbr.rel (%p121) target = $region20
      $region19: #{_lambda_.21} parent=11 // pred_region
        _
      $region20: #{_lambda_.21} parent=11 // pred_fallthru
        _
    $region12: #{_lambda_.21} parent=5 // pred_fallthru
      _
    %p124 = scmp.lt.s32.totalorder %s9, 2
    // Predicated region
    $region21: #{_lambda_.21} parent=5 // pred_check
      %p125 = pneg %p124
    $region22: #{_lambda_.21} parent=5 // pred_check_branch
      %127 = sbr.rel (%p125) target = $region24
    $region23: #{_lambda_.21} parent=5 // pred_region
      // Predicated region
      $region25: #{_lambda_.21} parent=23 // pred_check
        %p128 = pneg %p29
      $region26: #{_lambda_.21} parent=23 // pred_check_branch
        %130 = sbr.rel (%p128) target = $region28
      $region27: #{_lambda_.21} parent=23 // pred_region
        %s131 = smul.u32 4, %s9
        %p132 = scmp.lt.s32.totalorder %s131, 7
        %s133 = scalar_select %p132, %s131, 7
        %s134 = smul.addr %s133, 4
        %s135 = scalar_lea.vmem %s0, %s134
        %s136 = smul.u32 4, %s9
      $region28: #{_lambda_.21} parent=23 // pred_fallthru
        _
    $region24: #{_lambda_.21} parent=5 // pred_fallthru
      _
    %p137 = scmp.le.s32.totalorder 1, %s9
    %p138 = scmp.lt.s32.totalorder %s9, 3
    %p139 = pnand %p137, %p138
    %p140 = pneg %p139
    // Predicated region
    $region29: #{_lambda_.21} parent=5 // pred_check
      _
    $region30: #{_lambda_.21} parent=5 // pred_check_branch
      %142 = sbr.rel (%p139) target = $region32
    $region31: #{_lambda_.21} parent=5 // pred_region
      %s143 = ssub.s32 %s9, 1
      %s144 = smul.u32 4, %s14
      %p145 = scmp.lt.s32.totalorder %s144, 7
      %s146 = scalar_select %p145, %s144, 7
      %s147 = smul.addr %s146, 4
      %s148 = scalar_lea.vmem %s0, %s147
      %p149 = pneg %p35
      %p150 = pneg %p32
      %p151 = pneg %p56
      %p152 = pneg %p53
      %p153 = pneg %p77
      %p154 = pneg %p74
      %p155 = pneg %p103
      %p156 = pneg %p100
      %s157 = smul.u32 4, %s14
      %p158 = scmp.lt.s32.totalorder %s157, 7
      %s159 = scalar_select %p158, %s157, 7
      %s160 = smul.addr %s159, 4
      %s161 = scalar_lea.vmem %s3, %s160
      %s162 = smul.u32 4, %s14
      %p163 = scmp.lt.s32.totalorder %s162, 7
      %s164 = scalar_select %p163, %s162, 7
      %s165 = smul.addr %s164, 4
      %s166 = scalar_lea.vmem %s0, %s165
      %s167 = smul.u32 4, %s14
      %s168 = smul.u32 4, %s14
      %p169 = scmp.lt.s32.totalorder %s168, 7
      %s170 = scalar_select %p169, %s168, 7
      %s171 = smul.addr %s170, 4
      %s172 = scalar_lea.vmem %s3, %s171
      %s173 = smul.u32 4, %s14
      %v174 = vld [vmem:[%s166] sm:$0xf]
      %v175 = vld [vmem:[%s166 + $0x4] sm:$0xf]
      %v176 = vld [vmem:[%s166 + $0x8] sm:$0xf]
      %v177 = vld [vmem:[%s166 + $0xc] sm:$0xf]
      %v178 = vunpack.c.l.bf16 %v174
      %v179 = vunpack.c.l.bf16 %v175
      %v180 = vunpack.c.l.bf16 %v176
      %v181 = vunpack.c.l.bf16 %v177
      %v182 = vld [vmem:[%s1] sm:$0x1]
      %v184 = vperm.slane %v182, 0
      %v186 = vmul.f32 %v178, %v184
      %v187 = vmul.f32 %v179, %v184
      %v188 = vmul.f32 %v180, %v184
      %v189 = vmul.f32 %v181, %v184
      %v190 = vld [vmem:[%s2] sm:$0x1]
      %v192 = vperm.slane %v190, 0
      %v194 = vadd.f32 %v186, %v192
      %v195 = vadd.f32 %v187, %v192
      %v196 = vadd.f32 %v188, %v192
      %v197 = vadd.f32 %v189, %v192
      %v198 = vmax.f32 %v194, 0.0
      %v199 = vmax.f32 %v195, 0.0
      %v200 = vmax.f32 %v196, 0.0
      %v201 = vmax.f32 %v197, 0.0
      %v202 = vpack.c.bf16 %v198, %v198
      %v203 = vpack.c.bf16 %v199, %v199
      %v204 = vpack.c.bf16 %v200, %v200
      %v205 = vpack.c.bf16 %v201, %v201
      %206 = vst [vmem:[%s172] sm:$0xf] %v202
      %207 = vst [vmem:[%s172 + $0x4] sm:$0xf] %v203
      %208 = vst [vmem:[%s172 + $0x8] sm:$0xf] %v204
      %209 = vst [vmem:[%s172 + $0xc] sm:$0xf] %v205
      %s210 = smul.u32 4, %s14
      %p211 = scmp.lt.s32.totalorder %s210, 7
      %s212 = scalar_select %p211, %s210, 7
      %s213 = smul.addr %s212, 4
      %s214 = scalar_lea.vmem %s3, %s213
      // Predicated region
      $region33: #{_lambda_.21} parent=31 // pred_check
        %p215 = pneg %p100
      $region34: #{_lambda_.21} parent=31 // pred_check_branch
        %217 = sbr.rel (%p215) target = $region36
      $region35: #{_lambda_.21} parent=31 // pred_region
        %s218 = smul.u32 4, %s14
      $region36: #{_lambda_.21} parent=31 // pred_fallthru
        _
    $region32: #{_lambda_.21} parent=5 // pred_fallthru
      _
    %p219 = scmp.le.s32.totalorder 2, %s9
    // Predicated region
    $region37: #{_lambda_.21} parent=5 // pred_check
      %p220 = pneg %p219
    $region38: #{_lambda_.21} parent=5 // pred_check_branch
      %222 = sbr.rel (%p220) target = $region40
    $region39: #{_lambda_.21} parent=5 // pred_region
      %s223 = ssub.s32 %s9, 2
      // Predicated region
      $region41: #{_lambda_.21} parent=39 // pred_check
        %p224 = pneg %p106
      $region42: #{_lambda_.21} parent=39 // pred_check_branch
        %226 = sbr.rel (%p224) target = $region44
      $region43: #{_lambda_.21} parent=39 // pred_region
        %s227 = smul.u32 4, %s15
        %p228 = scmp.lt.s32.totalorder %s227, 7
        %s229 = scalar_select %p228, %s227, 7
        %s230 = smul.addr %s229, 4
        %s231 = scalar_lea.vmem %s3, %s230
      $region44: #{_lambda_.21} parent=39 // pred_fallthru
        _
    $region40: #{_lambda_.21} parent=5 // pred_fallthru
      _
  $region6: #{_lambda_.21} parent=0 // loop_footer
    %s13 = sadd.s32 1, %s9
  $region7: #{_lambda_.21} parent=0 // loop_footer_branch
    %8 = sbr.rel target = $region3
  $region8: #{_lambda_.21} parent=0 // loop_exit
    _

// kernel: _lambda_.23
$region0: #{_lambda_.23}
  #allocation0 [shape = 'u32[]', space=smem, size = 0x4, offset = 0x4, fixed_abs, tag = 'smem constant byte address 0x4 - core index']
  #allocation1 [shape = 'u32[72,128]{1,0:T(1,128)}', space=vmem, size = 0x9000, scoped, tag = 'internal scratch']
  %s0 = inlined_call_operand.vmem [shape: bf16[64,128], index: 0, kind: input, shape index: {}]
  %s1 = inlined_call_operand.vmem [shape: f32[1,128], index: 1, kind: input, shape index: {}]
  %s2 = inlined_call_operand.vmem [shape: f32[1,128], index: 2, kind: input, shape index: {}]
  %s3 = inlined_call_operand.vmem [shape: bf16[64,128], index: 3, kind: input, shape index: {}, may-alias: {3,4}]
  %s4 = inlined_call_operand.vmem [shape: bf16[64,128], index: 4, kind: output, shape index: {}, may-alias: {3,4}]
  %s5 = sld [smem:[#allocation0]]
  $region49: #{_lambda_.23} parent=0
    _
  %s7 = ssub.s32 1, %s5
  %s8 = scalar_select 0, %s7, %s5
  loop: start=0, step=1, limit=4
  $region2: #{_lambda_.23} parent=0 // loop_pre_header
    _
  $region3: #{_lambda_.23} parent=0 // loop_header
    %s10 = sphi 0, %s14
    %p11 = scmp.ge.s32.totalorder %s10, 4
    %s20 = sphi 0, %s22
    %s23 = sphi 0, %s20
    %s24 = sphi 0, %s23
    %s40 = sphi 0, %s24
    %s44 = sphi 0, %s44
    %s46 = sphi 0, %s44
    %s47 = sphi 0, %s46
    %s61 = sphi 0, %s47
    %s65 = sphi 0, %s65
    %s67 = sphi 0, %s65
    %s68 = sphi 0, %s67
    %s82 = sphi 0, %s68
    %s88 = sphi 0, %s90
    %s91 = sphi 0, %s88
    %s92 = sphi 0, %s91
    %s108 = sphi 0, %s92
    %s114 = sphi 0, %s116
    %s117 = sphi 0, %s114
    %s118 = sphi 0, %s117
    %s134 = sphi 0, %s118
  $region4: #{_lambda_.23} parent=0 // loop_header_branch
    %13 = sbr.rel (%p11) target = $region8
  $region5: #{_lambda_.23} parent=0 // loop_body
    %s15 = ssub.s32 %s10, 1
    %s16 = ssub.s32 %s10, 2
    %s17 = sadd.s32 %s10, 1
    %s18 = ssub.s32 %s10, %s17
    %p19 = scmp.eq.s32.totalorder %s18, 0
    %s21 = sadd.s32 %s20, 1
    %s22 = scalar_select %p19, %s20, %s21
    %p25 = pneg %p19
    %p26 = scmp.eq.s32.totalorder %s10, 1
    %p27 = por %p25, %p26
    %p28 = scmp.ne.s32.totalorder %s20, %s23
    %p29 = scmp.eq.s32.totalorder %s10, 0
    %p30 = por %p28, %p29
    %p31 = scmp.ne.s32.totalorder %s20, %s23
    %p32 = scmp.eq.s32.totalorder %s15, 1
    %p33 = por %p31, %p32
    %p34 = scmp.ne.s32.totalorder %s23, %s24
    %p35 = scmp.eq.s32.totalorder %s15, 0
    %p36 = por %p34, %p35
    %p37 = scmp.ne.s32.totalorder %s23, %s24
    %p38 = scmp.eq.s32.totalorder %s16, 1
    %p39 = por %p37, %p38
    %p41 = scmp.ne.s32.totalorder %s24, %s40
    %p42 = scmp.eq.s32.totalorder %s16, 0
    %p43 = por %p41, %p42
    %s45 = sadd.s32 %s44, 1
    %p48 = scmp.eq.s32.totalorder %s10, 1
    %p49 = scmp.ne.s32.totalorder %s44, %s46
    %p50 = scmp.eq.s32.totalorder %s10, 0
    %p51 = por %p49, %p50
    %p52 = scmp.ne.s32.totalorder %s44, %s46
    %p53 = scmp.eq.s32.totalorder %s15, 1
    %p54 = por %p52, %p53
    %p55 = scmp.ne.s32.totalorder %s46, %s47
    %p56 = scmp.eq.s32.totalorder %s15, 0
    %p57 = por %p55, %p56
    %p58 = scmp.ne.s32.totalorder %s46, %s47
    %p59 = scmp.eq.s32.totalorder %s16, 1
    %p60 = por %p58, %p59
    %p62 = scmp.ne.s32.totalorder %s47, %s61
    %p63 = scmp.eq.s32.totalorder %s16, 0
    %p64 = por %p62, %p63
    %s66 = sadd.s32 %s65, 1
    %p69 = scmp.eq.s32.totalorder %s10, 1
    %p70 = scmp.ne.s32.totalorder %s65, %s67
    %p71 = scmp.eq.s32.totalorder %s10, 0
    %p72 = por %p70, %p71
    %p73 = scmp.ne.s32.totalorder %s65, %s67
    %p74 = scmp.eq.s32.totalorder %s15, 1
    %p75 = por %p73, %p74
    %p76 = scmp.ne.s32.totalorder %s67, %s68
    %p77 = scmp.eq.s32.totalorder %s15, 0
    %p78 = por %p76, %p77
    %p79 = scmp.ne.s32.totalorder %s67, %s68
    %p80 = scmp.eq.s32.totalorder %s16, 1
    %p81 = por %p79, %p80
    %p83 = scmp.ne.s32.totalorder %s68, %s82
    %p84 = scmp.eq.s32.totalorder %s16, 0
    %p85 = por %p83, %p84
    %s86 = ssub.s32 %s10, %s17
    %p87 = scmp.eq.s32.totalorder %s86, 0
    %s89 = sadd.s32 %s88, 1
    %s90 = scalar_select %p87, %s88, %s89
    %p93 = pneg %p87
    %p94 = scmp.eq.s32.totalorder %s10, 1
    %p95 = por %p93, %p94
    %p96 = scmp.ne.s32.totalorder %s88, %s91
    %p97 = scmp.eq.s32.totalorder %s10, 0
    %p98 = por %p96, %p97
    %p99 = scmp.ne.s32.totalorder %s88, %s91
    %p100 = scmp.eq.s32.totalorder %s15, 1
    %p101 = por %p99, %p100
    %p102 = scmp.ne.s32.totalorder %s91, %s92
    %p103 = scmp.eq.s32.totalorder %s15, 0
    %p104 = por %p102, %p103
    %p105 = scmp.ne.s32.totalorder %s91, %s92
    %p106 = scmp.eq.s32.totalorder %s16, 1
    %p107 = por %p105, %p106
    %p109 = scmp.ne.s32.totalorder %s92, %s108
    %p110 = scmp.eq.s32.totalorder %s16, 0
    %p111 = por %p109, %p110
    %s112 = ssub.s32 %s10, %s17
    %p113 = scmp.eq.s32.totalorder %s112, 0
    %s115 = sadd.s32 %s114, 1
    %s116 = scalar_select %p113, %s114, %s115
    %p119 = pneg %p113
    %p120 = scmp.eq.s32.totalorder %s10, 1
    %p121 = por %p119, %p120
    %p122 = scmp.ne.s32.totalorder %s114, %s117
    %p123 = scmp.eq.s32.totalorder %s10, 0
    %p124 = por %p122, %p123
    %p125 = scmp.ne.s32.totalorder %s114, %s117
    %p126 = scmp.eq.s32.totalorder %s15, 1
    %p127 = por %p125, %p126
    %p128 = scmp.ne.s32.totalorder %s117, %s118
    %p129 = scmp.eq.s32.totalorder %s15, 0
    %p130 = por %p128, %p129
    %p131 = scmp.ne.s32.totalorder %s117, %s118
    %p132 = scmp.eq.s32.totalorder %s16, 1
    %p133 = por %p131, %p132
    %p135 = scmp.ne.s32.totalorder %s118, %s134
    %p136 = scmp.eq.s32.totalorder %s16, 0
    %p137 = por %p135, %p136
    %p138 = scmp.le.s32.totalorder 1, %s10
    %p139 = scmp.lt.s32.totalorder %s10, 3
    %p140 = pnand %p138, %p139
    %p141 = pneg %p140
    // Predicated region
    $region9: #{_lambda_.23} parent=5 // pred_check
      _
    $region10: #{_lambda_.23} parent=5 // pred_check_branch
      %143 = sbr.rel (%p140) target = $region12
    $region11: #{_lambda_.23} parent=5 // pred_region
      %s144 = ssub.s32 %s10, 1
      // Predicated region
      $region13: #{_lambda_.23} parent=11 // pred_check
        %p145 = pneg %p57
      $region14: #{_lambda_.23} parent=11 // pred_check_branch
        %147 = sbr.rel (%p145) target = $region16
      $region15: #{_lambda_.23} parent=11 // pred_region
        _
      $region16: #{_lambda_.23} parent=11 // pred_fallthru
        _
      // Predicated region
      $region17: #{_lambda_.23} parent=11 // pred_check
        %p148 = pneg %p78
      $region18: #{_lambda_.23} parent=11 // pred_check_branch
        %150 = sbr.rel (%p148) target = $region20
      $region19: #{_lambda_.23} parent=11 // pred_region
        _
      $region20: #{_lambda_.23} parent=11 // pred_fallthru
        _
    $region12: #{_lambda_.23} parent=5 // pred_fallthru
      _
    %p151 = scmp.lt.s32.totalorder %s10, 2
    // Predicated region
    $region21: #{_lambda_.23} parent=5 // pred_check
      %p152 = pneg %p151
    $region22: #{_lambda_.23} parent=5 // pred_check_branch
      %154 = sbr.rel (%p152) target = $region24
    $region23: #{_lambda_.23} parent=5 // pred_region
      // Predicated region
      $region25: #{_lambda_.23} parent=23 // pred_check
        %p155 = pneg %p30
      $region26: #{_lambda_.23} parent=23 // pred_check_branch
        %157 = sbr.rel (%p155) target = $region28
      $region27: #{_lambda_.23} parent=23 // pred_region
        %s158 = smul.u32 4, %s10
        %p159 = scmp.lt.s32.totalorder %s158, 7
        %s160 = scalar_select %p159, %s158, 7
        %s161 = smul.addr %s160, 4
        %s162 = scalar_lea.vmem %s0, %s161
        %s163 = smul.u32 4, %s10
      $region28: #{_lambda_.23} parent=23 // pred_fallthru
        _
      // Predicated region
      $region29: #{_lambda_.23} parent=23 // pred_check
        %p164 = pneg %p98
      $region30: #{_lambda_.23} parent=23 // pred_check_branch
        %166 = sbr.rel (%p164) target = $region32
      $region31: #{_lambda_.23} parent=23 // pred_region
        %s167 = smul.u32 4, %s10
        %p168 = scmp.lt.s32.totalorder %s167, 7
        %s169 = scalar_select %p168, %s167, 7
        %s170 = smul.addr %s169, 4
        %s171 = scalar_lea.vmem %s3, %s170
        %s172 = smul.u32 4, %s10
      $region32: #{_lambda_.23} parent=23 // pred_fallthru
        _
    $region24: #{_lambda_.23} parent=5 // pred_fallthru
      _
    %p173 = scmp.le.s32.totalorder 1, %s10
    %p174 = scmp.lt.s32.totalorder %s10, 3
    %p175 = pnand %p173, %p174
    %p176 = pneg %p175
    // Predicated region
    $region33: #{_lambda_.23} parent=5 // pred_check
      _
    $region34: #{_lambda_.23} parent=5 // pred_check_branch
      %178 = sbr.rel (%p175) target = $region36
    $region35: #{_lambda_.23} parent=5 // pred_region
      %s179 = ssub.s32 %s10, 1
      %s180 = smul.u32 4, %s15
      %p181 = scmp.lt.s32.totalorder %s180, 7
      %s182 = scalar_select %p181, %s180, 7
      %s183 = smul.addr %s182, 4
      %s184 = scalar_lea.vmem %s0, %s183
      %p185 = pneg %p36
      %p186 = pneg %p33
      %p187 = pneg %p57
      %p188 = pneg %p54
      %p189 = pneg %p78
      %p190 = pneg %p75
      %s191 = smul.u32 4, %s15
      %p192 = scmp.lt.s32.totalorder %s191, 7
      %s193 = scalar_select %p192, %s191, 7
      %s194 = smul.addr %s193, 4
      %s195 = scalar_lea.vmem %s3, %s194
      %p196 = pneg %p104
      %p197 = pneg %p101
      %p198 = pneg %p130
      %p199 = pneg %p127
      %s200 = smul.u32 4, %s15
      %p201 = scmp.lt.s32.totalorder %s200, 7
      %s202 = scalar_select %p201, %s200, 7
      %s203 = smul.addr %s202, 4
      %s204 = scalar_lea.vmem %s4, %s203
      %s205 = smul.u32 4, %s15
      %p206 = scmp.lt.s32.totalorder %s205, 7
      %s207 = scalar_select %p206, %s205, 7
      %s208 = smul.addr %s207, 4
      %s209 = scalar_lea.vmem %s0, %s208
      %s210 = smul.u32 4, %s15
      %s211 = smul.u32 4, %s15
      %p212 = scmp.lt.s32.totalorder %s211, 7
      %s213 = scalar_select %p212, %s211, 7
      %s214 = smul.addr %s213, 4
      %s215 = scalar_lea.vmem %s3, %s214
      %s216 = smul.u32 4, %s15
      %s217 = smul.u32 4, %s15
      %p218 = scmp.lt.s32.totalorder %s217, 7
      %s219 = scalar_select %p218, %s217, 7
      %s220 = smul.addr %s219, 4
      %s221 = scalar_lea.vmem %s4, %s220
      %s222 = smul.u32 4, %s15
      %v223 = vld [vmem:[%s209] sm:$0xf]
      %v224 = vld [vmem:[%s209 + $0x4] sm:$0xf]
      %v225 = vld [vmem:[%s209 + $0x8] sm:$0xf]
      %v226 = vld [vmem:[%s209 + $0xc] sm:$0xf]
      %v227 = vunpack.c.l.bf16 %v223
      %v228 = vunpack.c.l.bf16 %v224
      %v229 = vunpack.c.l.bf16 %v225
      %v230 = vunpack.c.l.bf16 %v226
      %v231 = vld [vmem:[%s1] sm:$0x1]
      %v233 = vperm.slane %v231, 0
      %v235 = vmul.f32 %v227, %v233
      %v236 = vmul.f32 %v228, %v233
      %v237 = vmul.f32 %v229, %v233
      %v238 = vmul.f32 %v230, %v233
      %v239 = vld [vmem:[%s2] sm:$0x1]
      %v241 = vperm.slane %v239, 0
      %v243 = vadd.f32 %v235, %v241
      %v244 = vadd.f32 %v236, %v241
      %v245 = vadd.f32 %v237, %v241
      %v246 = vadd.f32 %v238, %v241
      %v247 = vld [vmem:[%s215] sm:$0xf]
      %v248 = vld [vmem:[%s215 + $0x4] sm:$0xf]
      %v249 = vld [vmem:[%s215 + $0x8] sm:$0xf]
      %v250 = vld [vmem:[%s215 + $0xc] sm:$0xf]
      %v251 = vunpack.c.l.bf16 %v247
      %v252 = vunpack.c.l.bf16 %v248
      %v253 = vunpack.c.l.bf16 %v249
      %v254 = vunpack.c.l.bf16 %v250
      %v255 = vadd.f32 %v243, %v251
      %v256 = vadd.f32 %v244, %v252
      %v257 = vadd.f32 %v245, %v253
      %v258 = vadd.f32 %v246, %v254
      %v259 = vmax.f32 %v255, 0.0
      %v260 = vmax.f32 %v256, 0.0
      %v261 = vmax.f32 %v257, 0.0
      %v262 = vmax.f32 %v258, 0.0
      %v263 = vpack.c.bf16 %v259, %v259
      %v264 = vpack.c.bf16 %v260, %v260
      %v265 = vpack.c.bf16 %v261, %v261
      %v266 = vpack.c.bf16 %v262, %v262
      %267 = vst [vmem:[%s221] sm:$0xf] %v263
      %268 = vst [vmem:[%s221 + $0x4] sm:$0xf] %v264
      %269 = vst [vmem:[%s221 + $0x8] sm:$0xf] %v265
      %270 = vst [vmem:[%s221 + $0xc] sm:$0xf] %v266
      %s271 = smul.u32 4, %s15
      %p272 = scmp.lt.s32.totalorder %s271, 7
      %s273 = scalar_select %p272, %s271, 7
      %s274 = smul.addr %s273, 4
      %s275 = scalar_lea.vmem %s4, %s274
      // Predicated region
      $region37: #{_lambda_.23} parent=35 // pred_check
        %p276 = pneg %p127
      $region38: #{_lambda_.23} parent=35 // pred_check_branch
        %278 = sbr.rel (%p276) target = $region40
      $region39: #{_lambda_.23} parent=35 // pred_region
        %s279 = smul.u32 4, %s15
      $region40: #{_lambda_.23} parent=35 // pred_fallthru
        _
    $region36: #{_lambda_.23} parent=5 // pred_fallthru
      _
    %p280 = scmp.le.s32.totalorder 2, %s10
    // Predicated region
    $region41: #{_lambda_.23} parent=5 // pred_check
      %p281 = pneg %p280
    $region42: #{_lambda_.23} parent=5 // pred_check_branch
      %283 = sbr.rel (%p281) target = $region44
    $region43: #{_lambda_.23} parent=5 // pred_region
      %s284 = ssub.s32 %s10, 2
      // Predicated region
      $region45: #{_lambda_.23} parent=43 // pred_check
        %p285 = pneg %p133
      $region46: #{_lambda_.23} parent=43 // pred_check_branch
        %287 = sbr.rel (%p285) target = $region48
      $region47: #{_lambda_.23} parent=43 // pred_region
        %s288 = smul.u32 4, %s16
        %p289 = scmp.lt.s32.totalorder %s288, 7
        %s290 = scalar_select %p289, %s288, 7
        %s291 = smul.addr %s290, 4
        %s292 = scalar_lea.vmem %s4, %s291
      $region48: #{_lambda_.23} parent=43 // pred_fallthru
        _
    $region44: #{_lambda_.23} parent=5 // pred_fallthru
      _
  $region6: #{_lambda_.23} parent=0 // loop_footer
    %s14 = sadd.s32 1, %s10
  $region7: #{_lambda_.23} parent=0 // loop_footer_branch
    %9 = sbr.rel target = $region3
  $region8: #{_lambda_.23} parent=0 // loop_exit
    _

// kernel: tile.133
$region0: #{tile.133}
  #allocation0 [shape = 's32[1]{0}', space=sflag, size = 0x4, scoped, tag = 'scoped memory for tile.133']
  %s0 = inlined_call_operand.vmem [shape: f32[8], index: 0, kind: input, shape index: {}]
  %s1 = inlined_call_operand.vmem [shape: f32[16,8], index: 1, kind: output, shape index: {}]
  // Predicated region
  $region2: #{tile.133} parent=0 // pred_check
    _
  $region3: #{tile.133} parent=0 // pred_check_branch
    %3 = sbr.rel (0) target = $region5
  $region4: #{tile.133} parent=0 // pred_region
    _
  $region5: #{tile.133} parent=0 // pred_fallthru
    _
  %v4 = vld [vmem:[%s0] ss:$0 sm:$0xff]
  %5 = vst [vmem:[%s1] sm:$0xff] %v4
  %s6 = scalar_lea.vmem %s1, 8
  %7 = vst [vmem:[%s6] sm:$0xff] %v4

// kernel: tile.134
$region0: #{tile.134}
  %s0 = inlined_call_operand.vmem [shape: f32[16,8], index: 0, kind: input, shape index: {}]
  %s1 = inlined_call_operand.vmem [shape: f32[1,128], index: 1, kind: output, shape index: {}]
  $region1: #{tile.134} parent=0
    #allocation0 [shape = 'u8[4096]{0}', space=vmem, size = 0x1000, scoped, tag = 'scoped mem for output reshape']
    %v2 = vld [vmem:[%s0] sm:$0x1]
    %vm3 = vcmask 64512
    %4 = vst.msk [vmem:[#allocation0] sm:$0x1] %vm3, %v2
    %s5 = scalar_lea.vmem %s0, 15
    %v6 = vld [vmem:[%s5] sm:$0x1]
    %7 = vrot.lane.b32.xlu0 %v6, 120
    %v8 = vpop.permute.xlu0 %7
    %vm9 = vcmask 1048512
    %10 = vst.msk [vmem:[#allocation0] sm:$0x1] %vm9, %v8
    %s11 = scalar_lea.vmem %s0, 14
    %v12 = vld [vmem:[%s11] sm:$0x1]
    %13 = vrot.lane.b32.xlu0 %v12, 112
    %v14 = vpop.permute.xlu0 %13
    %vm15 = vcmask 982912
    %16 = vst.msk [vmem:[#allocation0] sm:$0x1] %vm15, %v14
    %s17 = scalar_lea.vmem %s0, 13
    %v18 = vld [vmem:[%s17] sm:$0x1]
    %19 = vrot.lane.b32.xlu0 %v18, 104
    %v20 = vpop.permute.xlu0 %19
    %vm21 = vcmask 917312
    %22 = vst.msk [vmem:[#allocation0] sm:$0x1] %vm21, %v20
    %s23 = scalar_lea.vmem %s0, 12
    %v24 = vld [vmem:[%s23] sm:$0x1]
    %25 = vrot.lane.b32.xlu0 %v24, 96
    %v26 = vpop.permute.xlu0 %25
    %vm27 = vcmask 851712
    %28 = vst.msk [vmem:[#allocation0] sm:$0x1] %vm27, %v26
    %s29 = scalar_lea.vmem %s0, 11
    %v30 = vld [vmem:[%s29] sm:$0x1]
    %31 = vrot.lane.b32.xlu0 %v30, 88
    %v32 = vpop.permute.xlu0 %31
    %vm33 = vcmask 786112
    %34 = vst.msk [vmem:[#allocation0] sm:$0x1] %vm33, %v32
    %s35 = scalar_lea.vmem %s0, 10
    %v36 = vld [vmem:[%s35] sm:$0x1]
    %37 = vrot.lane.b32.xlu0 %v36, 80
    %v38 = vpop.permute.xlu0 %37
    %vm39 = vcmask 720512
    %40 = vst.msk [vmem:[#allocation0] sm:$0x1] %vm39, %v38
    %s41 = scalar_lea.vmem %s0, 9
    %v42 = vld [vmem:[%s41] sm:$0x1]
    %43 = vrot.lane.b32.xlu0 %v42, 72
    %v44 = vpop.permute.xlu0 %43
    %vm45 = vcmask 654912
    %46 = vst.msk [vmem:[#allocation0] sm:$0x1] %vm45, %v44
    %s47 = scalar_lea.vmem %s0, 8
    %v48 = vld [vmem:[%s47] sm:$0x1]
    %49 = vrot.lane.b32.xlu0 %v48, 64
    %v50 = vpop.permute.xlu0 %49
    %vm51 = vcmask 589312
    %52 = vst.msk [vmem:[#allocation0] sm:$0x1] %vm51, %v50
    %s53 = scalar_lea.vmem %s0, 7
    %v54 = vld [vmem:[%s53] sm:$0x1]
    %55 = vrot.lane.b32.xlu0 %v54, 56
    %v56 = vpop.permute.xlu0 %55
    %vm57 = vcmask 523712
    %58 = vst.msk [vmem:[#allocation0] sm:$0x1] %vm57, %v56
    %s59 = scalar_lea.vmem %s0, 6
    %v60 = vld [vmem:[%s59] sm:$0x1]
    %61 = vrot.lane.b32.xlu0 %v60, 48
    %v62 = vpop.permute.xlu0 %61
    %vm63 = vcmask 458112
    %64 = vst.msk [vmem:[#allocation0] sm:$0x1] %vm63, %v62
    %s65 = scalar_lea.vmem %s0, 5
    %v66 = vld [vmem:[%s65] sm:$0x1]
    %67 = vrot.lane.b32.xlu0 %v66, 40
    %v68 = vpop.permute.xlu0 %67
    %vm69 = vcmask 392512
    %70 = vst.msk [vmem:[#allocation0] sm:$0x1] %vm69, %v68
    %s71 = scalar_lea.vmem %s0, 4
    %v72 = vld [vmem:[%s71] sm:$0x1]
    %73 = vrot.lane.b32.xlu0 %v72, 32
    %v74 = vpop.permute.xlu0 %73
    %vm75 = vcmask 326912
    %76 = vst.msk [vmem:[#allocation0] sm:$0x1] %vm75, %v74
    %s77 = scalar_lea.vmem %s0, 3
    %v78 = vld [vmem:[%s77] sm:$0x1]
    %79 = vrot.lane.b32.xlu0 %v78, 24
    %v80 = vpop.permute.xlu0 %79
    %vm81 = vcmask 261312
    %82 = vst.msk [vmem:[#allocation0] sm:$0x1] %vm81, %v80
    %s83 = scalar_lea.vmem %s0, 2
    %v84 = vld [vmem:[%s83] sm:$0x1]
    %85 = vrot.lane.b32.xlu0 %v84, 16
    %v86 = vpop.permute.xlu0 %85
    %vm87 = vcmask 195712
    %88 = vst.msk [vmem:[#allocation0] sm:$0x1] %vm87, %v86
    %s89 = scalar_lea.vmem %s0, 1
    %v90 = vld [vmem:[%s89] sm:$0x1]
    %91 = vrot.lane.b32.xlu0 %v90, 8
    %v92 = vpop.permute.xlu0 %91
    %vm93 = vcmask 130112
    %94 = vst.msk [vmem:[#allocation0] sm:$0x1] %vm93, %v92
    %s96 = ssub.s32 2, 1
    %v97 = vld [vmem:[#allocation0] sm:%s96]
    %s99 = ssub.s32 2, 1
    %100 = vst [vmem:[%s1] sm:%s99] %v97

// kernel: _lambda_.29
$region0: #{_lambda_.29}
  #allocation0 [shape = 'u32[]', space=smem, size = 0x4, offset = 0x4, fixed_abs, tag = 'smem constant byte address 0x4 - core index']
  #allocation1 [shape = 'u32[72,128]{1,0:T(1,128)}', space=vmem, size = 0x9000, scoped, tag = 'internal scratch']
  %s0 = inlined_call_operand.vmem [shape: bf16[128,128], index: 0, kind: input, shape index: {}]
  %s1 = inlined_call_operand.vmem [shape: f32[1,128], index: 1, kind: input, shape index: {}]
  %s2 = inlined_call_operand.vmem [shape: f32[1,128], index: 2, kind: input, shape index: {}]
  %s3 = inlined_call_operand.vmem [shape: bf16[128,128], index: 3, kind: output, shape index: {}]
  %s4 = sld [smem:[#allocation0]]
  $region45: #{_lambda_.29} parent=0
    _
  %s6 = ssub.s32 1, %s4
  %s7 = scalar_select 0, %s6, %s4
  loop: start=0, step=1, limit=4
  $region2: #{_lambda_.29} parent=0 // loop_pre_header
    _
  $region3: #{_lambda_.29} parent=0 // loop_header
    %s9 = sphi 0, %s13
    %p10 = scmp.ge.s32.totalorder %s9, 4
    %s19 = sphi 0, %s21
    %s22 = sphi 0, %s19
    %s23 = sphi 0, %s22
    %s39 = sphi 0, %s23
    %s43 = sphi 0, %s43
    %s45 = sphi 0, %s43
    %s46 = sphi 0, %s45
    %s60 = sphi 0, %s46
    %s64 = sphi 0, %s64
    %s66 = sphi 0, %s64
    %s67 = sphi 0, %s66
    %s81 = sphi 0, %s67
    %s87 = sphi 0, %s89
    %s90 = sphi 0, %s87
    %s91 = sphi 0, %s90
    %s107 = sphi 0, %s91
  $region4: #{_lambda_.29} parent=0 // loop_header_branch
    %12 = sbr.rel (%p10) target = $region8
  $region5: #{_lambda_.29} parent=0 // loop_body
    %s14 = ssub.s32 %s9, 1
    %s15 = ssub.s32 %s9, 2
    %s16 = sadd.s32 %s9, 1
    %s17 = ssub.s32 %s9, %s16
    %p18 = scmp.eq.s32.totalorder %s17, 0
    %s20 = sadd.s32 %s19, 1
    %s21 = scalar_select %p18, %s19, %s20
    %p24 = pneg %p18
    %p25 = scmp.eq.s32.totalorder %s9, 1
    %p26 = por %p24, %p25
    %p27 = scmp.ne.s32.totalorder %s19, %s22
    %p28 = scmp.eq.s32.totalorder %s9, 0
    %p29 = por %p27, %p28
    %p30 = scmp.ne.s32.totalorder %s19, %s22
    %p31 = scmp.eq.s32.totalorder %s14, 1
    %p32 = por %p30, %p31
    %p33 = scmp.ne.s32.totalorder %s22, %s23
    %p34 = scmp.eq.s32.totalorder %s14, 0
    %p35 = por %p33, %p34
    %p36 = scmp.ne.s32.totalorder %s22, %s23
    %p37 = scmp.eq.s32.totalorder %s15, 1
    %p38 = por %p36, %p37
    %p40 = scmp.ne.s32.totalorder %s23, %s39
    %p41 = scmp.eq.s32.totalorder %s15, 0
    %p42 = por %p40, %p41
    %s44 = sadd.s32 %s43, 1
    %p47 = scmp.eq.s32.totalorder %s9, 1
    %p48 = scmp.ne.s32.totalorder %s43, %s45
    %p49 = scmp.eq.s32.totalorder %s9, 0
    %p50 = por %p48, %p49
    %p51 = scmp.ne.s32.totalorder %s43, %s45
    %p52 = scmp.eq.s32.totalorder %s14, 1
    %p53 = por %p51, %p52
    %p54 = scmp.ne.s32.totalorder %s45, %s46
    %p55 = scmp.eq.s32.totalorder %s14, 0
    %p56 = por %p54, %p55
    %p57 = scmp.ne.s32.totalorder %s45, %s46
    %p58 = scmp.eq.s32.totalorder %s15, 1
    %p59 = por %p57, %p58
    %p61 = scmp.ne.s32.totalorder %s46, %s60
    %p62 = scmp.eq.s32.totalorder %s15, 0
    %p63 = por %p61, %p62
    %s65 = sadd.s32 %s64, 1
    %p68 = scmp.eq.s32.totalorder %s9, 1
    %p69 = scmp.ne.s32.totalorder %s64, %s66
    %p70 = scmp.eq.s32.totalorder %s9, 0
    %p71 = por %p69, %p70
    %p72 = scmp.ne.s32.totalorder %s64, %s66
    %p73 = scmp.eq.s32.totalorder %s14, 1
    %p74 = por %p72, %p73
    %p75 = scmp.ne.s32.totalorder %s66, %s67
    %p76 = scmp.eq.s32.totalorder %s14, 0
    %p77 = por %p75, %p76
    %p78 = scmp.ne.s32.totalorder %s66, %s67
    %p79 = scmp.eq.s32.totalorder %s15, 1
    %p80 = por %p78, %p79
    %p82 = scmp.ne.s32.totalorder %s67, %s81
    %p83 = scmp.eq.s32.totalorder %s15, 0
    %p84 = por %p82, %p83
    %s85 = ssub.s32 %s9, %s16
    %p86 = scmp.eq.s32.totalorder %s85, 0
    %s88 = sadd.s32 %s87, 1
    %s89 = scalar_select %p86, %s87, %s88
    %p92 = pneg %p86
    %p93 = scmp.eq.s32.totalorder %s9, 1
    %p94 = por %p92, %p93
    %p95 = scmp.ne.s32.totalorder %s87, %s90
    %p96 = scmp.eq.s32.totalorder %s9, 0
    %p97 = por %p95, %p96
    %p98 = scmp.ne.s32.totalorder %s87, %s90
    %p99 = scmp.eq.s32.totalorder %s14, 1
    %p100 = por %p98, %p99
    %p101 = scmp.ne.s32.totalorder %s90, %s91
    %p102 = scmp.eq.s32.totalorder %s14, 0
    %p103 = por %p101, %p102
    %p104 = scmp.ne.s32.totalorder %s90, %s91
    %p105 = scmp.eq.s32.totalorder %s15, 1
    %p106 = por %p104, %p105
    %p108 = scmp.ne.s32.totalorder %s91, %s107
    %p109 = scmp.eq.s32.totalorder %s15, 0
    %p110 = por %p108, %p109
    %p111 = scmp.le.s32.totalorder 1, %s9
    %p112 = scmp.lt.s32.totalorder %s9, 3
    %p113 = pnand %p111, %p112
    %p114 = pneg %p113
    // Predicated region
    $region9: #{_lambda_.29} parent=5 // pred_check
      _
    $region10: #{_lambda_.29} parent=5 // pred_check_branch
      %116 = sbr.rel (%p113) target = $region12
    $region11: #{_lambda_.29} parent=5 // pred_region
      %s117 = ssub.s32 %s9, 1
      // Predicated region
      $region13: #{_lambda_.29} parent=11 // pred_check
        %p118 = pneg %p56
      $region14: #{_lambda_.29} parent=11 // pred_check_branch
        %120 = sbr.rel (%p118) target = $region16
      $region15: #{_lambda_.29} parent=11 // pred_region
        _
      $region16: #{_lambda_.29} parent=11 // pred_fallthru
        _
      // Predicated region
      $region17: #{_lambda_.29} parent=11 // pred_check
        %p121 = pneg %p77
      $region18: #{_lambda_.29} parent=11 // pred_check_branch
        %123 = sbr.rel (%p121) target = $region20
      $region19: #{_lambda_.29} parent=11 // pred_region
        _
      $region20: #{_lambda_.29} parent=11 // pred_fallthru
        _
    $region12: #{_lambda_.29} parent=5 // pred_fallthru
      _
    %p124 = scmp.lt.s32.totalorder %s9, 2
    // Predicated region
    $region21: #{_lambda_.29} parent=5 // pred_check
      %p125 = pneg %p124
    $region22: #{_lambda_.29} parent=5 // pred_check_branch
      %127 = sbr.rel (%p125) target = $region24
    $region23: #{_lambda_.29} parent=5 // pred_region
      // Predicated region
      $region25: #{_lambda_.29} parent=23 // pred_check
        %p128 = pneg %p29
      $region26: #{_lambda_.29} parent=23 // pred_check_branch
        %130 = sbr.rel (%p128) target = $region28
      $region27: #{_lambda_.29} parent=23 // pred_region
        %s131 = smul.u32 8, %s9
        %p132 = scmp.lt.s32.totalorder %s131, 15
        %s133 = scalar_select %p132, %s131, 15
        %s134 = smul.addr %s133, 4
        %s135 = scalar_lea.vmem %s0, %s134
        %s136 = smul.u32 8, %s9
      $region28: #{_lambda_.29} parent=23 // pred_fallthru
        _
    $region24: #{_lambda_.29} parent=5 // pred_fallthru
      _
    %p137 = scmp.le.s32.totalorder 1, %s9
    %p138 = scmp.lt.s32.totalorder %s9, 3
    %p139 = pnand %p137, %p138
    %p140 = pneg %p139
    // Predicated region
    $region29: #{_lambda_.29} parent=5 // pred_check
      _
    $region30: #{_lambda_.29} parent=5 // pred_check_branch
      %142 = sbr.rel (%p139) target = $region32
    $region31: #{_lambda_.29} parent=5 // pred_region
      %s143 = ssub.s32 %s9, 1
      %s144 = smul.u32 8, %s14
      %p145 = scmp.lt.s32.totalorder %s144, 15
      %s146 = scalar_select %p145, %s144, 15
      %s147 = smul.addr %s146, 4
      %s148 = scalar_lea.vmem %s0, %s147
      %p149 = pneg %p35
      %p150 = pneg %p32
      %p151 = pneg %p56
      %p152 = pneg %p53
      %p153 = pneg %p77
      %p154 = pneg %p74
      %p155 = pneg %p103
      %p156 = pneg %p100
      %s157 = smul.u32 8, %s14
      %p158 = scmp.lt.s32.totalorder %s157, 15
      %s159 = scalar_select %p158, %s157, 15
      %s160 = smul.addr %s159, 4
      %s161 = scalar_lea.vmem %s3, %s160
      %s162 = smul.u32 8, %s14
      %p163 = scmp.lt.s32.totalorder %s162, 15
      %s164 = scalar_select %p163, %s162, 15
      %s165 = smul.addr %s164, 4
      %s166 = scalar_lea.vmem %s0, %s165
      %s167 = smul.u32 8, %s14
      %s168 = smul.u32 8, %s14
      %p169 = scmp.lt.s32.totalorder %s168, 15
      %s170 = scalar_select %p169, %s168, 15
      %s171 = smul.addr %s170, 4
      %s172 = scalar_lea.vmem %s3, %s171
      %s173 = smul.u32 8, %s14
      %v174 = vld [vmem:[%s166] sm:$0xf]
      %v175 = vld [vmem:[%s166 + $0x4] sm:$0xf]
      %v176 = vld [vmem:[%s166 + $0x8] sm:$0xf]
      %v177 = vld [vmem:[%s166 + $0xc] sm:$0xf]
      %v178 = vld [vmem:[%s166 + $0x10] sm:$0xf]
      %v179 = vld [vmem:[%s166 + $0x14] sm:$0xf]
      %v180 = vld [vmem:[%s166 + $0x18] sm:$0xf]
      %v181 = vld [vmem:[%s166 + $0x1c] sm:$0xf]
      %v182 = vunpack.c.l.bf16 %v174
      %v183 = vunpack.c.l.bf16 %v175
      %v184 = vunpack.c.l.bf16 %v176
      %v185 = vunpack.c.l.bf16 %v177
      %v186 = vunpack.c.l.bf16 %v178
      %v187 = vunpack.c.l.bf16 %v179
      %v188 = vunpack.c.l.bf16 %v180
      %v189 = vunpack.c.l.bf16 %v181
      %v190 = vld [vmem:[%s1] sm:$0x1]
      %v192 = vperm.slane %v190, 0
      %v194 = vmul.f32 %v182, %v192
      %v195 = vmul.f32 %v183, %v192
      %v196 = vmul.f32 %v184, %v192
      %v197 = vmul.f32 %v185, %v192
      %v198 = vmul.f32 %v186, %v192
      %v199 = vmul.f32 %v187, %v192
      %v200 = vmul.f32 %v188, %v192
      %v201 = vmul.f32 %v189, %v192
      %v202 = vld [vmem:[%s2] sm:$0x1]
      %v204 = vperm.slane %v202, 0
      %v206 = vadd.f32 %v194, %v204
      %v207 = vadd.f32 %v195, %v204
      %v208 = vadd.f32 %v196, %v204
      %v209 = vadd.f32 %v197, %v204
      %v210 = vadd.f32 %v198, %v204
      %v211 = vadd.f32 %v199, %v204
      %v212 = vadd.f32 %v200, %v204
      %v213 = vadd.f32 %v201, %v204
      %v214 = vmax.f32 %v206, 0.0
      %v215 = vmax.f32 %v207, 0.0
      %v216 = vmax.f32 %v208, 0.0
      %v217 = vmax.f32 %v209, 0.0
      %v218 = vmax.f32 %v210, 0.0
      %v219 = vmax.f32 %v211, 0.0
      %v220 = vmax.f32 %v212, 0.0
      %v221 = vmax.f32 %v213, 0.0
      %v222 = vpack.c.bf16 %v214, %v214
      %v223 = vpack.c.bf16 %v215, %v215
      %v224 = vpack.c.bf16 %v216, %v216
      %v225 = vpack.c.bf16 %v217, %v217
      %v226 = vpack.c.bf16 %v218, %v218
      %v227 = vpack.c.bf16 %v219, %v219
      %v228 = vpack.c.bf16 %v220, %v220
      %v229 = vpack.c.bf16 %v221, %v221
      %230 = vst [vmem:[%s172] sm:$0xf] %v222
      %231 = vst [vmem:[%s172 + $0x4] sm:$0xf] %v223
      %232 = vst [vmem:[%s172 + $0x8] sm:$0xf] %v224
      %233 = vst [vmem:[%s172 + $0xc] sm:$0xf] %v225
      %234 = vst [vmem:[%s172 + $0x10] sm:$0xf] %v226
      %235 = vst [vmem:[%s172 + $0x14] sm:$0xf] %v227
      %236 = vst [vmem:[%s172 + $0x18] sm:$0xf] %v228
      %237 = vst [vmem:[%s172 + $0x1c] sm:$0xf] %v229
      %s238 = smul.u32 8, %s14
      %p239 = scmp.lt.s32.totalorder %s238, 15
      %s240 = scalar_select %p239, %s238, 15
      %s241 = smul.addr %s240, 4
      %s242 = scalar_lea.vmem %s3, %s241
      // Predicated region
      $region33: #{_lambda_.29} parent=31 // pred_check
        %p243 = pneg %p100
      $region34: #{_lambda_.29} parent=31 // pred_check_branch
        %245 = sbr.rel (%p243) target = $region36
      $region35: #{_lambda_.29} parent=31 // pred_region
        %s246 = smul.u32 8, %s14
      $region36: #{_lambda_.29} parent=31 // pred_fallthru
        _
    $region32: #{_lambda_.29} parent=5 // pred_fallthru
      _
    %p247 = scmp.le.s32.totalorder 2, %s9
    // Predicated region
    $region37: #{_lambda_.29} parent=5 // pred_check
      %p248 = pneg %p247
    $region38: #{_lambda_.29} parent=5 // pred_check_branch
      %250 = sbr.rel (%p248) target = $region40
    $region39: #{_lambda_.29} parent=5 // pred_region
      %s251 = ssub.s32 %s9, 2
      // Predicated region
      $region41: #{_lambda_.29} parent=39 // pred_check
        %p252 = pneg %p106
      $region42: #{_lambda_.29} parent=39 // pred_check_branch
        %254 = sbr.rel (%p252) target = $region44
      $region43: #{_lambda_.29} parent=39 // pred_region
        %s255 = smul.u32 8, %s15
        %p256 = scmp.lt.s32.totalorder %s255, 15
        %s257 = scalar_select %p256, %s255, 15
        %s258 = smul.addr %s257, 4
        %s259 = scalar_lea.vmem %s3, %s258
      $region44: #{_lambda_.29} parent=39 // pred_fallthru
        _
    $region40: #{_lambda_.29} parent=5 // pred_fallthru
      _
  $region6: #{_lambda_.29} parent=0 // loop_footer
    %s13 = sadd.s32 1, %s9
  $region7: #{_lambda_.29} parent=0 // loop_footer_branch
    %8 = sbr.rel target = $region3
  $region8: #{_lambda_.29} parent=0 // loop_exit
    _

// kernel: _lambda_.28
$region0: #{_lambda_.28}
  #allocation0 [shape = 'u32[]', space=smem, size = 0x4, offset = 0x4, fixed_abs, tag = 'smem constant byte address 0x4 - core index']
  #allocation1 [shape = 'u32[72,128]{1,0:T(1,128)}', space=vmem, size = 0x9000, scoped, tag = 'internal scratch']
  %s0 = inlined_call_operand.vmem [shape: bf16[128,2304], index: 0, kind: input, shape index: {}]
  %s1 = inlined_call_operand.vmem [shape: bf16[2304,128], index: 1, kind: input, shape index: {}]
  %s2 = inlined_call_operand.vmem [shape: bf16[128,128], index: 2, kind: output, shape index: {0}]
  %s3 = inlined_call_operand.vmem [shape: f32[2,8,128], index: 3, kind: output, shape index: {1}]
  %s4 = inlined_call_operand.vmem [shape: f32[2,8,128], index: 4, kind: output, shape index: {2}]
  %5 = xla_tuple %s2, %s3, %s4
  %s6 = sld [smem:[#allocation0]]
  $region57: #{_lambda_.28} parent=0
    _
  %s8 = ssub.s32 1, %s6
  %s9 = scalar_select 0, %s8, %s6
  loop: start=0, step=1, limit=4
  $region2: #{_lambda_.28} parent=0 // loop_pre_header
    _
  $region3: #{_lambda_.28} parent=0 // loop_header
    %s11 = sphi 0, %s15
    %p12 = scmp.ge.s32.totalorder %s11, 4
    %s21 = sphi 0, %s23
    %s24 = sphi 0, %s21
    %s25 = sphi 0, %s24
    %s41 = sphi 0, %s25
    %s45 = sphi 0, %s45
    %s47 = sphi 0, %s45
    %s48 = sphi 0, %s47
    %s62 = sphi 0, %s48
    %s68 = sphi 0, %s70
    %s71 = sphi 0, %s68
    %s72 = sphi 0, %s71
    %s88 = sphi 0, %s72
    %s94 = sphi 0, %s96
    %s97 = sphi 0, %s94
    %s98 = sphi 0, %s97
    %s114 = sphi 0, %s98
    %s120 = sphi 0, %s122
    %s123 = sphi 0, %s120
    %s124 = sphi 0, %s123
    %s140 = sphi 0, %s124
  $region4: #{_lambda_.28} parent=0 // loop_header_branch
    %14 = sbr.rel (%p12) target = $region8
  $region5: #{_lambda_.28} parent=0 // loop_body
    %s16 = ssub.s32 %s11, 1
    %s17 = ssub.s32 %s11, 2
    %s18 = sadd.s32 %s11, 1
    %s19 = ssub.s32 %s11, %s18
    %p20 = scmp.eq.s32.totalorder %s19, 0
    %s22 = sadd.s32 %s21, 1
    %s23 = scalar_select %p20, %s21, %s22
    %p26 = pneg %p20
    %p27 = scmp.eq.s32.totalorder %s11, 1
    %p28 = por %p26, %p27
    %p29 = scmp.ne.s32.totalorder %s21, %s24
    %p30 = scmp.eq.s32.totalorder %s11, 0
    %p31 = por %p29, %p30
    %p32 = scmp.ne.s32.totalorder %s21, %s24
    %p33 = scmp.eq.s32.totalorder %s16, 1
    %p34 = por %p32, %p33
    %p35 = scmp.ne.s32.totalorder %s24, %s25
    %p36 = scmp.eq.s32.totalorder %s16, 0
    %p37 = por %p35, %p36
    %p38 = scmp.ne.s32.totalorder %s24, %s25
    %p39 = scmp.eq.s32.totalorder %s17, 1
    %p40 = por %p38, %p39
    %p42 = scmp.ne.s32.totalorder %s25, %s41
    %p43 = scmp.eq.s32.totalorder %s17, 0
    %p44 = por %p42, %p43
    %s46 = sadd.s32 %s45, 1
    %p49 = scmp.eq.s32.totalorder %s11, 1
    %p50 = scmp.ne.s32.totalorder %s45, %s47
    %p51 = scmp.eq.s32.totalorder %s11, 0
    %p52 = por %p50, %p51
    %p53 = scmp.ne.s32.totalorder %s45, %s47
    %p54 = scmp.eq.s32.totalorder %s16, 1
    %p55 = por %p53, %p54
    %p56 = scmp.ne.s32.totalorder %s47, %s48
    %p57 = scmp.eq.s32.totalorder %s16, 0
    %p58 = por %p56, %p57
    %p59 = scmp.ne.s32.totalorder %s47, %s48
    %p60 = scmp.eq.s32.totalorder %s17, 1
    %p61 = por %p59, %p60
    %p63 = scmp.ne.s32.totalorder %s48, %s62
    %p64 = scmp.eq.s32.totalorder %s17, 0
    %p65 = por %p63, %p64
    %s66 = ssub.s32 %s11, %s18
    %p67 = scmp.eq.s32.totalorder %s66, 0
    %s69 = sadd.s32 %s68, 1
    %s70 = scalar_select %p67, %s68, %s69
    %p73 = pneg %p67
    %p74 = scmp.eq.s32.totalorder %s11, 1
    %p75 = por %p73, %p74
    %p76 = scmp.ne.s32.totalorder %s68, %s71
    %p77 = scmp.eq.s32.totalorder %s11, 0
    %p78 = por %p76, %p77
    %p79 = scmp.ne.s32.totalorder %s68, %s71
    %p80 = scmp.eq.s32.totalorder %s16, 1
    %p81 = por %p79, %p80
    %p82 = scmp.ne.s32.totalorder %s71, %s72
    %p83 = scmp.eq.s32.totalorder %s16, 0
    %p84 = por %p82, %p83
    %p85 = scmp.ne.s32.totalorder %s71, %s72
    %p86 = scmp.eq.s32.totalorder %s17, 1
    %p87 = por %p85, %p86
    %p89 = scmp.ne.s32.totalorder %s72, %s88
    %p90 = scmp.eq.s32.totalorder %s17, 0
    %p91 = por %p89, %p90
    %s92 = ssub.s32 %s11, %s18
    %p93 = scmp.eq.s32.totalorder %s92, 0
    %s95 = sadd.s32 %s94, 1
    %s96 = scalar_select %p93, %s94, %s95
    %p99 = pneg %p93
    %p100 = scmp.eq.s32.totalorder %s11, 1
    %p101 = por %p99, %p100
    %p102 = scmp.ne.s32.totalorder %s94, %s97
    %p103 = scmp.eq.s32.totalorder %s11, 0
    %p104 = por %p102, %p103
    %p105 = scmp.ne.s32.totalorder %s94, %s97
    %p106 = scmp.eq.s32.totalorder %s16, 1
    %p107 = por %p105, %p106
    %p108 = scmp.ne.s32.totalorder %s97, %s98
    %p109 = scmp.eq.s32.totalorder %s16, 0
    %p110 = por %p108, %p109
    %p111 = scmp.ne.s32.totalorder %s97, %s98
    %p112 = scmp.eq.s32.totalorder %s17, 1
    %p113 = por %p111, %p112
    %p115 = scmp.ne.s32.totalorder %s98, %s114
    %p116 = scmp.eq.s32.totalorder %s17, 0
    %p117 = por %p115, %p116
    %s118 = ssub.s32 %s11, %s18
    %p119 = scmp.eq.s32.totalorder %s118, 0
    %s121 = sadd.s32 %s120, 1
    %s122 = scalar_select %p119, %s120, %s121
    %p125 = pneg %p119
    %p126 = scmp.eq.s32.totalorder %s11, 1
    %p127 = por %p125, %p126
    %p128 = scmp.ne.s32.totalorder %s120, %s123
    %p129 = scmp.eq.s32.totalorder %s11, 0
    %p130 = por %p128, %p129
    %p131 = scmp.ne.s32.totalorder %s120, %s123
    %p132 = scmp.eq.s32.totalorder %s16, 1
    %p133 = por %p131, %p132
    %p134 = scmp.ne.s32.totalorder %s123, %s124
    %p135 = scmp.eq.s32.totalorder %s16, 0
    %p136 = por %p134, %p135
    %p137 = scmp.ne.s32.totalorder %s123, %s124
    %p138 = scmp.eq.s32.totalorder %s17, 1
    %p139 = por %p137, %p138
    %p141 = scmp.ne.s32.totalorder %s124, %s140
    %p142 = scmp.eq.s32.totalorder %s17, 0
    %p143 = por %p141, %p142
    %p144 = scmp.le.s32.totalorder 1, %s11
    %p145 = scmp.lt.s32.totalorder %s11, 3
    %p146 = pnand %p144, %p145
    %p147 = pneg %p146
    // Predicated region
    $region9: #{_lambda_.28} parent=5 // pred_check
      _
    $region10: #{_lambda_.28} parent=5 // pred_check_branch
      %149 = sbr.rel (%p146) target = $region12
    $region11: #{_lambda_.28} parent=5 // pred_region
      %s150 = ssub.s32 %s11, 1
      // Predicated region
      $region13: #{_lambda_.28} parent=11 // pred_check
        %p151 = pneg %p58
      $region14: #{_lambda_.28} parent=11 // pred_check_branch
        %153 = sbr.rel (%p151) target = $region16
      $region15: #{_lambda_.28} parent=11 // pred_region
        _
      $region16: #{_lambda_.28} parent=11 // pred_fallthru
        _
    $region12: #{_lambda_.28} parent=5 // pred_fallthru
      _
    %p154 = scmp.lt.s32.totalorder %s11, 2
    // Predicated region
    $region17: #{_lambda_.28} parent=5 // pred_check
      %p155 = pneg %p154
    $region18: #{_lambda_.28} parent=5 // pred_check_branch
      %157 = sbr.rel (%p155) target = $region20
    $region19: #{_lambda_.28} parent=5 // pred_region
      // Predicated region
      $region21: #{_lambda_.28} parent=19 // pred_check
        %p158 = pneg %p31
      $region22: #{_lambda_.28} parent=19 // pred_check_branch
        %160 = sbr.rel (%p158) target = $region24
      $region23: #{_lambda_.28} parent=19 // pred_region
        %s161 = smul.u32 8, %s11
        %p162 = scmp.lt.s32.totalorder %s161, 15
        %s163 = scalar_select %p162, %s161, 15
        %s164 = smul.addr %s163, 18
        %s165 = smul.addr %s164, 4
        %s166 = scalar_lea.vmem %s0, %s165
        %s167 = smul.u32 8, %s11
      $region24: #{_lambda_.28} parent=19 // pred_fallthru
        _
    $region20: #{_lambda_.28} parent=5 // pred_fallthru
      _
    %p168 = scmp.le.s32.totalorder 1, %s11
    %p169 = scmp.lt.s32.totalorder %s11, 3
    %p170 = pnand %p168, %p169
    %p171 = pneg %p170
    // Predicated region
    $region25: #{_lambda_.28} parent=5 // pred_check
      _
    $region26: #{_lambda_.28} parent=5 // pred_check_branch
      %173 = sbr.rel (%p170) target = $region28
    $region27: #{_lambda_.28} parent=5 // pred_region
      %s174 = ssub.s32 %s11, 1
      %s175 = smul.u32 8, %s16
      %p176 = scmp.lt.s32.totalorder %s175, 15
      %s177 = scalar_select %p176, %s175, 15
      %s178 = smul.addr %s177, 18
      %s179 = smul.addr %s178, 4
      %s180 = scalar_lea.vmem %s0, %s179
      %p181 = pneg %p37
      %p182 = pneg %p34
      %p183 = pneg %p58
      %p184 = pneg %p55
      %p185 = pneg %p84
      %p186 = pneg %p81
      %s187 = smul.u32 8, %s16
      %p188 = scmp.lt.s32.totalorder %s187, 15
      %s189 = scalar_select %p188, %s187, 15
      %s190 = smul.addr %s189, 4
      %s191 = scalar_lea.vmem %s2, %s190
      %p192 = pneg %p110
      %p193 = pneg %p107
      %p194 = scmp.lt.s32.totalorder %s16, 1
      %s195 = scalar_select %p194, %s16, 1
      %s196 = smul.addr %s195, 8
      %s197 = scalar_lea.vmem %s3, %s196
      %p198 = pneg %p136
      %p199 = pneg %p133
      %p200 = scmp.lt.s32.totalorder %s16, 1
      %s201 = scalar_select %p200, %s16, 1
      %s202 = smul.addr %s201, 8
      %s203 = scalar_lea.vmem %s4, %s202
      %s204 = smul.u32 8, %s16
      %p205 = scmp.lt.s32.totalorder %s204, 15
      %s206 = scalar_select %p205, %s204, 15
      %s207 = smul.addr %s206, 18
      %s208 = smul.addr %s207, 4
      %s209 = scalar_lea.vmem %s0, %s208
      %s210 = smul.u32 8, %s16
      %s211 = smul.u32 8, %s16
      %p212 = scmp.lt.s32.totalorder %s211, 15
      %s213 = scalar_select %p212, %s211, 15
      %s214 = smul.addr %s213, 4
      %s215 = scalar_lea.vmem %s2, %s214
      %s216 = smul.u32 8, %s16
      %p217 = scmp.lt.s32.totalorder %s16, 1
      %s218 = scalar_select %p217, %s16, 1
      %s219 = smul.addr %s218, 8
      %s220 = scalar_lea.vmem %s3, %s219
      %p221 = scmp.lt.s32.totalorder %s16, 1
      %s222 = scalar_select %p221, %s16, 1
      %s223 = smul.addr %s222, 8
      %s224 = scalar_lea.vmem %s4, %s223
      %v225 = vld [vmem:[%s209] sm:$0xff]
      %v226 = vld [vmem:[%s209 + $0x8] sm:$0xff]
      %v227 = vld [vmem:[%s209 + $0x10] sm:$0xff]
      %v228 = vld [vmem:[%s209 + $0x18] sm:$0xff]
      %v229 = vld [vmem:[%s209 + $0x20] sm:$0xff]
      %v230 = vld [vmem:[%s209 + $0x28] sm:$0xff]
      %v231 = vld [vmem:[%s209 + $0x30] sm:$0xff]
      %v232 = vld [vmem:[%s209 + $0x38] sm:$0xff]
      %v233 = vld [vmem:[%s209 + $0x40] sm:$0xff]
      %v234 = vld [vmem:[%s209 + $0x48] sm:$0xff]
      %v235 = vld [vmem:[%s209 + $0x50] sm:$0xff]
      %v236 = vld [vmem:[%s209 + $0x58] sm:$0xff]
      %v237 = vld [vmem:[%s209 + $0x60] sm:$0xff]
      %v238 = vld [vmem:[%s209 + $0x68] sm:$0xff]
      %v239 = vld [vmem:[%s209 + $0x70] sm:$0xff]
      %v240 = vld [vmem:[%s209 + $0x78] sm:$0xff]
      %v241 = vld [vmem:[%s209 + $0x80] sm:$0xff]
      %v242 = vld [vmem:[%s209 + $0x88] sm:$0xff]
      %v243 = vld [vmem:[%s209 + $0x90] sm:$0xff]
      %v244 = vld [vmem:[%s209 + $0x98] sm:$0xff]
      %v245 = vld [vmem:[%s209 + $0xa0] sm:$0xff]
      %v246 = vld [vmem:[%s209 + $0xa8] sm:$0xff]
      %v247 = vld [vmem:[%s209 + $0xb0] sm:$0xff]
      %v248 = vld [vmem:[%s209 + $0xb8] sm:$0xff]
      %v249 = vld [vmem:[%s209 + $0xc0] sm:$0xff]
      %v250 = vld [vmem:[%s209 + $0xc8] sm:$0xff]
      %v251 = vld [vmem:[%s209 + $0xd0] sm:$0xff]
      %v252 = vld [vmem:[%s209 + $0xd8] sm:$0xff]
      %v253 = vld [vmem:[%s209 + $0xe0] sm:$0xff]
      %v254 = vld [vmem:[%s209 + $0xe8] sm:$0xff]
      %v255 = vld [vmem:[%s209 + $0xf0] sm:$0xff]
      %v256 = vld [vmem:[%s209 + $0xf8] sm:$0xff]
      %v257 = vld [vmem:[%s209 + $0x100] sm:$0xff]
      %v258 = vld [vmem:[%s209 + $0x108] sm:$0xff]
      %v259 = vld [vmem:[%s209 + $0x110] sm:$0xff]
      %v260 = vld [vmem:[%s209 + $0x118] sm:$0xff]
      %v261 = vld [vmem:[%s209 + $0x120] sm:$0xff]
      %v262 = vld [vmem:[%s209 + $0x128] sm:$0xff]
      %v263 = vld [vmem:[%s209 + $0x130] sm:$0xff]
      %v264 = vld [vmem:[%s209 + $0x138] sm:$0xff]
      %v265 = vld [vmem:[%s209 + $0x140] sm:$0xff]
      %v266 = vld [vmem:[%s209 + $0x148] sm:$0xff]
      %v267 = vld [vmem:[%s209 + $0x150] sm:$0xff]
      %v268 = vld [vmem:[%s209 + $0x158] sm:$0xff]
      %v269 = vld [vmem:[%s209 + $0x160] sm:$0xff]
      %v270 = vld [vmem:[%s209 + $0x168] sm:$0xff]
      %v271 = vld [vmem:[%s209 + $0x170] sm:$0xff]
      %v272 = vld [vmem:[%s209 + $0x178] sm:$0xff]
      %v273 = vld [vmem:[%s209 + $0x180] sm:$0xff]
      %v274 = vld [vmem:[%s209 + $0x188] sm:$0xff]
      %v275 = vld [vmem:[%s209 + $0x190] sm:$0xff]
      %v276 = vld [vmem:[%s209 + $0x198] sm:$0xff]
      %v277 = vld [vmem:[%s209 + $0x1a0] sm:$0xff]
      %v278 = vld [vmem:[%s209 + $0x1a8] sm:$0xff]
      %v279 = vld [vmem:[%s209 + $0x1b0] sm:$0xff]
      %v280 = vld [vmem:[%s209 + $0x1b8] sm:$0xff]
      %v281 = vld [vmem:[%s209 + $0x1c0] sm:$0xff]
      %v282 = vld [vmem:[%s209 + $0x1c8] sm:$0xff]
      %v283 = vld [vmem:[%s209 + $0x1d0] sm:$0xff]
      %v284 = vld [vmem:[%s209 + $0x1d8] sm:$0xff]
      %v285 = vld [vmem:[%s209 + $0x1e0] sm:$0xff]
      %v286 = vld [vmem:[%s209 + $0x1e8] sm:$0xff]
      %v287 = vld [vmem:[%s209 + $0x1f0] sm:$0xff]
      %v288 = vld [vmem:[%s209 + $0x1f8] sm:$0xff]
      %v289 = vld [vmem:[%s209 + $0x200] sm:$0xff]
      %v290 = vld [vmem:[%s209 + $0x208] sm:$0xff]
      %v291 = vld [vmem:[%s209 + $0x210] sm:$0xff]
      %v292 = vld [vmem:[%s209 + $0x218] sm:$0xff]
      %v293 = vld [vmem:[%s209 + $0x220] sm:$0xff]
      %v294 = vld [vmem:[%s209 + $0x228] sm:$0xff]
      %v295 = vld [vmem:[%s209 + $0x230] sm:$0xff]
      %v296 = vld [vmem:[%s209 + $0x238] sm:$0xff]
      %v297 = vld [vmem:[%s1] sm:$0xf]
      %v298 = vld [vmem:[%s1 + $0x4] sm:$0xf]
      %v299 = vld [vmem:[%s1 + $0x8] sm:$0xf]
      %v300 = vld [vmem:[%s1 + $0xc] sm:$0xf]
      %v301 = vld [vmem:[%s1 + $0x10] sm:$0xf]
      %v302 = vld [vmem:[%s1 + $0x14] sm:$0xf]
      %v303 = vld [vmem:[%s1 + $0x18] sm:$0xf]
      %v304 = vld [vmem:[%s1 + $0x1c] sm:$0xf]
      %v305 = vld [vmem:[%s1 + $0x20] sm:$0xf]
      %v306 = vld [vmem:[%s1 + $0x24] sm:$0xf]
      %v307 = vld [vmem:[%s1 + $0x28] sm:$0xf]
      %v308 = vld [vmem:[%s1 + $0x2c] sm:$0xf]
      %v309 = vld [vmem:[%s1 + $0x30] sm:$0xf]
      %v310 = vld [vmem:[%s1 + $0x34] sm:$0xf]
      %v311 = vld [vmem:[%s1 + $0x38] sm:$0xf]
      %v312 = vld [vmem:[%s1 + $0x3c] sm:$0xf]
      %v313 = vld [vmem:[%s1 + $0x40] sm:$0xf]
      %v314 = vld [vmem:[%s1 + $0x44] sm:$0xf]
      %v315 = vld [vmem:[%s1 + $0x48] sm:$0xf]
      %v316 = vld [vmem:[%s1 + $0x4c] sm:$0xf]
      %v317 = vld [vmem:[%s1 + $0x50] sm:$0xf]
      %v318 = vld [vmem:[%s1 + $0x54] sm:$0xf]
      %v319 = vld [vmem:[%s1 + $0x58] sm:$0xf]
      %v320 = vld [vmem:[%s1 + $0x5c] sm:$0xf]
      %v321 = vld [vmem:[%s1 + $0x60] sm:$0xf]
      %v322 = vld [vmem:[%s1 + $0x64] sm:$0xf]
      %v323 = vld [vmem:[%s1 + $0x68] sm:$0xf]
      %v324 = vld [vmem:[%s1 + $0x6c] sm:$0xf]
      %v325 = vld [vmem:[%s1 + $0x70] sm:$0xf]
      %v326 = vld [vmem:[%s1 + $0x74] sm:$0xf]
      %v327 = vld [vmem:[%s1 + $0x78] sm:$0xf]
      %v328 = vld [vmem:[%s1 + $0x7c] sm:$0xf]
      %v329 = vld [vmem:[%s1 + $0x80] sm:$0xf]
      %v330 = vld [vmem:[%s1 + $0x84] sm:$0xf]
      %v331 = vld [vmem:[%s1 + $0x88] sm:$0xf]
      %v332 = vld [vmem:[%s1 + $0x8c] sm:$0xf]
      %v333 = vld [vmem:[%s1 + $0x90] sm:$0xf]
      %v334 = vld [vmem:[%s1 + $0x94] sm:$0xf]
      %v335 = vld [vmem:[%s1 + $0x98] sm:$0xf]
      %v336 = vld [vmem:[%s1 + $0x9c] sm:$0xf]
      %v337 = vld [vmem:[%s1 + $0xa0] sm:$0xf]
      %v338 = vld [vmem:[%s1 + $0xa4] sm:$0xf]
      %v339 = vld [vmem:[%s1 + $0xa8] sm:$0xf]
      %v340 = vld [vmem:[%s1 + $0xac] sm:$0xf]
      %v341 = vld [vmem:[%s1 + $0xb0] sm:$0xf]
      %v342 = vld [vmem:[%s1 + $0xb4] sm:$0xf]
      %v343 = vld [vmem:[%s1 + $0xb8] sm:$0xf]
      %v344 = vld [vmem:[%s1 + $0xbc] sm:$0xf]
      %v345 = vld [vmem:[%s1 + $0xc0] sm:$0xf]
      %v346 = vld [vmem:[%s1 + $0xc4] sm:$0xf]
      %v347 = vld [vmem:[%s1 + $0xc8] sm:$0xf]
      %v348 = vld [vmem:[%s1 + $0xcc] sm:$0xf]
      %v349 = vld [vmem:[%s1 + $0xd0] sm:$0xf]
      %v350 = vld [vmem:[%s1 + $0xd4] sm:$0xf]
      %v351 = vld [vmem:[%s1 + $0xd8] sm:$0xf]
      %v352 = vld [vmem:[%s1 + $0xdc] sm:$0xf]
      %v353 = vld [vmem:[%s1 + $0xe0] sm:$0xf]
      %v354 = vld [vmem:[%s1 + $0xe4] sm:$0xf]
      %v355 = vld [vmem:[%s1 + $0xe8] sm:$0xf]
      %v356 = vld [vmem:[%s1 + $0xec] sm:$0xf]
      %v357 = vld [vmem:[%s1 + $0xf0] sm:$0xf]
      %v358 = vld [vmem:[%s1 + $0xf4] sm:$0xf]
      %v359 = vld [vmem:[%s1 + $0xf8] sm:$0xf]
      %v360 = vld [vmem:[%s1 + $0xfc] sm:$0xf]
      %v361 = vld [vmem:[%s1 + $0x100] sm:$0xf]
      %v362 = vld [vmem:[%s1 + $0x104] sm:$0xf]
      %v363 = vld [vmem:[%s1 + $0x108] sm:$0xf]
      %v364 = vld [vmem:[%s1 + $0x10c] sm:$0xf]
      %v365 = vld [vmem:[%s1 + $0x110] sm:$0xf]
      %v366 = vld [vmem:[%s1 + $0x114] sm:$0xf]
      %v367 = vld [vmem:[%s1 + $0x118] sm:$0xf]
      %v368 = vld [vmem:[%s1 + $0x11c] sm:$0xf]
      %v369 = vld [vmem:[%s1 + $0x120] sm:$0xf]
      %v370 = vld [vmem:[%s1 + $0x124] sm:$0xf]
      %v371 = vld [vmem:[%s1 + $0x128] sm:$0xf]
      %v372 = vld [vmem:[%s1 + $0x12c] sm:$0xf]
      %v373 = vld [vmem:[%s1 + $0x130] sm:$0xf]
      %v374 = vld [vmem:[%s1 + $0x134] sm:$0xf]
      %v375 = vld [vmem:[%s1 + $0x138] sm:$0xf]
      %v376 = vld [vmem:[%s1 + $0x13c] sm:$0xf]
      %v377 = vld [vmem:[%s1 + $0x140] sm:$0xf]
      %v378 = vld [vmem:[%s1 + $0x144] sm:$0xf]
      %v379 = vld [vmem:[%s1 + $0x148] sm:$0xf]
      %v380 = vld [vmem:[%s1 + $0x14c] sm:$0xf]
      %v381 = vld [vmem:[%s1 + $0x150] sm:$0xf]
      %v382 = vld [vmem:[%s1 + $0x154] sm:$0xf]
      %v383 = vld [vmem:[%s1 + $0x158] sm:$0xf]
      %v384 = vld [vmem:[%s1 + $0x15c] sm:$0xf]
      %v385 = vld [vmem:[%s1 + $0x160] sm:$0xf]
      %v386 = vld [vmem:[%s1 + $0x164] sm:$0xf]
      %v387 = vld [vmem:[%s1 + $0x168] sm:$0xf]
      %v388 = vld [vmem:[%s1 + $0x16c] sm:$0xf]
      %v389 = vld [vmem:[%s1 + $0x170] sm:$0xf]
      %v390 = vld [vmem:[%s1 + $0x174] sm:$0xf]
      %v391 = vld [vmem:[%s1 + $0x178] sm:$0xf]
      %v392 = vld [vmem:[%s1 + $0x17c] sm:$0xf]
      %v393 = vld [vmem:[%s1 + $0x180] sm:$0xf]
      %v394 = vld [vmem:[%s1 + $0x184] sm:$0xf]
      %v395 = vld [vmem:[%s1 + $0x188] sm:$0xf]
      %v396 = vld [vmem:[%s1 + $0x18c] sm:$0xf]
      %v397 = vld [vmem:[%s1 + $0x190] sm:$0xf]
      %v398 = vld [vmem:[%s1 + $0x194] sm:$0xf]
      %v399 = vld [vmem:[%s1 + $0x198] sm:$0xf]
      %v400 = vld [vmem:[%s1 + $0x19c] sm:$0xf]
      %v401 = vld [vmem:[%s1 + $0x1a0] sm:$0xf]
      %v402 = vld [vmem:[%s1 + $0x1a4] sm:$0xf]
      %v403 = vld [vmem:[%s1 + $0x1a8] sm:$0xf]
      %v404 = vld [vmem:[%s1 + $0x1ac] sm:$0xf]
      %v405 = vld [vmem:[%s1 + $0x1b0] sm:$0xf]
      %v406 = vld [vmem:[%s1 + $0x1b4] sm:$0xf]
      %v407 = vld [vmem:[%s1 + $0x1b8] sm:$0xf]
      %v408 = vld [vmem:[%s1 + $0x1bc] sm:$0xf]
      %v409 = vld [vmem:[%s1 + $0x1c0] sm:$0xf]
      %v410 = vld [vmem:[%s1 + $0x1c4] sm:$0xf]
      %v411 = vld [vmem:[%s1 + $0x1c8] sm:$0xf]
      %v412 = vld [vmem:[%s1 + $0x1cc] sm:$0xf]
      %v413 = vld [vmem:[%s1 + $0x1d0] sm:$0xf]
      %v414 = vld [vmem:[%s1 + $0x1d4] sm:$0xf]
      %v415 = vld [vmem:[%s1 + $0x1d8] sm:$0xf]
      %v416 = vld [vmem:[%s1 + $0x1dc] sm:$0xf]
      %v417 = vld [vmem:[%s1 + $0x1e0] sm:$0xf]
      %v418 = vld [vmem:[%s1 + $0x1e4] sm:$0xf]
      %v419 = vld [vmem:[%s1 + $0x1e8] sm:$0xf]
      %v420 = vld [vmem:[%s1 + $0x1ec] sm:$0xf]
      %v421 = vld [vmem:[%s1 + $0x1f0] sm:$0xf]
      %v422 = vld [vmem:[%s1 + $0x1f4] sm:$0xf]
      %v423 = vld [vmem:[%s1 + $0x1f8] sm:$0xf]
      %v424 = vld [vmem:[%s1 + $0x1fc] sm:$0xf]
      %v425 = vld [vmem:[%s1 + $0x200] sm:$0xf]
      %v426 = vld [vmem:[%s1 + $0x204] sm:$0xf]
      %v427 = vld [vmem:[%s1 + $0x208] sm:$0xf]
      %v428 = vld [vmem:[%s1 + $0x20c] sm:$0xf]
      %v429 = vld [vmem:[%s1 + $0x210] sm:$0xf]
      %v430 = vld [vmem:[%s1 + $0x214] sm:$0xf]
      %v431 = vld [vmem:[%s1 + $0x218] sm:$0xf]
      %v432 = vld [vmem:[%s1 + $0x21c] sm:$0xf]
      %v433 = vld [vmem:[%s1 + $0x220] sm:$0xf]
      %v434 = vld [vmem:[%s1 + $0x224] sm:$0xf]
      %v435 = vld [vmem:[%s1 + $0x228] sm:$0xf]
      %v436 = vld [vmem:[%s1 + $0x22c] sm:$0xf]
      %v437 = vld [vmem:[%s1 + $0x230] sm:$0xf]
      %v438 = vld [vmem:[%s1 + $0x234] sm:$0xf]
      %v439 = vld [vmem:[%s1 + $0x238] sm:$0xf]
      %v440 = vld [vmem:[%s1 + $0x23c] sm:$0xf]
      %v441 = vld [vmem:[%s1 + $0x240] sm:$0xf]
      %v442 = vld [vmem:[%s1 + $0x244] sm:$0xf]
      %v443 = vld [vmem:[%s1 + $0x248] sm:$0xf]
      %v444 = vld [vmem:[%s1 + $0x24c] sm:$0xf]
      %v445 = vld [vmem:[%s1 + $0x250] sm:$0xf]
      %v446 = vld [vmem:[%s1 + $0x254] sm:$0xf]
      %v447 = vld [vmem:[%s1 + $0x258] sm:$0xf]
      %v448 = vld [vmem:[%s1 + $0x25c] sm:$0xf]
      %v449 = vld [vmem:[%s1 + $0x260] sm:$0xf]
      %v450 = vld [vmem:[%s1 + $0x264] sm:$0xf]
      %v451 = vld [vmem:[%s1 + $0x268] sm:$0xf]
      %v452 = vld [vmem:[%s1 + $0x26c] sm:$0xf]
      %v453 = vld [vmem:[%s1 + $0x270] sm:$0xf]
      %v454 = vld [vmem:[%s1 + $0x274] sm:$0xf]
      %v455 = vld [vmem:[%s1 + $0x278] sm:$0xf]
      %v456 = vld [vmem:[%s1 + $0x27c] sm:$0xf]
      %v457 = vld [vmem:[%s1 + $0x280] sm:$0xf]
      %v458 = vld [vmem:[%s1 + $0x284] sm:$0xf]
      %v459 = vld [vmem:[%s1 + $0x288] sm:$0xf]
      %v460 = vld [vmem:[%s1 + $0x28c] sm:$0xf]
      %v461 = vld [vmem:[%s1 + $0x290] sm:$0xf]
      %v462 = vld [vmem:[%s1 + $0x294] sm:$0xf]
      %v463 = vld [vmem:[%s1 + $0x298] sm:$0xf]
      %v464 = vld [vmem:[%s1 + $0x29c] sm:$0xf]
      %v465 = vld [vmem:[%s1 + $0x2a0] sm:$0xf]
      %v466 = vld [vmem:[%s1 + $0x2a4] sm:$0xf]
      %v467 = vld [vmem:[%s1 + $0x2a8] sm:$0xf]
      %v468 = vld [vmem:[%s1 + $0x2ac] sm:$0xf]
      %v469 = vld [vmem:[%s1 + $0x2b0] sm:$0xf]
      %v470 = vld [vmem:[%s1 + $0x2b4] sm:$0xf]
      %v471 = vld [vmem:[%s1 + $0x2b8] sm:$0xf]
      %v472 = vld [vmem:[%s1 + $0x2bc] sm:$0xf]
      %v473 = vld [vmem:[%s1 + $0x2c0] sm:$0xf]
      %v474 = vld [vmem:[%s1 + $0x2c4] sm:$0xf]
      %v475 = vld [vmem:[%s1 + $0x2c8] sm:$0xf]
      %v476 = vld [vmem:[%s1 + $0x2cc] sm:$0xf]
      %v477 = vld [vmem:[%s1 + $0x2d0] sm:$0xf]
      %v478 = vld [vmem:[%s1 + $0x2d4] sm:$0xf]
      %v479 = vld [vmem:[%s1 + $0x2d8] sm:$0xf]
      %v480 = vld [vmem:[%s1 + $0x2dc] sm:$0xf]
      %v481 = vld [vmem:[%s1 + $0x2e0] sm:$0xf]
      %v482 = vld [vmem:[%s1 + $0x2e4] sm:$0xf]
      %v483 = vld [vmem:[%s1 + $0x2e8] sm:$0xf]
      %v484 = vld [vmem:[%s1 + $0x2ec] sm:$0xf]
      %v485 = vld [vmem:[%s1 + $0x2f0] sm:$0xf]
      %v486 = vld [vmem:[%s1 + $0x2f4] sm:$0xf]
      %v487 = vld [vmem:[%s1 + $0x2f8] sm:$0xf]
      %v488 = vld [vmem:[%s1 + $0x2fc] sm:$0xf]
      %v489 = vld [vmem:[%s1 + $0x300] sm:$0xf]
      %v490 = vld [vmem:[%s1 + $0x304] sm:$0xf]
      %v491 = vld [vmem:[%s1 + $0x308] sm:$0xf]
      %v492 = vld [vmem:[%s1 + $0x30c] sm:$0xf]
      %v493 = vld [vmem:[%s1 + $0x310] sm:$0xf]
      %v494 = vld [vmem:[%s1 + $0x314] sm:$0xf]
      %v495 = vld [vmem:[%s1 + $0x318] sm:$0xf]
      %v496 = vld [vmem:[%s1 + $0x31c] sm:$0xf]
      %v497 = vld [vmem:[%s1 + $0x320] sm:$0xf]
      %v498 = vld [vmem:[%s1 + $0x324] sm:$0xf]
      %v499 = vld [vmem:[%s1 + $0x328] sm:$0xf]
      %v500 = vld [vmem:[%s1 + $0x32c] sm:$0xf]
      %v501 = vld [vmem:[%s1 + $0x330] sm:$0xf]
      %v502 = vld [vmem:[%s1 + $0x334] sm:$0xf]
      %v503 = vld [vmem:[%s1 + $0x338] sm:$0xf]
      %v504 = vld [vmem:[%s1 + $0x33c] sm:$0xf]
      %v505 = vld [vmem:[%s1 + $0x340] sm:$0xf]
      %v506 = vld [vmem:[%s1 + $0x344] sm:$0xf]
      %v507 = vld [vmem:[%s1 + $0x348] sm:$0xf]
      %v508 = vld [vmem:[%s1 + $0x34c] sm:$0xf]
      %v509 = vld [vmem:[%s1 + $0x350] sm:$0xf]
      %v510 = vld [vmem:[%s1 + $0x354] sm:$0xf]
      %v511 = vld [vmem:[%s1 + $0x358] sm:$0xf]
      %v512 = vld [vmem:[%s1 + $0x35c] sm:$0xf]
      %v513 = vld [vmem:[%s1 + $0x360] sm:$0xf]
      %v514 = vld [vmem:[%s1 + $0x364] sm:$0xf]
      %v515 = vld [vmem:[%s1 + $0x368] sm:$0xf]
      %v516 = vld [vmem:[%s1 + $0x36c] sm:$0xf]
      %v517 = vld [vmem:[%s1 + $0x370] sm:$0xf]
      %v518 = vld [vmem:[%s1 + $0x374] sm:$0xf]
      %v519 = vld [vmem:[%s1 + $0x378] sm:$0xf]
      %v520 = vld [vmem:[%s1 + $0x37c] sm:$0xf]
      %v521 = vld [vmem:[%s1 + $0x380] sm:$0xf]
      %v522 = vld [vmem:[%s1 + $0x384] sm:$0xf]
      %v523 = vld [vmem:[%s1 + $0x388] sm:$0xf]
      %v524 = vld [vmem:[%s1 + $0x38c] sm:$0xf]
      %v525 = vld [vmem:[%s1 + $0x390] sm:$0xf]
      %v526 = vld [vmem:[%s1 + $0x394] sm:$0xf]
      %v527 = vld [vmem:[%s1 + $0x398] sm:$0xf]
      %v528 = vld [vmem:[%s1 + $0x39c] sm:$0xf]
      %v529 = vld [vmem:[%s1 + $0x3a0] sm:$0xf]
      %v530 = vld [vmem:[%s1 + $0x3a4] sm:$0xf]
      %v531 = vld [vmem:[%s1 + $0x3a8] sm:$0xf]
      %v532 = vld [vmem:[%s1 + $0x3ac] sm:$0xf]
      %v533 = vld [vmem:[%s1 + $0x3b0] sm:$0xf]
      %v534 = vld [vmem:[%s1 + $0x3b4] sm:$0xf]
      %v535 = vld [vmem:[%s1 + $0x3b8] sm:$0xf]
      %v536 = vld [vmem:[%s1 + $0x3bc] sm:$0xf]
      %v537 = vld [vmem:[%s1 + $0x3c0] sm:$0xf]
      %v538 = vld [vmem:[%s1 + $0x3c4] sm:$0xf]
      %v539 = vld [vmem:[%s1 + $0x3c8] sm:$0xf]
      %v540 = vld [vmem:[%s1 + $0x3cc] sm:$0xf]
      %v541 = vld [vmem:[%s1 + $0x3d0] sm:$0xf]
      %v542 = vld [vmem:[%s1 + $0x3d4] sm:$0xf]
      %v543 = vld [vmem:[%s1 + $0x3d8] sm:$0xf]
      %v544 = vld [vmem:[%s1 + $0x3dc] sm:$0xf]
      %v545 = vld [vmem:[%s1 + $0x3e0] sm:$0xf]
      %v546 = vld [vmem:[%s1 + $0x3e4] sm:$0xf]
      %v547 = vld [vmem:[%s1 + $0x3e8] sm:$0xf]
      %v548 = vld [vmem:[%s1 + $0x3ec] sm:$0xf]
      %v549 = vld [vmem:[%s1 + $0x3f0] sm:$0xf]
      %v550 = vld [vmem:[%s1 + $0x3f4] sm:$0xf]
      %v551 = vld [vmem:[%s1 + $0x3f8] sm:$0xf]
      %v552 = vld [vmem:[%s1 + $0x3fc] sm:$0xf]
      %v553 = vld [vmem:[%s1 + $0x400] sm:$0xf]
      %v554 = vld [vmem:[%s1 + $0x404] sm:$0xf]
      %v555 = vld [vmem:[%s1 + $0x408] sm:$0xf]
      %v556 = vld [vmem:[%s1 + $0x40c] sm:$0xf]
      %v557 = vld [vmem:[%s1 + $0x410] sm:$0xf]
      %v558 = vld [vmem:[%s1 + $0x414] sm:$0xf]
      %v559 = vld [vmem:[%s1 + $0x418] sm:$0xf]
      %v560 = vld [vmem:[%s1 + $0x41c] sm:$0xf]
      %v561 = vld [vmem:[%s1 + $0x420] sm:$0xf]
      %v562 = vld [vmem:[%s1 + $0x424] sm:$0xf]
      %v563 = vld [vmem:[%s1 + $0x428] sm:$0xf]
      %v564 = vld [vmem:[%s1 + $0x42c] sm:$0xf]
      %v565 = vld [vmem:[%s1 + $0x430] sm:$0xf]
      %v566 = vld [vmem:[%s1 + $0x434] sm:$0xf]
      %v567 = vld [vmem:[%s1 + $0x438] sm:$0xf]
      %v568 = vld [vmem:[%s1 + $0x43c] sm:$0xf]
      %v569 = vld [vmem:[%s1 + $0x440] sm:$0xf]
      %v570 = vld [vmem:[%s1 + $0x444] sm:$0xf]
      %v571 = vld [vmem:[%s1 + $0x448] sm:$0xf]
      %v572 = vld [vmem:[%s1 + $0x44c] sm:$0xf]
      %v573 = vld [vmem:[%s1 + $0x450] sm:$0xf]
      %v574 = vld [vmem:[%s1 + $0x454] sm:$0xf]
      %v575 = vld [vmem:[%s1 + $0x458] sm:$0xf]
      %v576 = vld [vmem:[%s1 + $0x45c] sm:$0xf]
      %v577 = vld [vmem:[%s1 + $0x460] sm:$0xf]
      %v578 = vld [vmem:[%s1 + $0x464] sm:$0xf]
      %v579 = vld [vmem:[%s1 + $0x468] sm:$0xf]
      %v580 = vld [vmem:[%s1 + $0x46c] sm:$0xf]
      %v581 = vld [vmem:[%s1 + $0x470] sm:$0xf]
      %v582 = vld [vmem:[%s1 + $0x474] sm:$0xf]
      %v583 = vld [vmem:[%s1 + $0x478] sm:$0xf]
      %v584 = vld [vmem:[%s1 + $0x47c] sm:$0xf]
      %v657 = vunpack.c.l.b16 %v225
      %v658 = vunpack.c.h.b16 %v225
      %v659 = vunpack.c.l.b16 %v226
      %v660 = vunpack.c.h.b16 %v226
      %v661 = vunpack.c.l.b16 %v227
      %v662 = vunpack.c.h.b16 %v227
      %v663 = vunpack.c.l.b16 %v228
      %v664 = vunpack.c.h.b16 %v228
      %v665 = vunpack.c.l.b16 %v229
      %v666 = vunpack.c.h.b16 %v229
      %v667 = vunpack.c.l.b16 %v230
      %v668 = vunpack.c.h.b16 %v230
      %v669 = vunpack.c.l.b16 %v231
      %v670 = vunpack.c.h.b16 %v231
      %v671 = vunpack.c.l.b16 %v232
      %v672 = vunpack.c.h.b16 %v232
      %v673 = vunpack.c.l.b16 %v233
      %v674 = vunpack.c.h.b16 %v233
      %v675 = vunpack.c.l.b16 %v234
      %v676 = vunpack.c.h.b16 %v234
      %v677 = vunpack.c.l.b16 %v235
      %v678 = vunpack.c.h.b16 %v235
      %v679 = vunpack.c.l.b16 %v236
      %v680 = vunpack.c.h.b16 %v236
      %v681 = vunpack.c.l.b16 %v237
      %v682 = vunpack.c.h.b16 %v237
      %v683 = vunpack.c.l.b16 %v238
      %v684 = vunpack.c.h.b16 %v238
      %v685 = vunpack.c.l.b16 %v239
      %v686 = vunpack.c.h.b16 %v239
      %v687 = vunpack.c.l.b16 %v240
      %v688 = vunpack.c.h.b16 %v240
      %v689 = vunpack.c.l.b16 %v241
      %v690 = vunpack.c.h.b16 %v241
      %v691 = vunpack.c.l.b16 %v242
      %v692 = vunpack.c.h.b16 %v242
      %v693 = vunpack.c.l.b16 %v243
      %v694 = vunpack.c.h.b16 %v243
      %v695 = vunpack.c.l.b16 %v244
      %v696 = vunpack.c.h.b16 %v244
      %v697 = vunpack.c.l.b16 %v245
      %v698 = vunpack.c.h.b16 %v245
      %v699 = vunpack.c.l.b16 %v246
      %v700 = vunpack.c.h.b16 %v246
      %v701 = vunpack.c.l.b16 %v247
      %v702 = vunpack.c.h.b16 %v247
      %v703 = vunpack.c.l.b16 %v248
      %v704 = vunpack.c.h.b16 %v248
      %v705 = vunpack.c.l.b16 %v249
      %v706 = vunpack.c.h.b16 %v249
      %v707 = vunpack.c.l.b16 %v250
      %v708 = vunpack.c.h.b16 %v250
      %v709 = vunpack.c.l.b16 %v251
      %v710 = vunpack.c.h.b16 %v251
      %v711 = vunpack.c.l.b16 %v252
      %v712 = vunpack.c.h.b16 %v252
      %v713 = vunpack.c.l.b16 %v253
      %v714 = vunpack.c.h.b16 %v253
      %v715 = vunpack.c.l.b16 %v254
      %v716 = vunpack.c.h.b16 %v254
      %v717 = vunpack.c.l.b16 %v255
      %v718 = vunpack.c.h.b16 %v255
      %v719 = vunpack.c.l.b16 %v256
      %v720 = vunpack.c.h.b16 %v256
      %v721 = vunpack.c.l.b16 %v257
      %v722 = vunpack.c.h.b16 %v257
      %v723 = vunpack.c.l.b16 %v258
      %v724 = vunpack.c.h.b16 %v258
      %v725 = vunpack.c.l.b16 %v259
      %v726 = vunpack.c.h.b16 %v259
      %v727 = vunpack.c.l.b16 %v260
      %v728 = vunpack.c.h.b16 %v260
      %v729 = vunpack.c.l.b16 %v261
      %v730 = vunpack.c.h.b16 %v261
      %v731 = vunpack.c.l.b16 %v262
      %v732 = vunpack.c.h.b16 %v262
      %v733 = vunpack.c.l.b16 %v263
      %v734 = vunpack.c.h.b16 %v263
      %v735 = vunpack.c.l.b16 %v264
      %v736 = vunpack.c.h.b16 %v264
      %v737 = vunpack.c.l.b16 %v265
      %v738 = vunpack.c.h.b16 %v265
      %v739 = vunpack.c.l.b16 %v266
      %v740 = vunpack.c.h.b16 %v266
      %v741 = vunpack.c.l.b16 %v267
      %v742 = vunpack.c.h.b16 %v267
      %v743 = vunpack.c.l.b16 %v268
      %v744 = vunpack.c.h.b16 %v268
      %v745 = vunpack.c.l.b16 %v269
      %v746 = vunpack.c.h.b16 %v269
      %v747 = vunpack.c.l.b16 %v270
      %v748 = vunpack.c.h.b16 %v270
      %v749 = vunpack.c.l.b16 %v271
      %v750 = vunpack.c.h.b16 %v271
      %v751 = vunpack.c.l.b16 %v272
      %v752 = vunpack.c.h.b16 %v272
      %v753 = vunpack.c.l.b16 %v273
      %v754 = vunpack.c.h.b16 %v273
      %v755 = vunpack.c.l.b16 %v274
      %v756 = vunpack.c.h.b16 %v274
      %v757 = vunpack.c.l.b16 %v275
      %v758 = vunpack.c.h.b16 %v275
      %v759 = vunpack.c.l.b16 %v276
      %v760 = vunpack.c.h.b16 %v276
      %v761 = vunpack.c.l.b16 %v277
      %v762 = vunpack.c.h.b16 %v277
      %v763 = vunpack.c.l.b16 %v278
      %v764 = vunpack.c.h.b16 %v278
      %v765 = vunpack.c.l.b16 %v279
      %v766 = vunpack.c.h.b16 %v279
      %v767 = vunpack.c.l.b16 %v280
      %v768 = vunpack.c.h.b16 %v280
      %v769 = vunpack.c.l.b16 %v281
      %v770 = vunpack.c.h.b16 %v281
      %v771 = vunpack.c.l.b16 %v282
      %v772 = vunpack.c.h.b16 %v282
      %v773 = vunpack.c.l.b16 %v283
      %v774 = vunpack.c.h.b16 %v283
      %v775 = vunpack.c.l.b16 %v284
      %v776 = vunpack.c.h.b16 %v284
      %v777 = vunpack.c.l.b16 %v285
      %v778 = vunpack.c.h.b16 %v285
      %v779 = vunpack.c.l.b16 %v286
      %v780 = vunpack.c.h.b16 %v286
      %v781 = vunpack.c.l.b16 %v287
      %v782 = vunpack.c.h.b16 %v287
      %v783 = vunpack.c.l.b16 %v288
      %v784 = vunpack.c.h.b16 %v288
      %v785 = vunpack.c.l.b16 %v289
      %v786 = vunpack.c.h.b16 %v289
      %v787 = vunpack.c.l.b16 %v290
      %v788 = vunpack.c.h.b16 %v290
      %v789 = vunpack.c.l.b16 %v291
      %v790 = vunpack.c.h.b16 %v291
      %v791 = vunpack.c.l.b16 %v292
      %v792 = vunpack.c.h.b16 %v292
      %v793 = vunpack.c.l.b16 %v293
      %v794 = vunpack.c.h.b16 %v293
      %v795 = vunpack.c.l.b16 %v294
      %v796 = vunpack.c.h.b16 %v294
      %v797 = vunpack.c.l.b16 %v295
      %v798 = vunpack.c.h.b16 %v295
      %v799 = vunpack.c.l.b16 %v296
      %v800 = vunpack.c.h.b16 %v296
      %v801 = vpack.c.b16 %v675, %v657
      %v802 = vpack.c.b16 %v676, %v658
      %v803 = vpack.c.b16 %v677, %v659
      %v804 = vpack.c.b16 %v678, %v660
      %v805 = vpack.c.b16 %v679, %v661
      %v806 = vpack.c.b16 %v680, %v662
      %v807 = vpack.c.b16 %v681, %v663
      %v808 = vpack.c.b16 %v682, %v664
      %v809 = vpack.c.b16 %v683, %v665
      %v810 = vpack.c.b16 %v684, %v666
      %v811 = vpack.c.b16 %v685, %v667
      %v812 = vpack.c.b16 %v686, %v668
      %v813 = vpack.c.b16 %v687, %v669
      %v814 = vpack.c.b16 %v688, %v670
      %v815 = vpack.c.b16 %v689, %v671
      %v816 = vpack.c.b16 %v690, %v672
      %v817 = vpack.c.b16 %v691, %v673
      %v818 = vpack.c.b16 %v692, %v674
      %v819 = vpack.c.b16 %v711, %v693
      %v820 = vpack.c.b16 %v712, %v694
      %v821 = vpack.c.b16 %v713, %v695
      %v822 = vpack.c.b16 %v714, %v696
      %v823 = vpack.c.b16 %v715, %v697
      %v824 = vpack.c.b16 %v716, %v698
      %v825 = vpack.c.b16 %v717, %v699
      %v826 = vpack.c.b16 %v718, %v700
      %v827 = vpack.c.b16 %v719, %v701
      %v828 = vpack.c.b16 %v720, %v702
      %v829 = vpack.c.b16 %v721, %v703
      %v830 = vpack.c.b16 %v722, %v704
      %v831 = vpack.c.b16 %v723, %v705
      %v832 = vpack.c.b16 %v724, %v706
      %v833 = vpack.c.b16 %v725, %v707
      %v834 = vpack.c.b16 %v726, %v708
      %v835 = vpack.c.b16 %v727, %v709
      %v836 = vpack.c.b16 %v728, %v710
      %v837 = vpack.c.b16 %v747, %v729
      %v838 = vpack.c.b16 %v748, %v730
      %v839 = vpack.c.b16 %v749, %v731
      %v840 = vpack.c.b16 %v750, %v732
      %v841 = vpack.c.b16 %v751, %v733
      %v842 = vpack.c.b16 %v752, %v734
      %v843 = vpack.c.b16 %v753, %v735
      %v844 = vpack.c.b16 %v754, %v736
      %v845 = vpack.c.b16 %v755, %v737
      %v846 = vpack.c.b16 %v756, %v738
      %v847 = vpack.c.b16 %v757, %v739
      %v848 = vpack.c.b16 %v758, %v740
      %v849 = vpack.c.b16 %v759, %v741
      %v850 = vpack.c.b16 %v760, %v742
      %v851 = vpack.c.b16 %v761, %v743
      %v852 = vpack.c.b16 %v762, %v744
      %v853 = vpack.c.b16 %v763, %v745
      %v854 = vpack.c.b16 %v764, %v746
      %v855 = vpack.c.b16 %v783, %v765
      %v856 = vpack.c.b16 %v784, %v766
      %v857 = vpack.c.b16 %v785, %v767
      %v858 = vpack.c.b16 %v786, %v768
      %v859 = vpack.c.b16 %v787, %v769
      %v860 = vpack.c.b16 %v788, %v770
      %v861 = vpack.c.b16 %v789, %v771
      %v862 = vpack.c.b16 %v790, %v772
      %v863 = vpack.c.b16 %v791, %v773
      %v864 = vpack.c.b16 %v792, %v774
      %v865 = vpack.c.b16 %v793, %v775
      %v866 = vpack.c.b16 %v794, %v776
      %v867 = vpack.c.b16 %v795, %v777
      %v868 = vpack.c.b16 %v796, %v778
      %v869 = vpack.c.b16 %v797, %v779
      %v870 = vpack.c.b16 %v798, %v780
      %v871 = vpack.c.b16 %v799, %v781
      %v872 = vpack.c.b16 %v800, %v782
      %v1233 = vunpack.c.l.b16 %v297
      %v1234 = vunpack.c.l.b16 %v298
      %v1235 = vunpack.c.l.b16 %v299
      %v1236 = vunpack.c.l.b16 %v300
      %v1237 = vunpack.c.l.b16 %v301
      %v1238 = vunpack.c.l.b16 %v302
      %v1239 = vunpack.c.l.b16 %v303
      %v1240 = vunpack.c.l.b16 %v304
      %v1241 = vunpack.c.l.b16 %v305
      %v1242 = vunpack.c.l.b16 %v306
      %v1243 = vunpack.c.l.b16 %v307
      %v1244 = vunpack.c.l.b16 %v308
      %v1245 = vunpack.c.l.b16 %v309
      %v1246 = vunpack.c.l.b16 %v310
      %v1247 = vunpack.c.l.b16 %v311
      %v1248 = vunpack.c.l.b16 %v312
      %v1249 = vunpack.c.l.b16 %v313
      %v1250 = vunpack.c.l.b16 %v314
      %v1251 = vunpack.c.l.b16 %v315
      %v1252 = vunpack.c.l.b16 %v316
      %v1253 = vunpack.c.l.b16 %v317
      %v1254 = vunpack.c.l.b16 %v318
      %v1255 = vunpack.c.l.b16 %v319
      %v1256 = vunpack.c.l.b16 %v320
      %v1257 = vunpack.c.l.b16 %v321
      %v1258 = vunpack.c.l.b16 %v322
      %v1259 = vunpack.c.l.b16 %v323
      %v1260 = vunpack.c.l.b16 %v324
      %v1261 = vunpack.c.l.b16 %v325
      %v1262 = vunpack.c.l.b16 %v326
      %v1263 = vunpack.c.l.b16 %v327
      %v1264 = vunpack.c.l.b16 %v328
      %v1265 = vunpack.c.l.b16 %v329
      %v1266 = vunpack.c.l.b16 %v330
      %v1267 = vunpack.c.l.b16 %v331
      %v1268 = vunpack.c.l.b16 %v332
      %v1269 = vunpack.c.l.b16 %v333
      %v1270 = vunpack.c.l.b16 %v334
      %v1271 = vunpack.c.l.b16 %v335
      %v1272 = vunpack.c.l.b16 %v336
      %v1273 = vunpack.c.l.b16 %v337
      %v1274 = vunpack.c.l.b16 %v338
      %v1275 = vunpack.c.l.b16 %v339
      %v1276 = vunpack.c.l.b16 %v340
      %v1277 = vunpack.c.l.b16 %v341
      %v1278 = vunpack.c.l.b16 %v342
      %v1279 = vunpack.c.l.b16 %v343
      %v1280 = vunpack.c.l.b16 %v344
      %v1281 = vunpack.c.l.b16 %v345
      %v1282 = vunpack.c.l.b16 %v346
      %v1283 = vunpack.c.l.b16 %v347
      %v1284 = vunpack.c.l.b16 %v348
      %v1285 = vunpack.c.l.b16 %v349
      %v1286 = vunpack.c.l.b16 %v350
      %v1287 = vunpack.c.l.b16 %v351
      %v1288 = vunpack.c.l.b16 %v352
      %v1289 = vunpack.c.l.b16 %v353
      %v1290 = vunpack.c.l.b16 %v354
      %v1291 = vunpack.c.l.b16 %v355
      %v1292 = vunpack.c.l.b16 %v356
      %v1293 = vunpack.c.l.b16 %v357
      %v1294 = vunpack.c.l.b16 %v358
      %v1295 = vunpack.c.l.b16 %v359
      %v1296 = vunpack.c.l.b16 %v360
      %v1297 = vunpack.c.l.b16 %v361
      %v1298 = vunpack.c.l.b16 %v362
      %v1299 = vunpack.c.l.b16 %v363
      %v1300 = vunpack.c.l.b16 %v364
      %v1301 = vunpack.c.l.b16 %v365
      %v1302 = vunpack.c.l.b16 %v366
      %v1303 = vunpack.c.l.b16 %v367
      %v1304 = vunpack.c.l.b16 %v368
      %v1305 = vunpack.c.l.b16 %v369
      %v1306 = vunpack.c.l.b16 %v370
      %v1307 = vunpack.c.l.b16 %v371
      %v1308 = vunpack.c.l.b16 %v372
      %v1309 = vunpack.c.l.b16 %v373
      %v1310 = vunpack.c.l.b16 %v374
      %v1311 = vunpack.c.l.b16 %v375
      %v1312 = vunpack.c.l.b16 %v376
      %v1313 = vunpack.c.l.b16 %v377
      %v1314 = vunpack.c.l.b16 %v378
      %v1315 = vunpack.c.l.b16 %v379
      %v1316 = vunpack.c.l.b16 %v380
      %v1317 = vunpack.c.l.b16 %v381
      %v1318 = vunpack.c.l.b16 %v382
      %v1319 = vunpack.c.l.b16 %v383
      %v1320 = vunpack.c.l.b16 %v384
      %v1321 = vunpack.c.l.b16 %v385
      %v1322 = vunpack.c.l.b16 %v386
      %v1323 = vunpack.c.l.b16 %v387
      %v1324 = vunpack.c.l.b16 %v388
      %v1325 = vunpack.c.l.b16 %v389
      %v1326 = vunpack.c.l.b16 %v390
      %v1327 = vunpack.c.l.b16 %v391
      %v1328 = vunpack.c.l.b16 %v392
      %v1329 = vunpack.c.l.b16 %v393
      %v1330 = vunpack.c.l.b16 %v394
      %v1331 = vunpack.c.l.b16 %v395
      %v1332 = vunpack.c.l.b16 %v396
      %v1333 = vunpack.c.l.b16 %v397
      %v1334 = vunpack.c.l.b16 %v398
      %v1335 = vunpack.c.l.b16 %v399
      %v1336 = vunpack.c.l.b16 %v400
      %v1337 = vunpack.c.l.b16 %v401
      %v1338 = vunpack.c.l.b16 %v402
      %v1339 = vunpack.c.l.b16 %v403
      %v1340 = vunpack.c.l.b16 %v404
      %v1341 = vunpack.c.l.b16 %v405
      %v1342 = vunpack.c.l.b16 %v406
      %v1343 = vunpack.c.l.b16 %v407
      %v1344 = vunpack.c.l.b16 %v408
      %v1345 = vunpack.c.l.b16 %v409
      %v1346 = vunpack.c.l.b16 %v410
      %v1347 = vunpack.c.l.b16 %v411
      %v1348 = vunpack.c.l.b16 %v412
      %v1349 = vunpack.c.l.b16 %v413
      %v1350 = vunpack.c.l.b16 %v414
      %v1351 = vunpack.c.l.b16 %v415
      %v1352 = vunpack.c.l.b16 %v416
      %v1353 = vunpack.c.l.b16 %v417
      %v1354 = vunpack.c.l.b16 %v418
      %v1355 = vunpack.c.l.b16 %v419
      %v1356 = vunpack.c.l.b16 %v420
      %v1357 = vunpack.c.l.b16 %v421
      %v1358 = vunpack.c.l.b16 %v422
      %v1359 = vunpack.c.l.b16 %v423
      %v1360 = vunpack.c.l.b16 %v424
      %v1361 = vunpack.c.l.b16 %v425
      %v1362 = vunpack.c.l.b16 %v426
      %v1363 = vunpack.c.l.b16 %v427
      %v1364 = vunpack.c.l.b16 %v428
      %v1365 = vunpack.c.l.b16 %v429
      %v1366 = vunpack.c.l.b16 %v430
      %v1367 = vunpack.c.l.b16 %v431
      %v1368 = vunpack.c.l.b16 %v432
      %v1369 = vunpack.c.l.b16 %v433
      %v1370 = vunpack.c.l.b16 %v434
      %v1371 = vunpack.c.l.b16 %v435
      %v1372 = vunpack.c.l.b16 %v436
      %v1373 = vunpack.c.l.b16 %v437
      %v1374 = vunpack.c.l.b16 %v438
      %v1375 = vunpack.c.l.b16 %v439
      %v1376 = vunpack.c.l.b16 %v440
      %v1377 = vunpack.c.l.b16 %v441
      %v1378 = vunpack.c.l.b16 %v442
      %v1379 = vunpack.c.l.b16 %v443
      %v1380 = vunpack.c.l.b16 %v444
      %v1381 = vunpack.c.l.b16 %v445
      %v1382 = vunpack.c.l.b16 %v446
      %v1383 = vunpack.c.l.b16 %v447
      %v1384 = vunpack.c.l.b16 %v448
      %v1385 = vunpack.c.l.b16 %v449
      %v1386 = vunpack.c.l.b16 %v450
      %v1387 = vunpack.c.l.b16 %v451
      %v1388 = vunpack.c.l.b16 %v452
      %v1389 = vunpack.c.l.b16 %v453
      %v1390 = vunpack.c.l.b16 %v454
      %v1391 = vunpack.c.l.b16 %v455
      %v1392 = vunpack.c.l.b16 %v456
      %v1393 = vunpack.c.l.b16 %v457
      %v1394 = vunpack.c.l.b16 %v458
      %v1395 = vunpack.c.l.b16 %v459
      %v1396 = vunpack.c.l.b16 %v460
      %v1397 = vunpack.c.l.b16 %v461
      %v1398 = vunpack.c.l.b16 %v462
      %v1399 = vunpack.c.l.b16 %v463
      %v1400 = vunpack.c.l.b16 %v464
      %v1401 = vunpack.c.l.b16 %v465
      %v1402 = vunpack.c.l.b16 %v466
      %v1403 = vunpack.c.l.b16 %v467
      %v1404 = vunpack.c.l.b16 %v468
      %v1405 = vunpack.c.l.b16 %v469
      %v1406 = vunpack.c.l.b16 %v470
      %v1407 = vunpack.c.l.b16 %v471
      %v1408 = vunpack.c.l.b16 %v472
      %v1409 = vunpack.c.l.b16 %v473
      %v1410 = vunpack.c.l.b16 %v474
      %v1411 = vunpack.c.l.b16 %v475
      %v1412 = vunpack.c.l.b16 %v476
      %v1413 = vunpack.c.l.b16 %v477
      %v1414 = vunpack.c.l.b16 %v478
      %v1415 = vunpack.c.l.b16 %v479
      %v1416 = vunpack.c.l.b16 %v480
      %v1417 = vunpack.c.l.b16 %v481
      %v1418 = vunpack.c.l.b16 %v482
      %v1419 = vunpack.c.l.b16 %v483
      %v1420 = vunpack.c.l.b16 %v484
      %v1421 = vunpack.c.l.b16 %v485
      %v1422 = vunpack.c.l.b16 %v486
      %v1423 = vunpack.c.l.b16 %v487
      %v1424 = vunpack.c.l.b16 %v488
      %v1425 = vunpack.c.l.b16 %v489
      %v1426 = vunpack.c.l.b16 %v490
      %v1427 = vunpack.c.l.b16 %v491
      %v1428 = vunpack.c.l.b16 %v492
      %v1429 = vunpack.c.l.b16 %v493
      %v1430 = vunpack.c.l.b16 %v494
      %v1431 = vunpack.c.l.b16 %v495
      %v1432 = vunpack.c.l.b16 %v496
      %v1433 = vunpack.c.l.b16 %v497
      %v1434 = vunpack.c.l.b16 %v498
      %v1435 = vunpack.c.l.b16 %v499
      %v1436 = vunpack.c.l.b16 %v500
      %v1437 = vunpack.c.l.b16 %v501
      %v1438 = vunpack.c.l.b16 %v502
      %v1439 = vunpack.c.l.b16 %v503
      %v1440 = vunpack.c.l.b16 %v504
      %v1441 = vunpack.c.l.b16 %v505
      %v1442 = vunpack.c.l.b16 %v506
      %v1443 = vunpack.c.l.b16 %v507
      %v1444 = vunpack.c.l.b16 %v508
      %v1445 = vunpack.c.l.b16 %v509
      %v1446 = vunpack.c.l.b16 %v510
      %v1447 = vunpack.c.l.b16 %v511
      %v1448 = vunpack.c.l.b16 %v512
      %v1449 = vunpack.c.l.b16 %v513
      %v1450 = vunpack.c.l.b16 %v514
      %v1451 = vunpack.c.l.b16 %v515
      %v1452 = vunpack.c.l.b16 %v516
      %v1453 = vunpack.c.l.b16 %v517
      %v1454 = vunpack.c.l.b16 %v518
      %v1455 = vunpack.c.l.b16 %v519
      %v1456 = vunpack.c.l.b16 %v520
      %v1457 = vunpack.c.l.b16 %v521
      %v1458 = vunpack.c.l.b16 %v522
      %v1459 = vunpack.c.l.b16 %v523
      %v1460 = vunpack.c.l.b16 %v524
      %v1461 = vunpack.c.l.b16 %v525
      %v1462 = vunpack.c.l.b16 %v526
      %v1463 = vunpack.c.l.b16 %v527
      %v1464 = vunpack.c.l.b16 %v528
      %v1465 = vunpack.c.l.b16 %v529
      %v1466 = vunpack.c.l.b16 %v530
      %v1467 = vunpack.c.l.b16 %v531
      %v1468 = vunpack.c.l.b16 %v532
      %v1469 = vunpack.c.l.b16 %v533
      %v1470 = vunpack.c.l.b16 %v534
      %v1471 = vunpack.c.l.b16 %v535
      %v1472 = vunpack.c.l.b16 %v536
      %v1473 = vunpack.c.l.b16 %v537
      %v1474 = vunpack.c.l.b16 %v538
      %v1475 = vunpack.c.l.b16 %v539
      %v1476 = vunpack.c.l.b16 %v540
      %v1477 = vunpack.c.l.b16 %v541
      %v1478 = vunpack.c.l.b16 %v542
      %v1479 = vunpack.c.l.b16 %v543
      %v1480 = vunpack.c.l.b16 %v544
      %v1481 = vunpack.c.l.b16 %v545
      %v1482 = vunpack.c.l.b16 %v546
      %v1483 = vunpack.c.l.b16 %v547
      %v1484 = vunpack.c.l.b16 %v548
      %v1485 = vunpack.c.l.b16 %v549
      %v1486 = vunpack.c.l.b16 %v550
      %v1487 = vunpack.c.l.b16 %v551
      %v1488 = vunpack.c.l.b16 %v552
      %v1489 = vunpack.c.l.b16 %v553
      %v1490 = vunpack.c.l.b16 %v554
      %v1491 = vunpack.c.l.b16 %v555
      %v1492 = vunpack.c.l.b16 %v556
      %v1493 = vunpack.c.l.b16 %v557
      %v1494 = vunpack.c.l.b16 %v558
      %v1495 = vunpack.c.l.b16 %v559
      %v1496 = vunpack.c.l.b16 %v560
      %v1497 = vunpack.c.l.b16 %v561
      %v1498 = vunpack.c.l.b16 %v562
      %v1499 = vunpack.c.l.b16 %v563
      %v1500 = vunpack.c.l.b16 %v564
      %v1501 = vunpack.c.l.b16 %v565
      %v1502 = vunpack.c.l.b16 %v566
      %v1503 = vunpack.c.l.b16 %v567
      %v1504 = vunpack.c.l.b16 %v568
      %v1505 = vunpack.c.l.b16 %v569
      %v1506 = vunpack.c.l.b16 %v570
      %v1507 = vunpack.c.l.b16 %v571
      %v1508 = vunpack.c.l.b16 %v572
      %v1509 = vunpack.c.l.b16 %v573
      %v1510 = vunpack.c.l.b16 %v574
      %v1511 = vunpack.c.l.b16 %v575
      %v1512 = vunpack.c.l.b16 %v576
      %v1513 = vunpack.c.l.b16 %v577
      %v1514 = vunpack.c.l.b16 %v578
      %v1515 = vunpack.c.l.b16 %v579
      %v1516 = vunpack.c.l.b16 %v580
      %v1517 = vunpack.c.l.b16 %v581
      %v1518 = vunpack.c.l.b16 %v582
      %v1519 = vunpack.c.l.b16 %v583
      %v1520 = vunpack.c.l.b16 %v584
      %v1521 = vpack.c.b16 %v1234, %v1233
      %v1522 = vpack.c.b16 %v1236, %v1235
      %v1523 = vpack.c.b16 %v1238, %v1237
      %v1524 = vpack.c.b16 %v1240, %v1239
      %v1525 = vpack.c.b16 %v1242, %v1241
      %v1526 = vpack.c.b16 %v1244, %v1243
      %v1527 = vpack.c.b16 %v1246, %v1245
      %v1528 = vpack.c.b16 %v1248, %v1247
      %v1529 = vpack.c.b16 %v1250, %v1249
      %v1530 = vpack.c.b16 %v1252, %v1251
      %v1531 = vpack.c.b16 %v1254, %v1253
      %v1532 = vpack.c.b16 %v1256, %v1255
      %v1533 = vpack.c.b16 %v1258, %v1257
      %v1534 = vpack.c.b16 %v1260, %v1259
      %v1535 = vpack.c.b16 %v1262, %v1261
      %v1536 = vpack.c.b16 %v1264, %v1263
      %v1537 = vpack.c.b16 %v1266, %v1265
      %v1538 = vpack.c.b16 %v1268, %v1267
      %v1539 = vpack.c.b16 %v1270, %v1269
      %v1540 = vpack.c.b16 %v1272, %v1271
      %v1541 = vpack.c.b16 %v1274, %v1273
      %v1542 = vpack.c.b16 %v1276, %v1275
      %v1543 = vpack.c.b16 %v1278, %v1277
      %v1544 = vpack.c.b16 %v1280, %v1279
      %v1545 = vpack.c.b16 %v1282, %v1281
      %v1546 = vpack.c.b16 %v1284, %v1283
      %v1547 = vpack.c.b16 %v1286, %v1285
      %v1548 = vpack.c.b16 %v1288, %v1287
      %v1549 = vpack.c.b16 %v1290, %v1289
      %v1550 = vpack.c.b16 %v1292, %v1291
      %v1551 = vpack.c.b16 %v1294, %v1293
      %v1552 = vpack.c.b16 %v1296, %v1295
      %v1553 = vpack.c.b16 %v1298, %v1297
      %v1554 = vpack.c.b16 %v1300, %v1299
      %v1555 = vpack.c.b16 %v1302, %v1301
      %v1556 = vpack.c.b16 %v1304, %v1303
      %v1557 = vpack.c.b16 %v1306, %v1305
      %v1558 = vpack.c.b16 %v1308, %v1307
      %v1559 = vpack.c.b16 %v1310, %v1309
      %v1560 = vpack.c.b16 %v1312, %v1311
      %v1561 = vpack.c.b16 %v1314, %v1313
      %v1562 = vpack.c.b16 %v1316, %v1315
      %v1563 = vpack.c.b16 %v1318, %v1317
      %v1564 = vpack.c.b16 %v1320, %v1319
      %v1565 = vpack.c.b16 %v1322, %v1321
      %v1566 = vpack.c.b16 %v1324, %v1323
      %v1567 = vpack.c.b16 %v1326, %v1325
      %v1568 = vpack.c.b16 %v1328, %v1327
      %v1569 = vpack.c.b16 %v1330, %v1329
      %v1570 = vpack.c.b16 %v1332, %v1331
      %v1571 = vpack.c.b16 %v1334, %v1333
      %v1572 = vpack.c.b16 %v1336, %v1335
      %v1573 = vpack.c.b16 %v1338, %v1337
      %v1574 = vpack.c.b16 %v1340, %v1339
      %v1575 = vpack.c.b16 %v1342, %v1341
      %v1576 = vpack.c.b16 %v1344, %v1343
      %v1577 = vpack.c.b16 %v1346, %v1345
      %v1578 = vpack.c.b16 %v1348, %v1347
      %v1579 = vpack.c.b16 %v1350, %v1349
      %v1580 = vpack.c.b16 %v1352, %v1351
      %v1581 = vpack.c.b16 %v1354, %v1353
      %v1582 = vpack.c.b16 %v1356, %v1355
      %v1583 = vpack.c.b16 %v1358, %v1357
      %v1584 = vpack.c.b16 %v1360, %v1359
      %v1585 = vpack.c.b16 %v1362, %v1361
      %v1586 = vpack.c.b16 %v1364, %v1363
      %v1587 = vpack.c.b16 %v1366, %v1365
      %v1588 = vpack.c.b16 %v1368, %v1367
      %v1589 = vpack.c.b16 %v1370, %v1369
      %v1590 = vpack.c.b16 %v1372, %v1371
      %v1591 = vpack.c.b16 %v1374, %v1373
      %v1592 = vpack.c.b16 %v1376, %v1375
      %v1593 = vpack.c.b16 %v1378, %v1377
      %v1594 = vpack.c.b16 %v1380, %v1379
      %v1595 = vpack.c.b16 %v1382, %v1381
      %v1596 = vpack.c.b16 %v1384, %v1383
      %v1597 = vpack.c.b16 %v1386, %v1385
      %v1598 = vpack.c.b16 %v1388, %v1387
      %v1599 = vpack.c.b16 %v1390, %v1389
      %v1600 = vpack.c.b16 %v1392, %v1391
      %v1601 = vpack.c.b16 %v1394, %v1393
      %v1602 = vpack.c.b16 %v1396, %v1395
      %v1603 = vpack.c.b16 %v1398, %v1397
      %v1604 = vpack.c.b16 %v1400, %v1399
      %v1605 = vpack.c.b16 %v1402, %v1401
      %v1606 = vpack.c.b16 %v1404, %v1403
      %v1607 = vpack.c.b16 %v1406, %v1405
      %v1608 = vpack.c.b16 %v1408, %v1407
      %v1609 = vpack.c.b16 %v1410, %v1409
      %v1610 = vpack.c.b16 %v1412, %v1411
      %v1611 = vpack.c.b16 %v1414, %v1413
      %v1612 = vpack.c.b16 %v1416, %v1415
      %v1613 = vpack.c.b16 %v1418, %v1417
      %v1614 = vpack.c.b16 %v1420, %v1419
      %v1615 = vpack.c.b16 %v1422, %v1421
      %v1616 = vpack.c.b16 %v1424, %v1423
      %v1617 = vpack.c.b16 %v1426, %v1425
      %v1618 = vpack.c.b16 %v1428, %v1427
      %v1619 = vpack.c.b16 %v1430, %v1429
      %v1620 = vpack.c.b16 %v1432, %v1431
      %v1621 = vpack.c.b16 %v1434, %v1433
      %v1622 = vpack.c.b16 %v1436, %v1435
      %v1623 = vpack.c.b16 %v1438, %v1437
      %v1624 = vpack.c.b16 %v1440, %v1439
      %v1625 = vpack.c.b16 %v1442, %v1441
      %v1626 = vpack.c.b16 %v1444, %v1443
      %v1627 = vpack.c.b16 %v1446, %v1445
      %v1628 = vpack.c.b16 %v1448, %v1447
      %v1629 = vpack.c.b16 %v1450, %v1449
      %v1630 = vpack.c.b16 %v1452, %v1451
      %v1631 = vpack.c.b16 %v1454, %v1453
      %v1632 = vpack.c.b16 %v1456, %v1455
      %v1633 = vpack.c.b16 %v1458, %v1457
      %v1634 = vpack.c.b16 %v1460, %v1459
      %v1635 = vpack.c.b16 %v1462, %v1461
      %v1636 = vpack.c.b16 %v1464, %v1463
      %v1637 = vpack.c.b16 %v1466, %v1465
      %v1638 = vpack.c.b16 %v1468, %v1467
      %v1639 = vpack.c.b16 %v1470, %v1469
      %v1640 = vpack.c.b16 %v1472, %v1471
      %v1641 = vpack.c.b16 %v1474, %v1473
      %v1642 = vpack.c.b16 %v1476, %v1475
      %v1643 = vpack.c.b16 %v1478, %v1477
      %v1644 = vpack.c.b16 %v1480, %v1479
      %v1645 = vpack.c.b16 %v1482, %v1481
      %v1646 = vpack.c.b16 %v1484, %v1483
      %v1647 = vpack.c.b16 %v1486, %v1485
      %v1648 = vpack.c.b16 %v1488, %v1487
      %v1649 = vpack.c.b16 %v1490, %v1489
      %v1650 = vpack.c.b16 %v1492, %v1491
      %v1651 = vpack.c.b16 %v1494, %v1493
      %v1652 = vpack.c.b16 %v1496, %v1495
      %v1653 = vpack.c.b16 %v1498, %v1497
      %v1654 = vpack.c.b16 %v1500, %v1499
      %v1655 = vpack.c.b16 %v1502, %v1501
      %v1656 = vpack.c.b16 %v1504, %v1503
      %v1657 = vpack.c.b16 %v1506, %v1505
      %v1658 = vpack.c.b16 %v1508, %v1507
      %v1659 = vpack.c.b16 %v1510, %v1509
      %v1660 = vpack.c.b16 %v1512, %v1511
      %v1661 = vpack.c.b16 %v1514, %v1513
      %v1662 = vpack.c.b16 %v1516, %v1515
      %v1663 = vpack.c.b16 %v1518, %v1517
      %v1664 = vpack.c.b16 %v1520, %v1519
      %1809 = vmatpush.bf16.msra.mxu0 %v1528
      %1810 = vmatpush.bf16.msra.mxu0 %v1527
      %1811 = vmatpush.bf16.msra.mxu0 %v1526
      %1812 = vmatpush.bf16.msra.mxu0 %v1525
      %1813 = vmatpush.bf16.msra.mxu0 %v1524
      %1814 = vmatpush.bf16.msra.mxu0 %v1523
      %1815 = vmatpush.bf16.msra.mxu0 %v1522
      %1816 = vmatpush.bf16.msra.mxu0 %v1521
      %1817 = vmatmul.bf16.gmra.mxu0 %v801
      %v1818 = vpop.f32.mrf.mxu0
      %v1819 = vadd.f32 0.0, %v1818
      %v1820 = vpop.f32.mrf.mxu0
      %v1821 = vadd.f32 0.0, %v1820
      %1822 = vmatmul.bf16.gmra.mxu0 %v819
      %v1823 = vpop.f32.mrf.mxu0
      %v1824 = vadd.f32 0.0, %v1823
      %v1825 = vpop.f32.mrf.mxu0
      %v1826 = vadd.f32 0.0, %v1825
      %1827 = vmatmul.bf16.gmra.mxu0 %v837
      %v1828 = vpop.f32.mrf.mxu0
      %v1829 = vadd.f32 0.0, %v1828
      %v1830 = vpop.f32.mrf.mxu0
      %v1831 = vadd.f32 0.0, %v1830
      %1832 = vmatmul.bf16.gmra.mxu0 %v855
      %v1833 = vpop.f32.mrf.mxu0
      %v1834 = vadd.f32 0.0, %v1833
      %v1835 = vpop.f32.mrf.mxu0
      %v1836 = vadd.f32 0.0, %v1835
      %1837 = vdwg.mxu0
      %1838 = vmatpush.bf16.msra.mxu0 %v1536
      %1839 = vmatpush.bf16.msra.mxu0 %v1535
      %1840 = vmatpush.bf16.msra.mxu0 %v1534
      %1841 = vmatpush.bf16.msra.mxu0 %v1533
      %1842 = vmatpush.bf16.msra.mxu0 %v1532
      %1843 = vmatpush.bf16.msra.mxu0 %v1531
      %1844 = vmatpush.bf16.msra.mxu0 %v1530
      %1845 = vmatpush.bf16.msra.mxu0 %v1529
      %1846 = vmatmul.bf16.gmra.mxu0 %v802
      %v1847 = vpop.f32.mrf.mxu0
      %v1848 = vadd.f32 %v1819, %v1847
      %v1849 = vpop.f32.mrf.mxu0
      %v1850 = vadd.f32 %v1821, %v1849
      %1851 = vmatmul.bf16.gmra.mxu0 %v820
      %v1852 = vpop.f32.mrf.mxu0
      %v1853 = vadd.f32 %v1824, %v1852
      %v1854 = vpop.f32.mrf.mxu0
      %v1855 = vadd.f32 %v1826, %v1854
      %1856 = vmatmul.bf16.gmra.mxu0 %v838
      %v1857 = vpop.f32.mrf.mxu0
      %v1858 = vadd.f32 %v1829, %v1857
      %v1859 = vpop.f32.mrf.mxu0
      %v1860 = vadd.f32 %v1831, %v1859
      %1861 = vmatmul.bf16.gmra.mxu0 %v856
      %v1862 = vpop.f32.mrf.mxu0
      %v1863 = vadd.f32 %v1834, %v1862
      %v1864 = vpop.f32.mrf.mxu0
      %v1865 = vadd.f32 %v1836, %v1864
      %1866 = vdwg.mxu0
      %1867 = vmatpush.bf16.msra.mxu0 %v1544
      %1868 = vmatpush.bf16.msra.mxu0 %v1543
      %1869 = vmatpush.bf16.msra.mxu0 %v1542
      %1870 = vmatpush.bf16.msra.mxu0 %v1541
      %1871 = vmatpush.bf16.msra.mxu0 %v1540
      %1872 = vmatpush.bf16.msra.mxu0 %v1539
      %1873 = vmatpush.bf16.msra.mxu0 %v1538
      %1874 = vmatpush.bf16.msra.mxu0 %v1537
      %1875 = vmatmul.bf16.gmra.mxu0 %v803
      %v1876 = vpop.f32.mrf.mxu0
      %v1877 = vadd.f32 %v1848, %v1876
      %v1878 = vpop.f32.mrf.mxu0
      %v1879 = vadd.f32 %v1850, %v1878
      %1880 = vmatmul.bf16.gmra.mxu0 %v821
      %v1881 = vpop.f32.mrf.mxu0
      %v1882 = vadd.f32 %v1853, %v1881
      %v1883 = vpop.f32.mrf.mxu0
      %v1884 = vadd.f32 %v1855, %v1883
      %1885 = vmatmul.bf16.gmra.mxu0 %v839
      %v1886 = vpop.f32.mrf.mxu0
      %v1887 = vadd.f32 %v1858, %v1886
      %v1888 = vpop.f32.mrf.mxu0
      %v1889 = vadd.f32 %v1860, %v1888
      %1890 = vmatmul.bf16.gmra.mxu0 %v857
      %v1891 = vpop.f32.mrf.mxu0
      %v1892 = vadd.f32 %v1863, %v1891
      %v1893 = vpop.f32.mrf.mxu0
      %v1894 = vadd.f32 %v1865, %v1893
      %1895 = vdwg.mxu0
      %1896 = vmatpush.bf16.msra.mxu0 %v1552
      %1897 = vmatpush.bf16.msra.mxu0 %v1551
      %1898 = vmatpush.bf16.msra.mxu0 %v1550
      %1899 = vmatpush.bf16.msra.mxu0 %v1549
      %1900 = vmatpush.bf16.msra.mxu0 %v1548
      %1901 = vmatpush.bf16.msra.mxu0 %v1547
      %1902 = vmatpush.bf16.msra.mxu0 %v1546
      %1903 = vmatpush.bf16.msra.mxu0 %v1545
      %1904 = vmatmul.bf16.gmra.mxu0 %v804
      %v1905 = vpop.f32.mrf.mxu0
      %v1906 = vadd.f32 %v1877, %v1905
      %v1907 = vpop.f32.mrf.mxu0
      %v1908 = vadd.f32 %v1879, %v1907
      %1909 = vmatmul.bf16.gmra.mxu0 %v822
      %v1910 = vpop.f32.mrf.mxu0
      %v1911 = vadd.f32 %v1882, %v1910
      %v1912 = vpop.f32.mrf.mxu0
      %v1913 = vadd.f32 %v1884, %v1912
      %1914 = vmatmul.bf16.gmra.mxu0 %v840
      %v1915 = vpop.f32.mrf.mxu0
      %v1916 = vadd.f32 %v1887, %v1915
      %v1917 = vpop.f32.mrf.mxu0
      %v1918 = vadd.f32 %v1889, %v1917
      %1919 = vmatmul.bf16.gmra.mxu0 %v858
      %v1920 = vpop.f32.mrf.mxu0
      %v1921 = vadd.f32 %v1892, %v1920
      %v1922 = vpop.f32.mrf.mxu0
      %v1923 = vadd.f32 %v1894, %v1922
      %1924 = vdwg.mxu0
      %1925 = vmatpush.bf16.msra.mxu0 %v1560
      %1926 = vmatpush.bf16.msra.mxu0 %v1559
      %1927 = vmatpush.bf16.msra.mxu0 %v1558
      %1928 = vmatpush.bf16.msra.mxu0 %v1557
      %1929 = vmatpush.bf16.msra.mxu0 %v1556
      %1930 = vmatpush.bf16.msra.mxu0 %v1555
      %1931 = vmatpush.bf16.msra.mxu0 %v1554
      %1932 = vmatpush.bf16.msra.mxu0 %v1553
      %1933 = vmatmul.bf16.gmra.mxu0 %v805
      %v1934 = vpop.f32.mrf.mxu0
      %v1935 = vadd.f32 %v1906, %v1934
      %v1936 = vpop.f32.mrf.mxu0
      %v1937 = vadd.f32 %v1908, %v1936
      %1938 = vmatmul.bf16.gmra.mxu0 %v823
      %v1939 = vpop.f32.mrf.mxu0
      %v1940 = vadd.f32 %v1911, %v1939
      %v1941 = vpop.f32.mrf.mxu0
      %v1942 = vadd.f32 %v1913, %v1941
      %1943 = vmatmul.bf16.gmra.mxu0 %v841
      %v1944 = vpop.f32.mrf.mxu0
      %v1945 = vadd.f32 %v1916, %v1944
      %v1946 = vpop.f32.mrf.mxu0
      %v1947 = vadd.f32 %v1918, %v1946
      %1948 = vmatmul.bf16.gmra.mxu0 %v859
      %v1949 = vpop.f32.mrf.mxu0
      %v1950 = vadd.f32 %v1921, %v1949
      %v1951 = vpop.f32.mrf.mxu0
      %v1952 = vadd.f32 %v1923, %v1951
      %1953 = vdwg.mxu0
      %1954 = vmatpush.bf16.msra.mxu0 %v1568
      %1955 = vmatpush.bf16.msra.mxu0 %v1567
      %1956 = vmatpush.bf16.msra.mxu0 %v1566
      %1957 = vmatpush.bf16.msra.mxu0 %v1565
      %1958 = vmatpush.bf16.msra.mxu0 %v1564
      %1959 = vmatpush.bf16.msra.mxu0 %v1563
      %1960 = vmatpush.bf16.msra.mxu0 %v1562
      %1961 = vmatpush.bf16.msra.mxu0 %v1561
      %1962 = vmatmul.bf16.gmra.mxu0 %v806
      %v1963 = vpop.f32.mrf.mxu0
      %v1964 = vadd.f32 %v1935, %v1963
      %v1965 = vpop.f32.mrf.mxu0
      %v1966 = vadd.f32 %v1937, %v1965
      %1967 = vmatmul.bf16.gmra.mxu0 %v824
      %v1968 = vpop.f32.mrf.mxu0
      %v1969 = vadd.f32 %v1940, %v1968
      %v1970 = vpop.f32.mrf.mxu0
      %v1971 = vadd.f32 %v1942, %v1970
      %1972 = vmatmul.bf16.gmra.mxu0 %v842
      %v1973 = vpop.f32.mrf.mxu0
      %v1974 = vadd.f32 %v1945, %v1973
      %v1975 = vpop.f32.mrf.mxu0
      %v1976 = vadd.f32 %v1947, %v1975
      %1977 = vmatmul.bf16.gmra.mxu0 %v860
      %v1978 = vpop.f32.mrf.mxu0
      %v1979 = vadd.f32 %v1950, %v1978
      %v1980 = vpop.f32.mrf.mxu0
      %v1981 = vadd.f32 %v1952, %v1980
      %1982 = vdwg.mxu0
      %1983 = vmatpush.bf16.msra.mxu0 %v1576
      %1984 = vmatpush.bf16.msra.mxu0 %v1575
      %1985 = vmatpush.bf16.msra.mxu0 %v1574
      %1986 = vmatpush.bf16.msra.mxu0 %v1573
      %1987 = vmatpush.bf16.msra.mxu0 %v1572
      %1988 = vmatpush.bf16.msra.mxu0 %v1571
      %1989 = vmatpush.bf16.msra.mxu0 %v1570
      %1990 = vmatpush.bf16.msra.mxu0 %v1569
      %1991 = vmatmul.bf16.gmra.mxu0 %v807
      %v1992 = vpop.f32.mrf.mxu0
      %v1993 = vadd.f32 %v1964, %v1992
      %v1994 = vpop.f32.mrf.mxu0
      %v1995 = vadd.f32 %v1966, %v1994
      %1996 = vmatmul.bf16.gmra.mxu0 %v825
      %v1997 = vpop.f32.mrf.mxu0
      %v1998 = vadd.f32 %v1969, %v1997
      %v1999 = vpop.f32.mrf.mxu0
      %v2000 = vadd.f32 %v1971, %v1999
      %2001 = vmatmul.bf16.gmra.mxu0 %v843
      %v2002 = vpop.f32.mrf.mxu0
      %v2003 = vadd.f32 %v1974, %v2002
      %v2004 = vpop.f32.mrf.mxu0
      %v2005 = vadd.f32 %v1976, %v2004
      %2006 = vmatmul.bf16.gmra.mxu0 %v861
      %v2007 = vpop.f32.mrf.mxu0
      %v2008 = vadd.f32 %v1979, %v2007
      %v2009 = vpop.f32.mrf.mxu0
      %v2010 = vadd.f32 %v1981, %v2009
      %2011 = vdwg.mxu0
      %2012 = vmatpush.bf16.msra.mxu0 %v1584
      %2013 = vmatpush.bf16.msra.mxu0 %v1583
      %2014 = vmatpush.bf16.msra.mxu0 %v1582
      %2015 = vmatpush.bf16.msra.mxu0 %v1581
      %2016 = vmatpush.bf16.msra.mxu0 %v1580
      %2017 = vmatpush.bf16.msra.mxu0 %v1579
      %2018 = vmatpush.bf16.msra.mxu0 %v1578
      %2019 = vmatpush.bf16.msra.mxu0 %v1577
      %2020 = vmatmul.bf16.gmra.mxu0 %v808
      %v2021 = vpop.f32.mrf.mxu0
      %v2022 = vadd.f32 %v1993, %v2021
      %v2023 = vpop.f32.mrf.mxu0
      %v2024 = vadd.f32 %v1995, %v2023
      %2025 = vmatmul.bf16.gmra.mxu0 %v826
      %v2026 = vpop.f32.mrf.mxu0
      %v2027 = vadd.f32 %v1998, %v2026
      %v2028 = vpop.f32.mrf.mxu0
      %v2029 = vadd.f32 %v2000, %v2028
      %2030 = vmatmul.bf16.gmra.mxu0 %v844
      %v2031 = vpop.f32.mrf.mxu0
      %v2032 = vadd.f32 %v2003, %v2031
      %v2033 = vpop.f32.mrf.mxu0
      %v2034 = vadd.f32 %v2005, %v2033
      %2035 = vmatmul.bf16.gmra.mxu0 %v862
      %v2036 = vpop.f32.mrf.mxu0
      %v2037 = vadd.f32 %v2008, %v2036
      %v2038 = vpop.f32.mrf.mxu0
      %v2039 = vadd.f32 %v2010, %v2038
      %2040 = vdwg.mxu0
      %2041 = vmatpush.bf16.msra.mxu0 %v1592
      %2042 = vmatpush.bf16.msra.mxu0 %v1591
      %2043 = vmatpush.bf16.msra.mxu0 %v1590
      %2044 = vmatpush.bf16.msra.mxu0 %v1589
      %2045 = vmatpush.bf16.msra.mxu0 %v1588
      %2046 = vmatpush.bf16.msra.mxu0 %v1587
      %2047 = vmatpush.bf16.msra.mxu0 %v1586
      %2048 = vmatpush.bf16.msra.mxu0 %v1585
      %2049 = vmatmul.bf16.gmra.mxu0 %v809
      %v2050 = vpop.f32.mrf.mxu0
      %v2051 = vadd.f32 %v2022, %v2050
      %v2052 = vpop.f32.mrf.mxu0
      %v2053 = vadd.f32 %v2024, %v2052
      %2054 = vmatmul.bf16.gmra.mxu0 %v827
      %v2055 = vpop.f32.mrf.mxu0
      %v2056 = vadd.f32 %v2027, %v2055
      %v2057 = vpop.f32.mrf.mxu0
      %v2058 = vadd.f32 %v2029, %v2057
      %2059 = vmatmul.bf16.gmra.mxu0 %v845
      %v2060 = vpop.f32.mrf.mxu0
      %v2061 = vadd.f32 %v2032, %v2060
      %v2062 = vpop.f32.mrf.mxu0
      %v2063 = vadd.f32 %v2034, %v2062
      %2064 = vmatmul.bf16.gmra.mxu0 %v863
      %v2065 = vpop.f32.mrf.mxu0
      %v2066 = vadd.f32 %v2037, %v2065
      %v2067 = vpop.f32.mrf.mxu0
      %v2068 = vadd.f32 %v2039, %v2067
      %2069 = vdwg.mxu0
      %2070 = vmatpush.bf16.msra.mxu0 %v1600
      %2071 = vmatpush.bf16.msra.mxu0 %v1599
      %2072 = vmatpush.bf16.msra.mxu0 %v1598
      %2073 = vmatpush.bf16.msra.mxu0 %v1597
      %2074 = vmatpush.bf16.msra.mxu0 %v1596
      %2075 = vmatpush.bf16.msra.mxu0 %v1595
      %2076 = vmatpush.bf16.msra.mxu0 %v1594
      %2077 = vmatpush.bf16.msra.mxu0 %v1593
      %2078 = vmatmul.bf16.gmra.mxu0 %v810
      %v2079 = vpop.f32.mrf.mxu0
      %v2080 = vadd.f32 %v2051, %v2079
      %v2081 = vpop.f32.mrf.mxu0
      %v2082 = vadd.f32 %v2053, %v2081
      %2083 = vmatmul.bf16.gmra.mxu0 %v828
      %v2084 = vpop.f32.mrf.mxu0
      %v2085 = vadd.f32 %v2056, %v2084
      %v2086 = vpop.f32.mrf.mxu0
      %v2087 = vadd.f32 %v2058, %v2086
      %2088 = vmatmul.bf16.gmra.mxu0 %v846
      %v2089 = vpop.f32.mrf.mxu0
      %v2090 = vadd.f32 %v2061, %v2089
      %v2091 = vpop.f32.mrf.mxu0
      %v2092 = vadd.f32 %v2063, %v2091
      %2093 = vmatmul.bf16.gmra.mxu0 %v864
      %v2094 = vpop.f32.mrf.mxu0
      %v2095 = vadd.f32 %v2066, %v2094
      %v2096 = vpop.f32.mrf.mxu0
      %v2097 = vadd.f32 %v2068, %v2096
      %2098 = vdwg.mxu0
      %2099 = vmatpush.bf16.msra.mxu0 %v1608
      %2100 = vmatpush.bf16.msra.mxu0 %v1607
      %2101 = vmatpush.bf16.msra.mxu0 %v1606
      %2102 = vmatpush.bf16.msra.mxu0 %v1605
      %2103 = vmatpush.bf16.msra.mxu0 %v1604
      %2104 = vmatpush.bf16.msra.mxu0 %v1603
      %2105 = vmatpush.bf16.msra.mxu0 %v1602
      %2106 = vmatpush.bf16.msra.mxu0 %v1601
      %2107 = vmatmul.bf16.gmra.mxu0 %v811
      %v2108 = vpop.f32.mrf.mxu0
      %v2109 = vadd.f32 %v2080, %v2108
      %v2110 = vpop.f32.mrf.mxu0
      %v2111 = vadd.f32 %v2082, %v2110
      %2112 = vmatmul.bf16.gmra.mxu0 %v829
      %v2113 = vpop.f32.mrf.mxu0
      %v2114 = vadd.f32 %v2085, %v2113
      %v2115 = vpop.f32.mrf.mxu0
      %v2116 = vadd.f32 %v2087, %v2115
      %2117 = vmatmul.bf16.gmra.mxu0 %v847
      %v2118 = vpop.f32.mrf.mxu0
      %v2119 = vadd.f32 %v2090, %v2118
      %v2120 = vpop.f32.mrf.mxu0
      %v2121 = vadd.f32 %v2092, %v2120
      %2122 = vmatmul.bf16.gmra.mxu0 %v865
      %v2123 = vpop.f32.mrf.mxu0
      %v2124 = vadd.f32 %v2095, %v2123
      %v2125 = vpop.f32.mrf.mxu0
      %v2126 = vadd.f32 %v2097, %v2125
      %2127 = vdwg.mxu0
      %2128 = vmatpush.bf16.msra.mxu0 %v1616
      %2129 = vmatpush.bf16.msra.mxu0 %v1615
      %2130 = vmatpush.bf16.msra.mxu0 %v1614
      %2131 = vmatpush.bf16.msra.mxu0 %v1613
      %2132 = vmatpush.bf16.msra.mxu0 %v1612
      %2133 = vmatpush.bf16.msra.mxu0 %v1611
      %2134 = vmatpush.bf16.msra.mxu0 %v1610
      %2135 = vmatpush.bf16.msra.mxu0 %v1609
      %2136 = vmatmul.bf16.gmra.mxu0 %v812
      %v2137 = vpop.f32.mrf.mxu0
      %v2138 = vadd.f32 %v2109, %v2137
      %v2139 = vpop.f32.mrf.mxu0
      %v2140 = vadd.f32 %v2111, %v2139
      %2141 = vmatmul.bf16.gmra.mxu0 %v830
      %v2142 = vpop.f32.mrf.mxu0
      %v2143 = vadd.f32 %v2114, %v2142
      %v2144 = vpop.f32.mrf.mxu0
      %v2145 = vadd.f32 %v2116, %v2144
      %2146 = vmatmul.bf16.gmra.mxu0 %v848
      %v2147 = vpop.f32.mrf.mxu0
      %v2148 = vadd.f32 %v2119, %v2147
      %v2149 = vpop.f32.mrf.mxu0
      %v2150 = vadd.f32 %v2121, %v2149
      %2151 = vmatmul.bf16.gmra.mxu0 %v866
      %v2152 = vpop.f32.mrf.mxu0
      %v2153 = vadd.f32 %v2124, %v2152
      %v2154 = vpop.f32.mrf.mxu0
      %v2155 = vadd.f32 %v2126, %v2154
      %2156 = vdwg.mxu0
      %2157 = vmatpush.bf16.msra.mxu0 %v1624
      %2158 = vmatpush.bf16.msra.mxu0 %v1623
      %2159 = vmatpush.bf16.msra.mxu0 %v1622
      %2160 = vmatpush.bf16.msra.mxu0 %v1621
      %2161 = vmatpush.bf16.msra.mxu0 %v1620
      %2162 = vmatpush.bf16.msra.mxu0 %v1619
      %2163 = vmatpush.bf16.msra.mxu0 %v1618
      %2164 = vmatpush.bf16.msra.mxu0 %v1617
      %2165 = vmatmul.bf16.gmra.mxu0 %v813
      %v2166 = vpop.f32.mrf.mxu0
      %v2167 = vadd.f32 %v2138, %v2166
      %v2168 = vpop.f32.mrf.mxu0
      %v2169 = vadd.f32 %v2140, %v2168
      %2170 = vmatmul.bf16.gmra.mxu0 %v831
      %v2171 = vpop.f32.mrf.mxu0
      %v2172 = vadd.f32 %v2143, %v2171
      %v2173 = vpop.f32.mrf.mxu0
      %v2174 = vadd.f32 %v2145, %v2173
      %2175 = vmatmul.bf16.gmra.mxu0 %v849
      %v2176 = vpop.f32.mrf.mxu0
      %v2177 = vadd.f32 %v2148, %v2176
      %v2178 = vpop.f32.mrf.mxu0
      %v2179 = vadd.f32 %v2150, %v2178
      %2180 = vmatmul.bf16.gmra.mxu0 %v867
      %v2181 = vpop.f32.mrf.mxu0
      %v2182 = vadd.f32 %v2153, %v2181
      %v2183 = vpop.f32.mrf.mxu0
      %v2184 = vadd.f32 %v2155, %v2183
      %2185 = vdwg.mxu0
      %2186 = vmatpush.bf16.msra.mxu0 %v1632
      %2187 = vmatpush.bf16.msra.mxu0 %v1631
      %2188 = vmatpush.bf16.msra.mxu0 %v1630
      %2189 = vmatpush.bf16.msra.mxu0 %v1629
      %2190 = vmatpush.bf16.msra.mxu0 %v1628
      %2191 = vmatpush.bf16.msra.mxu0 %v1627
      %2192 = vmatpush.bf16.msra.mxu0 %v1626
      %2193 = vmatpush.bf16.msra.mxu0 %v1625
      %2194 = vmatmul.bf16.gmra.mxu0 %v814
      %v2195 = vpop.f32.mrf.mxu0
      %v2196 = vadd.f32 %v2167, %v2195
      %v2197 = vpop.f32.mrf.mxu0
      %v2198 = vadd.f32 %v2169, %v2197
      %2199 = vmatmul.bf16.gmra.mxu0 %v832
      %v2200 = vpop.f32.mrf.mxu0
      %v2201 = vadd.f32 %v2172, %v2200
      %v2202 = vpop.f32.mrf.mxu0
      %v2203 = vadd.f32 %v2174, %v2202
      %2204 = vmatmul.bf16.gmra.mxu0 %v850
      %v2205 = vpop.f32.mrf.mxu0
      %v2206 = vadd.f32 %v2177, %v2205
      %v2207 = vpop.f32.mrf.mxu0
      %v2208 = vadd.f32 %v2179, %v2207
      %2209 = vmatmul.bf16.gmra.mxu0 %v868
      %v2210 = vpop.f32.mrf.mxu0
      %v2211 = vadd.f32 %v2182, %v2210
      %v2212 = vpop.f32.mrf.mxu0
      %v2213 = vadd.f32 %v2184, %v2212
      %2214 = vdwg.mxu0
      %2215 = vmatpush.bf16.msra.mxu0 %v1640
      %2216 = vmatpush.bf16.msra.mxu0 %v1639
      %2217 = vmatpush.bf16.msra.mxu0 %v1638
      %2218 = vmatpush.bf16.msra.mxu0 %v1637
      %2219 = vmatpush.bf16.msra.mxu0 %v1636
      %2220 = vmatpush.bf16.msra.mxu0 %v1635
      %2221 = vmatpush.bf16.msra.mxu0 %v1634
      %2222 = vmatpush.bf16.msra.mxu0 %v1633
      %2223 = vmatmul.bf16.gmra.mxu0 %v815
      %v2224 = vpop.f32.mrf.mxu0
      %v2225 = vadd.f32 %v2196, %v2224
      %v2226 = vpop.f32.mrf.mxu0
      %v2227 = vadd.f32 %v2198, %v2226
      %2228 = vmatmul.bf16.gmra.mxu0 %v833
      %v2229 = vpop.f32.mrf.mxu0
      %v2230 = vadd.f32 %v2201, %v2229
      %v2231 = vpop.f32.mrf.mxu0
      %v2232 = vadd.f32 %v2203, %v2231
      %2233 = vmatmul.bf16.gmra.mxu0 %v851
      %v2234 = vpop.f32.mrf.mxu0
      %v2235 = vadd.f32 %v2206, %v2234
      %v2236 = vpop.f32.mrf.mxu0
      %v2237 = vadd.f32 %v2208, %v2236
      %2238 = vmatmul.bf16.gmra.mxu0 %v869
      %v2239 = vpop.f32.mrf.mxu0
      %v2240 = vadd.f32 %v2211, %v2239
      %v2241 = vpop.f32.mrf.mxu0
      %v2242 = vadd.f32 %v2213, %v2241
      %2243 = vdwg.mxu0
      %2244 = vmatpush.bf16.msra.mxu0 %v1648
      %2245 = vmatpush.bf16.msra.mxu0 %v1647
      %2246 = vmatpush.bf16.msra.mxu0 %v1646
      %2247 = vmatpush.bf16.msra.mxu0 %v1645
      %2248 = vmatpush.bf16.msra.mxu0 %v1644
      %2249 = vmatpush.bf16.msra.mxu0 %v1643
      %2250 = vmatpush.bf16.msra.mxu0 %v1642
      %2251 = vmatpush.bf16.msra.mxu0 %v1641
      %2252 = vmatmul.bf16.gmra.mxu0 %v816
      %v2253 = vpop.f32.mrf.mxu0
      %v2254 = vadd.f32 %v2225, %v2253
      %v2255 = vpop.f32.mrf.mxu0
      %v2256 = vadd.f32 %v2227, %v2255
      %2257 = vmatmul.bf16.gmra.mxu0 %v834
      %v2258 = vpop.f32.mrf.mxu0
      %v2259 = vadd.f32 %v2230, %v2258
      %v2260 = vpop.f32.mrf.mxu0
      %v2261 = vadd.f32 %v2232, %v2260
      %2262 = vmatmul.bf16.gmra.mxu0 %v852
      %v2263 = vpop.f32.mrf.mxu0
      %v2264 = vadd.f32 %v2235, %v2263
      %v2265 = vpop.f32.mrf.mxu0
      %v2266 = vadd.f32 %v2237, %v2265
      %2267 = vmatmul.bf16.gmra.mxu0 %v870
      %v2268 = vpop.f32.mrf.mxu0
      %v2269 = vadd.f32 %v2240, %v2268
      %v2270 = vpop.f32.mrf.mxu0
      %v2271 = vadd.f32 %v2242, %v2270
      %2272 = vdwg.mxu0
      %2273 = vmatpush.bf16.msra.mxu0 %v1656
      %2274 = vmatpush.bf16.msra.mxu0 %v1655
      %2275 = vmatpush.bf16.msra.mxu0 %v1654
      %2276 = vmatpush.bf16.msra.mxu0 %v1653
      %2277 = vmatpush.bf16.msra.mxu0 %v1652
      %2278 = vmatpush.bf16.msra.mxu0 %v1651
      %2279 = vmatpush.bf16.msra.mxu0 %v1650
      %2280 = vmatpush.bf16.msra.mxu0 %v1649
      %2281 = vmatmul.bf16.gmra.mxu0 %v817
      %v2282 = vpop.f32.mrf.mxu0
      %v2283 = vadd.f32 %v2254, %v2282
      %v2284 = vpop.f32.mrf.mxu0
      %v2285 = vadd.f32 %v2256, %v2284
      %2286 = vmatmul.bf16.gmra.mxu0 %v835
      %v2287 = vpop.f32.mrf.mxu0
      %v2288 = vadd.f32 %v2259, %v2287
      %v2289 = vpop.f32.mrf.mxu0
      %v2290 = vadd.f32 %v2261, %v2289
      %2291 = vmatmul.bf16.gmra.mxu0 %v853
      %v2292 = vpop.f32.mrf.mxu0
      %v2293 = vadd.f32 %v2264, %v2292
      %v2294 = vpop.f32.mrf.mxu0
      %v2295 = vadd.f32 %v2266, %v2294
      %2296 = vmatmul.bf16.gmra.mxu0 %v871
      %v2297 = vpop.f32.mrf.mxu0
      %v2298 = vadd.f32 %v2269, %v2297
      %v2299 = vpop.f32.mrf.mxu0
      %v2300 = vadd.f32 %v2271, %v2299
      %2301 = vdwg.mxu0
      %2302 = vmatpush.bf16.msra.mxu0 %v1664
      %2303 = vmatpush.bf16.msra.mxu0 %v1663
      %2304 = vmatpush.bf16.msra.mxu0 %v1662
      %2305 = vmatpush.bf16.msra.mxu0 %v1661
      %2306 = vmatpush.bf16.msra.mxu0 %v1660
      %2307 = vmatpush.bf16.msra.mxu0 %v1659
      %2308 = vmatpush.bf16.msra.mxu0 %v1658
      %2309 = vmatpush.bf16.msra.mxu0 %v1657
      %2310 = vmatmul.bf16.gmra.mxu0 %v818
      %v2311 = vpop.f32.mrf.mxu0
      %v2312 = vadd.f32 %v2283, %v2311
      %v2313 = vpop.f32.mrf.mxu0
      %v2314 = vadd.f32 %v2285, %v2313
      %2315 = vmatmul.bf16.gmra.mxu0 %v836
      %v2316 = vpop.f32.mrf.mxu0
      %v2317 = vadd.f32 %v2288, %v2316
      %v2318 = vpop.f32.mrf.mxu0
      %v2319 = vadd.f32 %v2290, %v2318
      %2320 = vmatmul.bf16.gmra.mxu0 %v854
      %v2321 = vpop.f32.mrf.mxu0
      %v2322 = vadd.f32 %v2293, %v2321
      %v2323 = vpop.f32.mrf.mxu0
      %v2324 = vadd.f32 %v2295, %v2323
      %2325 = vmatmul.bf16.gmra.mxu0 %v872
      %v2326 = vpop.f32.mrf.mxu0
      %v2327 = vadd.f32 %v2298, %v2326
      %v2328 = vpop.f32.mrf.mxu0
      %v2329 = vadd.f32 %v2300, %v2328
      %2330 = vdwg.mxu0
      %v2331 = vpack.c.bf16 %v2312, %v2312
      %v2332 = vpack.c.bf16 %v2314, %v2314
      %v2333 = vpack.c.bf16 %v2317, %v2317
      %v2334 = vpack.c.bf16 %v2319, %v2319
      %v2335 = vpack.c.bf16 %v2322, %v2322
      %v2336 = vpack.c.bf16 %v2324, %v2324
      %v2337 = vpack.c.bf16 %v2327, %v2327
      %v2338 = vpack.c.bf16 %v2329, %v2329
      %2339 = vst [vmem:[%s215] sm:$0xf] %v2331
      %2340 = vst [vmem:[%s215 + $0x4] sm:$0xf] %v2332
      %2341 = vst [vmem:[%s215 + $0x8] sm:$0xf] %v2333
      %2342 = vst [vmem:[%s215 + $0xc] sm:$0xf] %v2334
      %2343 = vst [vmem:[%s215 + $0x10] sm:$0xf] %v2335
      %2344 = vst [vmem:[%s215 + $0x14] sm:$0xf] %v2336
      %2345 = vst [vmem:[%s215 + $0x18] sm:$0xf] %v2337
      %2346 = vst [vmem:[%s215 + $0x1c] sm:$0xf] %v2338
      %v2347 = vadd.f32 %v2312, %v2314
      %v2348 = vadd.f32 %v2347, %v2317
      %v2349 = vadd.f32 %v2348, %v2319
      %v2350 = vadd.f32 %v2349, %v2322
      %v2351 = vadd.f32 %v2350, %v2324
      %v2352 = vadd.f32 %v2351, %v2327
      %v2353 = vadd.f32 %v2352, %v2329
      %v2354 = vrot.slane %v2353, 4
      %v2355 = vadd.f32 %v2353, %v2354
      %v2356 = vrot.slane %v2355, 2
      %v2357 = vadd.f32 %v2355, %v2356
      %v2358 = vrot.slane %v2357, 1
      %v2359 = vadd.f32 %v2357, %v2358
      %v2360 = vmul.f32 %v2312, %v2312
      %v2361 = vmul.f32 %v2314, %v2314
      %v2362 = vmul.f32 %v2317, %v2317
      %v2363 = vmul.f32 %v2319, %v2319
      %v2364 = vmul.f32 %v2322, %v2322
      %v2365 = vmul.f32 %v2324, %v2324
      %v2366 = vmul.f32 %v2327, %v2327
      %v2367 = vmul.f32 %v2329, %v2329
      %v2368 = vadd.f32 %v2360, %v2361
      %v2369 = vadd.f32 %v2368, %v2362
      %v2370 = vadd.f32 %v2369, %v2363
      %v2371 = vadd.f32 %v2370, %v2364
      %v2372 = vadd.f32 %v2371, %v2365
      %v2373 = vadd.f32 %v2372, %v2366
      %v2374 = vadd.f32 %v2373, %v2367
      %v2375 = vrot.slane %v2374, 4
      %v2376 = vadd.f32 %v2374, %v2375
      %v2377 = vrot.slane %v2376, 2
      %v2378 = vadd.f32 %v2376, %v2377
      %v2379 = vrot.slane %v2378, 1
      %v2380 = vadd.f32 %v2378, %v2379
      %2381 = vst [vmem:[%s220] sm:$0xff] %v2359
      %2382 = vst [vmem:[%s224] sm:$0xff] %v2380
      %s2383 = smul.u32 8, %s16
      %p2384 = scmp.lt.s32.totalorder %s2383, 15
      %s2385 = scalar_select %p2384, %s2383, 15
      %s2386 = smul.addr %s2385, 4
      %s2387 = scalar_lea.vmem %s2, %s2386
      %p2388 = scmp.lt.s32.totalorder %s16, 1
      %s2389 = scalar_select %p2388, %s16, 1
      %s2390 = smul.addr %s2389, 8
      %s2391 = scalar_lea.vmem %s3, %s2390
      %p2392 = scmp.lt.s32.totalorder %s16, 1
      %s2393 = scalar_select %p2392, %s16, 1
      %s2394 = smul.addr %s2393, 8
      %s2395 = scalar_lea.vmem %s4, %s2394
      // Predicated region
      $region29: #{_lambda_.28} parent=27 // pred_check
        %p2396 = pneg %p81
      $region30: #{_lambda_.28} parent=27 // pred_check_branch
        %2398 = sbr.rel (%p2396) target = $region32
      $region31: #{_lambda_.28} parent=27 // pred_region
        %s2399 = smul.u32 8, %s16
      $region32: #{_lambda_.28} parent=27 // pred_fallthru
        _
      // Predicated region
      $region33: #{_lambda_.28} parent=27 // pred_check
        %p2400 = pneg %p107
      $region34: #{_lambda_.28} parent=27 // pred_check_branch
        %2402 = sbr.rel (%p2400) target = $region36
      $region35: #{_lambda_.28} parent=27 // pred_region
        _
      $region36: #{_lambda_.28} parent=27 // pred_fallthru
        _
      // Predicated region
      $region37: #{_lambda_.28} parent=27 // pred_check
        %p2403 = pneg %p133
      $region38: #{_lambda_.28} parent=27 // pred_check_branch
        %2405 = sbr.rel (%p2403) target = $region40
      $region39: #{_lambda_.28} parent=27 // pred_region
        _
      $region40: #{_lambda_.28} parent=27 // pred_fallthru
        _
    $region28: #{_lambda_.28} parent=5 // pred_fallthru
      _
    %p2406 = scmp.le.s32.totalorder 2, %s11
    // Predicated region
    $region41: #{_lambda_.28} parent=5 // pred_check
      %p2407 = pneg %p2406
    $region42: #{_lambda_.28} parent=5 // pred_check_branch
      %2409 = sbr.rel (%p2407) target = $region44
    $region43: #{_lambda_.28} parent=5 // pred_region
      %s2410 = ssub.s32 %s11, 2
      // Predicated region
      $region45: #{_lambda_.28} parent=43 // pred_check
        %p2411 = pneg %p87
      $region46: #{_lambda_.28} parent=43 // pred_check_branch
        %2413 = sbr.rel (%p2411) target = $region48
      $region47: #{_lambda_.28} parent=43 // pred_region
        %s2414 = smul.u32 8, %s17
        %p2415 = scmp.lt.s32.totalorder %s2414, 15
        %s2416 = scalar_select %p2415, %s2414, 15
        %s2417 = smul.addr %s2416, 4
        %s2418 = scalar_lea.vmem %s2, %s2417
      $region48: #{_lambda_.28} parent=43 // pred_fallthru
        _
      // Predicated region
      $region49: #{_lambda_.28} parent=43 // pred_check
        %p2419 = pneg %p113
      $region50: #{_lambda_.28} parent=43 // pred_check_branch
        %2421 = sbr.rel (%p2419) target = $region52
      $region51: #{_lambda_.28} parent=43 // pred_region
        %p2422 = scmp.lt.s32.totalorder %s17, 1
        %s2423 = scalar_select %p2422, %s17, 1
        %s2424 = smul.addr %s2423, 8
        %s2425 = scalar_lea.vmem %s3, %s2424
      $region52: #{_lambda_.28} parent=43 // pred_fallthru
        _
      // Predicated region
      $region53: #{_lambda_.28} parent=43 // pred_check
        %p2426 = pneg %p139
      $region54: #{_lambda_.28} parent=43 // pred_check_branch
        %2428 = sbr.rel (%p2426) target = $region56
      $region55: #{_lambda_.28} parent=43 // pred_region
        %p2429 = scmp.lt.s32.totalorder %s17, 1
        %s2430 = scalar_select %p2429, %s17, 1
        %s2431 = smul.addr %s2430, 8
        %s2432 = scalar_lea.vmem %s4, %s2431
      $region56: #{_lambda_.28} parent=43 // pred_fallthru
        _
    $region44: #{_lambda_.28} parent=5 // pred_fallthru
      _
  $region6: #{_lambda_.28} parent=0 // loop_footer
    %s15 = sadd.s32 1, %s11
  $region7: #{_lambda_.28} parent=0 // loop_footer_branch
    %10 = sbr.rel target = $region3
  $region8: #{_lambda_.28} parent=0 // loop_exit
    _

// kernel: _lambda_.30
$region0: #{_lambda_.30}
  #allocation0 [shape = 'u32[]', space=smem, size = 0x4, offset = 0x4, fixed_abs, tag = 'smem constant byte address 0x4 - core index']
  #allocation1 [shape = 'u32[72,128]{1,0:T(1,128)}', space=vmem, size = 0x9000, scoped, tag = 'internal scratch']
  %s0 = inlined_call_operand.vmem [shape: bf16[128,1152], index: 0, kind: input, shape index: {}]
  %s1 = inlined_call_operand.vmem [shape: bf16[1152,128], index: 1, kind: input, shape index: {}]
  %s2 = inlined_call_operand.vmem [shape: bf16[128,128], index: 2, kind: output, shape index: {0}]
  %s3 = inlined_call_operand.vmem [shape: f32[2,8,128], index: 3, kind: output, shape index: {1}]
  %s4 = inlined_call_operand.vmem [shape: f32[2,8,128], index: 4, kind: output, shape index: {2}]
  %5 = xla_tuple %s2, %s3, %s4
  %s6 = sld [smem:[#allocation0]]
  $region57: #{_lambda_.30} parent=0
    _
  %s8 = ssub.s32 1, %s6
  %s9 = scalar_select 0, %s8, %s6
  loop: start=0, step=1, limit=4
  $region2: #{_lambda_.30} parent=0 // loop_pre_header
    _
  $region3: #{_lambda_.30} parent=0 // loop_header
    %s11 = sphi 0, %s15
    %p12 = scmp.ge.s32.totalorder %s11, 4
    %s21 = sphi 0, %s23
    %s24 = sphi 0, %s21
    %s25 = sphi 0, %s24
    %s41 = sphi 0, %s25
    %s45 = sphi 0, %s45
    %s47 = sphi 0, %s45
    %s48 = sphi 0, %s47
    %s62 = sphi 0, %s48
    %s68 = sphi 0, %s70
    %s71 = sphi 0, %s68
    %s72 = sphi 0, %s71
    %s88 = sphi 0, %s72
    %s94 = sphi 0, %s96
    %s97 = sphi 0, %s94
    %s98 = sphi 0, %s97
    %s114 = sphi 0, %s98
    %s120 = sphi 0, %s122
    %s123 = sphi 0, %s120
    %s124 = sphi 0, %s123
    %s140 = sphi 0, %s124
  $region4: #{_lambda_.30} parent=0 // loop_header_branch
    %14 = sbr.rel (%p12) target = $region8
  $region5: #{_lambda_.30} parent=0 // loop_body
    %s16 = ssub.s32 %s11, 1
    %s17 = ssub.s32 %s11, 2
    %s18 = sadd.s32 %s11, 1
    %s19 = ssub.s32 %s11, %s18
    %p20 = scmp.eq.s32.totalorder %s19, 0
    %s22 = sadd.s32 %s21, 1
    %s23 = scalar_select %p20, %s21, %s22
    %p26 = pneg %p20
    %p27 = scmp.eq.s32.totalorder %s11, 1
    %p28 = por %p26, %p27
    %p29 = scmp.ne.s32.totalorder %s21, %s24
    %p30 = scmp.eq.s32.totalorder %s11, 0
    %p31 = por %p29, %p30
    %p32 = scmp.ne.s32.totalorder %s21, %s24
    %p33 = scmp.eq.s32.totalorder %s16, 1
    %p34 = por %p32, %p33
    %p35 = scmp.ne.s32.totalorder %s24, %s25
    %p36 = scmp.eq.s32.totalorder %s16, 0
    %p37 = por %p35, %p36
    %p38 = scmp.ne.s32.totalorder %s24, %s25
    %p39 = scmp.eq.s32.totalorder %s17, 1
    %p40 = por %p38, %p39
    %p42 = scmp.ne.s32.totalorder %s25, %s41
    %p43 = scmp.eq.s32.totalorder %s17, 0
    %p44 = por %p42, %p43
    %s46 = sadd.s32 %s45, 1
    %p49 = scmp.eq.s32.totalorder %s11, 1
    %p50 = scmp.ne.s32.totalorder %s45, %s47
    %p51 = scmp.eq.s32.totalorder %s11, 0
    %p52 = por %p50, %p51
    %p53 = scmp.ne.s32.totalorder %s45, %s47
    %p54 = scmp.eq.s32.totalorder %s16, 1
    %p55 = por %p53, %p54
    %p56 = scmp.ne.s32.totalorder %s47, %s48
    %p57 = scmp.eq.s32.totalorder %s16, 0
    %p58 = por %p56, %p57
    %p59 = scmp.ne.s32.totalorder %s47, %s48
    %p60 = scmp.eq.s32.totalorder %s17, 1
    %p61 = por %p59, %p60
    %p63 = scmp.ne.s32.totalorder %s48, %s62
    %p64 = scmp.eq.s32.totalorder %s17, 0
    %p65 = por %p63, %p64
    %s66 = ssub.s32 %s11, %s18
    %p67 = scmp.eq.s32.totalorder %s66, 0
    %s69 = sadd.s32 %s68, 1
    %s70 = scalar_select %p67, %s68, %s69
    %p73 = pneg %p67
    %p74 = scmp.eq.s32.totalorder %s11, 1
    %p75 = por %p73, %p74
    %p76 = scmp.ne.s32.totalorder %s68, %s71
    %p77 = scmp.eq.s32.totalorder %s11, 0
    %p78 = por %p76, %p77
    %p79 = scmp.ne.s32.totalorder %s68, %s71
    %p80 = scmp.eq.s32.totalorder %s16, 1
    %p81 = por %p79, %p80
    %p82 = scmp.ne.s32.totalorder %s71, %s72
    %p83 = scmp.eq.s32.totalorder %s16, 0
    %p84 = por %p82, %p83
    %p85 = scmp.ne.s32.totalorder %s71, %s72
    %p86 = scmp.eq.s32.totalorder %s17, 1
    %p87 = por %p85, %p86
    %p89 = scmp.ne.s32.totalorder %s72, %s88
    %p90 = scmp.eq.s32.totalorder %s17, 0
    %p91 = por %p89, %p90
    %s92 = ssub.s32 %s11, %s18
    %p93 = scmp.eq.s32.totalorder %s92, 0
    %s95 = sadd.s32 %s94, 1
    %s96 = scalar_select %p93, %s94, %s95
    %p99 = pneg %p93
    %p100 = scmp.eq.s32.totalorder %s11, 1
    %p101 = por %p99, %p100
    %p102 = scmp.ne.s32.totalorder %s94, %s97
    %p103 = scmp.eq.s32.totalorder %s11, 0
    %p104 = por %p102, %p103
    %p105 = scmp.ne.s32.totalorder %s94, %s97
    %p106 = scmp.eq.s32.totalorder %s16, 1
    %p107 = por %p105, %p106
    %p108 = scmp.ne.s32.totalorder %s97, %s98
    %p109 = scmp.eq.s32.totalorder %s16, 0
    %p110 = por %p108, %p109
    %p111 = scmp.ne.s32.totalorder %s97, %s98
    %p112 = scmp.eq.s32.totalorder %s17, 1
    %p113 = por %p111, %p112
    %p115 = scmp.ne.s32.totalorder %s98, %s114
    %p116 = scmp.eq.s32.totalorder %s17, 0
    %p117 = por %p115, %p116
    %s118 = ssub.s32 %s11, %s18
    %p119 = scmp.eq.s32.totalorder %s118, 0
    %s121 = sadd.s32 %s120, 1
    %s122 = scalar_select %p119, %s120, %s121
    %p125 = pneg %p119
    %p126 = scmp.eq.s32.totalorder %s11, 1
    %p127 = por %p125, %p126
    %p128 = scmp.ne.s32.totalorder %s120, %s123
    %p129 = scmp.eq.s32.totalorder %s11, 0
    %p130 = por %p128, %p129
    %p131 = scmp.ne.s32.totalorder %s120, %s123
    %p132 = scmp.eq.s32.totalorder %s16, 1
    %p133 = por %p131, %p132
    %p134 = scmp.ne.s32.totalorder %s123, %s124
    %p135 = scmp.eq.s32.totalorder %s16, 0
    %p136 = por %p134, %p135
    %p137 = scmp.ne.s32.totalorder %s123, %s124
    %p138 = scmp.eq.s32.totalorder %s17, 1
    %p139 = por %p137, %p138
    %p141 = scmp.ne.s32.totalorder %s124, %s140
    %p142 = scmp.eq.s32.totalorder %s17, 0
    %p143 = por %p141, %p142
    %p144 = scmp.le.s32.totalorder 1, %s11
    %p145 = scmp.lt.s32.totalorder %s11, 3
    %p146 = pnand %p144, %p145
    %p147 = pneg %p146
    // Predicated region
    $region9: #{_lambda_.30} parent=5 // pred_check
      _
    $region10: #{_lambda_.30} parent=5 // pred_check_branch
      %149 = sbr.rel (%p146) target = $region12
    $region11: #{_lambda_.30} parent=5 // pred_region
      %s150 = ssub.s32 %s11, 1
      // Predicated region
      $region13: #{_lambda_.30} parent=11 // pred_check
        %p151 = pneg %p58
      $region14: #{_lambda_.30} parent=11 // pred_check_branch
        %153 = sbr.rel (%p151) target = $region16
      $region15: #{_lambda_.30} parent=11 // pred_region
        _
      $region16: #{_lambda_.30} parent=11 // pred_fallthru
        _
    $region12: #{_lambda_.30} parent=5 // pred_fallthru
      _
    %p154 = scmp.lt.s32.totalorder %s11, 2
    // Predicated region
    $region17: #{_lambda_.30} parent=5 // pred_check
      %p155 = pneg %p154
    $region18: #{_lambda_.30} parent=5 // pred_check_branch
      %157 = sbr.rel (%p155) target = $region20
    $region19: #{_lambda_.30} parent=5 // pred_region
      // Predicated region
      $region21: #{_lambda_.30} parent=19 // pred_check
        %p158 = pneg %p31
      $region22: #{_lambda_.30} parent=19 // pred_check_branch
        %160 = sbr.rel (%p158) target = $region24
      $region23: #{_lambda_.30} parent=19 // pred_region
        %s161 = smul.u32 8, %s11
        %p162 = scmp.lt.s32.totalorder %s161, 15
        %s163 = scalar_select %p162, %s161, 15
        %s164 = smul.addr %s163, 9
        %s165 = smul.addr %s164, 4
        %s166 = scalar_lea.vmem %s0, %s165
        %s167 = smul.u32 8, %s11
      $region24: #{_lambda_.30} parent=19 // pred_fallthru
        _
    $region20: #{_lambda_.30} parent=5 // pred_fallthru
      _
    %p168 = scmp.le.s32.totalorder 1, %s11
    %p169 = scmp.lt.s32.totalorder %s11, 3
    %p170 = pnand %p168, %p169
    %p171 = pneg %p170
    // Predicated region
    $region25: #{_lambda_.30} parent=5 // pred_check
      _
    $region26: #{_lambda_.30} parent=5 // pred_check_branch
      %173 = sbr.rel (%p170) target = $region28
    $region27: #{_lambda_.30} parent=5 // pred_region
      %s174 = ssub.s32 %s11, 1
      %s175 = smul.u32 8, %s16
      %p176 = scmp.lt.s32.totalorder %s175, 15
      %s177 = scalar_select %p176, %s175, 15
      %s178 = smul.addr %s177, 9
      %s179 = smul.addr %s178, 4
      %s180 = scalar_lea.vmem %s0, %s179
      %p181 = pneg %p37
      %p182 = pneg %p34
      %p183 = pneg %p58
      %p184 = pneg %p55
      %p185 = pneg %p84
      %p186 = pneg %p81
      %s187 = smul.u32 8, %s16
      %p188 = scmp.lt.s32.totalorder %s187, 15
      %s189 = scalar_select %p188, %s187, 15
      %s190 = smul.addr %s189, 4
      %s191 = scalar_lea.vmem %s2, %s190
      %p192 = pneg %p110
      %p193 = pneg %p107
      %p194 = scmp.lt.s32.totalorder %s16, 1
      %s195 = scalar_select %p194, %s16, 1
      %s196 = smul.addr %s195, 8
      %s197 = scalar_lea.vmem %s3, %s196
      %p198 = pneg %p136
      %p199 = pneg %p133
      %p200 = scmp.lt.s32.totalorder %s16, 1
      %s201 = scalar_select %p200, %s16, 1
      %s202 = smul.addr %s201, 8
      %s203 = scalar_lea.vmem %s4, %s202
      %s204 = smul.u32 8, %s16
      %p205 = scmp.lt.s32.totalorder %s204, 15
      %s206 = scalar_select %p205, %s204, 15
      %s207 = smul.addr %s206, 9
      %s208 = smul.addr %s207, 4
      %s209 = scalar_lea.vmem %s0, %s208
      %s210 = smul.u32 8, %s16
      %s211 = smul.u32 8, %s16
      %p212 = scmp.lt.s32.totalorder %s211, 15
      %s213 = scalar_select %p212, %s211, 15
      %s214 = smul.addr %s213, 4
      %s215 = scalar_lea.vmem %s2, %s214
      %s216 = smul.u32 8, %s16
      %p217 = scmp.lt.s32.totalorder %s16, 1
      %s218 = scalar_select %p217, %s16, 1
      %s219 = smul.addr %s218, 8
      %s220 = scalar_lea.vmem %s3, %s219
      %p221 = scmp.lt.s32.totalorder %s16, 1
      %s222 = scalar_select %p221, %s16, 1
      %s223 = smul.addr %s222, 8
      %s224 = scalar_lea.vmem %s4, %s223
      %v225 = vld [vmem:[%s209] sm:$0xff]
      %v226 = vld [vmem:[%s209 + $0x8] sm:$0xff]
      %v227 = vld [vmem:[%s209 + $0x10] sm:$0xff]
      %v228 = vld [vmem:[%s209 + $0x18] sm:$0xff]
      %v229 = vld [vmem:[%s209 + $0x20] sm:$0xf]
      %v230 = vld [vmem:[%s209 + $0x24] sm:$0xff]
      %v231 = vld [vmem:[%s209 + $0x2c] sm:$0xff]
      %v232 = vld [vmem:[%s209 + $0x34] sm:$0xff]
      %v233 = vld [vmem:[%s209 + $0x3c] sm:$0xff]
      %v234 = vld [vmem:[%s209 + $0x44] sm:$0xf]
      %v235 = vld [vmem:[%s209 + $0x48] sm:$0xff]
      %v236 = vld [vmem:[%s209 + $0x50] sm:$0xff]
      %v237 = vld [vmem:[%s209 + $0x58] sm:$0xff]
      %v238 = vld [vmem:[%s209 + $0x60] sm:$0xff]
      %v239 = vld [vmem:[%s209 + $0x68] sm:$0xf]
      %v240 = vld [vmem:[%s209 + $0x6c] sm:$0xff]
      %v241 = vld [vmem:[%s209 + $0x74] sm:$0xff]
      %v242 = vld [vmem:[%s209 + $0x7c] sm:$0xff]
      %v243 = vld [vmem:[%s209 + $0x84] sm:$0xff]
      %v244 = vld [vmem:[%s209 + $0x8c] sm:$0xf]
      %v245 = vld [vmem:[%s209 + $0x90] sm:$0xff]
      %v246 = vld [vmem:[%s209 + $0x98] sm:$0xff]
      %v247 = vld [vmem:[%s209 + $0xa0] sm:$0xff]
      %v248 = vld [vmem:[%s209 + $0xa8] sm:$0xff]
      %v249 = vld [vmem:[%s209 + $0xb0] sm:$0xf]
      %v250 = vld [vmem:[%s209 + $0xb4] sm:$0xff]
      %v251 = vld [vmem:[%s209 + $0xbc] sm:$0xff]
      %v252 = vld [vmem:[%s209 + $0xc4] sm:$0xff]
      %v253 = vld [vmem:[%s209 + $0xcc] sm:$0xff]
      %v254 = vld [vmem:[%s209 + $0xd4] sm:$0xf]
      %v255 = vld [vmem:[%s209 + $0xd8] sm:$0xff]
      %v256 = vld [vmem:[%s209 + $0xe0] sm:$0xff]
      %v257 = vld [vmem:[%s209 + $0xe8] sm:$0xff]
      %v258 = vld [vmem:[%s209 + $0xf0] sm:$0xff]
      %v259 = vld [vmem:[%s209 + $0xf8] sm:$0xf]
      %v260 = vld [vmem:[%s209 + $0xfc] sm:$0xff]
      %v261 = vld [vmem:[%s209 + $0x104] sm:$0xff]
      %v262 = vld [vmem:[%s209 + $0x10c] sm:$0xff]
      %v263 = vld [vmem:[%s209 + $0x114] sm:$0xff]
      %v264 = vld [vmem:[%s209 + $0x11c] sm:$0xf]
      %v265 = vld [vmem:[%s1] sm:$0xf]
      %v266 = vld [vmem:[%s1 + $0x4] sm:$0xf]
      %v267 = vld [vmem:[%s1 + $0x8] sm:$0xf]
      %v268 = vld [vmem:[%s1 + $0xc] sm:$0xf]
      %v269 = vld [vmem:[%s1 + $0x10] sm:$0xf]
      %v270 = vld [vmem:[%s1 + $0x14] sm:$0xf]
      %v271 = vld [vmem:[%s1 + $0x18] sm:$0xf]
      %v272 = vld [vmem:[%s1 + $0x1c] sm:$0xf]
      %v273 = vld [vmem:[%s1 + $0x20] sm:$0xf]
      %v274 = vld [vmem:[%s1 + $0x24] sm:$0xf]
      %v275 = vld [vmem:[%s1 + $0x28] sm:$0xf]
      %v276 = vld [vmem:[%s1 + $0x2c] sm:$0xf]
      %v277 = vld [vmem:[%s1 + $0x30] sm:$0xf]
      %v278 = vld [vmem:[%s1 + $0x34] sm:$0xf]
      %v279 = vld [vmem:[%s1 + $0x38] sm:$0xf]
      %v280 = vld [vmem:[%s1 + $0x3c] sm:$0xf]
      %v281 = vld [vmem:[%s1 + $0x40] sm:$0xf]
      %v282 = vld [vmem:[%s1 + $0x44] sm:$0xf]
      %v283 = vld [vmem:[%s1 + $0x48] sm:$0xf]
      %v284 = vld [vmem:[%s1 + $0x4c] sm:$0xf]
      %v285 = vld [vmem:[%s1 + $0x50] sm:$0xf]
      %v286 = vld [vmem:[%s1 + $0x54] sm:$0xf]
      %v287 = vld [vmem:[%s1 + $0x58] sm:$0xf]
      %v288 = vld [vmem:[%s1 + $0x5c] sm:$0xf]
      %v289 = vld [vmem:[%s1 + $0x60] sm:$0xf]
      %v290 = vld [vmem:[%s1 + $0x64] sm:$0xf]
      %v291 = vld [vmem:[%s1 + $0x68] sm:$0xf]
      %v292 = vld [vmem:[%s1 + $0x6c] sm:$0xf]
      %v293 = vld [vmem:[%s1 + $0x70] sm:$0xf]
      %v294 = vld [vmem:[%s1 + $0x74] sm:$0xf]
      %v295 = vld [vmem:[%s1 + $0x78] sm:$0xf]
      %v296 = vld [vmem:[%s1 + $0x7c] sm:$0xf]
      %v297 = vld [vmem:[%s1 + $0x80] sm:$0xf]
      %v298 = vld [vmem:[%s1 + $0x84] sm:$0xf]
      %v299 = vld [vmem:[%s1 + $0x88] sm:$0xf]
      %v300 = vld [vmem:[%s1 + $0x8c] sm:$0xf]
      %v301 = vld [vmem:[%s1 + $0x90] sm:$0xf]
      %v302 = vld [vmem:[%s1 + $0x94] sm:$0xf]
      %v303 = vld [vmem:[%s1 + $0x98] sm:$0xf]
      %v304 = vld [vmem:[%s1 + $0x9c] sm:$0xf]
      %v305 = vld [vmem:[%s1 + $0xa0] sm:$0xf]
      %v306 = vld [vmem:[%s1 + $0xa4] sm:$0xf]
      %v307 = vld [vmem:[%s1 + $0xa8] sm:$0xf]
      %v308 = vld [vmem:[%s1 + $0xac] sm:$0xf]
      %v309 = vld [vmem:[%s1 + $0xb0] sm:$0xf]
      %v310 = vld [vmem:[%s1 + $0xb4] sm:$0xf]
      %v311 = vld [vmem:[%s1 + $0xb8] sm:$0xf]
      %v312 = vld [vmem:[%s1 + $0xbc] sm:$0xf]
      %v313 = vld [vmem:[%s1 + $0xc0] sm:$0xf]
      %v314 = vld [vmem:[%s1 + $0xc4] sm:$0xf]
      %v315 = vld [vmem:[%s1 + $0xc8] sm:$0xf]
      %v316 = vld [vmem:[%s1 + $0xcc] sm:$0xf]
      %v317 = vld [vmem:[%s1 + $0xd0] sm:$0xf]
      %v318 = vld [vmem:[%s1 + $0xd4] sm:$0xf]
      %v319 = vld [vmem:[%s1 + $0xd8] sm:$0xf]
      %v320 = vld [vmem:[%s1 + $0xdc] sm:$0xf]
      %v321 = vld [vmem:[%s1 + $0xe0] sm:$0xf]
      %v322 = vld [vmem:[%s1 + $0xe4] sm:$0xf]
      %v323 = vld [vmem:[%s1 + $0xe8] sm:$0xf]
      %v324 = vld [vmem:[%s1 + $0xec] sm:$0xf]
      %v325 = vld [vmem:[%s1 + $0xf0] sm:$0xf]
      %v326 = vld [vmem:[%s1 + $0xf4] sm:$0xf]
      %v327 = vld [vmem:[%s1 + $0xf8] sm:$0xf]
      %v328 = vld [vmem:[%s1 + $0xfc] sm:$0xf]
      %v329 = vld [vmem:[%s1 + $0x100] sm:$0xf]
      %v330 = vld [vmem:[%s1 + $0x104] sm:$0xf]
      %v331 = vld [vmem:[%s1 + $0x108] sm:$0xf]
      %v332 = vld [vmem:[%s1 + $0x10c] sm:$0xf]
      %v333 = vld [vmem:[%s1 + $0x110] sm:$0xf]
      %v334 = vld [vmem:[%s1 + $0x114] sm:$0xf]
      %v335 = vld [vmem:[%s1 + $0x118] sm:$0xf]
      %v336 = vld [vmem:[%s1 + $0x11c] sm:$0xf]
      %v337 = vld [vmem:[%s1 + $0x120] sm:$0xf]
      %v338 = vld [vmem:[%s1 + $0x124] sm:$0xf]
      %v339 = vld [vmem:[%s1 + $0x128] sm:$0xf]
      %v340 = vld [vmem:[%s1 + $0x12c] sm:$0xf]
      %v341 = vld [vmem:[%s1 + $0x130] sm:$0xf]
      %v342 = vld [vmem:[%s1 + $0x134] sm:$0xf]
      %v343 = vld [vmem:[%s1 + $0x138] sm:$0xf]
      %v344 = vld [vmem:[%s1 + $0x13c] sm:$0xf]
      %v345 = vld [vmem:[%s1 + $0x140] sm:$0xf]
      %v346 = vld [vmem:[%s1 + $0x144] sm:$0xf]
      %v347 = vld [vmem:[%s1 + $0x148] sm:$0xf]
      %v348 = vld [vmem:[%s1 + $0x14c] sm:$0xf]
      %v349 = vld [vmem:[%s1 + $0x150] sm:$0xf]
      %v350 = vld [vmem:[%s1 + $0x154] sm:$0xf]
      %v351 = vld [vmem:[%s1 + $0x158] sm:$0xf]
      %v352 = vld [vmem:[%s1 + $0x15c] sm:$0xf]
      %v353 = vld [vmem:[%s1 + $0x160] sm:$0xf]
      %v354 = vld [vmem:[%s1 + $0x164] sm:$0xf]
      %v355 = vld [vmem:[%s1 + $0x168] sm:$0xf]
      %v356 = vld [vmem:[%s1 + $0x16c] sm:$0xf]
      %v357 = vld [vmem:[%s1 + $0x170] sm:$0xf]
      %v358 = vld [vmem:[%s1 + $0x174] sm:$0xf]
      %v359 = vld [vmem:[%s1 + $0x178] sm:$0xf]
      %v360 = vld [vmem:[%s1 + $0x17c] sm:$0xf]
      %v361 = vld [vmem:[%s1 + $0x180] sm:$0xf]
      %v362 = vld [vmem:[%s1 + $0x184] sm:$0xf]
      %v363 = vld [vmem:[%s1 + $0x188] sm:$0xf]
      %v364 = vld [vmem:[%s1 + $0x18c] sm:$0xf]
      %v365 = vld [vmem:[%s1 + $0x190] sm:$0xf]
      %v366 = vld [vmem:[%s1 + $0x194] sm:$0xf]
      %v367 = vld [vmem:[%s1 + $0x198] sm:$0xf]
      %v368 = vld [vmem:[%s1 + $0x19c] sm:$0xf]
      %v369 = vld [vmem:[%s1 + $0x1a0] sm:$0xf]
      %v370 = vld [vmem:[%s1 + $0x1a4] sm:$0xf]
      %v371 = vld [vmem:[%s1 + $0x1a8] sm:$0xf]
      %v372 = vld [vmem:[%s1 + $0x1ac] sm:$0xf]
      %v373 = vld [vmem:[%s1 + $0x1b0] sm:$0xf]
      %v374 = vld [vmem:[%s1 + $0x1b4] sm:$0xf]
      %v375 = vld [vmem:[%s1 + $0x1b8] sm:$0xf]
      %v376 = vld [vmem:[%s1 + $0x1bc] sm:$0xf]
      %v377 = vld [vmem:[%s1 + $0x1c0] sm:$0xf]
      %v378 = vld [vmem:[%s1 + $0x1c4] sm:$0xf]
      %v379 = vld [vmem:[%s1 + $0x1c8] sm:$0xf]
      %v380 = vld [vmem:[%s1 + $0x1cc] sm:$0xf]
      %v381 = vld [vmem:[%s1 + $0x1d0] sm:$0xf]
      %v382 = vld [vmem:[%s1 + $0x1d4] sm:$0xf]
      %v383 = vld [vmem:[%s1 + $0x1d8] sm:$0xf]
      %v384 = vld [vmem:[%s1 + $0x1dc] sm:$0xf]
      %v385 = vld [vmem:[%s1 + $0x1e0] sm:$0xf]
      %v386 = vld [vmem:[%s1 + $0x1e4] sm:$0xf]
      %v387 = vld [vmem:[%s1 + $0x1e8] sm:$0xf]
      %v388 = vld [vmem:[%s1 + $0x1ec] sm:$0xf]
      %v389 = vld [vmem:[%s1 + $0x1f0] sm:$0xf]
      %v390 = vld [vmem:[%s1 + $0x1f4] sm:$0xf]
      %v391 = vld [vmem:[%s1 + $0x1f8] sm:$0xf]
      %v392 = vld [vmem:[%s1 + $0x1fc] sm:$0xf]
      %v393 = vld [vmem:[%s1 + $0x200] sm:$0xf]
      %v394 = vld [vmem:[%s1 + $0x204] sm:$0xf]
      %v395 = vld [vmem:[%s1 + $0x208] sm:$0xf]
      %v396 = vld [vmem:[%s1 + $0x20c] sm:$0xf]
      %v397 = vld [vmem:[%s1 + $0x210] sm:$0xf]
      %v398 = vld [vmem:[%s1 + $0x214] sm:$0xf]
      %v399 = vld [vmem:[%s1 + $0x218] sm:$0xf]
      %v400 = vld [vmem:[%s1 + $0x21c] sm:$0xf]
      %v401 = vld [vmem:[%s1 + $0x220] sm:$0xf]
      %v402 = vld [vmem:[%s1 + $0x224] sm:$0xf]
      %v403 = vld [vmem:[%s1 + $0x228] sm:$0xf]
      %v404 = vld [vmem:[%s1 + $0x22c] sm:$0xf]
      %v405 = vld [vmem:[%s1 + $0x230] sm:$0xf]
      %v406 = vld [vmem:[%s1 + $0x234] sm:$0xf]
      %v407 = vld [vmem:[%s1 + $0x238] sm:$0xf]
      %v408 = vld [vmem:[%s1 + $0x23c] sm:$0xf]
      %v449 = vunpack.c.l.b16 %v225
      %v450 = vunpack.c.h.b16 %v225
      %v451 = vunpack.c.l.b16 %v226
      %v452 = vunpack.c.h.b16 %v226
      %v453 = vunpack.c.l.b16 %v227
      %v454 = vunpack.c.h.b16 %v227
      %v455 = vunpack.c.l.b16 %v228
      %v456 = vunpack.c.h.b16 %v228
      %v457 = vunpack.c.l.b16 %v229
      %v458 = vunpack.c.l.b16 %v230
      %v459 = vunpack.c.h.b16 %v230
      %v460 = vunpack.c.l.b16 %v231
      %v461 = vunpack.c.h.b16 %v231
      %v462 = vunpack.c.l.b16 %v232
      %v463 = vunpack.c.h.b16 %v232
      %v464 = vunpack.c.l.b16 %v233
      %v465 = vunpack.c.h.b16 %v233
      %v466 = vunpack.c.l.b16 %v234
      %v467 = vunpack.c.l.b16 %v235
      %v468 = vunpack.c.h.b16 %v235
      %v469 = vunpack.c.l.b16 %v236
      %v470 = vunpack.c.h.b16 %v236
      %v471 = vunpack.c.l.b16 %v237
      %v472 = vunpack.c.h.b16 %v237
      %v473 = vunpack.c.l.b16 %v238
      %v474 = vunpack.c.h.b16 %v238
      %v475 = vunpack.c.l.b16 %v239
      %v476 = vunpack.c.l.b16 %v240
      %v477 = vunpack.c.h.b16 %v240
      %v478 = vunpack.c.l.b16 %v241
      %v479 = vunpack.c.h.b16 %v241
      %v480 = vunpack.c.l.b16 %v242
      %v481 = vunpack.c.h.b16 %v242
      %v482 = vunpack.c.l.b16 %v243
      %v483 = vunpack.c.h.b16 %v243
      %v484 = vunpack.c.l.b16 %v244
      %v485 = vunpack.c.l.b16 %v245
      %v486 = vunpack.c.h.b16 %v245
      %v487 = vunpack.c.l.b16 %v246
      %v488 = vunpack.c.h.b16 %v246
      %v489 = vunpack.c.l.b16 %v247
      %v490 = vunpack.c.h.b16 %v247
      %v491 = vunpack.c.l.b16 %v248
      %v492 = vunpack.c.h.b16 %v248
      %v493 = vunpack.c.l.b16 %v249
      %v494 = vunpack.c.l.b16 %v250
      %v495 = vunpack.c.h.b16 %v250
      %v496 = vunpack.c.l.b16 %v251
      %v497 = vunpack.c.h.b16 %v251
      %v498 = vunpack.c.l.b16 %v252
      %v499 = vunpack.c.h.b16 %v252
      %v500 = vunpack.c.l.b16 %v253
      %v501 = vunpack.c.h.b16 %v253
      %v502 = vunpack.c.l.b16 %v254
      %v503 = vunpack.c.l.b16 %v255
      %v504 = vunpack.c.h.b16 %v255
      %v505 = vunpack.c.l.b16 %v256
      %v506 = vunpack.c.h.b16 %v256
      %v507 = vunpack.c.l.b16 %v257
      %v508 = vunpack.c.h.b16 %v257
      %v509 = vunpack.c.l.b16 %v258
      %v510 = vunpack.c.h.b16 %v258
      %v511 = vunpack.c.l.b16 %v259
      %v512 = vunpack.c.l.b16 %v260
      %v513 = vunpack.c.h.b16 %v260
      %v514 = vunpack.c.l.b16 %v261
      %v515 = vunpack.c.h.b16 %v261
      %v516 = vunpack.c.l.b16 %v262
      %v517 = vunpack.c.h.b16 %v262
      %v518 = vunpack.c.l.b16 %v263
      %v519 = vunpack.c.h.b16 %v263
      %v520 = vunpack.c.l.b16 %v264
      %v521 = vpack.c.b16 %v458, %v449
      %v522 = vpack.c.b16 %v459, %v450
      %v523 = vpack.c.b16 %v460, %v451
      %v524 = vpack.c.b16 %v461, %v452
      %v525 = vpack.c.b16 %v462, %v453
      %v526 = vpack.c.b16 %v463, %v454
      %v527 = vpack.c.b16 %v464, %v455
      %v528 = vpack.c.b16 %v465, %v456
      %v529 = vpack.c.b16 %v466, %v457
      %v530 = vpack.c.b16 %v476, %v467
      %v531 = vpack.c.b16 %v477, %v468
      %v532 = vpack.c.b16 %v478, %v469
      %v533 = vpack.c.b16 %v479, %v470
      %v534 = vpack.c.b16 %v480, %v471
      %v535 = vpack.c.b16 %v481, %v472
      %v536 = vpack.c.b16 %v482, %v473
      %v537 = vpack.c.b16 %v483, %v474
      %v538 = vpack.c.b16 %v484, %v475
      %v539 = vpack.c.b16 %v494, %v485
      %v540 = vpack.c.b16 %v495, %v486
      %v541 = vpack.c.b16 %v496, %v487
      %v542 = vpack.c.b16 %v497, %v488
      %v543 = vpack.c.b16 %v498, %v489
      %v544 = vpack.c.b16 %v499, %v490
      %v545 = vpack.c.b16 %v500, %v491
      %v546 = vpack.c.b16 %v501, %v492
      %v547 = vpack.c.b16 %v502, %v493
      %v548 = vpack.c.b16 %v512, %v503
      %v549 = vpack.c.b16 %v513, %v504
      %v550 = vpack.c.b16 %v514, %v505
      %v551 = vpack.c.b16 %v515, %v506
      %v552 = vpack.c.b16 %v516, %v507
      %v553 = vpack.c.b16 %v517, %v508
      %v554 = vpack.c.b16 %v518, %v509
      %v555 = vpack.c.b16 %v519, %v510
      %v556 = vpack.c.b16 %v520, %v511
      %v737 = vunpack.c.l.b16 %v265
      %v738 = vunpack.c.l.b16 %v266
      %v739 = vunpack.c.l.b16 %v267
      %v740 = vunpack.c.l.b16 %v268
      %v741 = vunpack.c.l.b16 %v269
      %v742 = vunpack.c.l.b16 %v270
      %v743 = vunpack.c.l.b16 %v271
      %v744 = vunpack.c.l.b16 %v272
      %v745 = vunpack.c.l.b16 %v273
      %v746 = vunpack.c.l.b16 %v274
      %v747 = vunpack.c.l.b16 %v275
      %v748 = vunpack.c.l.b16 %v276
      %v749 = vunpack.c.l.b16 %v277
      %v750 = vunpack.c.l.b16 %v278
      %v751 = vunpack.c.l.b16 %v279
      %v752 = vunpack.c.l.b16 %v280
      %v753 = vunpack.c.l.b16 %v281
      %v754 = vunpack.c.l.b16 %v282
      %v755 = vunpack.c.l.b16 %v283
      %v756 = vunpack.c.l.b16 %v284
      %v757 = vunpack.c.l.b16 %v285
      %v758 = vunpack.c.l.b16 %v286
      %v759 = vunpack.c.l.b16 %v287
      %v760 = vunpack.c.l.b16 %v288
      %v761 = vunpack.c.l.b16 %v289
      %v762 = vunpack.c.l.b16 %v290
      %v763 = vunpack.c.l.b16 %v291
      %v764 = vunpack.c.l.b16 %v292
      %v765 = vunpack.c.l.b16 %v293
      %v766 = vunpack.c.l.b16 %v294
      %v767 = vunpack.c.l.b16 %v295
      %v768 = vunpack.c.l.b16 %v296
      %v769 = vunpack.c.l.b16 %v297
      %v770 = vunpack.c.l.b16 %v298
      %v771 = vunpack.c.l.b16 %v299
      %v772 = vunpack.c.l.b16 %v300
      %v773 = vunpack.c.l.b16 %v301
      %v774 = vunpack.c.l.b16 %v302
      %v775 = vunpack.c.l.b16 %v303
      %v776 = vunpack.c.l.b16 %v304
      %v777 = vunpack.c.l.b16 %v305
      %v778 = vunpack.c.l.b16 %v306
      %v779 = vunpack.c.l.b16 %v307
      %v780 = vunpack.c.l.b16 %v308
      %v781 = vunpack.c.l.b16 %v309
      %v782 = vunpack.c.l.b16 %v310
      %v783 = vunpack.c.l.b16 %v311
      %v784 = vunpack.c.l.b16 %v312
      %v785 = vunpack.c.l.b16 %v313
      %v786 = vunpack.c.l.b16 %v314
      %v787 = vunpack.c.l.b16 %v315
      %v788 = vunpack.c.l.b16 %v316
      %v789 = vunpack.c.l.b16 %v317
      %v790 = vunpack.c.l.b16 %v318
      %v791 = vunpack.c.l.b16 %v319
      %v792 = vunpack.c.l.b16 %v320
      %v793 = vunpack.c.l.b16 %v321
      %v794 = vunpack.c.l.b16 %v322
      %v795 = vunpack.c.l.b16 %v323
      %v796 = vunpack.c.l.b16 %v324
      %v797 = vunpack.c.l.b16 %v325
      %v798 = vunpack.c.l.b16 %v326
      %v799 = vunpack.c.l.b16 %v327
      %v800 = vunpack.c.l.b16 %v328
      %v801 = vunpack.c.l.b16 %v329
      %v802 = vunpack.c.l.b16 %v330
      %v803 = vunpack.c.l.b16 %v331
      %v804 = vunpack.c.l.b16 %v332
      %v805 = vunpack.c.l.b16 %v333
      %v806 = vunpack.c.l.b16 %v334
      %v807 = vunpack.c.l.b16 %v335
      %v808 = vunpack.c.l.b16 %v336
      %v809 = vunpack.c.l.b16 %v337
      %v810 = vunpack.c.l.b16 %v338
      %v811 = vunpack.c.l.b16 %v339
      %v812 = vunpack.c.l.b16 %v340
      %v813 = vunpack.c.l.b16 %v341
      %v814 = vunpack.c.l.b16 %v342
      %v815 = vunpack.c.l.b16 %v343
      %v816 = vunpack.c.l.b16 %v344
      %v817 = vunpack.c.l.b16 %v345
      %v818 = vunpack.c.l.b16 %v346
      %v819 = vunpack.c.l.b16 %v347
      %v820 = vunpack.c.l.b16 %v348
      %v821 = vunpack.c.l.b16 %v349
      %v822 = vunpack.c.l.b16 %v350
      %v823 = vunpack.c.l.b16 %v351
      %v824 = vunpack.c.l.b16 %v352
      %v825 = vunpack.c.l.b16 %v353
      %v826 = vunpack.c.l.b16 %v354
      %v827 = vunpack.c.l.b16 %v355
      %v828 = vunpack.c.l.b16 %v356
      %v829 = vunpack.c.l.b16 %v357
      %v830 = vunpack.c.l.b16 %v358
      %v831 = vunpack.c.l.b16 %v359
      %v832 = vunpack.c.l.b16 %v360
      %v833 = vunpack.c.l.b16 %v361
      %v834 = vunpack.c.l.b16 %v362
      %v835 = vunpack.c.l.b16 %v363
      %v836 = vunpack.c.l.b16 %v364
      %v837 = vunpack.c.l.b16 %v365
      %v838 = vunpack.c.l.b16 %v366
      %v839 = vunpack.c.l.b16 %v367
      %v840 = vunpack.c.l.b16 %v368
      %v841 = vunpack.c.l.b16 %v369
      %v842 = vunpack.c.l.b16 %v370
      %v843 = vunpack.c.l.b16 %v371
      %v844 = vunpack.c.l.b16 %v372
      %v845 = vunpack.c.l.b16 %v373
      %v846 = vunpack.c.l.b16 %v374
      %v847 = vunpack.c.l.b16 %v375
      %v848 = vunpack.c.l.b16 %v376
      %v849 = vunpack.c.l.b16 %v377
      %v850 = vunpack.c.l.b16 %v378
      %v851 = vunpack.c.l.b16 %v379
      %v852 = vunpack.c.l.b16 %v380
      %v853 = vunpack.c.l.b16 %v381
      %v854 = vunpack.c.l.b16 %v382
      %v855 = vunpack.c.l.b16 %v383
      %v856 = vunpack.c.l.b16 %v384
      %v857 = vunpack.c.l.b16 %v385
      %v858 = vunpack.c.l.b16 %v386
      %v859 = vunpack.c.l.b16 %v387
      %v860 = vunpack.c.l.b16 %v388
      %v861 = vunpack.c.l.b16 %v389
      %v862 = vunpack.c.l.b16 %v390
      %v863 = vunpack.c.l.b16 %v391
      %v864 = vunpack.c.l.b16 %v392
      %v865 = vunpack.c.l.b16 %v393
      %v866 = vunpack.c.l.b16 %v394
      %v867 = vunpack.c.l.b16 %v395
      %v868 = vunpack.c.l.b16 %v396
      %v869 = vunpack.c.l.b16 %v397
      %v870 = vunpack.c.l.b16 %v398
      %v871 = vunpack.c.l.b16 %v399
      %v872 = vunpack.c.l.b16 %v400
      %v873 = vunpack.c.l.b16 %v401
      %v874 = vunpack.c.l.b16 %v402
      %v875 = vunpack.c.l.b16 %v403
      %v876 = vunpack.c.l.b16 %v404
      %v877 = vunpack.c.l.b16 %v405
      %v878 = vunpack.c.l.b16 %v406
      %v879 = vunpack.c.l.b16 %v407
      %v880 = vunpack.c.l.b16 %v408
      %v881 = vpack.c.b16 %v738, %v737
      %v882 = vpack.c.b16 %v740, %v739
      %v883 = vpack.c.b16 %v742, %v741
      %v884 = vpack.c.b16 %v744, %v743
      %v885 = vpack.c.b16 %v746, %v745
      %v886 = vpack.c.b16 %v748, %v747
      %v887 = vpack.c.b16 %v750, %v749
      %v888 = vpack.c.b16 %v752, %v751
      %v889 = vpack.c.b16 %v754, %v753
      %v890 = vpack.c.b16 %v756, %v755
      %v891 = vpack.c.b16 %v758, %v757
      %v892 = vpack.c.b16 %v760, %v759
      %v893 = vpack.c.b16 %v762, %v761
      %v894 = vpack.c.b16 %v764, %v763
      %v895 = vpack.c.b16 %v766, %v765
      %v896 = vpack.c.b16 %v768, %v767
      %v897 = vpack.c.b16 %v770, %v769
      %v898 = vpack.c.b16 %v772, %v771
      %v899 = vpack.c.b16 %v774, %v773
      %v900 = vpack.c.b16 %v776, %v775
      %v901 = vpack.c.b16 %v778, %v777
      %v902 = vpack.c.b16 %v780, %v779
      %v903 = vpack.c.b16 %v782, %v781
      %v904 = vpack.c.b16 %v784, %v783
      %v905 = vpack.c.b16 %v786, %v785
      %v906 = vpack.c.b16 %v788, %v787
      %v907 = vpack.c.b16 %v790, %v789
      %v908 = vpack.c.b16 %v792, %v791
      %v909 = vpack.c.b16 %v794, %v793
      %v910 = vpack.c.b16 %v796, %v795
      %v911 = vpack.c.b16 %v798, %v797
      %v912 = vpack.c.b16 %v800, %v799
      %v913 = vpack.c.b16 %v802, %v801
      %v914 = vpack.c.b16 %v804, %v803
      %v915 = vpack.c.b16 %v806, %v805
      %v916 = vpack.c.b16 %v808, %v807
      %v917 = vpack.c.b16 %v810, %v809
      %v918 = vpack.c.b16 %v812, %v811
      %v919 = vpack.c.b16 %v814, %v813
      %v920 = vpack.c.b16 %v816, %v815
      %v921 = vpack.c.b16 %v818, %v817
      %v922 = vpack.c.b16 %v820, %v819
      %v923 = vpack.c.b16 %v822, %v821
      %v924 = vpack.c.b16 %v824, %v823
      %v925 = vpack.c.b16 %v826, %v825
      %v926 = vpack.c.b16 %v828, %v827
      %v927 = vpack.c.b16 %v830, %v829
      %v928 = vpack.c.b16 %v832, %v831
      %v929 = vpack.c.b16 %v834, %v833
      %v930 = vpack.c.b16 %v836, %v835
      %v931 = vpack.c.b16 %v838, %v837
      %v932 = vpack.c.b16 %v840, %v839
      %v933 = vpack.c.b16 %v842, %v841
      %v934 = vpack.c.b16 %v844, %v843
      %v935 = vpack.c.b16 %v846, %v845
      %v936 = vpack.c.b16 %v848, %v847
      %v937 = vpack.c.b16 %v850, %v849
      %v938 = vpack.c.b16 %v852, %v851
      %v939 = vpack.c.b16 %v854, %v853
      %v940 = vpack.c.b16 %v856, %v855
      %v941 = vpack.c.b16 %v858, %v857
      %v942 = vpack.c.b16 %v860, %v859
      %v943 = vpack.c.b16 %v862, %v861
      %v944 = vpack.c.b16 %v864, %v863
      %v945 = vpack.c.b16 %v866, %v865
      %v946 = vpack.c.b16 %v868, %v867
      %v947 = vpack.c.b16 %v870, %v869
      %v948 = vpack.c.b16 %v872, %v871
      %v949 = vpack.c.b16 %v874, %v873
      %v950 = vpack.c.b16 %v876, %v875
      %v951 = vpack.c.b16 %v878, %v877
      %v952 = vpack.c.b16 %v880, %v879
      %1025 = vmatpush.bf16.msra.mxu0 %v888
      %1026 = vmatpush.bf16.msra.mxu0 %v887
      %1027 = vmatpush.bf16.msra.mxu0 %v886
      %1028 = vmatpush.bf16.msra.mxu0 %v885
      %1029 = vmatpush.bf16.msra.mxu0 %v884
      %1030 = vmatpush.bf16.msra.mxu0 %v883
      %1031 = vmatpush.bf16.msra.mxu0 %v882
      %1032 = vmatpush.bf16.msra.mxu0 %v881
      %1033 = vmatmul.bf16.gmra.mxu0 %v521
      %v1034 = vpop.f32.mrf.mxu0
      %v1035 = vadd.f32 0.0, %v1034
      %v1036 = vpop.f32.mrf.mxu0
      %v1037 = vadd.f32 0.0, %v1036
      %1038 = vmatmul.bf16.gmra.mxu0 %v530
      %v1039 = vpop.f32.mrf.mxu0
      %v1040 = vadd.f32 0.0, %v1039
      %v1041 = vpop.f32.mrf.mxu0
      %v1042 = vadd.f32 0.0, %v1041
      %1043 = vmatmul.bf16.gmra.mxu0 %v539
      %v1044 = vpop.f32.mrf.mxu0
      %v1045 = vadd.f32 0.0, %v1044
      %v1046 = vpop.f32.mrf.mxu0
      %v1047 = vadd.f32 0.0, %v1046
      %1048 = vmatmul.bf16.gmra.mxu0 %v548
      %v1049 = vpop.f32.mrf.mxu0
      %v1050 = vadd.f32 0.0, %v1049
      %v1051 = vpop.f32.mrf.mxu0
      %v1052 = vadd.f32 0.0, %v1051
      %1053 = vdwg.mxu0
      %1054 = vmatpush.bf16.msra.mxu0 %v896
      %1055 = vmatpush.bf16.msra.mxu0 %v895
      %1056 = vmatpush.bf16.msra.mxu0 %v894
      %1057 = vmatpush.bf16.msra.mxu0 %v893
      %1058 = vmatpush.bf16.msra.mxu0 %v892
      %1059 = vmatpush.bf16.msra.mxu0 %v891
      %1060 = vmatpush.bf16.msra.mxu0 %v890
      %1061 = vmatpush.bf16.msra.mxu0 %v889
      %1062 = vmatmul.bf16.gmra.mxu0 %v522
      %v1063 = vpop.f32.mrf.mxu0
      %v1064 = vadd.f32 %v1035, %v1063
      %v1065 = vpop.f32.mrf.mxu0
      %v1066 = vadd.f32 %v1037, %v1065
      %1067 = vmatmul.bf16.gmra.mxu0 %v531
      %v1068 = vpop.f32.mrf.mxu0
      %v1069 = vadd.f32 %v1040, %v1068
      %v1070 = vpop.f32.mrf.mxu0
      %v1071 = vadd.f32 %v1042, %v1070
      %1072 = vmatmul.bf16.gmra.mxu0 %v540
      %v1073 = vpop.f32.mrf.mxu0
      %v1074 = vadd.f32 %v1045, %v1073
      %v1075 = vpop.f32.mrf.mxu0
      %v1076 = vadd.f32 %v1047, %v1075
      %1077 = vmatmul.bf16.gmra.mxu0 %v549
      %v1078 = vpop.f32.mrf.mxu0
      %v1079 = vadd.f32 %v1050, %v1078
      %v1080 = vpop.f32.mrf.mxu0
      %v1081 = vadd.f32 %v1052, %v1080
      %1082 = vdwg.mxu0
      %1083 = vmatpush.bf16.msra.mxu0 %v904
      %1084 = vmatpush.bf16.msra.mxu0 %v903
      %1085 = vmatpush.bf16.msra.mxu0 %v902
      %1086 = vmatpush.bf16.msra.mxu0 %v901
      %1087 = vmatpush.bf16.msra.mxu0 %v900
      %1088 = vmatpush.bf16.msra.mxu0 %v899
      %1089 = vmatpush.bf16.msra.mxu0 %v898
      %1090 = vmatpush.bf16.msra.mxu0 %v897
      %1091 = vmatmul.bf16.gmra.mxu0 %v523
      %v1092 = vpop.f32.mrf.mxu0
      %v1093 = vadd.f32 %v1064, %v1092
      %v1094 = vpop.f32.mrf.mxu0
      %v1095 = vadd.f32 %v1066, %v1094
      %1096 = vmatmul.bf16.gmra.mxu0 %v532
      %v1097 = vpop.f32.mrf.mxu0
      %v1098 = vadd.f32 %v1069, %v1097
      %v1099 = vpop.f32.mrf.mxu0
      %v1100 = vadd.f32 %v1071, %v1099
      %1101 = vmatmul.bf16.gmra.mxu0 %v541
      %v1102 = vpop.f32.mrf.mxu0
      %v1103 = vadd.f32 %v1074, %v1102
      %v1104 = vpop.f32.mrf.mxu0
      %v1105 = vadd.f32 %v1076, %v1104
      %1106 = vmatmul.bf16.gmra.mxu0 %v550
      %v1107 = vpop.f32.mrf.mxu0
      %v1108 = vadd.f32 %v1079, %v1107
      %v1109 = vpop.f32.mrf.mxu0
      %v1110 = vadd.f32 %v1081, %v1109
      %1111 = vdwg.mxu0
      %1112 = vmatpush.bf16.msra.mxu0 %v912
      %1113 = vmatpush.bf16.msra.mxu0 %v911
      %1114 = vmatpush.bf16.msra.mxu0 %v910
      %1115 = vmatpush.bf16.msra.mxu0 %v909
      %1116 = vmatpush.bf16.msra.mxu0 %v908
      %1117 = vmatpush.bf16.msra.mxu0 %v907
      %1118 = vmatpush.bf16.msra.mxu0 %v906
      %1119 = vmatpush.bf16.msra.mxu0 %v905
      %1120 = vmatmul.bf16.gmra.mxu0 %v524
      %v1121 = vpop.f32.mrf.mxu0
      %v1122 = vadd.f32 %v1093, %v1121
      %v1123 = vpop.f32.mrf.mxu0
      %v1124 = vadd.f32 %v1095, %v1123
      %1125 = vmatmul.bf16.gmra.mxu0 %v533
      %v1126 = vpop.f32.mrf.mxu0
      %v1127 = vadd.f32 %v1098, %v1126
      %v1128 = vpop.f32.mrf.mxu0
      %v1129 = vadd.f32 %v1100, %v1128
      %1130 = vmatmul.bf16.gmra.mxu0 %v542
      %v1131 = vpop.f32.mrf.mxu0
      %v1132 = vadd.f32 %v1103, %v1131
      %v1133 = vpop.f32.mrf.mxu0
      %v1134 = vadd.f32 %v1105, %v1133
      %1135 = vmatmul.bf16.gmra.mxu0 %v551
      %v1136 = vpop.f32.mrf.mxu0
      %v1137 = vadd.f32 %v1108, %v1136
      %v1138 = vpop.f32.mrf.mxu0
      %v1139 = vadd.f32 %v1110, %v1138
      %1140 = vdwg.mxu0
      %1141 = vmatpush.bf16.msra.mxu0 %v920
      %1142 = vmatpush.bf16.msra.mxu0 %v919
      %1143 = vmatpush.bf16.msra.mxu0 %v918
      %1144 = vmatpush.bf16.msra.mxu0 %v917
      %1145 = vmatpush.bf16.msra.mxu0 %v916
      %1146 = vmatpush.bf16.msra.mxu0 %v915
      %1147 = vmatpush.bf16.msra.mxu0 %v914
      %1148 = vmatpush.bf16.msra.mxu0 %v913
      %1149 = vmatmul.bf16.gmra.mxu0 %v525
      %v1150 = vpop.f32.mrf.mxu0
      %v1151 = vadd.f32 %v1122, %v1150
      %v1152 = vpop.f32.mrf.mxu0
      %v1153 = vadd.f32 %v1124, %v1152
      %1154 = vmatmul.bf16.gmra.mxu0 %v534
      %v1155 = vpop.f32.mrf.mxu0
      %v1156 = vadd.f32 %v1127, %v1155
      %v1157 = vpop.f32.mrf.mxu0
      %v1158 = vadd.f32 %v1129, %v1157
      %1159 = vmatmul.bf16.gmra.mxu0 %v543
      %v1160 = vpop.f32.mrf.mxu0
      %v1161 = vadd.f32 %v1132, %v1160
      %v1162 = vpop.f32.mrf.mxu0
      %v1163 = vadd.f32 %v1134, %v1162
      %1164 = vmatmul.bf16.gmra.mxu0 %v552
      %v1165 = vpop.f32.mrf.mxu0
      %v1166 = vadd.f32 %v1137, %v1165
      %v1167 = vpop.f32.mrf.mxu0
      %v1168 = vadd.f32 %v1139, %v1167
      %1169 = vdwg.mxu0
      %1170 = vmatpush.bf16.msra.mxu0 %v928
      %1171 = vmatpush.bf16.msra.mxu0 %v927
      %1172 = vmatpush.bf16.msra.mxu0 %v926
      %1173 = vmatpush.bf16.msra.mxu0 %v925
      %1174 = vmatpush.bf16.msra.mxu0 %v924
      %1175 = vmatpush.bf16.msra.mxu0 %v923
      %1176 = vmatpush.bf16.msra.mxu0 %v922
      %1177 = vmatpush.bf16.msra.mxu0 %v921
      %1178 = vmatmul.bf16.gmra.mxu0 %v526
      %v1179 = vpop.f32.mrf.mxu0
      %v1180 = vadd.f32 %v1151, %v1179
      %v1181 = vpop.f32.mrf.mxu0
      %v1182 = vadd.f32 %v1153, %v1181
      %1183 = vmatmul.bf16.gmra.mxu0 %v535
      %v1184 = vpop.f32.mrf.mxu0
      %v1185 = vadd.f32 %v1156, %v1184
      %v1186 = vpop.f32.mrf.mxu0
      %v1187 = vadd.f32 %v1158, %v1186
      %1188 = vmatmul.bf16.gmra.mxu0 %v544
      %v1189 = vpop.f32.mrf.mxu0
      %v1190 = vadd.f32 %v1161, %v1189
      %v1191 = vpop.f32.mrf.mxu0
      %v1192 = vadd.f32 %v1163, %v1191
      %1193 = vmatmul.bf16.gmra.mxu0 %v553
      %v1194 = vpop.f32.mrf.mxu0
      %v1195 = vadd.f32 %v1166, %v1194
      %v1196 = vpop.f32.mrf.mxu0
      %v1197 = vadd.f32 %v1168, %v1196
      %1198 = vdwg.mxu0
      %1199 = vmatpush.bf16.msra.mxu0 %v936
      %1200 = vmatpush.bf16.msra.mxu0 %v935
      %1201 = vmatpush.bf16.msra.mxu0 %v934
      %1202 = vmatpush.bf16.msra.mxu0 %v933
      %1203 = vmatpush.bf16.msra.mxu0 %v932
      %1204 = vmatpush.bf16.msra.mxu0 %v931
      %1205 = vmatpush.bf16.msra.mxu0 %v930
      %1206 = vmatpush.bf16.msra.mxu0 %v929
      %1207 = vmatmul.bf16.gmra.mxu0 %v527
      %v1208 = vpop.f32.mrf.mxu0
      %v1209 = vadd.f32 %v1180, %v1208
      %v1210 = vpop.f32.mrf.mxu0
      %v1211 = vadd.f32 %v1182, %v1210
      %1212 = vmatmul.bf16.gmra.mxu0 %v536
      %v1213 = vpop.f32.mrf.mxu0
      %v1214 = vadd.f32 %v1185, %v1213
      %v1215 = vpop.f32.mrf.mxu0
      %v1216 = vadd.f32 %v1187, %v1215
      %1217 = vmatmul.bf16.gmra.mxu0 %v545
      %v1218 = vpop.f32.mrf.mxu0
      %v1219 = vadd.f32 %v1190, %v1218
      %v1220 = vpop.f32.mrf.mxu0
      %v1221 = vadd.f32 %v1192, %v1220
      %1222 = vmatmul.bf16.gmra.mxu0 %v554
      %v1223 = vpop.f32.mrf.mxu0
      %v1224 = vadd.f32 %v1195, %v1223
      %v1225 = vpop.f32.mrf.mxu0
      %v1226 = vadd.f32 %v1197, %v1225
      %1227 = vdwg.mxu0
      %1228 = vmatpush.bf16.msra.mxu0 %v944
      %1229 = vmatpush.bf16.msra.mxu0 %v943
      %1230 = vmatpush.bf16.msra.mxu0 %v942
      %1231 = vmatpush.bf16.msra.mxu0 %v941
      %1232 = vmatpush.bf16.msra.mxu0 %v940
      %1233 = vmatpush.bf16.msra.mxu0 %v939
      %1234 = vmatpush.bf16.msra.mxu0 %v938
      %1235 = vmatpush.bf16.msra.mxu0 %v937
      %1236 = vmatmul.bf16.gmra.mxu0 %v528
      %v1237 = vpop.f32.mrf.mxu0
      %v1238 = vadd.f32 %v1209, %v1237
      %v1239 = vpop.f32.mrf.mxu0
      %v1240 = vadd.f32 %v1211, %v1239
      %1241 = vmatmul.bf16.gmra.mxu0 %v537
      %v1242 = vpop.f32.mrf.mxu0
      %v1243 = vadd.f32 %v1214, %v1242
      %v1244 = vpop.f32.mrf.mxu0
      %v1245 = vadd.f32 %v1216, %v1244
      %1246 = vmatmul.bf16.gmra.mxu0 %v546
      %v1247 = vpop.f32.mrf.mxu0
      %v1248 = vadd.f32 %v1219, %v1247
      %v1249 = vpop.f32.mrf.mxu0
      %v1250 = vadd.f32 %v1221, %v1249
      %1251 = vmatmul.bf16.gmra.mxu0 %v555
      %v1252 = vpop.f32.mrf.mxu0
      %v1253 = vadd.f32 %v1224, %v1252
      %v1254 = vpop.f32.mrf.mxu0
      %v1255 = vadd.f32 %v1226, %v1254
      %1256 = vdwg.mxu0
      %1257 = vmatpush.bf16.msra.mxu0 %v952
      %1258 = vmatpush.bf16.msra.mxu0 %v951
      %1259 = vmatpush.bf16.msra.mxu0 %v950
      %1260 = vmatpush.bf16.msra.mxu0 %v949
      %1261 = vmatpush.bf16.msra.mxu0 %v948
      %1262 = vmatpush.bf16.msra.mxu0 %v947
      %1263 = vmatpush.bf16.msra.mxu0 %v946
      %1264 = vmatpush.bf16.msra.mxu0 %v945
      %1265 = vmatmul.bf16.gmra.mxu0 %v529
      %v1266 = vpop.f32.mrf.mxu0
      %v1267 = vadd.f32 %v1238, %v1266
      %v1268 = vpop.f32.mrf.mxu0
      %v1269 = vadd.f32 %v1240, %v1268
      %1270 = vmatmul.bf16.gmra.mxu0 %v538
      %v1271 = vpop.f32.mrf.mxu0
      %v1272 = vadd.f32 %v1243, %v1271
      %v1273 = vpop.f32.mrf.mxu0
      %v1274 = vadd.f32 %v1245, %v1273
      %1275 = vmatmul.bf16.gmra.mxu0 %v547
      %v1276 = vpop.f32.mrf.mxu0
      %v1277 = vadd.f32 %v1248, %v1276
      %v1278 = vpop.f32.mrf.mxu0
      %v1279 = vadd.f32 %v1250, %v1278
      %1280 = vmatmul.bf16.gmra.mxu0 %v556
      %v1281 = vpop.f32.mrf.mxu0
      %v1282 = vadd.f32 %v1253, %v1281
      %v1283 = vpop.f32.mrf.mxu0
      %v1284 = vadd.f32 %v1255, %v1283
      %1285 = vdwg.mxu0
      %v1286 = vpack.c.bf16 %v1267, %v1267
      %v1287 = vpack.c.bf16 %v1269, %v1269
      %v1288 = vpack.c.bf16 %v1272, %v1272
      %v1289 = vpack.c.bf16 %v1274, %v1274
      %v1290 = vpack.c.bf16 %v1277, %v1277
      %v1291 = vpack.c.bf16 %v1279, %v1279
      %v1292 = vpack.c.bf16 %v1282, %v1282
      %v1293 = vpack.c.bf16 %v1284, %v1284
      %1294 = vst [vmem:[%s215] sm:$0xf] %v1286
      %1295 = vst [vmem:[%s215 + $0x4] sm:$0xf] %v1287
      %1296 = vst [vmem:[%s215 + $0x8] sm:$0xf] %v1288
      %1297 = vst [vmem:[%s215 + $0xc] sm:$0xf] %v1289
      %1298 = vst [vmem:[%s215 + $0x10] sm:$0xf] %v1290
      %1299 = vst [vmem:[%s215 + $0x14] sm:$0xf] %v1291
      %1300 = vst [vmem:[%s215 + $0x18] sm:$0xf] %v1292
      %1301 = vst [vmem:[%s215 + $0x1c] sm:$0xf] %v1293
      %v1302 = vadd.f32 %v1267, %v1269
      %v1303 = vadd.f32 %v1302, %v1272
      %v1304 = vadd.f32 %v1303, %v1274
      %v1305 = vadd.f32 %v1304, %v1277
      %v1306 = vadd.f32 %v1305, %v1279
      %v1307 = vadd.f32 %v1306, %v1282
      %v1308 = vadd.f32 %v1307, %v1284
      %v1309 = vrot.slane %v1308, 4
      %v1310 = vadd.f32 %v1308, %v1309
      %v1311 = vrot.slane %v1310, 2
      %v1312 = vadd.f32 %v1310, %v1311
      %v1313 = vrot.slane %v1312, 1
      %v1314 = vadd.f32 %v1312, %v1313
      %v1315 = vmul.f32 %v1267, %v1267
      %v1316 = vmul.f32 %v1269, %v1269
      %v1317 = vmul.f32 %v1272, %v1272
      %v1318 = vmul.f32 %v1274, %v1274
      %v1319 = vmul.f32 %v1277, %v1277
      %v1320 = vmul.f32 %v1279, %v1279
      %v1321 = vmul.f32 %v1282, %v1282
      %v1322 = vmul.f32 %v1284, %v1284
      %v1323 = vadd.f32 %v1315, %v1316
      %v1324 = vadd.f32 %v1323, %v1317
      %v1325 = vadd.f32 %v1324, %v1318
      %v1326 = vadd.f32 %v1325, %v1319
      %v1327 = vadd.f32 %v1326, %v1320
      %v1328 = vadd.f32 %v1327, %v1321
      %v1329 = vadd.f32 %v1328, %v1322
      %v1330 = vrot.slane %v1329, 4
      %v1331 = vadd.f32 %v1329, %v1330
      %v1332 = vrot.slane %v1331, 2
      %v1333 = vadd.f32 %v1331, %v1332
      %v1334 = vrot.slane %v1333, 1
      %v1335 = vadd.f32 %v1333, %v1334
      %1336 = vst [vmem:[%s220] sm:$0xff] %v1314
      %1337 = vst [vmem:[%s224] sm:$0xff] %v1335
      %s1338 = smul.u32 8, %s16
      %p1339 = scmp.lt.s32.totalorder %s1338, 15
      %s1340 = scalar_select %p1339, %s1338, 15
      %s1341 = smul.addr %s1340, 4
      %s1342 = scalar_lea.vmem %s2, %s1341
      %p1343 = scmp.lt.s32.totalorder %s16, 1
      %s1344 = scalar_select %p1343, %s16, 1
      %s1345 = smul.addr %s1344, 8
      %s1346 = scalar_lea.vmem %s3, %s1345
      %p1347 = scmp.lt.s32.totalorder %s16, 1
      %s1348 = scalar_select %p1347, %s16, 1
      %s1349 = smul.addr %s1348, 8
      %s1350 = scalar_lea.vmem %s4, %s1349
      // Predicated region
      $region29: #{_lambda_.30} parent=27 // pred_check
        %p1351 = pneg %p81
      $region30: #{_lambda_.30} parent=27 // pred_check_branch
        %1353 = sbr.rel (%p1351) target = $region32
      $region31: #{_lambda_.30} parent=27 // pred_region
        %s1354 = smul.u32 8, %s16
      $region32: #{_lambda_.30} parent=27 // pred_fallthru
        _
      // Predicated region
      $region33: #{_lambda_.30} parent=27 // pred_check
        %p1355 = pneg %p107
      $region34: #{_lambda_.30} parent=27 // pred_check_branch
        %1357 = sbr.rel (%p1355) target = $region36
      $region35: #{_lambda_.30} parent=27 // pred_region
        _
      $region36: #{_lambda_.30} parent=27 // pred_fallthru
        _
      // Predicated region
      $region37: #{_lambda_.30} parent=27 // pred_check
        %p1358 = pneg %p133
      $region38: #{_lambda_.30} parent=27 // pred_check_branch
        %1360 = sbr.rel (%p1358) target = $region40
      $region39: #{_lambda_.30} parent=27 // pred_region
        _
      $region40: #{_lambda_.30} parent=27 // pred_fallthru
        _
    $region28: #{_lambda_.30} parent=5 // pred_fallthru
      _
    %p1361 = scmp.le.s32.totalorder 2, %s11
    // Predicated region
    $region41: #{_lambda_.30} parent=5 // pred_check
      %p1362 = pneg %p1361
    $region42: #{_lambda_.30} parent=5 // pred_check_branch
      %1364 = sbr.rel (%p1362) target = $region44
    $region43: #{_lambda_.30} parent=5 // pred_region
      %s1365 = ssub.s32 %s11, 2
      // Predicated region
      $region45: #{_lambda_.30} parent=43 // pred_check
        %p1366 = pneg %p87
      $region46: #{_lambda_.30} parent=43 // pred_check_branch
        %1368 = sbr.rel (%p1366) target = $region48
      $region47: #{_lambda_.30} parent=43 // pred_region
        %s1369 = smul.u32 8, %s17
        %p1370 = scmp.lt.s32.totalorder %s1369, 15
        %s1371 = scalar_select %p1370, %s1369, 15
        %s1372 = smul.addr %s1371, 4
        %s1373 = scalar_lea.vmem %s2, %s1372
      $region48: #{_lambda_.30} parent=43 // pred_fallthru
        _
      // Predicated region
      $region49: #{_lambda_.30} parent=43 // pred_check
        %p1374 = pneg %p113
      $region50: #{_lambda_.30} parent=43 // pred_check_branch
        %1376 = sbr.rel (%p1374) target = $region52
      $region51: #{_lambda_.30} parent=43 // pred_region
        %p1377 = scmp.lt.s32.totalorder %s17, 1
        %s1378 = scalar_select %p1377, %s17, 1
        %s1379 = smul.addr %s1378, 8
        %s1380 = scalar_lea.vmem %s3, %s1379
      $region52: #{_lambda_.30} parent=43 // pred_fallthru
        _
      // Predicated region
      $region53: #{_lambda_.30} parent=43 // pred_check
        %p1381 = pneg %p139
      $region54: #{_lambda_.30} parent=43 // pred_check_branch
        %1383 = sbr.rel (%p1381) target = $region56
      $region55: #{_lambda_.30} parent=43 // pred_region
        %p1384 = scmp.lt.s32.totalorder %s17, 1
        %s1385 = scalar_select %p1384, %s17, 1
        %s1386 = smul.addr %s1385, 8
        %s1387 = scalar_lea.vmem %s4, %s1386
      $region56: #{_lambda_.30} parent=43 // pred_fallthru
        _
    $region44: #{_lambda_.30} parent=5 // pred_fallthru
      _
  $region6: #{_lambda_.30} parent=0 // loop_footer
    %s15 = sadd.s32 1, %s11
  $region7: #{_lambda_.30} parent=0 // loop_footer_branch
    %10 = sbr.rel target = $region3
  $region8: #{_lambda_.30} parent=0 // loop_exit
    _

// kernel: _lambda_.33
$region0: #{_lambda_.33}
  #allocation0 [shape = 'u32[]', space=smem, size = 0x4, offset = 0x4, fixed_abs, tag = 'smem constant byte address 0x4 - core index']
  #allocation1 [shape = 'u32[72,128]{1,0:T(1,128)}', space=vmem, size = 0x9000, scoped, tag = 'internal scratch']
  %s0 = inlined_call_operand.vmem [shape: bf16[128,128], index: 0, kind: input, shape index: {}]
  %s1 = inlined_call_operand.vmem [shape: f32[1,128], index: 1, kind: input, shape index: {}]
  %s2 = inlined_call_operand.vmem [shape: f32[1,128], index: 2, kind: input, shape index: {}]
  %s3 = inlined_call_operand.vmem [shape: bf16[128,128], index: 3, kind: input, shape index: {}, may-alias: {3,4}]
  %s4 = inlined_call_operand.vmem [shape: bf16[128,128], index: 4, kind: output, shape index: {}, may-alias: {3,4}]
  %s5 = sld [smem:[#allocation0]]
  $region49: #{_lambda_.33} parent=0
    _
  %s7 = ssub.s32 1, %s5
  %s8 = scalar_select 0, %s7, %s5
  loop: start=0, step=1, limit=4
  $region2: #{_lambda_.33} parent=0 // loop_pre_header
    _
  $region3: #{_lambda_.33} parent=0 // loop_header
    %s10 = sphi 0, %s14
    %p11 = scmp.ge.s32.totalorder %s10, 4
    %s20 = sphi 0, %s22
    %s23 = sphi 0, %s20
    %s24 = sphi 0, %s23
    %s40 = sphi 0, %s24
    %s44 = sphi 0, %s44
    %s46 = sphi 0, %s44
    %s47 = sphi 0, %s46
    %s61 = sphi 0, %s47
    %s65 = sphi 0, %s65
    %s67 = sphi 0, %s65
    %s68 = sphi 0, %s67
    %s82 = sphi 0, %s68
    %s88 = sphi 0, %s90
    %s91 = sphi 0, %s88
    %s92 = sphi 0, %s91
    %s108 = sphi 0, %s92
    %s114 = sphi 0, %s116
    %s117 = sphi 0, %s114
    %s118 = sphi 0, %s117
    %s134 = sphi 0, %s118
  $region4: #{_lambda_.33} parent=0 // loop_header_branch
    %13 = sbr.rel (%p11) target = $region8
  $region5: #{_lambda_.33} parent=0 // loop_body
    %s15 = ssub.s32 %s10, 1
    %s16 = ssub.s32 %s10, 2
    %s17 = sadd.s32 %s10, 1
    %s18 = ssub.s32 %s10, %s17
    %p19 = scmp.eq.s32.totalorder %s18, 0
    %s21 = sadd.s32 %s20, 1
    %s22 = scalar_select %p19, %s20, %s21
    %p25 = pneg %p19
    %p26 = scmp.eq.s32.totalorder %s10, 1
    %p27 = por %p25, %p26
    %p28 = scmp.ne.s32.totalorder %s20, %s23
    %p29 = scmp.eq.s32.totalorder %s10, 0
    %p30 = por %p28, %p29
    %p31 = scmp.ne.s32.totalorder %s20, %s23
    %p32 = scmp.eq.s32.totalorder %s15, 1
    %p33 = por %p31, %p32
    %p34 = scmp.ne.s32.totalorder %s23, %s24
    %p35 = scmp.eq.s32.totalorder %s15, 0
    %p36 = por %p34, %p35
    %p37 = scmp.ne.s32.totalorder %s23, %s24
    %p38 = scmp.eq.s32.totalorder %s16, 1
    %p39 = por %p37, %p38
    %p41 = scmp.ne.s32.totalorder %s24, %s40
    %p42 = scmp.eq.s32.totalorder %s16, 0
    %p43 = por %p41, %p42
    %s45 = sadd.s32 %s44, 1
    %p48 = scmp.eq.s32.totalorder %s10, 1
    %p49 = scmp.ne.s32.totalorder %s44, %s46
    %p50 = scmp.eq.s32.totalorder %s10, 0
    %p51 = por %p49, %p50
    %p52 = scmp.ne.s32.totalorder %s44, %s46
    %p53 = scmp.eq.s32.totalorder %s15, 1
    %p54 = por %p52, %p53
    %p55 = scmp.ne.s32.totalorder %s46, %s47
    %p56 = scmp.eq.s32.totalorder %s15, 0
    %p57 = por %p55, %p56
    %p58 = scmp.ne.s32.totalorder %s46, %s47
    %p59 = scmp.eq.s32.totalorder %s16, 1
    %p60 = por %p58, %p59
    %p62 = scmp.ne.s32.totalorder %s47, %s61
    %p63 = scmp.eq.s32.totalorder %s16, 0
    %p64 = por %p62, %p63
    %s66 = sadd.s32 %s65, 1
    %p69 = scmp.eq.s32.totalorder %s10, 1
    %p70 = scmp.ne.s32.totalorder %s65, %s67
    %p71 = scmp.eq.s32.totalorder %s10, 0
    %p72 = por %p70, %p71
    %p73 = scmp.ne.s32.totalorder %s65, %s67
    %p74 = scmp.eq.s32.totalorder %s15, 1
    %p75 = por %p73, %p74
    %p76 = scmp.ne.s32.totalorder %s67, %s68
    %p77 = scmp.eq.s32.totalorder %s15, 0
    %p78 = por %p76, %p77
    %p79 = scmp.ne.s32.totalorder %s67, %s68
    %p80 = scmp.eq.s32.totalorder %s16, 1
    %p81 = por %p79, %p80
    %p83 = scmp.ne.s32.totalorder %s68, %s82
    %p84 = scmp.eq.s32.totalorder %s16, 0
    %p85 = por %p83, %p84
    %s86 = ssub.s32 %s10, %s17
    %p87 = scmp.eq.s32.totalorder %s86, 0
    %s89 = sadd.s32 %s88, 1
    %s90 = scalar_select %p87, %s88, %s89
    %p93 = pneg %p87
    %p94 = scmp.eq.s32.totalorder %s10, 1
    %p95 = por %p93, %p94
    %p96 = scmp.ne.s32.totalorder %s88, %s91
    %p97 = scmp.eq.s32.totalorder %s10, 0
    %p98 = por %p96, %p97
    %p99 = scmp.ne.s32.totalorder %s88, %s91
    %p100 = scmp.eq.s32.totalorder %s15, 1
    %p101 = por %p99, %p100
    %p102 = scmp.ne.s32.totalorder %s91, %s92
    %p103 = scmp.eq.s32.totalorder %s15, 0
    %p104 = por %p102, %p103
    %p105 = scmp.ne.s32.totalorder %s91, %s92
    %p106 = scmp.eq.s32.totalorder %s16, 1
    %p107 = por %p105, %p106
    %p109 = scmp.ne.s32.totalorder %s92, %s108
    %p110 = scmp.eq.s32.totalorder %s16, 0
    %p111 = por %p109, %p110
    %s112 = ssub.s32 %s10, %s17
    %p113 = scmp.eq.s32.totalorder %s112, 0
    %s115 = sadd.s32 %s114, 1
    %s116 = scalar_select %p113, %s114, %s115
    %p119 = pneg %p113
    %p120 = scmp.eq.s32.totalorder %s10, 1
    %p121 = por %p119, %p120
    %p122 = scmp.ne.s32.totalorder %s114, %s117
    %p123 = scmp.eq.s32.totalorder %s10, 0
    %p124 = por %p122, %p123
    %p125 = scmp.ne.s32.totalorder %s114, %s117
    %p126 = scmp.eq.s32.totalorder %s15, 1
    %p127 = por %p125, %p126
    %p128 = scmp.ne.s32.totalorder %s117, %s118
    %p129 = scmp.eq.s32.totalorder %s15, 0
    %p130 = por %p128, %p129
    %p131 = scmp.ne.s32.totalorder %s117, %s118
    %p132 = scmp.eq.s32.totalorder %s16, 1
    %p133 = por %p131, %p132
    %p135 = scmp.ne.s32.totalorder %s118, %s134
    %p136 = scmp.eq.s32.totalorder %s16, 0
    %p137 = por %p135, %p136
    %p138 = scmp.le.s32.totalorder 1, %s10
    %p139 = scmp.lt.s32.totalorder %s10, 3
    %p140 = pnand %p138, %p139
    %p141 = pneg %p140
    // Predicated region
    $region9: #{_lambda_.33} parent=5 // pred_check
      _
    $region10: #{_lambda_.33} parent=5 // pred_check_branch
      %143 = sbr.rel (%p140) target = $region12
    $region11: #{_lambda_.33} parent=5 // pred_region
      %s144 = ssub.s32 %s10, 1
      // Predicated region
      $region13: #{_lambda_.33} parent=11 // pred_check
        %p145 = pneg %p57
      $region14: #{_lambda_.33} parent=11 // pred_check_branch
        %147 = sbr.rel (%p145) target = $region16
      $region15: #{_lambda_.33} parent=11 // pred_region
        _
      $region16: #{_lambda_.33} parent=11 // pred_fallthru
        _
      // Predicated region
      $region17: #{_lambda_.33} parent=11 // pred_check
        %p148 = pneg %p78
      $region18: #{_lambda_.33} parent=11 // pred_check_branch
        %150 = sbr.rel (%p148) target = $region20
      $region19: #{_lambda_.33} parent=11 // pred_region
        _
      $region20: #{_lambda_.33} parent=11 // pred_fallthru
        _
    $region12: #{_lambda_.33} parent=5 // pred_fallthru
      _
    %p151 = scmp.lt.s32.totalorder %s10, 2
    // Predicated region
    $region21: #{_lambda_.33} parent=5 // pred_check
      %p152 = pneg %p151
    $region22: #{_lambda_.33} parent=5 // pred_check_branch
      %154 = sbr.rel (%p152) target = $region24
    $region23: #{_lambda_.33} parent=5 // pred_region
      // Predicated region
      $region25: #{_lambda_.33} parent=23 // pred_check
        %p155 = pneg %p30
      $region26: #{_lambda_.33} parent=23 // pred_check_branch
        %157 = sbr.rel (%p155) target = $region28
      $region27: #{_lambda_.33} parent=23 // pred_region
        %s158 = smul.u32 8, %s10
        %p159 = scmp.lt.s32.totalorder %s158, 15
        %s160 = scalar_select %p159, %s158, 15
        %s161 = smul.addr %s160, 4
        %s162 = scalar_lea.vmem %s0, %s161
        %s163 = smul.u32 8, %s10
      $region28: #{_lambda_.33} parent=23 // pred_fallthru
        _
      // Predicated region
      $region29: #{_lambda_.33} parent=23 // pred_check
        %p164 = pneg %p98
      $region30: #{_lambda_.33} parent=23 // pred_check_branch
        %166 = sbr.rel (%p164) target = $region32
      $region31: #{_lambda_.33} parent=23 // pred_region
        %s167 = smul.u32 8, %s10
        %p168 = scmp.lt.s32.totalorder %s167, 15
        %s169 = scalar_select %p168, %s167, 15
        %s170 = smul.addr %s169, 4
        %s171 = scalar_lea.vmem %s3, %s170
        %s172 = smul.u32 8, %s10
      $region32: #{_lambda_.33} parent=23 // pred_fallthru
        _
    $region24: #{_lambda_.33} parent=5 // pred_fallthru
      _
    %p173 = scmp.le.s32.totalorder 1, %s10
    %p174 = scmp.lt.s32.totalorder %s10, 3
    %p175 = pnand %p173, %p174
    %p176 = pneg %p175
    // Predicated region
    $region33: #{_lambda_.33} parent=5 // pred_check
      _
    $region34: #{_lambda_.33} parent=5 // pred_check_branch
      %178 = sbr.rel (%p175) target = $region36
    $region35: #{_lambda_.33} parent=5 // pred_region
      %s179 = ssub.s32 %s10, 1
      %s180 = smul.u32 8, %s15
      %p181 = scmp.lt.s32.totalorder %s180, 15
      %s182 = scalar_select %p181, %s180, 15
      %s183 = smul.addr %s182, 4
      %s184 = scalar_lea.vmem %s0, %s183
      %p185 = pneg %p36
      %p186 = pneg %p33
      %p187 = pneg %p57
      %p188 = pneg %p54
      %p189 = pneg %p78
      %p190 = pneg %p75
      %s191 = smul.u32 8, %s15
      %p192 = scmp.lt.s32.totalorder %s191, 15
      %s193 = scalar_select %p192, %s191, 15
      %s194 = smul.addr %s193, 4
      %s195 = scalar_lea.vmem %s3, %s194
      %p196 = pneg %p104
      %p197 = pneg %p101
      %p198 = pneg %p130
      %p199 = pneg %p127
      %s200 = smul.u32 8, %s15
      %p201 = scmp.lt.s32.totalorder %s200, 15
      %s202 = scalar_select %p201, %s200, 15
      %s203 = smul.addr %s202, 4
      %s204 = scalar_lea.vmem %s4, %s203
      %s205 = smul.u32 8, %s15
      %p206 = scmp.lt.s32.totalorder %s205, 15
      %s207 = scalar_select %p206, %s205, 15
      %s208 = smul.addr %s207, 4
      %s209 = scalar_lea.vmem %s0, %s208
      %s210 = smul.u32 8, %s15
      %s211 = smul.u32 8, %s15
      %p212 = scmp.lt.s32.totalorder %s211, 15
      %s213 = scalar_select %p212, %s211, 15
      %s214 = smul.addr %s213, 4
      %s215 = scalar_lea.vmem %s3, %s214
      %s216 = smul.u32 8, %s15
      %s217 = smul.u32 8, %s15
      %p218 = scmp.lt.s32.totalorder %s217, 15
      %s219 = scalar_select %p218, %s217, 15
      %s220 = smul.addr %s219, 4
      %s221 = scalar_lea.vmem %s4, %s220
      %s222 = smul.u32 8, %s15
      %v223 = vld [vmem:[%s209] sm:$0xf]
      %v224 = vld [vmem:[%s209 + $0x4] sm:$0xf]
      %v225 = vld [vmem:[%s209 + $0x8] sm:$0xf]
      %v226 = vld [vmem:[%s209 + $0xc] sm:$0xf]
      %v227 = vld [vmem:[%s209 + $0x10] sm:$0xf]
      %v228 = vld [vmem:[%s209 + $0x14] sm:$0xf]
      %v229 = vld [vmem:[%s209 + $0x18] sm:$0xf]
      %v230 = vld [vmem:[%s209 + $0x1c] sm:$0xf]
      %v231 = vunpack.c.l.bf16 %v223
      %v232 = vunpack.c.l.bf16 %v224
      %v233 = vunpack.c.l.bf16 %v225
      %v234 = vunpack.c.l.bf16 %v226
      %v235 = vunpack.c.l.bf16 %v227
      %v236 = vunpack.c.l.bf16 %v228
      %v237 = vunpack.c.l.bf16 %v229
      %v238 = vunpack.c.l.bf16 %v230
      %v239 = vld [vmem:[%s1] sm:$0x1]
      %v241 = vperm.slane %v239, 0
      %v243 = vmul.f32 %v231, %v241
      %v244 = vmul.f32 %v232, %v241
      %v245 = vmul.f32 %v233, %v241
      %v246 = vmul.f32 %v234, %v241
      %v247 = vmul.f32 %v235, %v241
      %v248 = vmul.f32 %v236, %v241
      %v249 = vmul.f32 %v237, %v241
      %v250 = vmul.f32 %v238, %v241
      %v251 = vld [vmem:[%s2] sm:$0x1]
      %v253 = vperm.slane %v251, 0
      %v255 = vadd.f32 %v243, %v253
      %v256 = vadd.f32 %v244, %v253
      %v257 = vadd.f32 %v245, %v253
      %v258 = vadd.f32 %v246, %v253
      %v259 = vadd.f32 %v247, %v253
      %v260 = vadd.f32 %v248, %v253
      %v261 = vadd.f32 %v249, %v253
      %v262 = vadd.f32 %v250, %v253
      %v263 = vld [vmem:[%s215] sm:$0xf]
      %v264 = vld [vmem:[%s215 + $0x4] sm:$0xf]
      %v265 = vld [vmem:[%s215 + $0x8] sm:$0xf]
      %v266 = vld [vmem:[%s215 + $0xc] sm:$0xf]
      %v267 = vld [vmem:[%s215 + $0x10] sm:$0xf]
      %v268 = vld [vmem:[%s215 + $0x14] sm:$0xf]
      %v269 = vld [vmem:[%s215 + $0x18] sm:$0xf]
      %v270 = vld [vmem:[%s215 + $0x1c] sm:$0xf]
      %v271 = vunpack.c.l.bf16 %v263
      %v272 = vunpack.c.l.bf16 %v264
      %v273 = vunpack.c.l.bf16 %v265
      %v274 = vunpack.c.l.bf16 %v266
      %v275 = vunpack.c.l.bf16 %v267
      %v276 = vunpack.c.l.bf16 %v268
      %v277 = vunpack.c.l.bf16 %v269
      %v278 = vunpack.c.l.bf16 %v270
      %v279 = vadd.f32 %v255, %v271
      %v280 = vadd.f32 %v256, %v272
      %v281 = vadd.f32 %v257, %v273
      %v282 = vadd.f32 %v258, %v274
      %v283 = vadd.f32 %v259, %v275
      %v284 = vadd.f32 %v260, %v276
      %v285 = vadd.f32 %v261, %v277
      %v286 = vadd.f32 %v262, %v278
      %v287 = vmax.f32 %v279, 0.0
      %v288 = vmax.f32 %v280, 0.0
      %v289 = vmax.f32 %v281, 0.0
      %v290 = vmax.f32 %v282, 0.0
      %v291 = vmax.f32 %v283, 0.0
      %v292 = vmax.f32 %v284, 0.0
      %v293 = vmax.f32 %v285, 0.0
      %v294 = vmax.f32 %v286, 0.0
      %v295 = vpack.c.bf16 %v287, %v287
      %v296 = vpack.c.bf16 %v288, %v288
      %v297 = vpack.c.bf16 %v289, %v289
      %v298 = vpack.c.bf16 %v290, %v290
      %v299 = vpack.c.bf16 %v291, %v291
      %v300 = vpack.c.bf16 %v292, %v292
      %v301 = vpack.c.bf16 %v293, %v293
      %v302 = vpack.c.bf16 %v294, %v294
      %303 = vst [vmem:[%s221] sm:$0xf] %v295
      %304 = vst [vmem:[%s221 + $0x4] sm:$0xf] %v296
      %305 = vst [vmem:[%s221 + $0x8] sm:$0xf] %v297
      %306 = vst [vmem:[%s221 + $0xc] sm:$0xf] %v298
      %307 = vst [vmem:[%s221 + $0x10] sm:$0xf] %v299
      %308 = vst [vmem:[%s221 + $0x14] sm:$0xf] %v300
      %309 = vst [vmem:[%s221 + $0x18] sm:$0xf] %v301
      %310 = vst [vmem:[%s221 + $0x1c] sm:$0xf] %v302
      %s311 = smul.u32 8, %s15
      %p312 = scmp.lt.s32.totalorder %s311, 15
      %s313 = scalar_select %p312, %s311, 15
      %s314 = smul.addr %s313, 4
      %s315 = scalar_lea.vmem %s4, %s314
      // Predicated region
      $region37: #{_lambda_.33} parent=35 // pred_check
        %p316 = pneg %p127
      $region38: #{_lambda_.33} parent=35 // pred_check_branch
        %318 = sbr.rel (%p316) target = $region40
      $region39: #{_lambda_.33} parent=35 // pred_region
        %s319 = smul.u32 8, %s15
      $region40: #{_lambda_.33} parent=35 // pred_fallthru
        _
    $region36: #{_lambda_.33} parent=5 // pred_fallthru
      _
    %p320 = scmp.le.s32.totalorder 2, %s10
    // Predicated region
    $region41: #{_lambda_.33} parent=5 // pred_check
      %p321 = pneg %p320
    $region42: #{_lambda_.33} parent=5 // pred_check_branch
      %323 = sbr.rel (%p321) target = $region44
    $region43: #{_lambda_.33} parent=5 // pred_region
      %s324 = ssub.s32 %s10, 2
      // Predicated region
      $region45: #{_lambda_.33} parent=43 // pred_check
        %p325 = pneg %p133
      $region46: #{_lambda_.33} parent=43 // pred_check_branch
        %327 = sbr.rel (%p325) target = $region48
      $region47: #{_lambda_.33} parent=43 // pred_region
        %s328 = smul.u32 8, %s16
        %p329 = scmp.lt.s32.totalorder %s328, 15
        %s330 = scalar_select %p329, %s328, 15
        %s331 = smul.addr %s330, 4
        %s332 = scalar_lea.vmem %s4, %s331
      $region48: #{_lambda_.33} parent=43 // pred_fallthru
        _
    $region44: #{_lambda_.33} parent=5 // pred_fallthru
      _
  $region6: #{_lambda_.33} parent=0 // loop_footer
    %s14 = sadd.s32 1, %s10
  $region7: #{_lambda_.33} parent=0 // loop_footer_branch
    %9 = sbr.rel target = $region3
  $region8: #{_lambda_.33} parent=0 // loop_exit
    _

</llo_original>
